<compile_context>
chip_gen: v6e
topology: v6e:2x2x1
jax: 0.10.0
libtpu: 0.0.40
codegen_flags: <defaults>
</compile_context>

<pallas_src>
import functools

import jax
import jax.numpy as jnp
from jax.experimental import pallas as pl
from jax.experimental.pallas import tpu as pltpu

_BN_EPS = 1e-5


# ---------------------------------------------------------------------------
# Fused Pallas kernel
# ---------------------------------------------------------------------------
def _residual_conv_kernel(x_ref, mask_ref,
                          w1_ref, b1_ref, g1_ref, be1_ref,
                          g2_ref, be2_ref, w2_ref, b2_ref,
                          ws_ref, bs_ref, g3_ref, be3_ref,
                          o_ref, *, img_w):
    """Whole ResidualConv forward on a (C, N*H*W) lane-flattened layout."""
    x = x_ref[...]          # (Cin, L) float32
    masks = mask_ref[...]   # (9, L)   float32 0/1 zero-padding masks per tap

    # Flat lane shift for tap (kh, kw): dy*W + dx. Wrap-around reads (row /
    # batch-boundary crossings) are exactly the positions zeroed by the mask.
    shifts = [(kh - 1) * img_w + (kw - 1) for kh in range(3) for kw in range(3)]

    def lane_shift(v, s):
        # out[..., l] = v[..., (l + s) mod L]  (explicit, sign-unambiguous roll)
        l = v.shape[-1]
        s = s % l
        if s == 0:
            return v
        return jnp.concatenate([v[:, s:], v[:, :s]], axis=-1)

    def conv3x3_same(a, w_rows, b_col):
        # a: (C, L); w_rows: (9*C, Co) with row (kh*3+kw)*C + ci; b_col: (Co, 1)
        c, l = a.shape
        co = w_rows.shape[-1]
        acc = jnp.zeros((co, l), jnp.float32) + b_col
        for t, s in enumerate(shifts):
            shifted = lane_shift(a, s) * masks[t][None, :]       # (C, L)
            for ci in range(c):
                # (Co,1) * (1,L) outer-product tap, accumulated on the VPU.
                acc = acc + w_rows[t * c + ci][:, None] * shifted[ci][None, :]
        return acc

    def bn_fold(v, gamma, beta):
        # Training-mode BN over (N,H,W) == the lane axis; biased variance.
        mean = jnp.mean(v, axis=-1, keepdims=True)
        var = jnp.mean(jnp.square(v - mean), axis=-1, keepdims=True)
        scale = gamma * jax.lax.rsqrt(var + _BN_EPS)
        return scale, beta - mean * scale

    # conv_block: BN -> ReLU -> conv1 -> BN -> ReLU -> conv2
    s1, t1 = bn_fold(x, g1_ref[...], be1_ref[...])
    a1 = jnp.maximum(x * s1 + t1, 0.0)
    y1 = conv3x3_same(a1, w1_ref[...], b1_ref[...])

    s2, t2 = bn_fold(y1, g2_ref[...], be2_ref[...])
    a2 = jnp.maximum(y1 * s2 + t2, 0.0)
    y2 = conv3x3_same(a2, w2_ref[...], b2_ref[...])

    # conv_skip: conv -> BN, fused with the residual add as the epilogue.
    ys = conv3x3_same(x, ws_ref[...], bs_ref[...])
    s3, t3 = bn_fold(ys, g3_ref[...], be3_ref[...])

    o_ref[...] = y2 + ys * s3 + t3        # (Cout, L): lane-dense store


# ---------------------------------------------------------------------------
# Wrapper
# ---------------------------------------------------------------------------
def _tap_masks(n, h, w):
    """(9, N*H*W) 0/1 masks emulating zero padding=1 for each 3x3 tap."""
    yy = jnp.arange(h, dtype=jnp.int32).reshape(h, 1)
    xx = jnp.arange(w, dtype=jnp.int32).reshape(1, w)
    rows = []
    for kh in range(3):
        for kw in range(3):
            dy, dx = kh - 1, kw - 1
            valid = ((yy + dy >= 0) & (yy + dy < h) &
                     (xx + dx >= 0) & (xx + dx < w))              # (H, W)
            m = jnp.broadcast_to(valid[None], (n, h, w)).reshape(n * h * w)
            rows.append(m.astype(jnp.float32))
    return jnp.stack(rows, axis=0)


@functools.partial(jax.jit, static_argnames=("stride", "padding"))
def residual_conv_forward(x_nchw, params, stride, padding):
    if stride != 1 or padding != 1:
        # TODO(synk): general stride/padding fused path (decimate taps in-kernel
        # and pre-shift masks); current fast path covers the stride=1/padding=1
        # configuration used by the reference instantiation.
        raise NotImplementedError(
            "fused ResidualConv kernel supports stride=1, padding=1")

    n, cin, h, w = x_nchw.shape
    cout = params["w1"].shape[-1]
    l = n * h * w

    # Lane-dense layout: channels -> sublanes, flattened (N,H,W) -> lanes.
    x_flat = jnp.transpose(x_nchw.astype(jnp.float32), (1, 0, 2, 3)).reshape(cin, l)
    masks = _tap_masks(n, h, w)

    # Weights HWIO -> (9*Cin, Cout) rows ordered (kh, kw, ci), matching the kernel.
    w1r = params["w1"].astype(jnp.float32).reshape(9 * cin, cout)
    w2r = params["w2"].astype(jnp.float32).reshape(9 * cout, cout)
    wsr = params["ws"].astype(jnp.float32).reshape(9 * cin, cout)
    col = lambda v: v.astype(jnp.float32).reshape(-1, 1)

    vmem = pl.BlockSpec(memory_space=pltpu.MemorySpace.VMEM)
    out_flat = pl.pallas_call(
        functools.partial(_residual_conv_kernel, img_w=w),
        out_shape=jax.ShapeDtypeStruct((cout, l), jnp.float32),
        in_specs=[vmem] * 14,
        out_specs=vmem,
    )(x_flat, masks,
      w1r, col(params["b1"]), col(params["bn1_gamma"]), col(params["bn1_beta"]),
      col(params["bn2_gamma"]), col(params["bn2_beta"]), w2r, col(params["b2"]),
      wsr, col(params["bs"]), col(params["bn3_gamma"]), col(params["bn3_beta"]))

    # (Cout, N*H*W) -> NCHW (layout plumbing only).
    return out_flat.reshape(cout, n, h, w).transpose(1, 0, 2, 3)


# ---------------------------------------------------------------------------
# Pure-JAX reference (mirrors PyTorch training-mode forward) for verification
# ---------------------------------------------------------------------------
def _reference(x_nchw, params, stride, padding, eps=_BN_EPS):
    def bn(x, g, b):
        mean = jnp.mean(x, axis=(0, 2, 3), keepdims=True)
        var = jnp.mean((x - mean) ** 2, axis=(0, 2, 3), keepdims=True)
        return ((x - mean) * jax.lax.rsqrt(var + eps) * g.reshape(1, -1, 1, 1)
                + b.reshape(1, -1, 1, 1))

    def conv(x, w_hwio, b, s, p):
        w_oihw = jnp.transpose(w_hwio, (3, 2, 0, 1))
        y = jax.lax.conv_general_dilated(
            x, w_oihw, (s, s), [(p, p), (p, p)],
            dimension_numbers=("NCHW", "OIHW", "NCHW"),
            precision=jax.lax.Precision.HIGHEST)
        return y + b.reshape(1, -1, 1, 1)

    h = jnp.maximum(bn(x_nchw, params["bn1_gamma"], params["bn1_beta"]), 0.0)
    h = conv(h, params["w1"], params["b1"], stride, padding)
    h = jnp.maximum(bn(h, params["bn2_gamma"], params["bn2_beta"]), 0.0)
    h = conv(h, params["w2"], params["b2"], 1, 1)
    s_ = conv(x_nchw, params["ws"], params["bs"], stride, 1)
    s_ = bn(s_, params["bn3_gamma"], params["bn3_beta"])
    return h + s_


# ---------------------------------------------------------------------------
# Main
# ---------------------------------------------------------------------------
if __name__ == "__main__":
    input_dim, output_dim, stride, padding = 4, 8, 1, 1
    N, H, W = 2, 16, 16

    key = jax.random.PRNGKey(0)
    ks = jax.random.split(key, 12)
    params = {
        "bn1_gamma": 1.0 + 0.1 * jax.random.normal(ks[0], (input_dim,), jnp.float32),
        "bn1_beta": 0.1 * jax.random.normal(ks[1], (input_dim,), jnp.float32),
        "w1": 0.2 * jax.random.normal(ks[2], (3, 3, input_dim, output_dim), jnp.float32),
        "b1": 0.1 * jax.random.normal(ks[3], (output_dim,), jnp.float32),
        "bn2_gamma": 1.0 + 0.1 * jax.random.normal(ks[4], (output_dim,), jnp.float32),
        "bn2_beta": 0.1 * jax.random.normal(ks[5], (output_dim,), jnp.float32),
        "w2": 0.2 * jax.random.normal(ks[6], (3, 3, output_dim, output_dim), jnp.float32),
        "b2": 0.1 * jax.random.normal(ks[7], (output_dim,), jnp.float32),
        "ws": 0.2 * jax.random.normal(ks[8], (3, 3, input_dim, output_dim), jnp.float32),
        "bs": 0.1 * jax.random.normal(ks[9], (output_dim,), jnp.float32),
        "bn3_gamma": 1.0 + 0.1 * jax.random.normal(ks[10], (output_dim,), jnp.float32),
        "bn3_beta": 0.1 * jax.random.normal(ks[11], (output_dim,), jnp.float32),
    }
    x = jax.random.normal(jax.random.PRNGKey(42), (N, input_dim, H, W), jnp.float32)

    out = residual_conv_forward(x, params, stride, padding)
    out = jax.block_until_ready(out)

    ref = jax.block_until_ready(_reference(x, params, stride, padding))
    assert out.shape == ref.shape, (out.shape, ref.shape)
    err = float(jnp.max(jnp.abs(out - ref)))
    assert err < 1e-3, f"max abs error too large: {err}"

    print("KERNEL_OK")
</pallas_src>

<mosaic_0001>
module attributes {stable_mosaic.version = 11 : i64} {
  func.func @_residual_conv_kernel(%arg0: memref<4x512xf32, #tpu.memory_space<vmem>>, %arg1: memref<9x512xf32, #tpu.memory_space<vmem>>, %arg2: memref<36x8xf32, #tpu.memory_space<vmem>>, %arg3: memref<8x1xf32, #tpu.memory_space<vmem>>, %arg4: memref<4x1xf32, #tpu.memory_space<vmem>>, %arg5: memref<4x1xf32, #tpu.memory_space<vmem>>, %arg6: memref<8x1xf32, #tpu.memory_space<vmem>>, %arg7: memref<8x1xf32, #tpu.memory_space<vmem>>, %arg8: memref<72x8xf32, #tpu.memory_space<vmem>>, %arg9: memref<8x1xf32, #tpu.memory_space<vmem>>, %arg10: memref<36x8xf32, #tpu.memory_space<vmem>>, %arg11: memref<8x1xf32, #tpu.memory_space<vmem>>, %arg12: memref<8x1xf32, #tpu.memory_space<vmem>>, %arg13: memref<8x1xf32, #tpu.memory_space<vmem>>, %arg14: memref<8x512xf32, #tpu.memory_space<vmem>>) attributes {dimension_semantics = [], scalar_prefetch = 0 : i64, scratch_operands = 0 : i64, tpu.core_type = #tpu.core_type<tc>} {
    %c0 = arith.constant 0 : index
    %c0_0 = arith.constant 0 : index
    %0 = vector.load %arg0[%c0, %c0_0] : memref<4x512xf32, #tpu.memory_space<vmem>>, vector<4x512xf32>
    %c0_1 = arith.constant 0 : index
    %c0_2 = arith.constant 0 : index
    %1 = vector.load %arg1[%c0_1, %c0_2] : memref<9x512xf32, #tpu.memory_space<vmem>>, vector<9x512xf32>
    %c0_3 = arith.constant 0 : index
    %c0_4 = arith.constant 0 : index
    %2 = vector.load %arg4[%c0_3, %c0_4] : memref<4x1xf32, #tpu.memory_space<vmem>>, vector<4x1xf32>
    %c0_5 = arith.constant 0 : index
    %c0_6 = arith.constant 0 : index
    %3 = vector.load %arg5[%c0_5, %c0_6] : memref<4x1xf32, #tpu.memory_space<vmem>>, vector<4x1xf32>
    %cst = arith.constant dense<0.000000e+00> : vector<4xf32>
    %4 = vector.multi_reduction <add>, %0, %cst [1] : vector<4x512xf32> to vector<4xf32>
    %5 = vector.shape_cast %4 : vector<4xf32> to vector<4x1xf32>
    %cst_7 = arith.constant 5.120000e+02 : f32
    %6 = vector.broadcast %cst_7 : f32 to vector<4x1xf32>
    %7 = arith.divf %5, %6 : vector<4x1xf32>
    %8 = vector.broadcast %7 : vector<4x1xf32> to vector<4x512xf32>
    %9 = arith.subf %0, %8 : vector<4x512xf32>
    %10 = arith.mulf %9, %9 : vector<4x512xf32>
    %cst_8 = arith.constant dense<0.000000e+00> : vector<4xf32>
    %11 = vector.multi_reduction <add>, %10, %cst_8 [1] : vector<4x512xf32> to vector<4xf32>
    %12 = vector.shape_cast %11 : vector<4xf32> to vector<4x1xf32>
    %cst_9 = arith.constant 5.120000e+02 : f32
    %13 = vector.broadcast %cst_9 : f32 to vector<4x1xf32>
    %14 = arith.divf %12, %13 : vector<4x1xf32>
    %cst_10 = arith.constant 9.99999974E-6 : f32
    %15 = vector.broadcast %cst_10 : f32 to vector<4x1xf32>
    %16 = arith.addf %14, %15 : vector<4x1xf32>
    %17 = math.rsqrt %16 : vector<4x1xf32>
    %18 = arith.mulf %2, %17 : vector<4x1xf32>
    %19 = arith.mulf %7, %18 : vector<4x1xf32>
    %20 = arith.subf %3, %19 : vector<4x1xf32>
    %21 = vector.broadcast %18 : vector<4x1xf32> to vector<4x512xf32>
    %22 = arith.mulf %0, %21 : vector<4x512xf32>
    %23 = vector.broadcast %20 : vector<4x1xf32> to vector<4x512xf32>
    %24 = arith.addf %22, %23 : vector<4x512xf32>
    %cst_11 = arith.constant 0.000000e+00 : f32
    %25 = vector.broadcast %cst_11 : f32 to vector<4x512xf32>
    %26 = arith.maximumf %24, %25 : vector<4x512xf32>
    %c0_12 = arith.constant 0 : index
    %c0_13 = arith.constant 0 : index
    %27 = vector.load %arg2[%c0_12, %c0_13] : memref<36x8xf32, #tpu.memory_space<vmem>>, vector<36x8xf32>
    %c0_14 = arith.constant 0 : index
    %c0_15 = arith.constant 0 : index
    %28 = vector.load %arg3[%c0_14, %c0_15] : memref<8x1xf32, #tpu.memory_space<vmem>>, vector<8x1xf32>
    %cst_16 = arith.constant 0.000000e+00 : f32
    %29 = vector.broadcast %cst_16 : f32 to vector<8x512xf32>
    %30 = vector.broadcast %28 : vector<8x1xf32> to vector<8x512xf32>
    %31 = arith.addf %29, %30 : vector<8x512xf32>
    %32 = vector.extract_strided_slice %26 {offsets = [0, 495], sizes = [4, 17], strides = [1, 1]} : vector<4x512xf32> to vector<4x17xf32>
    %33 = vector.extract_strided_slice %26 {offsets = [0, 0], sizes = [4, 495], strides = [1, 1]} : vector<4x512xf32> to vector<4x495xf32>
    %34 = tpu.concatenate %32, %33 in 1 : vector<4x17xf32>, vector<4x495xf32> -> vector<4x512xf32>
    %35 = vector.extract_strided_slice %1 {offsets = [0, 0], sizes = [1, 512], strides = [1, 1]} : vector<9x512xf32> to vector<1x512xf32>
    %36 = vector.shape_cast %35 : vector<1x512xf32> to vector<512xf32>
    %37 = vector.shape_cast %36 : vector<512xf32> to vector<1x512xf32>
    %38 = vector.broadcast %37 : vector<1x512xf32> to vector<4x512xf32>
    %39 = arith.mulf %34, %38 : vector<4x512xf32>
    %40 = vector.extract_strided_slice %27 {offsets = [0, 0], sizes = [1, 8], strides = [1, 1]} : vector<36x8xf32> to vector<1x8xf32>
    %41 = vector.shape_cast %40 : vector<1x8xf32> to vector<8xf32>
    %42 = vector.shape_cast %41 : vector<8xf32> to vector<8x1xf32>
    %43 = vector.extract_strided_slice %39 {offsets = [0, 0], sizes = [1, 512], strides = [1, 1]} : vector<4x512xf32> to vector<1x512xf32>
    %44 = vector.shape_cast %43 : vector<1x512xf32> to vector<512xf32>
    %45 = vector.shape_cast %44 : vector<512xf32> to vector<1x512xf32>
    %46 = vector.broadcast %42 : vector<8x1xf32> to vector<8x512xf32>
    %47 = vector.broadcast %45 : vector<1x512xf32> to vector<8x512xf32>
    %48 = arith.mulf %46, %47 : vector<8x512xf32>
    %49 = arith.addf %31, %48 : vector<8x512xf32>
    %50 = vector.extract_strided_slice %27 {offsets = [1, 0], sizes = [1, 8], strides = [1, 1]} : vector<36x8xf32> to vector<1x8xf32>
    %51 = vector.shape_cast %50 : vector<1x8xf32> to vector<8xf32>
    %52 = vector.shape_cast %51 : vector<8xf32> to vector<8x1xf32>
    %53 = vector.extract_strided_slice %39 {offsets = [1, 0], sizes = [1, 512], strides = [1, 1]} : vector<4x512xf32> to vector<1x512xf32>
    %54 = vector.shape_cast %53 : vector<1x512xf32> to vector<512xf32>
    %55 = vector.shape_cast %54 : vector<512xf32> to vector<1x512xf32>
    %56 = vector.broadcast %52 : vector<8x1xf32> to vector<8x512xf32>
    %57 = vector.broadcast %55 : vector<1x512xf32> to vector<8x512xf32>
    %58 = arith.mulf %56, %57 : vector<8x512xf32>
    %59 = arith.addf %49, %58 : vector<8x512xf32>
    %60 = vector.extract_strided_slice %27 {offsets = [2, 0], sizes = [1, 8], strides = [1, 1]} : vector<36x8xf32> to vector<1x8xf32>
    %61 = vector.shape_cast %60 : vector<1x8xf32> to vector<8xf32>
    %62 = vector.shape_cast %61 : vector<8xf32> to vector<8x1xf32>
    %63 = vector.extract_strided_slice %39 {offsets = [2, 0], sizes = [1, 512], strides = [1, 1]} : vector<4x512xf32> to vector<1x512xf32>
    %64 = vector.shape_cast %63 : vector<1x512xf32> to vector<512xf32>
    %65 = vector.shape_cast %64 : vector<512xf32> to vector<1x512xf32>
    %66 = vector.broadcast %62 : vector<8x1xf32> to vector<8x512xf32>
    %67 = vector.broadcast %65 : vector<1x512xf32> to vector<8x512xf32>
    %68 = arith.mulf %66, %67 : vector<8x512xf32>
    %69 = arith.addf %59, %68 : vector<8x512xf32>
    %70 = vector.extract_strided_slice %27 {offsets = [3, 0], sizes = [1, 8], strides = [1, 1]} : vector<36x8xf32> to vector<1x8xf32>
    %71 = vector.shape_cast %70 : vector<1x8xf32> to vector<8xf32>
    %72 = vector.shape_cast %71 : vector<8xf32> to vector<8x1xf32>
    %73 = vector.extract_strided_slice %39 {offsets = [3, 0], sizes = [1, 512], strides = [1, 1]} : vector<4x512xf32> to vector<1x512xf32>
    %74 = vector.shape_cast %73 : vector<1x512xf32> to vector<512xf32>
    %75 = vector.shape_cast %74 : vector<512xf32> to vector<1x512xf32>
    %76 = vector.broadcast %72 : vector<8x1xf32> to vector<8x512xf32>
    %77 = vector.broadcast %75 : vector<1x512xf32> to vector<8x512xf32>
    %78 = arith.mulf %76, %77 : vector<8x512xf32>
    %79 = arith.addf %69, %78 : vector<8x512xf32>
    %80 = vector.extract_strided_slice %26 {offsets = [0, 496], sizes = [4, 16], strides = [1, 1]} : vector<4x512xf32> to vector<4x16xf32>
    %81 = vector.extract_strided_slice %26 {offsets = [0, 0], sizes = [4, 496], strides = [1, 1]} : vector<4x512xf32> to vector<4x496xf32>
    %82 = tpu.concatenate %80, %81 in 1 : vector<4x16xf32>, vector<4x496xf32> -> vector<4x512xf32>
    %83 = vector.extract_strided_slice %1 {offsets = [1, 0], sizes = [1, 512], strides = [1, 1]} : vector<9x512xf32> to vector<1x512xf32>
    %84 = vector.shape_cast %83 : vector<1x512xf32> to vector<512xf32>
    %85 = vector.shape_cast %84 : vector<512xf32> to vector<1x512xf32>
    %86 = vector.broadcast %85 : vector<1x512xf32> to vector<4x512xf32>
    %87 = arith.mulf %82, %86 : vector<4x512xf32>
    %88 = vector.extract_strided_slice %27 {offsets = [4, 0], sizes = [1, 8], strides = [1, 1]} : vector<36x8xf32> to vector<1x8xf32>
    %89 = vector.shape_cast %88 : vector<1x8xf32> to vector<8xf32>
    %90 = vector.shape_cast %89 : vector<8xf32> to vector<8x1xf32>
    %91 = vector.extract_strided_slice %87 {offsets = [0, 0], sizes = [1, 512], strides = [1, 1]} : vector<4x512xf32> to vector<1x512xf32>
    %92 = vector.shape_cast %91 : vector<1x512xf32> to vector<512xf32>
    %93 = vector.shape_cast %92 : vector<512xf32> to vector<1x512xf32>
    %94 = vector.broadcast %90 : vector<8x1xf32> to vector<8x512xf32>
    %95 = vector.broadcast %93 : vector<1x512xf32> to vector<8x512xf32>
    %96 = arith.mulf %94, %95 : vector<8x512xf32>
    %97 = arith.addf %79, %96 : vector<8x512xf32>
    %98 = vector.extract_strided_slice %27 {offsets = [5, 0], sizes = [1, 8], strides = [1, 1]} : vector<36x8xf32> to vector<1x8xf32>
    %99 = vector.shape_cast %98 : vector<1x8xf32> to vector<8xf32>
    %100 = vector.shape_cast %99 : vector<8xf32> to vector<8x1xf32>
    %101 = vector.extract_strided_slice %87 {offsets = [1, 0], sizes = [1, 512], strides = [1, 1]} : vector<4x512xf32> to vector<1x512xf32>
    %102 = vector.shape_cast %101 : vector<1x512xf32> to vector<512xf32>
    %103 = vector.shape_cast %102 : vector<512xf32> to vector<1x512xf32>
    %104 = vector.broadcast %100 : vector<8x1xf32> to vector<8x512xf32>
    %105 = vector.broadcast %103 : vector<1x512xf32> to vector<8x512xf32>
    %106 = arith.mulf %104, %105 : vector<8x512xf32>
    %107 = arith.addf %97, %106 : vector<8x512xf32>
    %108 = vector.extract_strided_slice %27 {offsets = [6, 0], sizes = [1, 8], strides = [1, 1]} : vector<36x8xf32> to vector<1x8xf32>
    %109 = vector.shape_cast %108 : vector<1x8xf32> to vector<8xf32>
    %110 = vector.shape_cast %109 : vector<8xf32> to vector<8x1xf32>
    %111 = vector.extract_strided_slice %87 {offsets = [2, 0], sizes = [1, 512], strides = [1, 1]} : vector<4x512xf32> to vector<1x512xf32>
    %112 = vector.shape_cast %111 : vector<1x512xf32> to vector<512xf32>
    %113 = vector.shape_cast %112 : vector<512xf32> to vector<1x512xf32>
    %114 = vector.broadcast %110 : vector<8x1xf32> to vector<8x512xf32>
    %115 = vector.broadcast %113 : vector<1x512xf32> to vector<8x512xf32>
    %116 = arith.mulf %114, %115 : vector<8x512xf32>
    %117 = arith.addf %107, %116 : vector<8x512xf32>
    %118 = vector.extract_strided_slice %27 {offsets = [7, 0], sizes = [1, 8], strides = [1, 1]} : vector<36x8xf32> to vector<1x8xf32>
    %119 = vector.shape_cast %118 : vector<1x8xf32> to vector<8xf32>
    %120 = vector.shape_cast %119 : vector<8xf32> to vector<8x1xf32>
    %121 = vector.extract_strided_slice %87 {offsets = [3, 0], sizes = [1, 512], strides = [1, 1]} : vector<4x512xf32> to vector<1x512xf32>
    %122 = vector.shape_cast %121 : vector<1x512xf32> to vector<512xf32>
    %123 = vector.shape_cast %122 : vector<512xf32> to vector<1x512xf32>
    %124 = vector.broadcast %120 : vector<8x1xf32> to vector<8x512xf32>
    %125 = vector.broadcast %123 : vector<1x512xf32> to vector<8x512xf32>
    %126 = arith.mulf %124, %125 : vector<8x512xf32>
    %127 = arith.addf %117, %126 : vector<8x512xf32>
    %128 = vector.extract_strided_slice %26 {offsets = [0, 497], sizes = [4, 15], strides = [1, 1]} : vector<4x512xf32> to vector<4x15xf32>
    %129 = vector.extract_strided_slice %26 {offsets = [0, 0], sizes = [4, 497], strides = [1, 1]} : vector<4x512xf32> to vector<4x497xf32>
    %130 = tpu.concatenate %128, %129 in 1 : vector<4x15xf32>, vector<4x497xf32> -> vector<4x512xf32>
    %131 = vector.extract_strided_slice %1 {offsets = [2, 0], sizes = [1, 512], strides = [1, 1]} : vector<9x512xf32> to vector<1x512xf32>
    %132 = vector.shape_cast %131 : vector<1x512xf32> to vector<512xf32>
    %133 = vector.shape_cast %132 : vector<512xf32> to vector<1x512xf32>
    %134 = vector.broadcast %133 : vector<1x512xf32> to vector<4x512xf32>
    %135 = arith.mulf %130, %134 : vector<4x512xf32>
    %136 = vector.extract_strided_slice %27 {offsets = [8, 0], sizes = [1, 8], strides = [1, 1]} : vector<36x8xf32> to vector<1x8xf32>
    %137 = vector.shape_cast %136 : vector<1x8xf32> to vector<8xf32>
    %138 = vector.shape_cast %137 : vector<8xf32> to vector<8x1xf32>
    %139 = vector.extract_strided_slice %135 {offsets = [0, 0], sizes = [1, 512], strides = [1, 1]} : vector<4x512xf32> to vector<1x512xf32>
    %140 = vector.shape_cast %139 : vector<1x512xf32> to vector<512xf32>
    %141 = vector.shape_cast %140 : vector<512xf32> to vector<1x512xf32>
    %142 = vector.broadcast %138 : vector<8x1xf32> to vector<8x512xf32>
    %143 = vector.broadcast %141 : vector<1x512xf32> to vector<8x512xf32>
    %144 = arith.mulf %142, %143 : vector<8x512xf32>
    %145 = arith.addf %127, %144 : vector<8x512xf32>
    %146 = vector.extract_strided_slice %27 {offsets = [9, 0], sizes = [1, 8], strides = [1, 1]} : vector<36x8xf32> to vector<1x8xf32>
    %147 = vector.shape_cast %146 : vector<1x8xf32> to vector<8xf32>
    %148 = vector.shape_cast %147 : vector<8xf32> to vector<8x1xf32>
    %149 = vector.extract_strided_slice %135 {offsets = [1, 0], sizes = [1, 512], strides = [1, 1]} : vector<4x512xf32> to vector<1x512xf32>
    %150 = vector.shape_cast %149 : vector<1x512xf32> to vector<512xf32>
    %151 = vector.shape_cast %150 : vector<512xf32> to vector<1x512xf32>
    %152 = vector.broadcast %148 : vector<8x1xf32> to vector<8x512xf32>
    %153 = vector.broadcast %151 : vector<1x512xf32> to vector<8x512xf32>
    %154 = arith.mulf %152, %153 : vector<8x512xf32>
    %155 = arith.addf %145, %154 : vector<8x512xf32>
    %156 = vector.extract_strided_slice %27 {offsets = [10, 0], sizes = [1, 8], strides = [1, 1]} : vector<36x8xf32> to vector<1x8xf32>
    %157 = vector.shape_cast %156 : vector<1x8xf32> to vector<8xf32>
    %158 = vector.shape_cast %157 : vector<8xf32> to vector<8x1xf32>
    %159 = vector.extract_strided_slice %135 {offsets = [2, 0], sizes = [1, 512], strides = [1, 1]} : vector<4x512xf32> to vector<1x512xf32>
    %160 = vector.shape_cast %159 : vector<1x512xf32> to vector<512xf32>
    %161 = vector.shape_cast %160 : vector<512xf32> to vector<1x512xf32>
    %162 = vector.broadcast %158 : vector<8x1xf32> to vector<8x512xf32>
    %163 = vector.broadcast %161 : vector<1x512xf32> to vector<8x512xf32>
    %164 = arith.mulf %162, %163 : vector<8x512xf32>
    %165 = arith.addf %155, %164 : vector<8x512xf32>
    %166 = vector.extract_strided_slice %27 {offsets = [11, 0], sizes = [1, 8], strides = [1, 1]} : vector<36x8xf32> to vector<1x8xf32>
    %167 = vector.shape_cast %166 : vector<1x8xf32> to vector<8xf32>
    %168 = vector.shape_cast %167 : vector<8xf32> to vector<8x1xf32>
    %169 = vector.extract_strided_slice %135 {offsets = [3, 0], sizes = [1, 512], strides = [1, 1]} : vector<4x512xf32> to vector<1x512xf32>
    %170 = vector.shape_cast %169 : vector<1x512xf32> to vector<512xf32>
    %171 = vector.shape_cast %170 : vector<512xf32> to vector<1x512xf32>
    %172 = vector.broadcast %168 : vector<8x1xf32> to vector<8x512xf32>
    %173 = vector.broadcast %171 : vector<1x512xf32> to vector<8x512xf32>
    %174 = arith.mulf %172, %173 : vector<8x512xf32>
    %175 = arith.addf %165, %174 : vector<8x512xf32>
    %176 = vector.extract_strided_slice %26 {offsets = [0, 511], sizes = [4, 1], strides = [1, 1]} : vector<4x512xf32> to vector<4x1xf32>
    %177 = vector.extract_strided_slice %26 {offsets = [0, 0], sizes = [4, 511], strides = [1, 1]} : vector<4x512xf32> to vector<4x511xf32>
    %178 = tpu.concatenate %176, %177 in 1 : vector<4x1xf32>, vector<4x511xf32> -> vector<4x512xf32>
    %179 = vector.extract_strided_slice %1 {offsets = [3, 0], sizes = [1, 512], strides = [1, 1]} : vector<9x512xf32> to vector<1x512xf32>
    %180 = vector.shape_cast %179 : vector<1x512xf32> to vector<512xf32>
    %181 = vector.shape_cast %180 : vector<512xf32> to vector<1x512xf32>
    %182 = vector.broadcast %181 : vector<1x512xf32> to vector<4x512xf32>
    %183 = arith.mulf %178, %182 : vector<4x512xf32>
    %184 = vector.extract_strided_slice %27 {offsets = [12, 0], sizes = [1, 8], strides = [1, 1]} : vector<36x8xf32> to vector<1x8xf32>
    %185 = vector.shape_cast %184 : vector<1x8xf32> to vector<8xf32>
    %186 = vector.shape_cast %185 : vector<8xf32> to vector<8x1xf32>
    %187 = vector.extract_strided_slice %183 {offsets = [0, 0], sizes = [1, 512], strides = [1, 1]} : vector<4x512xf32> to vector<1x512xf32>
    %188 = vector.shape_cast %187 : vector<1x512xf32> to vector<512xf32>
    %189 = vector.shape_cast %188 : vector<512xf32> to vector<1x512xf32>
    %190 = vector.broadcast %186 : vector<8x1xf32> to vector<8x512xf32>
    %191 = vector.broadcast %189 : vector<1x512xf32> to vector<8x512xf32>
    %192 = arith.mulf %190, %191 : vector<8x512xf32>
    %193 = arith.addf %175, %192 : vector<8x512xf32>
    %194 = vector.extract_strided_slice %27 {offsets = [13, 0], sizes = [1, 8], strides = [1, 1]} : vector<36x8xf32> to vector<1x8xf32>
    %195 = vector.shape_cast %194 : vector<1x8xf32> to vector<8xf32>
    %196 = vector.shape_cast %195 : vector<8xf32> to vector<8x1xf32>
    %197 = vector.extract_strided_slice %183 {offsets = [1, 0], sizes = [1, 512], strides = [1, 1]} : vector<4x512xf32> to vector<1x512xf32>
    %198 = vector.shape_cast %197 : vector<1x512xf32> to vector<512xf32>
    %199 = vector.shape_cast %198 : vector<512xf32> to vector<1x512xf32>
    %200 = vector.broadcast %196 : vector<8x1xf32> to vector<8x512xf32>
    %201 = vector.broadcast %199 : vector<1x512xf32> to vector<8x512xf32>
    %202 = arith.mulf %200, %201 : vector<8x512xf32>
    %203 = arith.addf %193, %202 : vector<8x512xf32>
    %204 = vector.extract_strided_slice %27 {offsets = [14, 0], sizes = [1, 8], strides = [1, 1]} : vector<36x8xf32> to vector<1x8xf32>
    %205 = vector.shape_cast %204 : vector<1x8xf32> to vector<8xf32>
    %206 = vector.shape_cast %205 : vector<8xf32> to vector<8x1xf32>
    %207 = vector.extract_strided_slice %183 {offsets = [2, 0], sizes = [1, 512], strides = [1, 1]} : vector<4x512xf32> to vector<1x512xf32>
    %208 = vector.shape_cast %207 : vector<1x512xf32> to vector<512xf32>
    %209 = vector.shape_cast %208 : vector<512xf32> to vector<1x512xf32>
    %210 = vector.broadcast %206 : vector<8x1xf32> to vector<8x512xf32>
    %211 = vector.broadcast %209 : vector<1x512xf32> to vector<8x512xf32>
    %212 = arith.mulf %210, %211 : vector<8x512xf32>
    %213 = arith.addf %203, %212 : vector<8x512xf32>
    %214 = vector.extract_strided_slice %27 {offsets = [15, 0], sizes = [1, 8], strides = [1, 1]} : vector<36x8xf32> to vector<1x8xf32>
    %215 = vector.shape_cast %214 : vector<1x8xf32> to vector<8xf32>
    %216 = vector.shape_cast %215 : vector<8xf32> to vector<8x1xf32>
    %217 = vector.extract_strided_slice %183 {offsets = [3, 0], sizes = [1, 512], strides = [1, 1]} : vector<4x512xf32> to vector<1x512xf32>
    %218 = vector.shape_cast %217 : vector<1x512xf32> to vector<512xf32>
    %219 = vector.shape_cast %218 : vector<512xf32> to vector<1x512xf32>
    %220 = vector.broadcast %216 : vector<8x1xf32> to vector<8x512xf32>
    %221 = vector.broadcast %219 : vector<1x512xf32> to vector<8x512xf32>
    %222 = arith.mulf %220, %221 : vector<8x512xf32>
    %223 = arith.addf %213, %222 : vector<8x512xf32>
    %224 = vector.extract_strided_slice %1 {offsets = [4, 0], sizes = [1, 512], strides = [1, 1]} : vector<9x512xf32> to vector<1x512xf32>
    %225 = vector.shape_cast %224 : vector<1x512xf32> to vector<512xf32>
    %226 = vector.shape_cast %225 : vector<512xf32> to vector<1x512xf32>
    %227 = vector.broadcast %226 : vector<1x512xf32> to vector<4x512xf32>
    %228 = arith.mulf %26, %227 : vector<4x512xf32>
    %229 = vector.extract_strided_slice %27 {offsets = [16, 0], sizes = [1, 8], strides = [1, 1]} : vector<36x8xf32> to vector<1x8xf32>
    %230 = vector.shape_cast %229 : vector<1x8xf32> to vector<8xf32>
    %231 = vector.shape_cast %230 : vector<8xf32> to vector<8x1xf32>
    %232 = vector.extract_strided_slice %228 {offsets = [0, 0], sizes = [1, 512], strides = [1, 1]} : vector<4x512xf32> to vector<1x512xf32>
    %233 = vector.shape_cast %232 : vector<1x512xf32> to vector<512xf32>
    %234 = vector.shape_cast %233 : vector<512xf32> to vector<1x512xf32>
    %235 = vector.broadcast %231 : vector<8x1xf32> to vector<8x512xf32>
    %236 = vector.broadcast %234 : vector<1x512xf32> to vector<8x512xf32>
    %237 = arith.mulf %235, %236 : vector<8x512xf32>
    %238 = arith.addf %223, %237 : vector<8x512xf32>
    %239 = vector.extract_strided_slice %27 {offsets = [17, 0], sizes = [1, 8], strides = [1, 1]} : vector<36x8xf32> to vector<1x8xf32>
    %240 = vector.shape_cast %239 : vector<1x8xf32> to vector<8xf32>
    %241 = vector.shape_cast %240 : vector<8xf32> to vector<8x1xf32>
    %242 = vector.extract_strided_slice %228 {offsets = [1, 0], sizes = [1, 512], strides = [1, 1]} : vector<4x512xf32> to vector<1x512xf32>
    %243 = vector.shape_cast %242 : vector<1x512xf32> to vector<512xf32>
    %244 = vector.shape_cast %243 : vector<512xf32> to vector<1x512xf32>
    %245 = vector.broadcast %241 : vector<8x1xf32> to vector<8x512xf32>
    %246 = vector.broadcast %244 : vector<1x512xf32> to vector<8x512xf32>
    %247 = arith.mulf %245, %246 : vector<8x512xf32>
    %248 = arith.addf %238, %247 : vector<8x512xf32>
    %249 = vector.extract_strided_slice %27 {offsets = [18, 0], sizes = [1, 8], strides = [1, 1]} : vector<36x8xf32> to vector<1x8xf32>
    %250 = vector.shape_cast %249 : vector<1x8xf32> to vector<8xf32>
    %251 = vector.shape_cast %250 : vector<8xf32> to vector<8x1xf32>
    %252 = vector.extract_strided_slice %228 {offsets = [2, 0], sizes = [1, 512], strides = [1, 1]} : vector<4x512xf32> to vector<1x512xf32>
    %253 = vector.shape_cast %252 : vector<1x512xf32> to vector<512xf32>
    %254 = vector.shape_cast %253 : vector<512xf32> to vector<1x512xf32>
    %255 = vector.broadcast %251 : vector<8x1xf32> to vector<8x512xf32>
    %256 = vector.broadcast %254 : vector<1x512xf32> to vector<8x512xf32>
    %257 = arith.mulf %255, %256 : vector<8x512xf32>
    %258 = arith.addf %248, %257 : vector<8x512xf32>
    %259 = vector.extract_strided_slice %27 {offsets = [19, 0], sizes = [1, 8], strides = [1, 1]} : vector<36x8xf32> to vector<1x8xf32>
    %260 = vector.shape_cast %259 : vector<1x8xf32> to vector<8xf32>
    %261 = vector.shape_cast %260 : vector<8xf32> to vector<8x1xf32>
    %262 = vector.extract_strided_slice %228 {offsets = [3, 0], sizes = [1, 512], strides = [1, 1]} : vector<4x512xf32> to vector<1x512xf32>
    %263 = vector.shape_cast %262 : vector<1x512xf32> to vector<512xf32>
    %264 = vector.shape_cast %263 : vector<512xf32> to vector<1x512xf32>
    %265 = vector.broadcast %261 : vector<8x1xf32> to vector<8x512xf32>
    %266 = vector.broadcast %264 : vector<1x512xf32> to vector<8x512xf32>
    %267 = arith.mulf %265, %266 : vector<8x512xf32>
    %268 = arith.addf %258, %267 : vector<8x512xf32>
    %269 = vector.extract_strided_slice %26 {offsets = [0, 1], sizes = [4, 511], strides = [1, 1]} : vector<4x512xf32> to vector<4x511xf32>
    %270 = vector.extract_strided_slice %26 {offsets = [0, 0], sizes = [4, 1], strides = [1, 1]} : vector<4x512xf32> to vector<4x1xf32>
    %271 = tpu.concatenate %269, %270 in 1 : vector<4x511xf32>, vector<4x1xf32> -> vector<4x512xf32>
    %272 = vector.extract_strided_slice %1 {offsets = [5, 0], sizes = [1, 512], strides = [1, 1]} : vector<9x512xf32> to vector<1x512xf32>
    %273 = vector.shape_cast %272 : vector<1x512xf32> to vector<512xf32>
    %274 = vector.shape_cast %273 : vector<512xf32> to vector<1x512xf32>
    %275 = vector.broadcast %274 : vector<1x512xf32> to vector<4x512xf32>
    %276 = arith.mulf %271, %275 : vector<4x512xf32>
    %277 = vector.extract_strided_slice %27 {offsets = [20, 0], sizes = [1, 8], strides = [1, 1]} : vector<36x8xf32> to vector<1x8xf32>
    %278 = vector.shape_cast %277 : vector<1x8xf32> to vector<8xf32>
    %279 = vector.shape_cast %278 : vector<8xf32> to vector<8x1xf32>
    %280 = vector.extract_strided_slice %276 {offsets = [0, 0], sizes = [1, 512], strides = [1, 1]} : vector<4x512xf32> to vector<1x512xf32>
    %281 = vector.shape_cast %280 : vector<1x512xf32> to vector<512xf32>
    %282 = vector.shape_cast %281 : vector<512xf32> to vector<1x512xf32>
    %283 = vector.broadcast %279 : vector<8x1xf32> to vector<8x512xf32>
    %284 = vector.broadcast %282 : vector<1x512xf32> to vector<8x512xf32>
    %285 = arith.mulf %283, %284 : vector<8x512xf32>
    %286 = arith.addf %268, %285 : vector<8x512xf32>
    %287 = vector.extract_strided_slice %27 {offsets = [21, 0], sizes = [1, 8], strides = [1, 1]} : vector<36x8xf32> to vector<1x8xf32>
    %288 = vector.shape_cast %287 : vector<1x8xf32> to vector<8xf32>
    %289 = vector.shape_cast %288 : vector<8xf32> to vector<8x1xf32>
    %290 = vector.extract_strided_slice %276 {offsets = [1, 0], sizes = [1, 512], strides = [1, 1]} : vector<4x512xf32> to vector<1x512xf32>
    %291 = vector.shape_cast %290 : vector<1x512xf32> to vector<512xf32>
    %292 = vector.shape_cast %291 : vector<512xf32> to vector<1x512xf32>
    %293 = vector.broadcast %289 : vector<8x1xf32> to vector<8x512xf32>
    %294 = vector.broadcast %292 : vector<1x512xf32> to vector<8x512xf32>
    %295 = arith.mulf %293, %294 : vector<8x512xf32>
    %296 = arith.addf %286, %295 : vector<8x512xf32>
    %297 = vector.extract_strided_slice %27 {offsets = [22, 0], sizes = [1, 8], strides = [1, 1]} : vector<36x8xf32> to vector<1x8xf32>
    %298 = vector.shape_cast %297 : vector<1x8xf32> to vector<8xf32>
    %299 = vector.shape_cast %298 : vector<8xf32> to vector<8x1xf32>
    %300 = vector.extract_strided_slice %276 {offsets = [2, 0], sizes = [1, 512], strides = [1, 1]} : vector<4x512xf32> to vector<1x512xf32>
    %301 = vector.shape_cast %300 : vector<1x512xf32> to vector<512xf32>
    %302 = vector.shape_cast %301 : vector<512xf32> to vector<1x512xf32>
    %303 = vector.broadcast %299 : vector<8x1xf32> to vector<8x512xf32>
    %304 = vector.broadcast %302 : vector<1x512xf32> to vector<8x512xf32>
    %305 = arith.mulf %303, %304 : vector<8x512xf32>
    %306 = arith.addf %296, %305 : vector<8x512xf32>
    %307 = vector.extract_strided_slice %27 {offsets = [23, 0], sizes = [1, 8], strides = [1, 1]} : vector<36x8xf32> to vector<1x8xf32>
    %308 = vector.shape_cast %307 : vector<1x8xf32> to vector<8xf32>
    %309 = vector.shape_cast %308 : vector<8xf32> to vector<8x1xf32>
    %310 = vector.extract_strided_slice %276 {offsets = [3, 0], sizes = [1, 512], strides = [1, 1]} : vector<4x512xf32> to vector<1x512xf32>
    %311 = vector.shape_cast %310 : vector<1x512xf32> to vector<512xf32>
    %312 = vector.shape_cast %311 : vector<512xf32> to vector<1x512xf32>
    %313 = vector.broadcast %309 : vector<8x1xf32> to vector<8x512xf32>
    %314 = vector.broadcast %312 : vector<1x512xf32> to vector<8x512xf32>
    %315 = arith.mulf %313, %314 : vector<8x512xf32>
    %316 = arith.addf %306, %315 : vector<8x512xf32>
    %317 = vector.extract_strided_slice %26 {offsets = [0, 15], sizes = [4, 497], strides = [1, 1]} : vector<4x512xf32> to vector<4x497xf32>
    %318 = vector.extract_strided_slice %26 {offsets = [0, 0], sizes = [4, 15], strides = [1, 1]} : vector<4x512xf32> to vector<4x15xf32>
    %319 = tpu.concatenate %317, %318 in 1 : vector<4x497xf32>, vector<4x15xf32> -> vector<4x512xf32>
    %320 = vector.extract_strided_slice %1 {offsets = [6, 0], sizes = [1, 512], strides = [1, 1]} : vector<9x512xf32> to vector<1x512xf32>
    %321 = vector.shape_cast %320 : vector<1x512xf32> to vector<512xf32>
    %322 = vector.shape_cast %321 : vector<512xf32> to vector<1x512xf32>
    %323 = vector.broadcast %322 : vector<1x512xf32> to vector<4x512xf32>
    %324 = arith.mulf %319, %323 : vector<4x512xf32>
    %325 = vector.extract_strided_slice %27 {offsets = [24, 0], sizes = [1, 8], strides = [1, 1]} : vector<36x8xf32> to vector<1x8xf32>
    %326 = vector.shape_cast %325 : vector<1x8xf32> to vector<8xf32>
    %327 = vector.shape_cast %326 : vector<8xf32> to vector<8x1xf32>
    %328 = vector.extract_strided_slice %324 {offsets = [0, 0], sizes = [1, 512], strides = [1, 1]} : vector<4x512xf32> to vector<1x512xf32>
    %329 = vector.shape_cast %328 : vector<1x512xf32> to vector<512xf32>
    %330 = vector.shape_cast %329 : vector<512xf32> to vector<1x512xf32>
    %331 = vector.broadcast %327 : vector<8x1xf32> to vector<8x512xf32>
    %332 = vector.broadcast %330 : vector<1x512xf32> to vector<8x512xf32>
    %333 = arith.mulf %331, %332 : vector<8x512xf32>
    %334 = arith.addf %316, %333 : vector<8x512xf32>
    %335 = vector.extract_strided_slice %27 {offsets = [25, 0], sizes = [1, 8], strides = [1, 1]} : vector<36x8xf32> to vector<1x8xf32>
    %336 = vector.shape_cast %335 : vector<1x8xf32> to vector<8xf32>
    %337 = vector.shape_cast %336 : vector<8xf32> to vector<8x1xf32>
    %338 = vector.extract_strided_slice %324 {offsets = [1, 0], sizes = [1, 512], strides = [1, 1]} : vector<4x512xf32> to vector<1x512xf32>
    %339 = vector.shape_cast %338 : vector<1x512xf32> to vector<512xf32>
    %340 = vector.shape_cast %339 : vector<512xf32> to vector<1x512xf32>
    %341 = vector.broadcast %337 : vector<8x1xf32> to vector<8x512xf32>
    %342 = vector.broadcast %340 : vector<1x512xf32> to vector<8x512xf32>
    %343 = arith.mulf %341, %342 : vector<8x512xf32>
    %344 = arith.addf %334, %343 : vector<8x512xf32>
    %345 = vector.extract_strided_slice %27 {offsets = [26, 0], sizes = [1, 8], strides = [1, 1]} : vector<36x8xf32> to vector<1x8xf32>
    %346 = vector.shape_cast %345 : vector<1x8xf32> to vector<8xf32>
    %347 = vector.shape_cast %346 : vector<8xf32> to vector<8x1xf32>
    %348 = vector.extract_strided_slice %324 {offsets = [2, 0], sizes = [1, 512], strides = [1, 1]} : vector<4x512xf32> to vector<1x512xf32>
    %349 = vector.shape_cast %348 : vector<1x512xf32> to vector<512xf32>
    %350 = vector.shape_cast %349 : vector<512xf32> to vector<1x512xf32>
    %351 = vector.broadcast %347 : vector<8x1xf32> to vector<8x512xf32>
    %352 = vector.broadcast %350 : vector<1x512xf32> to vector<8x512xf32>
    %353 = arith.mulf %351, %352 : vector<8x512xf32>
    %354 = arith.addf %344, %353 : vector<8x512xf32>
    %355 = vector.extract_strided_slice %27 {offsets = [27, 0], sizes = [1, 8], strides = [1, 1]} : vector<36x8xf32> to vector<1x8xf32>
    %356 = vector.shape_cast %355 : vector<1x8xf32> to vector<8xf32>
    %357 = vector.shape_cast %356 : vector<8xf32> to vector<8x1xf32>
    %358 = vector.extract_strided_slice %324 {offsets = [3, 0], sizes = [1, 512], strides = [1, 1]} : vector<4x512xf32> to vector<1x512xf32>
    %359 = vector.shape_cast %358 : vector<1x512xf32> to vector<512xf32>
    %360 = vector.shape_cast %359 : vector<512xf32> to vector<1x512xf32>
    %361 = vector.broadcast %357 : vector<8x1xf32> to vector<8x512xf32>
    %362 = vector.broadcast %360 : vector<1x512xf32> to vector<8x512xf32>
    %363 = arith.mulf %361, %362 : vector<8x512xf32>
    %364 = arith.addf %354, %363 : vector<8x512xf32>
    %365 = vector.extract_strided_slice %26 {offsets = [0, 16], sizes = [4, 496], strides = [1, 1]} : vector<4x512xf32> to vector<4x496xf32>
    %366 = vector.extract_strided_slice %26 {offsets = [0, 0], sizes = [4, 16], strides = [1, 1]} : vector<4x512xf32> to vector<4x16xf32>
    %367 = tpu.concatenate %365, %366 in 1 : vector<4x496xf32>, vector<4x16xf32> -> vector<4x512xf32>
    %368 = vector.extract_strided_slice %1 {offsets = [7, 0], sizes = [1, 512], strides = [1, 1]} : vector<9x512xf32> to vector<1x512xf32>
    %369 = vector.shape_cast %368 : vector<1x512xf32> to vector<512xf32>
    %370 = vector.shape_cast %369 : vector<512xf32> to vector<1x512xf32>
    %371 = vector.broadcast %370 : vector<1x512xf32> to vector<4x512xf32>
    %372 = arith.mulf %367, %371 : vector<4x512xf32>
    %373 = vector.extract_strided_slice %27 {offsets = [28, 0], sizes = [1, 8], strides = [1, 1]} : vector<36x8xf32> to vector<1x8xf32>
    %374 = vector.shape_cast %373 : vector<1x8xf32> to vector<8xf32>
    %375 = vector.shape_cast %374 : vector<8xf32> to vector<8x1xf32>
    %376 = vector.extract_strided_slice %372 {offsets = [0, 0], sizes = [1, 512], strides = [1, 1]} : vector<4x512xf32> to vector<1x512xf32>
    %377 = vector.shape_cast %376 : vector<1x512xf32> to vector<512xf32>
    %378 = vector.shape_cast %377 : vector<512xf32> to vector<1x512xf32>
    %379 = vector.broadcast %375 : vector<8x1xf32> to vector<8x512xf32>
    %380 = vector.broadcast %378 : vector<1x512xf32> to vector<8x512xf32>
    %381 = arith.mulf %379, %380 : vector<8x512xf32>
    %382 = arith.addf %364, %381 : vector<8x512xf32>
    %383 = vector.extract_strided_slice %27 {offsets = [29, 0], sizes = [1, 8], strides = [1, 1]} : vector<36x8xf32> to vector<1x8xf32>
    %384 = vector.shape_cast %383 : vector<1x8xf32> to vector<8xf32>
    %385 = vector.shape_cast %384 : vector<8xf32> to vector<8x1xf32>
    %386 = vector.extract_strided_slice %372 {offsets = [1, 0], sizes = [1, 512], strides = [1, 1]} : vector<4x512xf32> to vector<1x512xf32>
    %387 = vector.shape_cast %386 : vector<1x512xf32> to vector<512xf32>
    %388 = vector.shape_cast %387 : vector<512xf32> to vector<1x512xf32>
    %389 = vector.broadcast %385 : vector<8x1xf32> to vector<8x512xf32>
    %390 = vector.broadcast %388 : vector<1x512xf32> to vector<8x512xf32>
    %391 = arith.mulf %389, %390 : vector<8x512xf32>
    %392 = arith.addf %382, %391 : vector<8x512xf32>
    %393 = vector.extract_strided_slice %27 {offsets = [30, 0], sizes = [1, 8], strides = [1, 1]} : vector<36x8xf32> to vector<1x8xf32>
    %394 = vector.shape_cast %393 : vector<1x8xf32> to vector<8xf32>
    %395 = vector.shape_cast %394 : vector<8xf32> to vector<8x1xf32>
    %396 = vector.extract_strided_slice %372 {offsets = [2, 0], sizes = [1, 512], strides = [1, 1]} : vector<4x512xf32> to vector<1x512xf32>
    %397 = vector.shape_cast %396 : vector<1x512xf32> to vector<512xf32>
    %398 = vector.shape_cast %397 : vector<512xf32> to vector<1x512xf32>
    %399 = vector.broadcast %395 : vector<8x1xf32> to vector<8x512xf32>
    %400 = vector.broadcast %398 : vector<1x512xf32> to vector<8x512xf32>
    %401 = arith.mulf %399, %400 : vector<8x512xf32>
    %402 = arith.addf %392, %401 : vector<8x512xf32>
    %403 = vector.extract_strided_slice %27 {offsets = [31, 0], sizes = [1, 8], strides = [1, 1]} : vector<36x8xf32> to vector<1x8xf32>
    %404 = vector.shape_cast %403 : vector<1x8xf32> to vector<8xf32>
    %405 = vector.shape_cast %404 : vector<8xf32> to vector<8x1xf32>
    %406 = vector.extract_strided_slice %372 {offsets = [3, 0], sizes = [1, 512], strides = [1, 1]} : vector<4x512xf32> to vector<1x512xf32>
    %407 = vector.shape_cast %406 : vector<1x512xf32> to vector<512xf32>
    %408 = vector.shape_cast %407 : vector<512xf32> to vector<1x512xf32>
    %409 = vector.broadcast %405 : vector<8x1xf32> to vector<8x512xf32>
    %410 = vector.broadcast %408 : vector<1x512xf32> to vector<8x512xf32>
    %411 = arith.mulf %409, %410 : vector<8x512xf32>
    %412 = arith.addf %402, %411 : vector<8x512xf32>
    %413 = vector.extract_strided_slice %26 {offsets = [0, 17], sizes = [4, 495], strides = [1, 1]} : vector<4x512xf32> to vector<4x495xf32>
    %414 = vector.extract_strided_slice %26 {offsets = [0, 0], sizes = [4, 17], strides = [1, 1]} : vector<4x512xf32> to vector<4x17xf32>
    %415 = tpu.concatenate %413, %414 in 1 : vector<4x495xf32>, vector<4x17xf32> -> vector<4x512xf32>
    %416 = vector.extract_strided_slice %1 {offsets = [8, 0], sizes = [1, 512], strides = [1, 1]} : vector<9x512xf32> to vector<1x512xf32>
    %417 = vector.shape_cast %416 : vector<1x512xf32> to vector<512xf32>
    %418 = vector.shape_cast %417 : vector<512xf32> to vector<1x512xf32>
    %419 = vector.broadcast %418 : vector<1x512xf32> to vector<4x512xf32>
    %420 = arith.mulf %415, %419 : vector<4x512xf32>
    %421 = vector.extract_strided_slice %27 {offsets = [32, 0], sizes = [1, 8], strides = [1, 1]} : vector<36x8xf32> to vector<1x8xf32>
    %422 = vector.shape_cast %421 : vector<1x8xf32> to vector<8xf32>
    %423 = vector.shape_cast %422 : vector<8xf32> to vector<8x1xf32>
    %424 = vector.extract_strided_slice %420 {offsets = [0, 0], sizes = [1, 512], strides = [1, 1]} : vector<4x512xf32> to vector<1x512xf32>
    %425 = vector.shape_cast %424 : vector<1x512xf32> to vector<512xf32>
    %426 = vector.shape_cast %425 : vector<512xf32> to vector<1x512xf32>
    %427 = vector.broadcast %423 : vector<8x1xf32> to vector<8x512xf32>
    %428 = vector.broadcast %426 : vector<1x512xf32> to vector<8x512xf32>
    %429 = arith.mulf %427, %428 : vector<8x512xf32>
    %430 = arith.addf %412, %429 : vector<8x512xf32>
    %431 = vector.extract_strided_slice %27 {offsets = [33, 0], sizes = [1, 8], strides = [1, 1]} : vector<36x8xf32> to vector<1x8xf32>
    %432 = vector.shape_cast %431 : vector<1x8xf32> to vector<8xf32>
    %433 = vector.shape_cast %432 : vector<8xf32> to vector<8x1xf32>
    %434 = vector.extract_strided_slice %420 {offsets = [1, 0], sizes = [1, 512], strides = [1, 1]} : vector<4x512xf32> to vector<1x512xf32>
    %435 = vector.shape_cast %434 : vector<1x512xf32> to vector<512xf32>
    %436 = vector.shape_cast %435 : vector<512xf32> to vector<1x512xf32>
    %437 = vector.broadcast %433 : vector<8x1xf32> to vector<8x512xf32>
    %438 = vector.broadcast %436 : vector<1x512xf32> to vector<8x512xf32>
    %439 = arith.mulf %437, %438 : vector<8x512xf32>
    %440 = arith.addf %430, %439 : vector<8x512xf32>
    %441 = vector.extract_strided_slice %27 {offsets = [34, 0], sizes = [1, 8], strides = [1, 1]} : vector<36x8xf32> to vector<1x8xf32>
    %442 = vector.shape_cast %441 : vector<1x8xf32> to vector<8xf32>
    %443 = vector.shape_cast %442 : vector<8xf32> to vector<8x1xf32>
    %444 = vector.extract_strided_slice %420 {offsets = [2, 0], sizes = [1, 512], strides = [1, 1]} : vector<4x512xf32> to vector<1x512xf32>
    %445 = vector.shape_cast %444 : vector<1x512xf32> to vector<512xf32>
    %446 = vector.shape_cast %445 : vector<512xf32> to vector<1x512xf32>
    %447 = vector.broadcast %443 : vector<8x1xf32> to vector<8x512xf32>
    %448 = vector.broadcast %446 : vector<1x512xf32> to vector<8x512xf32>
    %449 = arith.mulf %447, %448 : vector<8x512xf32>
    %450 = arith.addf %440, %449 : vector<8x512xf32>
    %451 = vector.extract_strided_slice %27 {offsets = [35, 0], sizes = [1, 8], strides = [1, 1]} : vector<36x8xf32> to vector<1x8xf32>
    %452 = vector.shape_cast %451 : vector<1x8xf32> to vector<8xf32>
    %453 = vector.shape_cast %452 : vector<8xf32> to vector<8x1xf32>
    %454 = vector.extract_strided_slice %420 {offsets = [3, 0], sizes = [1, 512], strides = [1, 1]} : vector<4x512xf32> to vector<1x512xf32>
    %455 = vector.shape_cast %454 : vector<1x512xf32> to vector<512xf32>
    %456 = vector.shape_cast %455 : vector<512xf32> to vector<1x512xf32>
    %457 = vector.broadcast %453 : vector<8x1xf32> to vector<8x512xf32>
    %458 = vector.broadcast %456 : vector<1x512xf32> to vector<8x512xf32>
    %459 = arith.mulf %457, %458 : vector<8x512xf32>
    %460 = arith.addf %450, %459 : vector<8x512xf32>
    %c0_17 = arith.constant 0 : index
    %c0_18 = arith.constant 0 : index
    %461 = vector.load %arg6[%c0_17, %c0_18] : memref<8x1xf32, #tpu.memory_space<vmem>>, vector<8x1xf32>
    %c0_19 = arith.constant 0 : index
    %c0_20 = arith.constant 0 : index
    %462 = vector.load %arg7[%c0_19, %c0_20] : memref<8x1xf32, #tpu.memory_space<vmem>>, vector<8x1xf32>
    %cst_21 = arith.constant dense<0.000000e+00> : vector<8xf32>
    %463 = vector.multi_reduction <add>, %460, %cst_21 [1] : vector<8x512xf32> to vector<8xf32>
    %464 = vector.shape_cast %463 : vector<8xf32> to vector<8x1xf32>
    %cst_22 = arith.constant 5.120000e+02 : f32
    %465 = vector.broadcast %cst_22 : f32 to vector<8x1xf32>
    %466 = arith.divf %464, %465 : vector<8x1xf32>
    %467 = vector.broadcast %466 : vector<8x1xf32> to vector<8x512xf32>
    %468 = arith.subf %460, %467 : vector<8x512xf32>
    %469 = arith.mulf %468, %468 : vector<8x512xf32>
    %cst_23 = arith.constant dense<0.000000e+00> : vector<8xf32>
    %470 = vector.multi_reduction <add>, %469, %cst_23 [1] : vector<8x512xf32> to vector<8xf32>
    %471 = vector.shape_cast %470 : vector<8xf32> to vector<8x1xf32>
    %cst_24 = arith.constant 5.120000e+02 : f32
    %472 = vector.broadcast %cst_24 : f32 to vector<8x1xf32>
    %473 = arith.divf %471, %472 : vector<8x1xf32>
    %cst_25 = arith.constant 9.99999974E-6 : f32
    %474 = vector.broadcast %cst_25 : f32 to vector<8x1xf32>
    %475 = arith.addf %473, %474 : vector<8x1xf32>
    %476 = math.rsqrt %475 : vector<8x1xf32>
    %477 = arith.mulf %461, %476 : vector<8x1xf32>
    %478 = arith.mulf %466, %477 : vector<8x1xf32>
    %479 = arith.subf %462, %478 : vector<8x1xf32>
    %480 = vector.broadcast %477 : vector<8x1xf32> to vector<8x512xf32>
    %481 = arith.mulf %460, %480 : vector<8x512xf32>
    %482 = vector.broadcast %479 : vector<8x1xf32> to vector<8x512xf32>
    %483 = arith.addf %481, %482 : vector<8x512xf32>
    %cst_26 = arith.constant 0.000000e+00 : f32
    %484 = vector.broadcast %cst_26 : f32 to vector<8x512xf32>
    %485 = arith.maximumf %483, %484 : vector<8x512xf32>
    %c0_27 = arith.constant 0 : index
    %c0_28 = arith.constant 0 : index
    %486 = vector.load %arg8[%c0_27, %c0_28] : memref<72x8xf32, #tpu.memory_space<vmem>>, vector<72x8xf32>
    %c0_29 = arith.constant 0 : index
    %c0_30 = arith.constant 0 : index
    %487 = vector.load %arg9[%c0_29, %c0_30] : memref<8x1xf32, #tpu.memory_space<vmem>>, vector<8x1xf32>
    %cst_31 = arith.constant 0.000000e+00 : f32
    %488 = vector.broadcast %cst_31 : f32 to vector<8x512xf32>
    %489 = vector.broadcast %487 : vector<8x1xf32> to vector<8x512xf32>
    %490 = arith.addf %488, %489 : vector<8x512xf32>
    %491 = vector.extract_strided_slice %485 {offsets = [0, 495], sizes = [8, 17], strides = [1, 1]} : vector<8x512xf32> to vector<8x17xf32>
    %492 = vector.extract_strided_slice %485 {offsets = [0, 0], sizes = [8, 495], strides = [1, 1]} : vector<8x512xf32> to vector<8x495xf32>
    %493 = tpu.concatenate %491, %492 in 1 : vector<8x17xf32>, vector<8x495xf32> -> vector<8x512xf32>
    %494 = vector.extract_strided_slice %1 {offsets = [0, 0], sizes = [1, 512], strides = [1, 1]} : vector<9x512xf32> to vector<1x512xf32>
    %495 = vector.shape_cast %494 : vector<1x512xf32> to vector<512xf32>
    %496 = vector.shape_cast %495 : vector<512xf32> to vector<1x512xf32>
    %497 = vector.broadcast %496 : vector<1x512xf32> to vector<8x512xf32>
    %498 = arith.mulf %493, %497 : vector<8x512xf32>
    %499 = vector.extract_strided_slice %486 {offsets = [0, 0], sizes = [1, 8], strides = [1, 1]} : vector<72x8xf32> to vector<1x8xf32>
    %500 = vector.shape_cast %499 : vector<1x8xf32> to vector<8xf32>
    %501 = vector.shape_cast %500 : vector<8xf32> to vector<8x1xf32>
    %502 = vector.extract_strided_slice %498 {offsets = [0, 0], sizes = [1, 512], strides = [1, 1]} : vector<8x512xf32> to vector<1x512xf32>
    %503 = vector.shape_cast %502 : vector<1x512xf32> to vector<512xf32>
    %504 = vector.shape_cast %503 : vector<512xf32> to vector<1x512xf32>
    %505 = vector.broadcast %501 : vector<8x1xf32> to vector<8x512xf32>
    %506 = vector.broadcast %504 : vector<1x512xf32> to vector<8x512xf32>
    %507 = arith.mulf %505, %506 : vector<8x512xf32>
    %508 = arith.addf %490, %507 : vector<8x512xf32>
    %509 = vector.extract_strided_slice %486 {offsets = [1, 0], sizes = [1, 8], strides = [1, 1]} : vector<72x8xf32> to vector<1x8xf32>
    %510 = vector.shape_cast %509 : vector<1x8xf32> to vector<8xf32>
    %511 = vector.shape_cast %510 : vector<8xf32> to vector<8x1xf32>
    %512 = vector.extract_strided_slice %498 {offsets = [1, 0], sizes = [1, 512], strides = [1, 1]} : vector<8x512xf32> to vector<1x512xf32>
    %513 = vector.shape_cast %512 : vector<1x512xf32> to vector<512xf32>
    %514 = vector.shape_cast %513 : vector<512xf32> to vector<1x512xf32>
    %515 = vector.broadcast %511 : vector<8x1xf32> to vector<8x512xf32>
    %516 = vector.broadcast %514 : vector<1x512xf32> to vector<8x512xf32>
    %517 = arith.mulf %515, %516 : vector<8x512xf32>
    %518 = arith.addf %508, %517 : vector<8x512xf32>
    %519 = vector.extract_strided_slice %486 {offsets = [2, 0], sizes = [1, 8], strides = [1, 1]} : vector<72x8xf32> to vector<1x8xf32>
    %520 = vector.shape_cast %519 : vector<1x8xf32> to vector<8xf32>
    %521 = vector.shape_cast %520 : vector<8xf32> to vector<8x1xf32>
    %522 = vector.extract_strided_slice %498 {offsets = [2, 0], sizes = [1, 512], strides = [1, 1]} : vector<8x512xf32> to vector<1x512xf32>
    %523 = vector.shape_cast %522 : vector<1x512xf32> to vector<512xf32>
    %524 = vector.shape_cast %523 : vector<512xf32> to vector<1x512xf32>
    %525 = vector.broadcast %521 : vector<8x1xf32> to vector<8x512xf32>
    %526 = vector.broadcast %524 : vector<1x512xf32> to vector<8x512xf32>
    %527 = arith.mulf %525, %526 : vector<8x512xf32>
    %528 = arith.addf %518, %527 : vector<8x512xf32>
    %529 = vector.extract_strided_slice %486 {offsets = [3, 0], sizes = [1, 8], strides = [1, 1]} : vector<72x8xf32> to vector<1x8xf32>
    %530 = vector.shape_cast %529 : vector<1x8xf32> to vector<8xf32>
    %531 = vector.shape_cast %530 : vector<8xf32> to vector<8x1xf32>
    %532 = vector.extract_strided_slice %498 {offsets = [3, 0], sizes = [1, 512], strides = [1, 1]} : vector<8x512xf32> to vector<1x512xf32>
    %533 = vector.shape_cast %532 : vector<1x512xf32> to vector<512xf32>
    %534 = vector.shape_cast %533 : vector<512xf32> to vector<1x512xf32>
    %535 = vector.broadcast %531 : vector<8x1xf32> to vector<8x512xf32>
    %536 = vector.broadcast %534 : vector<1x512xf32> to vector<8x512xf32>
    %537 = arith.mulf %535, %536 : vector<8x512xf32>
    %538 = arith.addf %528, %537 : vector<8x512xf32>
    %539 = vector.extract_strided_slice %486 {offsets = [4, 0], sizes = [1, 8], strides = [1, 1]} : vector<72x8xf32> to vector<1x8xf32>
    %540 = vector.shape_cast %539 : vector<1x8xf32> to vector<8xf32>
    %541 = vector.shape_cast %540 : vector<8xf32> to vector<8x1xf32>
    %542 = vector.extract_strided_slice %498 {offsets = [4, 0], sizes = [1, 512], strides = [1, 1]} : vector<8x512xf32> to vector<1x512xf32>
    %543 = vector.shape_cast %542 : vector<1x512xf32> to vector<512xf32>
    %544 = vector.shape_cast %543 : vector<512xf32> to vector<1x512xf32>
    %545 = vector.broadcast %541 : vector<8x1xf32> to vector<8x512xf32>
    %546 = vector.broadcast %544 : vector<1x512xf32> to vector<8x512xf32>
    %547 = arith.mulf %545, %546 : vector<8x512xf32>
    %548 = arith.addf %538, %547 : vector<8x512xf32>
    %549 = vector.extract_strided_slice %486 {offsets = [5, 0], sizes = [1, 8], strides = [1, 1]} : vector<72x8xf32> to vector<1x8xf32>
    %550 = vector.shape_cast %549 : vector<1x8xf32> to vector<8xf32>
    %551 = vector.shape_cast %550 : vector<8xf32> to vector<8x1xf32>
    %552 = vector.extract_strided_slice %498 {offsets = [5, 0], sizes = [1, 512], strides = [1, 1]} : vector<8x512xf32> to vector<1x512xf32>
    %553 = vector.shape_cast %552 : vector<1x512xf32> to vector<512xf32>
    %554 = vector.shape_cast %553 : vector<512xf32> to vector<1x512xf32>
    %555 = vector.broadcast %551 : vector<8x1xf32> to vector<8x512xf32>
    %556 = vector.broadcast %554 : vector<1x512xf32> to vector<8x512xf32>
    %557 = arith.mulf %555, %556 : vector<8x512xf32>
    %558 = arith.addf %548, %557 : vector<8x512xf32>
    %559 = vector.extract_strided_slice %486 {offsets = [6, 0], sizes = [1, 8], strides = [1, 1]} : vector<72x8xf32> to vector<1x8xf32>
    %560 = vector.shape_cast %559 : vector<1x8xf32> to vector<8xf32>
    %561 = vector.shape_cast %560 : vector<8xf32> to vector<8x1xf32>
    %562 = vector.extract_strided_slice %498 {offsets = [6, 0], sizes = [1, 512], strides = [1, 1]} : vector<8x512xf32> to vector<1x512xf32>
    %563 = vector.shape_cast %562 : vector<1x512xf32> to vector<512xf32>
    %564 = vector.shape_cast %563 : vector<512xf32> to vector<1x512xf32>
    %565 = vector.broadcast %561 : vector<8x1xf32> to vector<8x512xf32>
    %566 = vector.broadcast %564 : vector<1x512xf32> to vector<8x512xf32>
    %567 = arith.mulf %565, %566 : vector<8x512xf32>
    %568 = arith.addf %558, %567 : vector<8x512xf32>
    %569 = vector.extract_strided_slice %486 {offsets = [7, 0], sizes = [1, 8], strides = [1, 1]} : vector<72x8xf32> to vector<1x8xf32>
    %570 = vector.shape_cast %569 : vector<1x8xf32> to vector<8xf32>
    %571 = vector.shape_cast %570 : vector<8xf32> to vector<8x1xf32>
    %572 = vector.extract_strided_slice %498 {offsets = [7, 0], sizes = [1, 512], strides = [1, 1]} : vector<8x512xf32> to vector<1x512xf32>
    %573 = vector.shape_cast %572 : vector<1x512xf32> to vector<512xf32>
    %574 = vector.shape_cast %573 : vector<512xf32> to vector<1x512xf32>
    %575 = vector.broadcast %571 : vector<8x1xf32> to vector<8x512xf32>
    %576 = vector.broadcast %574 : vector<1x512xf32> to vector<8x512xf32>
    %577 = arith.mulf %575, %576 : vector<8x512xf32>
    %578 = arith.addf %568, %577 : vector<8x512xf32>
    %579 = vector.extract_strided_slice %485 {offsets = [0, 496], sizes = [8, 16], strides = [1, 1]} : vector<8x512xf32> to vector<8x16xf32>
    %580 = vector.extract_strided_slice %485 {offsets = [0, 0], sizes = [8, 496], strides = [1, 1]} : vector<8x512xf32> to vector<8x496xf32>
    %581 = tpu.concatenate %579, %580 in 1 : vector<8x16xf32>, vector<8x496xf32> -> vector<8x512xf32>
    %582 = vector.extract_strided_slice %1 {offsets = [1, 0], sizes = [1, 512], strides = [1, 1]} : vector<9x512xf32> to vector<1x512xf32>
    %583 = vector.shape_cast %582 : vector<1x512xf32> to vector<512xf32>
    %584 = vector.shape_cast %583 : vector<512xf32> to vector<1x512xf32>
    %585 = vector.broadcast %584 : vector<1x512xf32> to vector<8x512xf32>
    %586 = arith.mulf %581, %585 : vector<8x512xf32>
    %587 = vector.extract_strided_slice %486 {offsets = [8, 0], sizes = [1, 8], strides = [1, 1]} : vector<72x8xf32> to vector<1x8xf32>
    %588 = vector.shape_cast %587 : vector<1x8xf32> to vector<8xf32>
    %589 = vector.shape_cast %588 : vector<8xf32> to vector<8x1xf32>
    %590 = vector.extract_strided_slice %586 {offsets = [0, 0], sizes = [1, 512], strides = [1, 1]} : vector<8x512xf32> to vector<1x512xf32>
    %591 = vector.shape_cast %590 : vector<1x512xf32> to vector<512xf32>
    %592 = vector.shape_cast %591 : vector<512xf32> to vector<1x512xf32>
    %593 = vector.broadcast %589 : vector<8x1xf32> to vector<8x512xf32>
    %594 = vector.broadcast %592 : vector<1x512xf32> to vector<8x512xf32>
    %595 = arith.mulf %593, %594 : vector<8x512xf32>
    %596 = arith.addf %578, %595 : vector<8x512xf32>
    %597 = vector.extract_strided_slice %486 {offsets = [9, 0], sizes = [1, 8], strides = [1, 1]} : vector<72x8xf32> to vector<1x8xf32>
    %598 = vector.shape_cast %597 : vector<1x8xf32> to vector<8xf32>
    %599 = vector.shape_cast %598 : vector<8xf32> to vector<8x1xf32>
    %600 = vector.extract_strided_slice %586 {offsets = [1, 0], sizes = [1, 512], strides = [1, 1]} : vector<8x512xf32> to vector<1x512xf32>
    %601 = vector.shape_cast %600 : vector<1x512xf32> to vector<512xf32>
    %602 = vector.shape_cast %601 : vector<512xf32> to vector<1x512xf32>
    %603 = vector.broadcast %599 : vector<8x1xf32> to vector<8x512xf32>
    %604 = vector.broadcast %602 : vector<1x512xf32> to vector<8x512xf32>
    %605 = arith.mulf %603, %604 : vector<8x512xf32>
    %606 = arith.addf %596, %605 : vector<8x512xf32>
    %607 = vector.extract_strided_slice %486 {offsets = [10, 0], sizes = [1, 8], strides = [1, 1]} : vector<72x8xf32> to vector<1x8xf32>
    %608 = vector.shape_cast %607 : vector<1x8xf32> to vector<8xf32>
    %609 = vector.shape_cast %608 : vector<8xf32> to vector<8x1xf32>
    %610 = vector.extract_strided_slice %586 {offsets = [2, 0], sizes = [1, 512], strides = [1, 1]} : vector<8x512xf32> to vector<1x512xf32>
    %611 = vector.shape_cast %610 : vector<1x512xf32> to vector<512xf32>
    %612 = vector.shape_cast %611 : vector<512xf32> to vector<1x512xf32>
    %613 = vector.broadcast %609 : vector<8x1xf32> to vector<8x512xf32>
    %614 = vector.broadcast %612 : vector<1x512xf32> to vector<8x512xf32>
    %615 = arith.mulf %613, %614 : vector<8x512xf32>
    %616 = arith.addf %606, %615 : vector<8x512xf32>
    %617 = vector.extract_strided_slice %486 {offsets = [11, 0], sizes = [1, 8], strides = [1, 1]} : vector<72x8xf32> to vector<1x8xf32>
    %618 = vector.shape_cast %617 : vector<1x8xf32> to vector<8xf32>
    %619 = vector.shape_cast %618 : vector<8xf32> to vector<8x1xf32>
    %620 = vector.extract_strided_slice %586 {offsets = [3, 0], sizes = [1, 512], strides = [1, 1]} : vector<8x512xf32> to vector<1x512xf32>
    %621 = vector.shape_cast %620 : vector<1x512xf32> to vector<512xf32>
    %622 = vector.shape_cast %621 : vector<512xf32> to vector<1x512xf32>
    %623 = vector.broadcast %619 : vector<8x1xf32> to vector<8x512xf32>
    %624 = vector.broadcast %622 : vector<1x512xf32> to vector<8x512xf32>
    %625 = arith.mulf %623, %624 : vector<8x512xf32>
    %626 = arith.addf %616, %625 : vector<8x512xf32>
    %627 = vector.extract_strided_slice %486 {offsets = [12, 0], sizes = [1, 8], strides = [1, 1]} : vector<72x8xf32> to vector<1x8xf32>
    %628 = vector.shape_cast %627 : vector<1x8xf32> to vector<8xf32>
    %629 = vector.shape_cast %628 : vector<8xf32> to vector<8x1xf32>
    %630 = vector.extract_strided_slice %586 {offsets = [4, 0], sizes = [1, 512], strides = [1, 1]} : vector<8x512xf32> to vector<1x512xf32>
    %631 = vector.shape_cast %630 : vector<1x512xf32> to vector<512xf32>
    %632 = vector.shape_cast %631 : vector<512xf32> to vector<1x512xf32>
    %633 = vector.broadcast %629 : vector<8x1xf32> to vector<8x512xf32>
    %634 = vector.broadcast %632 : vector<1x512xf32> to vector<8x512xf32>
    %635 = arith.mulf %633, %634 : vector<8x512xf32>
    %636 = arith.addf %626, %635 : vector<8x512xf32>
    %637 = vector.extract_strided_slice %486 {offsets = [13, 0], sizes = [1, 8], strides = [1, 1]} : vector<72x8xf32> to vector<1x8xf32>
    %638 = vector.shape_cast %637 : vector<1x8xf32> to vector<8xf32>
    %639 = vector.shape_cast %638 : vector<8xf32> to vector<8x1xf32>
    %640 = vector.extract_strided_slice %586 {offsets = [5, 0], sizes = [1, 512], strides = [1, 1]} : vector<8x512xf32> to vector<1x512xf32>
    %641 = vector.shape_cast %640 : vector<1x512xf32> to vector<512xf32>
    %642 = vector.shape_cast %641 : vector<512xf32> to vector<1x512xf32>
    %643 = vector.broadcast %639 : vector<8x1xf32> to vector<8x512xf32>
    %644 = vector.broadcast %642 : vector<1x512xf32> to vector<8x512xf32>
    %645 = arith.mulf %643, %644 : vector<8x512xf32>
    %646 = arith.addf %636, %645 : vector<8x512xf32>
    %647 = vector.extract_strided_slice %486 {offsets = [14, 0], sizes = [1, 8], strides = [1, 1]} : vector<72x8xf32> to vector<1x8xf32>
    %648 = vector.shape_cast %647 : vector<1x8xf32> to vector<8xf32>
    %649 = vector.shape_cast %648 : vector<8xf32> to vector<8x1xf32>
    %650 = vector.extract_strided_slice %586 {offsets = [6, 0], sizes = [1, 512], strides = [1, 1]} : vector<8x512xf32> to vector<1x512xf32>
    %651 = vector.shape_cast %650 : vector<1x512xf32> to vector<512xf32>
    %652 = vector.shape_cast %651 : vector<512xf32> to vector<1x512xf32>
    %653 = vector.broadcast %649 : vector<8x1xf32> to vector<8x512xf32>
    %654 = vector.broadcast %652 : vector<1x512xf32> to vector<8x512xf32>
    %655 = arith.mulf %653, %654 : vector<8x512xf32>
    %656 = arith.addf %646, %655 : vector<8x512xf32>
    %657 = vector.extract_strided_slice %486 {offsets = [15, 0], sizes = [1, 8], strides = [1, 1]} : vector<72x8xf32> to vector<1x8xf32>
    %658 = vector.shape_cast %657 : vector<1x8xf32> to vector<8xf32>
    %659 = vector.shape_cast %658 : vector<8xf32> to vector<8x1xf32>
    %660 = vector.extract_strided_slice %586 {offsets = [7, 0], sizes = [1, 512], strides = [1, 1]} : vector<8x512xf32> to vector<1x512xf32>
    %661 = vector.shape_cast %660 : vector<1x512xf32> to vector<512xf32>
    %662 = vector.shape_cast %661 : vector<512xf32> to vector<1x512xf32>
    %663 = vector.broadcast %659 : vector<8x1xf32> to vector<8x512xf32>
    %664 = vector.broadcast %662 : vector<1x512xf32> to vector<8x512xf32>
    %665 = arith.mulf %663, %664 : vector<8x512xf32>
    %666 = arith.addf %656, %665 : vector<8x512xf32>
    %667 = vector.extract_strided_slice %485 {offsets = [0, 497], sizes = [8, 15], strides = [1, 1]} : vector<8x512xf32> to vector<8x15xf32>
    %668 = vector.extract_strided_slice %485 {offsets = [0, 0], sizes = [8, 497], strides = [1, 1]} : vector<8x512xf32> to vector<8x497xf32>
    %669 = tpu.concatenate %667, %668 in 1 : vector<8x15xf32>, vector<8x497xf32> -> vector<8x512xf32>
    %670 = vector.extract_strided_slice %1 {offsets = [2, 0], sizes = [1, 512], strides = [1, 1]} : vector<9x512xf32> to vector<1x512xf32>
    %671 = vector.shape_cast %670 : vector<1x512xf32> to vector<512xf32>
    %672 = vector.shape_cast %671 : vector<512xf32> to vector<1x512xf32>
    %673 = vector.broadcast %672 : vector<1x512xf32> to vector<8x512xf32>
    %674 = arith.mulf %669, %673 : vector<8x512xf32>
    %675 = vector.extract_strided_slice %486 {offsets = [16, 0], sizes = [1, 8], strides = [1, 1]} : vector<72x8xf32> to vector<1x8xf32>
    %676 = vector.shape_cast %675 : vector<1x8xf32> to vector<8xf32>
    %677 = vector.shape_cast %676 : vector<8xf32> to vector<8x1xf32>
    %678 = vector.extract_strided_slice %674 {offsets = [0, 0], sizes = [1, 512], strides = [1, 1]} : vector<8x512xf32> to vector<1x512xf32>
    %679 = vector.shape_cast %678 : vector<1x512xf32> to vector<512xf32>
    %680 = vector.shape_cast %679 : vector<512xf32> to vector<1x512xf32>
    %681 = vector.broadcast %677 : vector<8x1xf32> to vector<8x512xf32>
    %682 = vector.broadcast %680 : vector<1x512xf32> to vector<8x512xf32>
    %683 = arith.mulf %681, %682 : vector<8x512xf32>
    %684 = arith.addf %666, %683 : vector<8x512xf32>
    %685 = vector.extract_strided_slice %486 {offsets = [17, 0], sizes = [1, 8], strides = [1, 1]} : vector<72x8xf32> to vector<1x8xf32>
    %686 = vector.shape_cast %685 : vector<1x8xf32> to vector<8xf32>
    %687 = vector.shape_cast %686 : vector<8xf32> to vector<8x1xf32>
    %688 = vector.extract_strided_slice %674 {offsets = [1, 0], sizes = [1, 512], strides = [1, 1]} : vector<8x512xf32> to vector<1x512xf32>
    %689 = vector.shape_cast %688 : vector<1x512xf32> to vector<512xf32>
    %690 = vector.shape_cast %689 : vector<512xf32> to vector<1x512xf32>
    %691 = vector.broadcast %687 : vector<8x1xf32> to vector<8x512xf32>
    %692 = vector.broadcast %690 : vector<1x512xf32> to vector<8x512xf32>
    %693 = arith.mulf %691, %692 : vector<8x512xf32>
    %694 = arith.addf %684, %693 : vector<8x512xf32>
    %695 = vector.extract_strided_slice %486 {offsets = [18, 0], sizes = [1, 8], strides = [1, 1]} : vector<72x8xf32> to vector<1x8xf32>
    %696 = vector.shape_cast %695 : vector<1x8xf32> to vector<8xf32>
    %697 = vector.shape_cast %696 : vector<8xf32> to vector<8x1xf32>
    %698 = vector.extract_strided_slice %674 {offsets = [2, 0], sizes = [1, 512], strides = [1, 1]} : vector<8x512xf32> to vector<1x512xf32>
    %699 = vector.shape_cast %698 : vector<1x512xf32> to vector<512xf32>
    %700 = vector.shape_cast %699 : vector<512xf32> to vector<1x512xf32>
    %701 = vector.broadcast %697 : vector<8x1xf32> to vector<8x512xf32>
    %702 = vector.broadcast %700 : vector<1x512xf32> to vector<8x512xf32>
    %703 = arith.mulf %701, %702 : vector<8x512xf32>
    %704 = arith.addf %694, %703 : vector<8x512xf32>
    %705 = vector.extract_strided_slice %486 {offsets = [19, 0], sizes = [1, 8], strides = [1, 1]} : vector<72x8xf32> to vector<1x8xf32>
    %706 = vector.shape_cast %705 : vector<1x8xf32> to vector<8xf32>
    %707 = vector.shape_cast %706 : vector<8xf32> to vector<8x1xf32>
    %708 = vector.extract_strided_slice %674 {offsets = [3, 0], sizes = [1, 512], strides = [1, 1]} : vector<8x512xf32> to vector<1x512xf32>
    %709 = vector.shape_cast %708 : vector<1x512xf32> to vector<512xf32>
    %710 = vector.shape_cast %709 : vector<512xf32> to vector<1x512xf32>
    %711 = vector.broadcast %707 : vector<8x1xf32> to vector<8x512xf32>
    %712 = vector.broadcast %710 : vector<1x512xf32> to vector<8x512xf32>
    %713 = arith.mulf %711, %712 : vector<8x512xf32>
    %714 = arith.addf %704, %713 : vector<8x512xf32>
    %715 = vector.extract_strided_slice %486 {offsets = [20, 0], sizes = [1, 8], strides = [1, 1]} : vector<72x8xf32> to vector<1x8xf32>
    %716 = vector.shape_cast %715 : vector<1x8xf32> to vector<8xf32>
    %717 = vector.shape_cast %716 : vector<8xf32> to vector<8x1xf32>
    %718 = vector.extract_strided_slice %674 {offsets = [4, 0], sizes = [1, 512], strides = [1, 1]} : vector<8x512xf32> to vector<1x512xf32>
    %719 = vector.shape_cast %718 : vector<1x512xf32> to vector<512xf32>
    %720 = vector.shape_cast %719 : vector<512xf32> to vector<1x512xf32>
    %721 = vector.broadcast %717 : vector<8x1xf32> to vector<8x512xf32>
    %722 = vector.broadcast %720 : vector<1x512xf32> to vector<8x512xf32>
    %723 = arith.mulf %721, %722 : vector<8x512xf32>
    %724 = arith.addf %714, %723 : vector<8x512xf32>
    %725 = vector.extract_strided_slice %486 {offsets = [21, 0], sizes = [1, 8], strides = [1, 1]} : vector<72x8xf32> to vector<1x8xf32>
    %726 = vector.shape_cast %725 : vector<1x8xf32> to vector<8xf32>
    %727 = vector.shape_cast %726 : vector<8xf32> to vector<8x1xf32>
    %728 = vector.extract_strided_slice %674 {offsets = [5, 0], sizes = [1, 512], strides = [1, 1]} : vector<8x512xf32> to vector<1x512xf32>
    %729 = vector.shape_cast %728 : vector<1x512xf32> to vector<512xf32>
    %730 = vector.shape_cast %729 : vector<512xf32> to vector<1x512xf32>
    %731 = vector.broadcast %727 : vector<8x1xf32> to vector<8x512xf32>
    %732 = vector.broadcast %730 : vector<1x512xf32> to vector<8x512xf32>
    %733 = arith.mulf %731, %732 : vector<8x512xf32>
    %734 = arith.addf %724, %733 : vector<8x512xf32>
    %735 = vector.extract_strided_slice %486 {offsets = [22, 0], sizes = [1, 8], strides = [1, 1]} : vector<72x8xf32> to vector<1x8xf32>
    %736 = vector.shape_cast %735 : vector<1x8xf32> to vector<8xf32>
    %737 = vector.shape_cast %736 : vector<8xf32> to vector<8x1xf32>
    %738 = vector.extract_strided_slice %674 {offsets = [6, 0], sizes = [1, 512], strides = [1, 1]} : vector<8x512xf32> to vector<1x512xf32>
    %739 = vector.shape_cast %738 : vector<1x512xf32> to vector<512xf32>
    %740 = vector.shape_cast %739 : vector<512xf32> to vector<1x512xf32>
    %741 = vector.broadcast %737 : vector<8x1xf32> to vector<8x512xf32>
    %742 = vector.broadcast %740 : vector<1x512xf32> to vector<8x512xf32>
    %743 = arith.mulf %741, %742 : vector<8x512xf32>
    %744 = arith.addf %734, %743 : vector<8x512xf32>
    %745 = vector.extract_strided_slice %486 {offsets = [23, 0], sizes = [1, 8], strides = [1, 1]} : vector<72x8xf32> to vector<1x8xf32>
    %746 = vector.shape_cast %745 : vector<1x8xf32> to vector<8xf32>
    %747 = vector.shape_cast %746 : vector<8xf32> to vector<8x1xf32>
    %748 = vector.extract_strided_slice %674 {offsets = [7, 0], sizes = [1, 512], strides = [1, 1]} : vector<8x512xf32> to vector<1x512xf32>
    %749 = vector.shape_cast %748 : vector<1x512xf32> to vector<512xf32>
    %750 = vector.shape_cast %749 : vector<512xf32> to vector<1x512xf32>
    %751 = vector.broadcast %747 : vector<8x1xf32> to vector<8x512xf32>
    %752 = vector.broadcast %750 : vector<1x512xf32> to vector<8x512xf32>
    %753 = arith.mulf %751, %752 : vector<8x512xf32>
    %754 = arith.addf %744, %753 : vector<8x512xf32>
    %755 = vector.extract_strided_slice %485 {offsets = [0, 511], sizes = [8, 1], strides = [1, 1]} : vector<8x512xf32> to vector<8x1xf32>
    %756 = vector.extract_strided_slice %485 {offsets = [0, 0], sizes = [8, 511], strides = [1, 1]} : vector<8x512xf32> to vector<8x511xf32>
    %757 = tpu.concatenate %755, %756 in 1 : vector<8x1xf32>, vector<8x511xf32> -> vector<8x512xf32>
    %758 = vector.extract_strided_slice %1 {offsets = [3, 0], sizes = [1, 512], strides = [1, 1]} : vector<9x512xf32> to vector<1x512xf32>
    %759 = vector.shape_cast %758 : vector<1x512xf32> to vector<512xf32>
    %760 = vector.shape_cast %759 : vector<512xf32> to vector<1x512xf32>
    %761 = vector.broadcast %760 : vector<1x512xf32> to vector<8x512xf32>
    %762 = arith.mulf %757, %761 : vector<8x512xf32>
    %763 = vector.extract_strided_slice %486 {offsets = [24, 0], sizes = [1, 8], strides = [1, 1]} : vector<72x8xf32> to vector<1x8xf32>
    %764 = vector.shape_cast %763 : vector<1x8xf32> to vector<8xf32>
    %765 = vector.shape_cast %764 : vector<8xf32> to vector<8x1xf32>
    %766 = vector.extract_strided_slice %762 {offsets = [0, 0], sizes = [1, 512], strides = [1, 1]} : vector<8x512xf32> to vector<1x512xf32>
    %767 = vector.shape_cast %766 : vector<1x512xf32> to vector<512xf32>
    %768 = vector.shape_cast %767 : vector<512xf32> to vector<1x512xf32>
    %769 = vector.broadcast %765 : vector<8x1xf32> to vector<8x512xf32>
    %770 = vector.broadcast %768 : vector<1x512xf32> to vector<8x512xf32>
    %771 = arith.mulf %769, %770 : vector<8x512xf32>
    %772 = arith.addf %754, %771 : vector<8x512xf32>
    %773 = vector.extract_strided_slice %486 {offsets = [25, 0], sizes = [1, 8], strides = [1, 1]} : vector<72x8xf32> to vector<1x8xf32>
    %774 = vector.shape_cast %773 : vector<1x8xf32> to vector<8xf32>
    %775 = vector.shape_cast %774 : vector<8xf32> to vector<8x1xf32>
    %776 = vector.extract_strided_slice %762 {offsets = [1, 0], sizes = [1, 512], strides = [1, 1]} : vector<8x512xf32> to vector<1x512xf32>
    %777 = vector.shape_cast %776 : vector<1x512xf32> to vector<512xf32>
    %778 = vector.shape_cast %777 : vector<512xf32> to vector<1x512xf32>
    %779 = vector.broadcast %775 : vector<8x1xf32> to vector<8x512xf32>
    %780 = vector.broadcast %778 : vector<1x512xf32> to vector<8x512xf32>
    %781 = arith.mulf %779, %780 : vector<8x512xf32>
    %782 = arith.addf %772, %781 : vector<8x512xf32>
    %783 = vector.extract_strided_slice %486 {offsets = [26, 0], sizes = [1, 8], strides = [1, 1]} : vector<72x8xf32> to vector<1x8xf32>
    %784 = vector.shape_cast %783 : vector<1x8xf32> to vector<8xf32>
    %785 = vector.shape_cast %784 : vector<8xf32> to vector<8x1xf32>
    %786 = vector.extract_strided_slice %762 {offsets = [2, 0], sizes = [1, 512], strides = [1, 1]} : vector<8x512xf32> to vector<1x512xf32>
    %787 = vector.shape_cast %786 : vector<1x512xf32> to vector<512xf32>
    %788 = vector.shape_cast %787 : vector<512xf32> to vector<1x512xf32>
    %789 = vector.broadcast %785 : vector<8x1xf32> to vector<8x512xf32>
    %790 = vector.broadcast %788 : vector<1x512xf32> to vector<8x512xf32>
    %791 = arith.mulf %789, %790 : vector<8x512xf32>
    %792 = arith.addf %782, %791 : vector<8x512xf32>
    %793 = vector.extract_strided_slice %486 {offsets = [27, 0], sizes = [1, 8], strides = [1, 1]} : vector<72x8xf32> to vector<1x8xf32>
    %794 = vector.shape_cast %793 : vector<1x8xf32> to vector<8xf32>
    %795 = vector.shape_cast %794 : vector<8xf32> to vector<8x1xf32>
    %796 = vector.extract_strided_slice %762 {offsets = [3, 0], sizes = [1, 512], strides = [1, 1]} : vector<8x512xf32> to vector<1x512xf32>
    %797 = vector.shape_cast %796 : vector<1x512xf32> to vector<512xf32>
    %798 = vector.shape_cast %797 : vector<512xf32> to vector<1x512xf32>
    %799 = vector.broadcast %795 : vector<8x1xf32> to vector<8x512xf32>
    %800 = vector.broadcast %798 : vector<1x512xf32> to vector<8x512xf32>
    %801 = arith.mulf %799, %800 : vector<8x512xf32>
    %802 = arith.addf %792, %801 : vector<8x512xf32>
    %803 = vector.extract_strided_slice %486 {offsets = [28, 0], sizes = [1, 8], strides = [1, 1]} : vector<72x8xf32> to vector<1x8xf32>
    %804 = vector.shape_cast %803 : vector<1x8xf32> to vector<8xf32>
    %805 = vector.shape_cast %804 : vector<8xf32> to vector<8x1xf32>
    %806 = vector.extract_strided_slice %762 {offsets = [4, 0], sizes = [1, 512], strides = [1, 1]} : vector<8x512xf32> to vector<1x512xf32>
    %807 = vector.shape_cast %806 : vector<1x512xf32> to vector<512xf32>
    %808 = vector.shape_cast %807 : vector<512xf32> to vector<1x512xf32>
    %809 = vector.broadcast %805 : vector<8x1xf32> to vector<8x512xf32>
    %810 = vector.broadcast %808 : vector<1x512xf32> to vector<8x512xf32>
    %811 = arith.mulf %809, %810 : vector<8x512xf32>
    %812 = arith.addf %802, %811 : vector<8x512xf32>
    %813 = vector.extract_strided_slice %486 {offsets = [29, 0], sizes = [1, 8], strides = [1, 1]} : vector<72x8xf32> to vector<1x8xf32>
    %814 = vector.shape_cast %813 : vector<1x8xf32> to vector<8xf32>
    %815 = vector.shape_cast %814 : vector<8xf32> to vector<8x1xf32>
    %816 = vector.extract_strided_slice %762 {offsets = [5, 0], sizes = [1, 512], strides = [1, 1]} : vector<8x512xf32> to vector<1x512xf32>
    %817 = vector.shape_cast %816 : vector<1x512xf32> to vector<512xf32>
    %818 = vector.shape_cast %817 : vector<512xf32> to vector<1x512xf32>
    %819 = vector.broadcast %815 : vector<8x1xf32> to vector<8x512xf32>
    %820 = vector.broadcast %818 : vector<1x512xf32> to vector<8x512xf32>
    %821 = arith.mulf %819, %820 : vector<8x512xf32>
    %822 = arith.addf %812, %821 : vector<8x512xf32>
    %823 = vector.extract_strided_slice %486 {offsets = [30, 0], sizes = [1, 8], strides = [1, 1]} : vector<72x8xf32> to vector<1x8xf32>
    %824 = vector.shape_cast %823 : vector<1x8xf32> to vector<8xf32>
    %825 = vector.shape_cast %824 : vector<8xf32> to vector<8x1xf32>
    %826 = vector.extract_strided_slice %762 {offsets = [6, 0], sizes = [1, 512], strides = [1, 1]} : vector<8x512xf32> to vector<1x512xf32>
    %827 = vector.shape_cast %826 : vector<1x512xf32> to vector<512xf32>
    %828 = vector.shape_cast %827 : vector<512xf32> to vector<1x512xf32>
    %829 = vector.broadcast %825 : vector<8x1xf32> to vector<8x512xf32>
    %830 = vector.broadcast %828 : vector<1x512xf32> to vector<8x512xf32>
    %831 = arith.mulf %829, %830 : vector<8x512xf32>
    %832 = arith.addf %822, %831 : vector<8x512xf32>
    %833 = vector.extract_strided_slice %486 {offsets = [31, 0], sizes = [1, 8], strides = [1, 1]} : vector<72x8xf32> to vector<1x8xf32>
    %834 = vector.shape_cast %833 : vector<1x8xf32> to vector<8xf32>
    %835 = vector.shape_cast %834 : vector<8xf32> to vector<8x1xf32>
    %836 = vector.extract_strided_slice %762 {offsets = [7, 0], sizes = [1, 512], strides = [1, 1]} : vector<8x512xf32> to vector<1x512xf32>
    %837 = vector.shape_cast %836 : vector<1x512xf32> to vector<512xf32>
    %838 = vector.shape_cast %837 : vector<512xf32> to vector<1x512xf32>
    %839 = vector.broadcast %835 : vector<8x1xf32> to vector<8x512xf32>
    %840 = vector.broadcast %838 : vector<1x512xf32> to vector<8x512xf32>
    %841 = arith.mulf %839, %840 : vector<8x512xf32>
    %842 = arith.addf %832, %841 : vector<8x512xf32>
    %843 = vector.extract_strided_slice %1 {offsets = [4, 0], sizes = [1, 512], strides = [1, 1]} : vector<9x512xf32> to vector<1x512xf32>
    %844 = vector.shape_cast %843 : vector<1x512xf32> to vector<512xf32>
    %845 = vector.shape_cast %844 : vector<512xf32> to vector<1x512xf32>
    %846 = vector.broadcast %845 : vector<1x512xf32> to vector<8x512xf32>
    %847 = arith.mulf %485, %846 : vector<8x512xf32>
    %848 = vector.extract_strided_slice %486 {offsets = [32, 0], sizes = [1, 8], strides = [1, 1]} : vector<72x8xf32> to vector<1x8xf32>
    %849 = vector.shape_cast %848 : vector<1x8xf32> to vector<8xf32>
    %850 = vector.shape_cast %849 : vector<8xf32> to vector<8x1xf32>
    %851 = vector.extract_strided_slice %847 {offsets = [0, 0], sizes = [1, 512], strides = [1, 1]} : vector<8x512xf32> to vector<1x512xf32>
    %852 = vector.shape_cast %851 : vector<1x512xf32> to vector<512xf32>
    %853 = vector.shape_cast %852 : vector<512xf32> to vector<1x512xf32>
    %854 = vector.broadcast %850 : vector<8x1xf32> to vector<8x512xf32>
    %855 = vector.broadcast %853 : vector<1x512xf32> to vector<8x512xf32>
    %856 = arith.mulf %854, %855 : vector<8x512xf32>
    %857 = arith.addf %842, %856 : vector<8x512xf32>
    %858 = vector.extract_strided_slice %486 {offsets = [33, 0], sizes = [1, 8], strides = [1, 1]} : vector<72x8xf32> to vector<1x8xf32>
    %859 = vector.shape_cast %858 : vector<1x8xf32> to vector<8xf32>
    %860 = vector.shape_cast %859 : vector<8xf32> to vector<8x1xf32>
    %861 = vector.extract_strided_slice %847 {offsets = [1, 0], sizes = [1, 512], strides = [1, 1]} : vector<8x512xf32> to vector<1x512xf32>
    %862 = vector.shape_cast %861 : vector<1x512xf32> to vector<512xf32>
    %863 = vector.shape_cast %862 : vector<512xf32> to vector<1x512xf32>
    %864 = vector.broadcast %860 : vector<8x1xf32> to vector<8x512xf32>
    %865 = vector.broadcast %863 : vector<1x512xf32> to vector<8x512xf32>
    %866 = arith.mulf %864, %865 : vector<8x512xf32>
    %867 = arith.addf %857, %866 : vector<8x512xf32>
    %868 = vector.extract_strided_slice %486 {offsets = [34, 0], sizes = [1, 8], strides = [1, 1]} : vector<72x8xf32> to vector<1x8xf32>
    %869 = vector.shape_cast %868 : vector<1x8xf32> to vector<8xf32>
    %870 = vector.shape_cast %869 : vector<8xf32> to vector<8x1xf32>
    %871 = vector.extract_strided_slice %847 {offsets = [2, 0], sizes = [1, 512], strides = [1, 1]} : vector<8x512xf32> to vector<1x512xf32>
    %872 = vector.shape_cast %871 : vector<1x512xf32> to vector<512xf32>
    %873 = vector.shape_cast %872 : vector<512xf32> to vector<1x512xf32>
    %874 = vector.broadcast %870 : vector<8x1xf32> to vector<8x512xf32>
    %875 = vector.broadcast %873 : vector<1x512xf32> to vector<8x512xf32>
    %876 = arith.mulf %874, %875 : vector<8x512xf32>
    %877 = arith.addf %867, %876 : vector<8x512xf32>
    %878 = vector.extract_strided_slice %486 {offsets = [35, 0], sizes = [1, 8], strides = [1, 1]} : vector<72x8xf32> to vector<1x8xf32>
    %879 = vector.shape_cast %878 : vector<1x8xf32> to vector<8xf32>
    %880 = vector.shape_cast %879 : vector<8xf32> to vector<8x1xf32>
    %881 = vector.extract_strided_slice %847 {offsets = [3, 0], sizes = [1, 512], strides = [1, 1]} : vector<8x512xf32> to vector<1x512xf32>
    %882 = vector.shape_cast %881 : vector<1x512xf32> to vector<512xf32>
    %883 = vector.shape_cast %882 : vector<512xf32> to vector<1x512xf32>
    %884 = vector.broadcast %880 : vector<8x1xf32> to vector<8x512xf32>
    %885 = vector.broadcast %883 : vector<1x512xf32> to vector<8x512xf32>
    %886 = arith.mulf %884, %885 : vector<8x512xf32>
    %887 = arith.addf %877, %886 : vector<8x512xf32>
    %888 = vector.extract_strided_slice %486 {offsets = [36, 0], sizes = [1, 8], strides = [1, 1]} : vector<72x8xf32> to vector<1x8xf32>
    %889 = vector.shape_cast %888 : vector<1x8xf32> to vector<8xf32>
    %890 = vector.shape_cast %889 : vector<8xf32> to vector<8x1xf32>
    %891 = vector.extract_strided_slice %847 {offsets = [4, 0], sizes = [1, 512], strides = [1, 1]} : vector<8x512xf32> to vector<1x512xf32>
    %892 = vector.shape_cast %891 : vector<1x512xf32> to vector<512xf32>
    %893 = vector.shape_cast %892 : vector<512xf32> to vector<1x512xf32>
    %894 = vector.broadcast %890 : vector<8x1xf32> to vector<8x512xf32>
    %895 = vector.broadcast %893 : vector<1x512xf32> to vector<8x512xf32>
    %896 = arith.mulf %894, %895 : vector<8x512xf32>
    %897 = arith.addf %887, %896 : vector<8x512xf32>
    %898 = vector.extract_strided_slice %486 {offsets = [37, 0], sizes = [1, 8], strides = [1, 1]} : vector<72x8xf32> to vector<1x8xf32>
    %899 = vector.shape_cast %898 : vector<1x8xf32> to vector<8xf32>
    %900 = vector.shape_cast %899 : vector<8xf32> to vector<8x1xf32>
    %901 = vector.extract_strided_slice %847 {offsets = [5, 0], sizes = [1, 512], strides = [1, 1]} : vector<8x512xf32> to vector<1x512xf32>
    %902 = vector.shape_cast %901 : vector<1x512xf32> to vector<512xf32>
    %903 = vector.shape_cast %902 : vector<512xf32> to vector<1x512xf32>
    %904 = vector.broadcast %900 : vector<8x1xf32> to vector<8x512xf32>
    %905 = vector.broadcast %903 : vector<1x512xf32> to vector<8x512xf32>
    %906 = arith.mulf %904, %905 : vector<8x512xf32>
    %907 = arith.addf %897, %906 : vector<8x512xf32>
    %908 = vector.extract_strided_slice %486 {offsets = [38, 0], sizes = [1, 8], strides = [1, 1]} : vector<72x8xf32> to vector<1x8xf32>
    %909 = vector.shape_cast %908 : vector<1x8xf32> to vector<8xf32>
    %910 = vector.shape_cast %909 : vector<8xf32> to vector<8x1xf32>
    %911 = vector.extract_strided_slice %847 {offsets = [6, 0], sizes = [1, 512], strides = [1, 1]} : vector<8x512xf32> to vector<1x512xf32>
    %912 = vector.shape_cast %911 : vector<1x512xf32> to vector<512xf32>
    %913 = vector.shape_cast %912 : vector<512xf32> to vector<1x512xf32>
    %914 = vector.broadcast %910 : vector<8x1xf32> to vector<8x512xf32>
    %915 = vector.broadcast %913 : vector<1x512xf32> to vector<8x512xf32>
    %916 = arith.mulf %914, %915 : vector<8x512xf32>
    %917 = arith.addf %907, %916 : vector<8x512xf32>
    %918 = vector.extract_strided_slice %486 {offsets = [39, 0], sizes = [1, 8], strides = [1, 1]} : vector<72x8xf32> to vector<1x8xf32>
    %919 = vector.shape_cast %918 : vector<1x8xf32> to vector<8xf32>
    %920 = vector.shape_cast %919 : vector<8xf32> to vector<8x1xf32>
    %921 = vector.extract_strided_slice %847 {offsets = [7, 0], sizes = [1, 512], strides = [1, 1]} : vector<8x512xf32> to vector<1x512xf32>
    %922 = vector.shape_cast %921 : vector<1x512xf32> to vector<512xf32>
    %923 = vector.shape_cast %922 : vector<512xf32> to vector<1x512xf32>
    %924 = vector.broadcast %920 : vector<8x1xf32> to vector<8x512xf32>
    %925 = vector.broadcast %923 : vector<1x512xf32> to vector<8x512xf32>
    %926 = arith.mulf %924, %925 : vector<8x512xf32>
    %927 = arith.addf %917, %926 : vector<8x512xf32>
    %928 = vector.extract_strided_slice %485 {offsets = [0, 1], sizes = [8, 511], strides = [1, 1]} : vector<8x512xf32> to vector<8x511xf32>
    %929 = vector.extract_strided_slice %485 {offsets = [0, 0], sizes = [8, 1], strides = [1, 1]} : vector<8x512xf32> to vector<8x1xf32>
    %930 = tpu.concatenate %928, %929 in 1 : vector<8x511xf32>, vector<8x1xf32> -> vector<8x512xf32>
    %931 = vector.extract_strided_slice %1 {offsets = [5, 0], sizes = [1, 512], strides = [1, 1]} : vector<9x512xf32> to vector<1x512xf32>
    %932 = vector.shape_cast %931 : vector<1x512xf32> to vector<512xf32>
    %933 = vector.shape_cast %932 : vector<512xf32> to vector<1x512xf32>
    %934 = vector.broadcast %933 : vector<1x512xf32> to vector<8x512xf32>
    %935 = arith.mulf %930, %934 : vector<8x512xf32>
    %936 = vector.extract_strided_slice %486 {offsets = [40, 0], sizes = [1, 8], strides = [1, 1]} : vector<72x8xf32> to vector<1x8xf32>
    %937 = vector.shape_cast %936 : vector<1x8xf32> to vector<8xf32>
    %938 = vector.shape_cast %937 : vector<8xf32> to vector<8x1xf32>
    %939 = vector.extract_strided_slice %935 {offsets = [0, 0], sizes = [1, 512], strides = [1, 1]} : vector<8x512xf32> to vector<1x512xf32>
    %940 = vector.shape_cast %939 : vector<1x512xf32> to vector<512xf32>
    %941 = vector.shape_cast %940 : vector<512xf32> to vector<1x512xf32>
    %942 = vector.broadcast %938 : vector<8x1xf32> to vector<8x512xf32>
    %943 = vector.broadcast %941 : vector<1x512xf32> to vector<8x512xf32>
    %944 = arith.mulf %942, %943 : vector<8x512xf32>
    %945 = arith.addf %927, %944 : vector<8x512xf32>
    %946 = vector.extract_strided_slice %486 {offsets = [41, 0], sizes = [1, 8], strides = [1, 1]} : vector<72x8xf32> to vector<1x8xf32>
    %947 = vector.shape_cast %946 : vector<1x8xf32> to vector<8xf32>
    %948 = vector.shape_cast %947 : vector<8xf32> to vector<8x1xf32>
    %949 = vector.extract_strided_slice %935 {offsets = [1, 0], sizes = [1, 512], strides = [1, 1]} : vector<8x512xf32> to vector<1x512xf32>
    %950 = vector.shape_cast %949 : vector<1x512xf32> to vector<512xf32>
    %951 = vector.shape_cast %950 : vector<512xf32> to vector<1x512xf32>
    %952 = vector.broadcast %948 : vector<8x1xf32> to vector<8x512xf32>
    %953 = vector.broadcast %951 : vector<1x512xf32> to vector<8x512xf32>
    %954 = arith.mulf %952, %953 : vector<8x512xf32>
    %955 = arith.addf %945, %954 : vector<8x512xf32>
    %956 = vector.extract_strided_slice %486 {offsets = [42, 0], sizes = [1, 8], strides = [1, 1]} : vector<72x8xf32> to vector<1x8xf32>
    %957 = vector.shape_cast %956 : vector<1x8xf32> to vector<8xf32>
    %958 = vector.shape_cast %957 : vector<8xf32> to vector<8x1xf32>
    %959 = vector.extract_strided_slice %935 {offsets = [2, 0], sizes = [1, 512], strides = [1, 1]} : vector<8x512xf32> to vector<1x512xf32>
    %960 = vector.shape_cast %959 : vector<1x512xf32> to vector<512xf32>
    %961 = vector.shape_cast %960 : vector<512xf32> to vector<1x512xf32>
    %962 = vector.broadcast %958 : vector<8x1xf32> to vector<8x512xf32>
    %963 = vector.broadcast %961 : vector<1x512xf32> to vector<8x512xf32>
    %964 = arith.mulf %962, %963 : vector<8x512xf32>
    %965 = arith.addf %955, %964 : vector<8x512xf32>
    %966 = vector.extract_strided_slice %486 {offsets = [43, 0], sizes = [1, 8], strides = [1, 1]} : vector<72x8xf32> to vector<1x8xf32>
    %967 = vector.shape_cast %966 : vector<1x8xf32> to vector<8xf32>
    %968 = vector.shape_cast %967 : vector<8xf32> to vector<8x1xf32>
    %969 = vector.extract_strided_slice %935 {offsets = [3, 0], sizes = [1, 512], strides = [1, 1]} : vector<8x512xf32> to vector<1x512xf32>
    %970 = vector.shape_cast %969 : vector<1x512xf32> to vector<512xf32>
    %971 = vector.shape_cast %970 : vector<512xf32> to vector<1x512xf32>
    %972 = vector.broadcast %968 : vector<8x1xf32> to vector<8x512xf32>
    %973 = vector.broadcast %971 : vector<1x512xf32> to vector<8x512xf32>
    %974 = arith.mulf %972, %973 : vector<8x512xf32>
    %975 = arith.addf %965, %974 : vector<8x512xf32>
    %976 = vector.extract_strided_slice %486 {offsets = [44, 0], sizes = [1, 8], strides = [1, 1]} : vector<72x8xf32> to vector<1x8xf32>
    %977 = vector.shape_cast %976 : vector<1x8xf32> to vector<8xf32>
    %978 = vector.shape_cast %977 : vector<8xf32> to vector<8x1xf32>
    %979 = vector.extract_strided_slice %935 {offsets = [4, 0], sizes = [1, 512], strides = [1, 1]} : vector<8x512xf32> to vector<1x512xf32>
    %980 = vector.shape_cast %979 : vector<1x512xf32> to vector<512xf32>
    %981 = vector.shape_cast %980 : vector<512xf32> to vector<1x512xf32>
    %982 = vector.broadcast %978 : vector<8x1xf32> to vector<8x512xf32>
    %983 = vector.broadcast %981 : vector<1x512xf32> to vector<8x512xf32>
    %984 = arith.mulf %982, %983 : vector<8x512xf32>
    %985 = arith.addf %975, %984 : vector<8x512xf32>
    %986 = vector.extract_strided_slice %486 {offsets = [45, 0], sizes = [1, 8], strides = [1, 1]} : vector<72x8xf32> to vector<1x8xf32>
    %987 = vector.shape_cast %986 : vector<1x8xf32> to vector<8xf32>
    %988 = vector.shape_cast %987 : vector<8xf32> to vector<8x1xf32>
    %989 = vector.extract_strided_slice %935 {offsets = [5, 0], sizes = [1, 512], strides = [1, 1]} : vector<8x512xf32> to vector<1x512xf32>
    %990 = vector.shape_cast %989 : vector<1x512xf32> to vector<512xf32>
    %991 = vector.shape_cast %990 : vector<512xf32> to vector<1x512xf32>
    %992 = vector.broadcast %988 : vector<8x1xf32> to vector<8x512xf32>
    %993 = vector.broadcast %991 : vector<1x512xf32> to vector<8x512xf32>
    %994 = arith.mulf %992, %993 : vector<8x512xf32>
    %995 = arith.addf %985, %994 : vector<8x512xf32>
    %996 = vector.extract_strided_slice %486 {offsets = [46, 0], sizes = [1, 8], strides = [1, 1]} : vector<72x8xf32> to vector<1x8xf32>
    %997 = vector.shape_cast %996 : vector<1x8xf32> to vector<8xf32>
    %998 = vector.shape_cast %997 : vector<8xf32> to vector<8x1xf32>
    %999 = vector.extract_strided_slice %935 {offsets = [6, 0], sizes = [1, 512], strides = [1, 1]} : vector<8x512xf32> to vector<1x512xf32>
    %1000 = vector.shape_cast %999 : vector<1x512xf32> to vector<512xf32>
    %1001 = vector.shape_cast %1000 : vector<512xf32> to vector<1x512xf32>
    %1002 = vector.broadcast %998 : vector<8x1xf32> to vector<8x512xf32>
    %1003 = vector.broadcast %1001 : vector<1x512xf32> to vector<8x512xf32>
    %1004 = arith.mulf %1002, %1003 : vector<8x512xf32>
    %1005 = arith.addf %995, %1004 : vector<8x512xf32>
    %1006 = vector.extract_strided_slice %486 {offsets = [47, 0], sizes = [1, 8], strides = [1, 1]} : vector<72x8xf32> to vector<1x8xf32>
    %1007 = vector.shape_cast %1006 : vector<1x8xf32> to vector<8xf32>
    %1008 = vector.shape_cast %1007 : vector<8xf32> to vector<8x1xf32>
    %1009 = vector.extract_strided_slice %935 {offsets = [7, 0], sizes = [1, 512], strides = [1, 1]} : vector<8x512xf32> to vector<1x512xf32>
    %1010 = vector.shape_cast %1009 : vector<1x512xf32> to vector<512xf32>
    %1011 = vector.shape_cast %1010 : vector<512xf32> to vector<1x512xf32>
    %1012 = vector.broadcast %1008 : vector<8x1xf32> to vector<8x512xf32>
    %1013 = vector.broadcast %1011 : vector<1x512xf32> to vector<8x512xf32>
    %1014 = arith.mulf %1012, %1013 : vector<8x512xf32>
    %1015 = arith.addf %1005, %1014 : vector<8x512xf32>
    %1016 = vector.extract_strided_slice %485 {offsets = [0, 15], sizes = [8, 497], strides = [1, 1]} : vector<8x512xf32> to vector<8x497xf32>
    %1017 = vector.extract_strided_slice %485 {offsets = [0, 0], sizes = [8, 15], strides = [1, 1]} : vector<8x512xf32> to vector<8x15xf32>
    %1018 = tpu.concatenate %1016, %1017 in 1 : vector<8x497xf32>, vector<8x15xf32> -> vector<8x512xf32>
    %1019 = vector.extract_strided_slice %1 {offsets = [6, 0], sizes = [1, 512], strides = [1, 1]} : vector<9x512xf32> to vector<1x512xf32>
    %1020 = vector.shape_cast %1019 : vector<1x512xf32> to vector<512xf32>
    %1021 = vector.shape_cast %1020 : vector<512xf32> to vector<1x512xf32>
    %1022 = vector.broadcast %1021 : vector<1x512xf32> to vector<8x512xf32>
    %1023 = arith.mulf %1018, %1022 : vector<8x512xf32>
    %1024 = vector.extract_strided_slice %486 {offsets = [48, 0], sizes = [1, 8], strides = [1, 1]} : vector<72x8xf32> to vector<1x8xf32>
    %1025 = vector.shape_cast %1024 : vector<1x8xf32> to vector<8xf32>
    %1026 = vector.shape_cast %1025 : vector<8xf32> to vector<8x1xf32>
    %1027 = vector.extract_strided_slice %1023 {offsets = [0, 0], sizes = [1, 512], strides = [1, 1]} : vector<8x512xf32> to vector<1x512xf32>
    %1028 = vector.shape_cast %1027 : vector<1x512xf32> to vector<512xf32>
    %1029 = vector.shape_cast %1028 : vector<512xf32> to vector<1x512xf32>
    %1030 = vector.broadcast %1026 : vector<8x1xf32> to vector<8x512xf32>
    %1031 = vector.broadcast %1029 : vector<1x512xf32> to vector<8x512xf32>
    %1032 = arith.mulf %1030, %1031 : vector<8x512xf32>
    %1033 = arith.addf %1015, %1032 : vector<8x512xf32>
    %1034 = vector.extract_strided_slice %486 {offsets = [49, 0], sizes = [1, 8], strides = [1, 1]} : vector<72x8xf32> to vector<1x8xf32>
    %1035 = vector.shape_cast %1034 : vector<1x8xf32> to vector<8xf32>
    %1036 = vector.shape_cast %1035 : vector<8xf32> to vector<8x1xf32>
    %1037 = vector.extract_strided_slice %1023 {offsets = [1, 0], sizes = [1, 512], strides = [1, 1]} : vector<8x512xf32> to vector<1x512xf32>
    %1038 = vector.shape_cast %1037 : vector<1x512xf32> to vector<512xf32>
    %1039 = vector.shape_cast %1038 : vector<512xf32> to vector<1x512xf32>
    %1040 = vector.broadcast %1036 : vector<8x1xf32> to vector<8x512xf32>
    %1041 = vector.broadcast %1039 : vector<1x512xf32> to vector<8x512xf32>
    %1042 = arith.mulf %1040, %1041 : vector<8x512xf32>
    %1043 = arith.addf %1033, %1042 : vector<8x512xf32>
    %1044 = vector.extract_strided_slice %486 {offsets = [50, 0], sizes = [1, 8], strides = [1, 1]} : vector<72x8xf32> to vector<1x8xf32>
    %1045 = vector.shape_cast %1044 : vector<1x8xf32> to vector<8xf32>
    %1046 = vector.shape_cast %1045 : vector<8xf32> to vector<8x1xf32>
    %1047 = vector.extract_strided_slice %1023 {offsets = [2, 0], sizes = [1, 512], strides = [1, 1]} : vector<8x512xf32> to vector<1x512xf32>
    %1048 = vector.shape_cast %1047 : vector<1x512xf32> to vector<512xf32>
    %1049 = vector.shape_cast %1048 : vector<512xf32> to vector<1x512xf32>
    %1050 = vector.broadcast %1046 : vector<8x1xf32> to vector<8x512xf32>
    %1051 = vector.broadcast %1049 : vector<1x512xf32> to vector<8x512xf32>
    %1052 = arith.mulf %1050, %1051 : vector<8x512xf32>
    %1053 = arith.addf %1043, %1052 : vector<8x512xf32>
    %1054 = vector.extract_strided_slice %486 {offsets = [51, 0], sizes = [1, 8], strides = [1, 1]} : vector<72x8xf32> to vector<1x8xf32>
    %1055 = vector.shape_cast %1054 : vector<1x8xf32> to vector<8xf32>
    %1056 = vector.shape_cast %1055 : vector<8xf32> to vector<8x1xf32>
    %1057 = vector.extract_strided_slice %1023 {offsets = [3, 0], sizes = [1, 512], strides = [1, 1]} : vector<8x512xf32> to vector<1x512xf32>
    %1058 = vector.shape_cast %1057 : vector<1x512xf32> to vector<512xf32>
    %1059 = vector.shape_cast %1058 : vector<512xf32> to vector<1x512xf32>
    %1060 = vector.broadcast %1056 : vector<8x1xf32> to vector<8x512xf32>
    %1061 = vector.broadcast %1059 : vector<1x512xf32> to vector<8x512xf32>
    %1062 = arith.mulf %1060, %1061 : vector<8x512xf32>
    %1063 = arith.addf %1053, %1062 : vector<8x512xf32>
    %1064 = vector.extract_strided_slice %486 {offsets = [52, 0], sizes = [1, 8], strides = [1, 1]} : vector<72x8xf32> to vector<1x8xf32>
    %1065 = vector.shape_cast %1064 : vector<1x8xf32> to vector<8xf32>
    %1066 = vector.shape_cast %1065 : vector<8xf32> to vector<8x1xf32>
    %1067 = vector.extract_strided_slice %1023 {offsets = [4, 0], sizes = [1, 512], strides = [1, 1]} : vector<8x512xf32> to vector<1x512xf32>
    %1068 = vector.shape_cast %1067 : vector<1x512xf32> to vector<512xf32>
    %1069 = vector.shape_cast %1068 : vector<512xf32> to vector<1x512xf32>
    %1070 = vector.broadcast %1066 : vector<8x1xf32> to vector<8x512xf32>
    %1071 = vector.broadcast %1069 : vector<1x512xf32> to vector<8x512xf32>
    %1072 = arith.mulf %1070, %1071 : vector<8x512xf32>
    %1073 = arith.addf %1063, %1072 : vector<8x512xf32>
    %1074 = vector.extract_strided_slice %486 {offsets = [53, 0], sizes = [1, 8], strides = [1, 1]} : vector<72x8xf32> to vector<1x8xf32>
    %1075 = vector.shape_cast %1074 : vector<1x8xf32> to vector<8xf32>
    %1076 = vector.shape_cast %1075 : vector<8xf32> to vector<8x1xf32>
    %1077 = vector.extract_strided_slice %1023 {offsets = [5, 0], sizes = [1, 512], strides = [1, 1]} : vector<8x512xf32> to vector<1x512xf32>
    %1078 = vector.shape_cast %1077 : vector<1x512xf32> to vector<512xf32>
    %1079 = vector.shape_cast %1078 : vector<512xf32> to vector<1x512xf32>
    %1080 = vector.broadcast %1076 : vector<8x1xf32> to vector<8x512xf32>
    %1081 = vector.broadcast %1079 : vector<1x512xf32> to vector<8x512xf32>
    %1082 = arith.mulf %1080, %1081 : vector<8x512xf32>
    %1083 = arith.addf %1073, %1082 : vector<8x512xf32>
    %1084 = vector.extract_strided_slice %486 {offsets = [54, 0], sizes = [1, 8], strides = [1, 1]} : vector<72x8xf32> to vector<1x8xf32>
    %1085 = vector.shape_cast %1084 : vector<1x8xf32> to vector<8xf32>
    %1086 = vector.shape_cast %1085 : vector<8xf32> to vector<8x1xf32>
    %1087 = vector.extract_strided_slice %1023 {offsets = [6, 0], sizes = [1, 512], strides = [1, 1]} : vector<8x512xf32> to vector<1x512xf32>
    %1088 = vector.shape_cast %1087 : vector<1x512xf32> to vector<512xf32>
    %1089 = vector.shape_cast %1088 : vector<512xf32> to vector<1x512xf32>
    %1090 = vector.broadcast %1086 : vector<8x1xf32> to vector<8x512xf32>
    %1091 = vector.broadcast %1089 : vector<1x512xf32> to vector<8x512xf32>
    %1092 = arith.mulf %1090, %1091 : vector<8x512xf32>
    %1093 = arith.addf %1083, %1092 : vector<8x512xf32>
    %1094 = vector.extract_strided_slice %486 {offsets = [55, 0], sizes = [1, 8], strides = [1, 1]} : vector<72x8xf32> to vector<1x8xf32>
    %1095 = vector.shape_cast %1094 : vector<1x8xf32> to vector<8xf32>
    %1096 = vector.shape_cast %1095 : vector<8xf32> to vector<8x1xf32>
    %1097 = vector.extract_strided_slice %1023 {offsets = [7, 0], sizes = [1, 512], strides = [1, 1]} : vector<8x512xf32> to vector<1x512xf32>
    %1098 = vector.shape_cast %1097 : vector<1x512xf32> to vector<512xf32>
    %1099 = vector.shape_cast %1098 : vector<512xf32> to vector<1x512xf32>
    %1100 = vector.broadcast %1096 : vector<8x1xf32> to vector<8x512xf32>
    %1101 = vector.broadcast %1099 : vector<1x512xf32> to vector<8x512xf32>
    %1102 = arith.mulf %1100, %1101 : vector<8x512xf32>
    %1103 = arith.addf %1093, %1102 : vector<8x512xf32>
    %1104 = vector.extract_strided_slice %485 {offsets = [0, 16], sizes = [8, 496], strides = [1, 1]} : vector<8x512xf32> to vector<8x496xf32>
    %1105 = vector.extract_strided_slice %485 {offsets = [0, 0], sizes = [8, 16], strides = [1, 1]} : vector<8x512xf32> to vector<8x16xf32>
    %1106 = tpu.concatenate %1104, %1105 in 1 : vector<8x496xf32>, vector<8x16xf32> -> vector<8x512xf32>
    %1107 = vector.extract_strided_slice %1 {offsets = [7, 0], sizes = [1, 512], strides = [1, 1]} : vector<9x512xf32> to vector<1x512xf32>
    %1108 = vector.shape_cast %1107 : vector<1x512xf32> to vector<512xf32>
    %1109 = vector.shape_cast %1108 : vector<512xf32> to vector<1x512xf32>
    %1110 = vector.broadcast %1109 : vector<1x512xf32> to vector<8x512xf32>
    %1111 = arith.mulf %1106, %1110 : vector<8x512xf32>
    %1112 = vector.extract_strided_slice %486 {offsets = [56, 0], sizes = [1, 8], strides = [1, 1]} : vector<72x8xf32> to vector<1x8xf32>
    %1113 = vector.shape_cast %1112 : vector<1x8xf32> to vector<8xf32>
    %1114 = vector.shape_cast %1113 : vector<8xf32> to vector<8x1xf32>
    %1115 = vector.extract_strided_slice %1111 {offsets = [0, 0], sizes = [1, 512], strides = [1, 1]} : vector<8x512xf32> to vector<1x512xf32>
    %1116 = vector.shape_cast %1115 : vector<1x512xf32> to vector<512xf32>
    %1117 = vector.shape_cast %1116 : vector<512xf32> to vector<1x512xf32>
    %1118 = vector.broadcast %1114 : vector<8x1xf32> to vector<8x512xf32>
    %1119 = vector.broadcast %1117 : vector<1x512xf32> to vector<8x512xf32>
    %1120 = arith.mulf %1118, %1119 : vector<8x512xf32>
    %1121 = arith.addf %1103, %1120 : vector<8x512xf32>
    %1122 = vector.extract_strided_slice %486 {offsets = [57, 0], sizes = [1, 8], strides = [1, 1]} : vector<72x8xf32> to vector<1x8xf32>
    %1123 = vector.shape_cast %1122 : vector<1x8xf32> to vector<8xf32>
    %1124 = vector.shape_cast %1123 : vector<8xf32> to vector<8x1xf32>
    %1125 = vector.extract_strided_slice %1111 {offsets = [1, 0], sizes = [1, 512], strides = [1, 1]} : vector<8x512xf32> to vector<1x512xf32>
    %1126 = vector.shape_cast %1125 : vector<1x512xf32> to vector<512xf32>
    %1127 = vector.shape_cast %1126 : vector<512xf32> to vector<1x512xf32>
    %1128 = vector.broadcast %1124 : vector<8x1xf32> to vector<8x512xf32>
    %1129 = vector.broadcast %1127 : vector<1x512xf32> to vector<8x512xf32>
    %1130 = arith.mulf %1128, %1129 : vector<8x512xf32>
    %1131 = arith.addf %1121, %1130 : vector<8x512xf32>
    %1132 = vector.extract_strided_slice %486 {offsets = [58, 0], sizes = [1, 8], strides = [1, 1]} : vector<72x8xf32> to vector<1x8xf32>
    %1133 = vector.shape_cast %1132 : vector<1x8xf32> to vector<8xf32>
    %1134 = vector.shape_cast %1133 : vector<8xf32> to vector<8x1xf32>
    %1135 = vector.extract_strided_slice %1111 {offsets = [2, 0], sizes = [1, 512], strides = [1, 1]} : vector<8x512xf32> to vector<1x512xf32>
    %1136 = vector.shape_cast %1135 : vector<1x512xf32> to vector<512xf32>
    %1137 = vector.shape_cast %1136 : vector<512xf32> to vector<1x512xf32>
    %1138 = vector.broadcast %1134 : vector<8x1xf32> to vector<8x512xf32>
    %1139 = vector.broadcast %1137 : vector<1x512xf32> to vector<8x512xf32>
    %1140 = arith.mulf %1138, %1139 : vector<8x512xf32>
    %1141 = arith.addf %1131, %1140 : vector<8x512xf32>
    %1142 = vector.extract_strided_slice %486 {offsets = [59, 0], sizes = [1, 8], strides = [1, 1]} : vector<72x8xf32> to vector<1x8xf32>
    %1143 = vector.shape_cast %1142 : vector<1x8xf32> to vector<8xf32>
    %1144 = vector.shape_cast %1143 : vector<8xf32> to vector<8x1xf32>
    %1145 = vector.extract_strided_slice %1111 {offsets = [3, 0], sizes = [1, 512], strides = [1, 1]} : vector<8x512xf32> to vector<1x512xf32>
    %1146 = vector.shape_cast %1145 : vector<1x512xf32> to vector<512xf32>
    %1147 = vector.shape_cast %1146 : vector<512xf32> to vector<1x512xf32>
    %1148 = vector.broadcast %1144 : vector<8x1xf32> to vector<8x512xf32>
    %1149 = vector.broadcast %1147 : vector<1x512xf32> to vector<8x512xf32>
    %1150 = arith.mulf %1148, %1149 : vector<8x512xf32>
    %1151 = arith.addf %1141, %1150 : vector<8x512xf32>
    %1152 = vector.extract_strided_slice %486 {offsets = [60, 0], sizes = [1, 8], strides = [1, 1]} : vector<72x8xf32> to vector<1x8xf32>
    %1153 = vector.shape_cast %1152 : vector<1x8xf32> to vector<8xf32>
    %1154 = vector.shape_cast %1153 : vector<8xf32> to vector<8x1xf32>
    %1155 = vector.extract_strided_slice %1111 {offsets = [4, 0], sizes = [1, 512], strides = [1, 1]} : vector<8x512xf32> to vector<1x512xf32>
    %1156 = vector.shape_cast %1155 : vector<1x512xf32> to vector<512xf32>
    %1157 = vector.shape_cast %1156 : vector<512xf32> to vector<1x512xf32>
    %1158 = vector.broadcast %1154 : vector<8x1xf32> to vector<8x512xf32>
    %1159 = vector.broadcast %1157 : vector<1x512xf32> to vector<8x512xf32>
    %1160 = arith.mulf %1158, %1159 : vector<8x512xf32>
    %1161 = arith.addf %1151, %1160 : vector<8x512xf32>
    %1162 = vector.extract_strided_slice %486 {offsets = [61, 0], sizes = [1, 8], strides = [1, 1]} : vector<72x8xf32> to vector<1x8xf32>
    %1163 = vector.shape_cast %1162 : vector<1x8xf32> to vector<8xf32>
    %1164 = vector.shape_cast %1163 : vector<8xf32> to vector<8x1xf32>
    %1165 = vector.extract_strided_slice %1111 {offsets = [5, 0], sizes = [1, 512], strides = [1, 1]} : vector<8x512xf32> to vector<1x512xf32>
    %1166 = vector.shape_cast %1165 : vector<1x512xf32> to vector<512xf32>
    %1167 = vector.shape_cast %1166 : vector<512xf32> to vector<1x512xf32>
    %1168 = vector.broadcast %1164 : vector<8x1xf32> to vector<8x512xf32>
    %1169 = vector.broadcast %1167 : vector<1x512xf32> to vector<8x512xf32>
    %1170 = arith.mulf %1168, %1169 : vector<8x512xf32>
    %1171 = arith.addf %1161, %1170 : vector<8x512xf32>
    %1172 = vector.extract_strided_slice %486 {offsets = [62, 0], sizes = [1, 8], strides = [1, 1]} : vector<72x8xf32> to vector<1x8xf32>
    %1173 = vector.shape_cast %1172 : vector<1x8xf32> to vector<8xf32>
    %1174 = vector.shape_cast %1173 : vector<8xf32> to vector<8x1xf32>
    %1175 = vector.extract_strided_slice %1111 {offsets = [6, 0], sizes = [1, 512], strides = [1, 1]} : vector<8x512xf32> to vector<1x512xf32>
    %1176 = vector.shape_cast %1175 : vector<1x512xf32> to vector<512xf32>
    %1177 = vector.shape_cast %1176 : vector<512xf32> to vector<1x512xf32>
    %1178 = vector.broadcast %1174 : vector<8x1xf32> to vector<8x512xf32>
    %1179 = vector.broadcast %1177 : vector<1x512xf32> to vector<8x512xf32>
    %1180 = arith.mulf %1178, %1179 : vector<8x512xf32>
    %1181 = arith.addf %1171, %1180 : vector<8x512xf32>
    %1182 = vector.extract_strided_slice %486 {offsets = [63, 0], sizes = [1, 8], strides = [1, 1]} : vector<72x8xf32> to vector<1x8xf32>
    %1183 = vector.shape_cast %1182 : vector<1x8xf32> to vector<8xf32>
    %1184 = vector.shape_cast %1183 : vector<8xf32> to vector<8x1xf32>
    %1185 = vector.extract_strided_slice %1111 {offsets = [7, 0], sizes = [1, 512], strides = [1, 1]} : vector<8x512xf32> to vector<1x512xf32>
    %1186 = vector.shape_cast %1185 : vector<1x512xf32> to vector<512xf32>
    %1187 = vector.shape_cast %1186 : vector<512xf32> to vector<1x512xf32>
    %1188 = vector.broadcast %1184 : vector<8x1xf32> to vector<8x512xf32>
    %1189 = vector.broadcast %1187 : vector<1x512xf32> to vector<8x512xf32>
    %1190 = arith.mulf %1188, %1189 : vector<8x512xf32>
    %1191 = arith.addf %1181, %1190 : vector<8x512xf32>
    %1192 = vector.extract_strided_slice %485 {offsets = [0, 17], sizes = [8, 495], strides = [1, 1]} : vector<8x512xf32> to vector<8x495xf32>
    %1193 = vector.extract_strided_slice %485 {offsets = [0, 0], sizes = [8, 17], strides = [1, 1]} : vector<8x512xf32> to vector<8x17xf32>
    %1194 = tpu.concatenate %1192, %1193 in 1 : vector<8x495xf32>, vector<8x17xf32> -> vector<8x512xf32>
    %1195 = vector.extract_strided_slice %1 {offsets = [8, 0], sizes = [1, 512], strides = [1, 1]} : vector<9x512xf32> to vector<1x512xf32>
    %1196 = vector.shape_cast %1195 : vector<1x512xf32> to vector<512xf32>
    %1197 = vector.shape_cast %1196 : vector<512xf32> to vector<1x512xf32>
    %1198 = vector.broadcast %1197 : vector<1x512xf32> to vector<8x512xf32>
    %1199 = arith.mulf %1194, %1198 : vector<8x512xf32>
    %1200 = vector.extract_strided_slice %486 {offsets = [64, 0], sizes = [1, 8], strides = [1, 1]} : vector<72x8xf32> to vector<1x8xf32>
    %1201 = vector.shape_cast %1200 : vector<1x8xf32> to vector<8xf32>
    %1202 = vector.shape_cast %1201 : vector<8xf32> to vector<8x1xf32>
    %1203 = vector.extract_strided_slice %1199 {offsets = [0, 0], sizes = [1, 512], strides = [1, 1]} : vector<8x512xf32> to vector<1x512xf32>
    %1204 = vector.shape_cast %1203 : vector<1x512xf32> to vector<512xf32>
    %1205 = vector.shape_cast %1204 : vector<512xf32> to vector<1x512xf32>
    %1206 = vector.broadcast %1202 : vector<8x1xf32> to vector<8x512xf32>
    %1207 = vector.broadcast %1205 : vector<1x512xf32> to vector<8x512xf32>
    %1208 = arith.mulf %1206, %1207 : vector<8x512xf32>
    %1209 = arith.addf %1191, %1208 : vector<8x512xf32>
    %1210 = vector.extract_strided_slice %486 {offsets = [65, 0], sizes = [1, 8], strides = [1, 1]} : vector<72x8xf32> to vector<1x8xf32>
    %1211 = vector.shape_cast %1210 : vector<1x8xf32> to vector<8xf32>
    %1212 = vector.shape_cast %1211 : vector<8xf32> to vector<8x1xf32>
    %1213 = vector.extract_strided_slice %1199 {offsets = [1, 0], sizes = [1, 512], strides = [1, 1]} : vector<8x512xf32> to vector<1x512xf32>
    %1214 = vector.shape_cast %1213 : vector<1x512xf32> to vector<512xf32>
    %1215 = vector.shape_cast %1214 : vector<512xf32> to vector<1x512xf32>
    %1216 = vector.broadcast %1212 : vector<8x1xf32> to vector<8x512xf32>
    %1217 = vector.broadcast %1215 : vector<1x512xf32> to vector<8x512xf32>
    %1218 = arith.mulf %1216, %1217 : vector<8x512xf32>
    %1219 = arith.addf %1209, %1218 : vector<8x512xf32>
    %1220 = vector.extract_strided_slice %486 {offsets = [66, 0], sizes = [1, 8], strides = [1, 1]} : vector<72x8xf32> to vector<1x8xf32>
    %1221 = vector.shape_cast %1220 : vector<1x8xf32> to vector<8xf32>
    %1222 = vector.shape_cast %1221 : vector<8xf32> to vector<8x1xf32>
    %1223 = vector.extract_strided_slice %1199 {offsets = [2, 0], sizes = [1, 512], strides = [1, 1]} : vector<8x512xf32> to vector<1x512xf32>
    %1224 = vector.shape_cast %1223 : vector<1x512xf32> to vector<512xf32>
    %1225 = vector.shape_cast %1224 : vector<512xf32> to vector<1x512xf32>
    %1226 = vector.broadcast %1222 : vector<8x1xf32> to vector<8x512xf32>
    %1227 = vector.broadcast %1225 : vector<1x512xf32> to vector<8x512xf32>
    %1228 = arith.mulf %1226, %1227 : vector<8x512xf32>
    %1229 = arith.addf %1219, %1228 : vector<8x512xf32>
    %1230 = vector.extract_strided_slice %486 {offsets = [67, 0], sizes = [1, 8], strides = [1, 1]} : vector<72x8xf32> to vector<1x8xf32>
    %1231 = vector.shape_cast %1230 : vector<1x8xf32> to vector<8xf32>
    %1232 = vector.shape_cast %1231 : vector<8xf32> to vector<8x1xf32>
    %1233 = vector.extract_strided_slice %1199 {offsets = [3, 0], sizes = [1, 512], strides = [1, 1]} : vector<8x512xf32> to vector<1x512xf32>
    %1234 = vector.shape_cast %1233 : vector<1x512xf32> to vector<512xf32>
    %1235 = vector.shape_cast %1234 : vector<512xf32> to vector<1x512xf32>
    %1236 = vector.broadcast %1232 : vector<8x1xf32> to vector<8x512xf32>
    %1237 = vector.broadcast %1235 : vector<1x512xf32> to vector<8x512xf32>
    %1238 = arith.mulf %1236, %1237 : vector<8x512xf32>
    %1239 = arith.addf %1229, %1238 : vector<8x512xf32>
    %1240 = vector.extract_strided_slice %486 {offsets = [68, 0], sizes = [1, 8], strides = [1, 1]} : vector<72x8xf32> to vector<1x8xf32>
    %1241 = vector.shape_cast %1240 : vector<1x8xf32> to vector<8xf32>
    %1242 = vector.shape_cast %1241 : vector<8xf32> to vector<8x1xf32>
    %1243 = vector.extract_strided_slice %1199 {offsets = [4, 0], sizes = [1, 512], strides = [1, 1]} : vector<8x512xf32> to vector<1x512xf32>
    %1244 = vector.shape_cast %1243 : vector<1x512xf32> to vector<512xf32>
    %1245 = vector.shape_cast %1244 : vector<512xf32> to vector<1x512xf32>
    %1246 = vector.broadcast %1242 : vector<8x1xf32> to vector<8x512xf32>
    %1247 = vector.broadcast %1245 : vector<1x512xf32> to vector<8x512xf32>
    %1248 = arith.mulf %1246, %1247 : vector<8x512xf32>
    %1249 = arith.addf %1239, %1248 : vector<8x512xf32>
    %1250 = vector.extract_strided_slice %486 {offsets = [69, 0], sizes = [1, 8], strides = [1, 1]} : vector<72x8xf32> to vector<1x8xf32>
    %1251 = vector.shape_cast %1250 : vector<1x8xf32> to vector<8xf32>
    %1252 = vector.shape_cast %1251 : vector<8xf32> to vector<8x1xf32>
    %1253 = vector.extract_strided_slice %1199 {offsets = [5, 0], sizes = [1, 512], strides = [1, 1]} : vector<8x512xf32> to vector<1x512xf32>
    %1254 = vector.shape_cast %1253 : vector<1x512xf32> to vector<512xf32>
    %1255 = vector.shape_cast %1254 : vector<512xf32> to vector<1x512xf32>
    %1256 = vector.broadcast %1252 : vector<8x1xf32> to vector<8x512xf32>
    %1257 = vector.broadcast %1255 : vector<1x512xf32> to vector<8x512xf32>
    %1258 = arith.mulf %1256, %1257 : vector<8x512xf32>
    %1259 = arith.addf %1249, %1258 : vector<8x512xf32>
    %1260 = vector.extract_strided_slice %486 {offsets = [70, 0], sizes = [1, 8], strides = [1, 1]} : vector<72x8xf32> to vector<1x8xf32>
    %1261 = vector.shape_cast %1260 : vector<1x8xf32> to vector<8xf32>
    %1262 = vector.shape_cast %1261 : vector<8xf32> to vector<8x1xf32>
    %1263 = vector.extract_strided_slice %1199 {offsets = [6, 0], sizes = [1, 512], strides = [1, 1]} : vector<8x512xf32> to vector<1x512xf32>
    %1264 = vector.shape_cast %1263 : vector<1x512xf32> to vector<512xf32>
    %1265 = vector.shape_cast %1264 : vector<512xf32> to vector<1x512xf32>
    %1266 = vector.broadcast %1262 : vector<8x1xf32> to vector<8x512xf32>
    %1267 = vector.broadcast %1265 : vector<1x512xf32> to vector<8x512xf32>
    %1268 = arith.mulf %1266, %1267 : vector<8x512xf32>
    %1269 = arith.addf %1259, %1268 : vector<8x512xf32>
    %1270 = vector.extract_strided_slice %486 {offsets = [71, 0], sizes = [1, 8], strides = [1, 1]} : vector<72x8xf32> to vector<1x8xf32>
    %1271 = vector.shape_cast %1270 : vector<1x8xf32> to vector<8xf32>
    %1272 = vector.shape_cast %1271 : vector<8xf32> to vector<8x1xf32>
    %1273 = vector.extract_strided_slice %1199 {offsets = [7, 0], sizes = [1, 512], strides = [1, 1]} : vector<8x512xf32> to vector<1x512xf32>
    %1274 = vector.shape_cast %1273 : vector<1x512xf32> to vector<512xf32>
    %1275 = vector.shape_cast %1274 : vector<512xf32> to vector<1x512xf32>
    %1276 = vector.broadcast %1272 : vector<8x1xf32> to vector<8x512xf32>
    %1277 = vector.broadcast %1275 : vector<1x512xf32> to vector<8x512xf32>
    %1278 = arith.mulf %1276, %1277 : vector<8x512xf32>
    %1279 = arith.addf %1269, %1278 : vector<8x512xf32>
    %c0_32 = arith.constant 0 : index
    %c0_33 = arith.constant 0 : index
    %1280 = vector.load %arg10[%c0_32, %c0_33] : memref<36x8xf32, #tpu.memory_space<vmem>>, vector<36x8xf32>
    %c0_34 = arith.constant 0 : index
    %c0_35 = arith.constant 0 : index
    %1281 = vector.load %arg11[%c0_34, %c0_35] : memref<8x1xf32, #tpu.memory_space<vmem>>, vector<8x1xf32>
    %cst_36 = arith.constant 0.000000e+00 : f32
    %1282 = vector.broadcast %cst_36 : f32 to vector<8x512xf32>
    %1283 = vector.broadcast %1281 : vector<8x1xf32> to vector<8x512xf32>
    %1284 = arith.addf %1282, %1283 : vector<8x512xf32>
    %1285 = vector.extract_strided_slice %0 {offsets = [0, 495], sizes = [4, 17], strides = [1, 1]} : vector<4x512xf32> to vector<4x17xf32>
    %1286 = vector.extract_strided_slice %0 {offsets = [0, 0], sizes = [4, 495], strides = [1, 1]} : vector<4x512xf32> to vector<4x495xf32>
    %1287 = tpu.concatenate %1285, %1286 in 1 : vector<4x17xf32>, vector<4x495xf32> -> vector<4x512xf32>
    %1288 = vector.extract_strided_slice %1 {offsets = [0, 0], sizes = [1, 512], strides = [1, 1]} : vector<9x512xf32> to vector<1x512xf32>
    %1289 = vector.shape_cast %1288 : vector<1x512xf32> to vector<512xf32>
    %1290 = vector.shape_cast %1289 : vector<512xf32> to vector<1x512xf32>
    %1291 = vector.broadcast %1290 : vector<1x512xf32> to vector<4x512xf32>
    %1292 = arith.mulf %1287, %1291 : vector<4x512xf32>
    %1293 = vector.extract_strided_slice %1280 {offsets = [0, 0], sizes = [1, 8], strides = [1, 1]} : vector<36x8xf32> to vector<1x8xf32>
    %1294 = vector.shape_cast %1293 : vector<1x8xf32> to vector<8xf32>
    %1295 = vector.shape_cast %1294 : vector<8xf32> to vector<8x1xf32>
    %1296 = vector.extract_strided_slice %1292 {offsets = [0, 0], sizes = [1, 512], strides = [1, 1]} : vector<4x512xf32> to vector<1x512xf32>
    %1297 = vector.shape_cast %1296 : vector<1x512xf32> to vector<512xf32>
    %1298 = vector.shape_cast %1297 : vector<512xf32> to vector<1x512xf32>
    %1299 = vector.broadcast %1295 : vector<8x1xf32> to vector<8x512xf32>
    %1300 = vector.broadcast %1298 : vector<1x512xf32> to vector<8x512xf32>
    %1301 = arith.mulf %1299, %1300 : vector<8x512xf32>
    %1302 = arith.addf %1284, %1301 : vector<8x512xf32>
    %1303 = vector.extract_strided_slice %1280 {offsets = [1, 0], sizes = [1, 8], strides = [1, 1]} : vector<36x8xf32> to vector<1x8xf32>
    %1304 = vector.shape_cast %1303 : vector<1x8xf32> to vector<8xf32>
    %1305 = vector.shape_cast %1304 : vector<8xf32> to vector<8x1xf32>
    %1306 = vector.extract_strided_slice %1292 {offsets = [1, 0], sizes = [1, 512], strides = [1, 1]} : vector<4x512xf32> to vector<1x512xf32>
    %1307 = vector.shape_cast %1306 : vector<1x512xf32> to vector<512xf32>
    %1308 = vector.shape_cast %1307 : vector<512xf32> to vector<1x512xf32>
    %1309 = vector.broadcast %1305 : vector<8x1xf32> to vector<8x512xf32>
    %1310 = vector.broadcast %1308 : vector<1x512xf32> to vector<8x512xf32>
    %1311 = arith.mulf %1309, %1310 : vector<8x512xf32>
    %1312 = arith.addf %1302, %1311 : vector<8x512xf32>
    %1313 = vector.extract_strided_slice %1280 {offsets = [2, 0], sizes = [1, 8], strides = [1, 1]} : vector<36x8xf32> to vector<1x8xf32>
    %1314 = vector.shape_cast %1313 : vector<1x8xf32> to vector<8xf32>
    %1315 = vector.shape_cast %1314 : vector<8xf32> to vector<8x1xf32>
    %1316 = vector.extract_strided_slice %1292 {offsets = [2, 0], sizes = [1, 512], strides = [1, 1]} : vector<4x512xf32> to vector<1x512xf32>
    %1317 = vector.shape_cast %1316 : vector<1x512xf32> to vector<512xf32>
    %1318 = vector.shape_cast %1317 : vector<512xf32> to vector<1x512xf32>
    %1319 = vector.broadcast %1315 : vector<8x1xf32> to vector<8x512xf32>
    %1320 = vector.broadcast %1318 : vector<1x512xf32> to vector<8x512xf32>
    %1321 = arith.mulf %1319, %1320 : vector<8x512xf32>
    %1322 = arith.addf %1312, %1321 : vector<8x512xf32>
    %1323 = vector.extract_strided_slice %1280 {offsets = [3, 0], sizes = [1, 8], strides = [1, 1]} : vector<36x8xf32> to vector<1x8xf32>
    %1324 = vector.shape_cast %1323 : vector<1x8xf32> to vector<8xf32>
    %1325 = vector.shape_cast %1324 : vector<8xf32> to vector<8x1xf32>
    %1326 = vector.extract_strided_slice %1292 {offsets = [3, 0], sizes = [1, 512], strides = [1, 1]} : vector<4x512xf32> to vector<1x512xf32>
    %1327 = vector.shape_cast %1326 : vector<1x512xf32> to vector<512xf32>
    %1328 = vector.shape_cast %1327 : vector<512xf32> to vector<1x512xf32>
    %1329 = vector.broadcast %1325 : vector<8x1xf32> to vector<8x512xf32>
    %1330 = vector.broadcast %1328 : vector<1x512xf32> to vector<8x512xf32>
    %1331 = arith.mulf %1329, %1330 : vector<8x512xf32>
    %1332 = arith.addf %1322, %1331 : vector<8x512xf32>
    %1333 = vector.extract_strided_slice %0 {offsets = [0, 496], sizes = [4, 16], strides = [1, 1]} : vector<4x512xf32> to vector<4x16xf32>
    %1334 = vector.extract_strided_slice %0 {offsets = [0, 0], sizes = [4, 496], strides = [1, 1]} : vector<4x512xf32> to vector<4x496xf32>
    %1335 = tpu.concatenate %1333, %1334 in 1 : vector<4x16xf32>, vector<4x496xf32> -> vector<4x512xf32>
    %1336 = vector.extract_strided_slice %1 {offsets = [1, 0], sizes = [1, 512], strides = [1, 1]} : vector<9x512xf32> to vector<1x512xf32>
    %1337 = vector.shape_cast %1336 : vector<1x512xf32> to vector<512xf32>
    %1338 = vector.shape_cast %1337 : vector<512xf32> to vector<1x512xf32>
    %1339 = vector.broadcast %1338 : vector<1x512xf32> to vector<4x512xf32>
    %1340 = arith.mulf %1335, %1339 : vector<4x512xf32>
    %1341 = vector.extract_strided_slice %1280 {offsets = [4, 0], sizes = [1, 8], strides = [1, 1]} : vector<36x8xf32> to vector<1x8xf32>
    %1342 = vector.shape_cast %1341 : vector<1x8xf32> to vector<8xf32>
    %1343 = vector.shape_cast %1342 : vector<8xf32> to vector<8x1xf32>
    %1344 = vector.extract_strided_slice %1340 {offsets = [0, 0], sizes = [1, 512], strides = [1, 1]} : vector<4x512xf32> to vector<1x512xf32>
    %1345 = vector.shape_cast %1344 : vector<1x512xf32> to vector<512xf32>
    %1346 = vector.shape_cast %1345 : vector<512xf32> to vector<1x512xf32>
    %1347 = vector.broadcast %1343 : vector<8x1xf32> to vector<8x512xf32>
    %1348 = vector.broadcast %1346 : vector<1x512xf32> to vector<8x512xf32>
    %1349 = arith.mulf %1347, %1348 : vector<8x512xf32>
    %1350 = arith.addf %1332, %1349 : vector<8x512xf32>
    %1351 = vector.extract_strided_slice %1280 {offsets = [5, 0], sizes = [1, 8], strides = [1, 1]} : vector<36x8xf32> to vector<1x8xf32>
    %1352 = vector.shape_cast %1351 : vector<1x8xf32> to vector<8xf32>
    %1353 = vector.shape_cast %1352 : vector<8xf32> to vector<8x1xf32>
    %1354 = vector.extract_strided_slice %1340 {offsets = [1, 0], sizes = [1, 512], strides = [1, 1]} : vector<4x512xf32> to vector<1x512xf32>
    %1355 = vector.shape_cast %1354 : vector<1x512xf32> to vector<512xf32>
    %1356 = vector.shape_cast %1355 : vector<512xf32> to vector<1x512xf32>
    %1357 = vector.broadcast %1353 : vector<8x1xf32> to vector<8x512xf32>
    %1358 = vector.broadcast %1356 : vector<1x512xf32> to vector<8x512xf32>
    %1359 = arith.mulf %1357, %1358 : vector<8x512xf32>
    %1360 = arith.addf %1350, %1359 : vector<8x512xf32>
    %1361 = vector.extract_strided_slice %1280 {offsets = [6, 0], sizes = [1, 8], strides = [1, 1]} : vector<36x8xf32> to vector<1x8xf32>
    %1362 = vector.shape_cast %1361 : vector<1x8xf32> to vector<8xf32>
    %1363 = vector.shape_cast %1362 : vector<8xf32> to vector<8x1xf32>
    %1364 = vector.extract_strided_slice %1340 {offsets = [2, 0], sizes = [1, 512], strides = [1, 1]} : vector<4x512xf32> to vector<1x512xf32>
    %1365 = vector.shape_cast %1364 : vector<1x512xf32> to vector<512xf32>
    %1366 = vector.shape_cast %1365 : vector<512xf32> to vector<1x512xf32>
    %1367 = vector.broadcast %1363 : vector<8x1xf32> to vector<8x512xf32>
    %1368 = vector.broadcast %1366 : vector<1x512xf32> to vector<8x512xf32>
    %1369 = arith.mulf %1367, %1368 : vector<8x512xf32>
    %1370 = arith.addf %1360, %1369 : vector<8x512xf32>
    %1371 = vector.extract_strided_slice %1280 {offsets = [7, 0], sizes = [1, 8], strides = [1, 1]} : vector<36x8xf32> to vector<1x8xf32>
    %1372 = vector.shape_cast %1371 : vector<1x8xf32> to vector<8xf32>
    %1373 = vector.shape_cast %1372 : vector<8xf32> to vector<8x1xf32>
    %1374 = vector.extract_strided_slice %1340 {offsets = [3, 0], sizes = [1, 512], strides = [1, 1]} : vector<4x512xf32> to vector<1x512xf32>
    %1375 = vector.shape_cast %1374 : vector<1x512xf32> to vector<512xf32>
    %1376 = vector.shape_cast %1375 : vector<512xf32> to vector<1x512xf32>
    %1377 = vector.broadcast %1373 : vector<8x1xf32> to vector<8x512xf32>
    %1378 = vector.broadcast %1376 : vector<1x512xf32> to vector<8x512xf32>
    %1379 = arith.mulf %1377, %1378 : vector<8x512xf32>
    %1380 = arith.addf %1370, %1379 : vector<8x512xf32>
    %1381 = vector.extract_strided_slice %0 {offsets = [0, 497], sizes = [4, 15], strides = [1, 1]} : vector<4x512xf32> to vector<4x15xf32>
    %1382 = vector.extract_strided_slice %0 {offsets = [0, 0], sizes = [4, 497], strides = [1, 1]} : vector<4x512xf32> to vector<4x497xf32>
    %1383 = tpu.concatenate %1381, %1382 in 1 : vector<4x15xf32>, vector<4x497xf32> -> vector<4x512xf32>
    %1384 = vector.extract_strided_slice %1 {offsets = [2, 0], sizes = [1, 512], strides = [1, 1]} : vector<9x512xf32> to vector<1x512xf32>
    %1385 = vector.shape_cast %1384 : vector<1x512xf32> to vector<512xf32>
    %1386 = vector.shape_cast %1385 : vector<512xf32> to vector<1x512xf32>
    %1387 = vector.broadcast %1386 : vector<1x512xf32> to vector<4x512xf32>
    %1388 = arith.mulf %1383, %1387 : vector<4x512xf32>
    %1389 = vector.extract_strided_slice %1280 {offsets = [8, 0], sizes = [1, 8], strides = [1, 1]} : vector<36x8xf32> to vector<1x8xf32>
    %1390 = vector.shape_cast %1389 : vector<1x8xf32> to vector<8xf32>
    %1391 = vector.shape_cast %1390 : vector<8xf32> to vector<8x1xf32>
    %1392 = vector.extract_strided_slice %1388 {offsets = [0, 0], sizes = [1, 512], strides = [1, 1]} : vector<4x512xf32> to vector<1x512xf32>
    %1393 = vector.shape_cast %1392 : vector<1x512xf32> to vector<512xf32>
    %1394 = vector.shape_cast %1393 : vector<512xf32> to vector<1x512xf32>
    %1395 = vector.broadcast %1391 : vector<8x1xf32> to vector<8x512xf32>
    %1396 = vector.broadcast %1394 : vector<1x512xf32> to vector<8x512xf32>
    %1397 = arith.mulf %1395, %1396 : vector<8x512xf32>
    %1398 = arith.addf %1380, %1397 : vector<8x512xf32>
    %1399 = vector.extract_strided_slice %1280 {offsets = [9, 0], sizes = [1, 8], strides = [1, 1]} : vector<36x8xf32> to vector<1x8xf32>
    %1400 = vector.shape_cast %1399 : vector<1x8xf32> to vector<8xf32>
    %1401 = vector.shape_cast %1400 : vector<8xf32> to vector<8x1xf32>
    %1402 = vector.extract_strided_slice %1388 {offsets = [1, 0], sizes = [1, 512], strides = [1, 1]} : vector<4x512xf32> to vector<1x512xf32>
    %1403 = vector.shape_cast %1402 : vector<1x512xf32> to vector<512xf32>
    %1404 = vector.shape_cast %1403 : vector<512xf32> to vector<1x512xf32>
    %1405 = vector.broadcast %1401 : vector<8x1xf32> to vector<8x512xf32>
    %1406 = vector.broadcast %1404 : vector<1x512xf32> to vector<8x512xf32>
    %1407 = arith.mulf %1405, %1406 : vector<8x512xf32>
    %1408 = arith.addf %1398, %1407 : vector<8x512xf32>
    %1409 = vector.extract_strided_slice %1280 {offsets = [10, 0], sizes = [1, 8], strides = [1, 1]} : vector<36x8xf32> to vector<1x8xf32>
    %1410 = vector.shape_cast %1409 : vector<1x8xf32> to vector<8xf32>
    %1411 = vector.shape_cast %1410 : vector<8xf32> to vector<8x1xf32>
    %1412 = vector.extract_strided_slice %1388 {offsets = [2, 0], sizes = [1, 512], strides = [1, 1]} : vector<4x512xf32> to vector<1x512xf32>
    %1413 = vector.shape_cast %1412 : vector<1x512xf32> to vector<512xf32>
    %1414 = vector.shape_cast %1413 : vector<512xf32> to vector<1x512xf32>
    %1415 = vector.broadcast %1411 : vector<8x1xf32> to vector<8x512xf32>
    %1416 = vector.broadcast %1414 : vector<1x512xf32> to vector<8x512xf32>
    %1417 = arith.mulf %1415, %1416 : vector<8x512xf32>
    %1418 = arith.addf %1408, %1417 : vector<8x512xf32>
    %1419 = vector.extract_strided_slice %1280 {offsets = [11, 0], sizes = [1, 8], strides = [1, 1]} : vector<36x8xf32> to vector<1x8xf32>
    %1420 = vector.shape_cast %1419 : vector<1x8xf32> to vector<8xf32>
    %1421 = vector.shape_cast %1420 : vector<8xf32> to vector<8x1xf32>
    %1422 = vector.extract_strided_slice %1388 {offsets = [3, 0], sizes = [1, 512], strides = [1, 1]} : vector<4x512xf32> to vector<1x512xf32>
    %1423 = vector.shape_cast %1422 : vector<1x512xf32> to vector<512xf32>
    %1424 = vector.shape_cast %1423 : vector<512xf32> to vector<1x512xf32>
    %1425 = vector.broadcast %1421 : vector<8x1xf32> to vector<8x512xf32>
    %1426 = vector.broadcast %1424 : vector<1x512xf32> to vector<8x512xf32>
    %1427 = arith.mulf %1425, %1426 : vector<8x512xf32>
    %1428 = arith.addf %1418, %1427 : vector<8x512xf32>
    %1429 = vector.extract_strided_slice %0 {offsets = [0, 511], sizes = [4, 1], strides = [1, 1]} : vector<4x512xf32> to vector<4x1xf32>
    %1430 = vector.extract_strided_slice %0 {offsets = [0, 0], sizes = [4, 511], strides = [1, 1]} : vector<4x512xf32> to vector<4x511xf32>
    %1431 = tpu.concatenate %1429, %1430 in 1 : vector<4x1xf32>, vector<4x511xf32> -> vector<4x512xf32>
    %1432 = vector.extract_strided_slice %1 {offsets = [3, 0], sizes = [1, 512], strides = [1, 1]} : vector<9x512xf32> to vector<1x512xf32>
    %1433 = vector.shape_cast %1432 : vector<1x512xf32> to vector<512xf32>
    %1434 = vector.shape_cast %1433 : vector<512xf32> to vector<1x512xf32>
    %1435 = vector.broadcast %1434 : vector<1x512xf32> to vector<4x512xf32>
    %1436 = arith.mulf %1431, %1435 : vector<4x512xf32>
    %1437 = vector.extract_strided_slice %1280 {offsets = [12, 0], sizes = [1, 8], strides = [1, 1]} : vector<36x8xf32> to vector<1x8xf32>
    %1438 = vector.shape_cast %1437 : vector<1x8xf32> to vector<8xf32>
    %1439 = vector.shape_cast %1438 : vector<8xf32> to vector<8x1xf32>
    %1440 = vector.extract_strided_slice %1436 {offsets = [0, 0], sizes = [1, 512], strides = [1, 1]} : vector<4x512xf32> to vector<1x512xf32>
    %1441 = vector.shape_cast %1440 : vector<1x512xf32> to vector<512xf32>
    %1442 = vector.shape_cast %1441 : vector<512xf32> to vector<1x512xf32>
    %1443 = vector.broadcast %1439 : vector<8x1xf32> to vector<8x512xf32>
    %1444 = vector.broadcast %1442 : vector<1x512xf32> to vector<8x512xf32>
    %1445 = arith.mulf %1443, %1444 : vector<8x512xf32>
    %1446 = arith.addf %1428, %1445 : vector<8x512xf32>
    %1447 = vector.extract_strided_slice %1280 {offsets = [13, 0], sizes = [1, 8], strides = [1, 1]} : vector<36x8xf32> to vector<1x8xf32>
    %1448 = vector.shape_cast %1447 : vector<1x8xf32> to vector<8xf32>
    %1449 = vector.shape_cast %1448 : vector<8xf32> to vector<8x1xf32>
    %1450 = vector.extract_strided_slice %1436 {offsets = [1, 0], sizes = [1, 512], strides = [1, 1]} : vector<4x512xf32> to vector<1x512xf32>
    %1451 = vector.shape_cast %1450 : vector<1x512xf32> to vector<512xf32>
    %1452 = vector.shape_cast %1451 : vector<512xf32> to vector<1x512xf32>
    %1453 = vector.broadcast %1449 : vector<8x1xf32> to vector<8x512xf32>
    %1454 = vector.broadcast %1452 : vector<1x512xf32> to vector<8x512xf32>
    %1455 = arith.mulf %1453, %1454 : vector<8x512xf32>
    %1456 = arith.addf %1446, %1455 : vector<8x512xf32>
    %1457 = vector.extract_strided_slice %1280 {offsets = [14, 0], sizes = [1, 8], strides = [1, 1]} : vector<36x8xf32> to vector<1x8xf32>
    %1458 = vector.shape_cast %1457 : vector<1x8xf32> to vector<8xf32>
    %1459 = vector.shape_cast %1458 : vector<8xf32> to vector<8x1xf32>
    %1460 = vector.extract_strided_slice %1436 {offsets = [2, 0], sizes = [1, 512], strides = [1, 1]} : vector<4x512xf32> to vector<1x512xf32>
    %1461 = vector.shape_cast %1460 : vector<1x512xf32> to vector<512xf32>
    %1462 = vector.shape_cast %1461 : vector<512xf32> to vector<1x512xf32>
    %1463 = vector.broadcast %1459 : vector<8x1xf32> to vector<8x512xf32>
    %1464 = vector.broadcast %1462 : vector<1x512xf32> to vector<8x512xf32>
    %1465 = arith.mulf %1463, %1464 : vector<8x512xf32>
    %1466 = arith.addf %1456, %1465 : vector<8x512xf32>
    %1467 = vector.extract_strided_slice %1280 {offsets = [15, 0], sizes = [1, 8], strides = [1, 1]} : vector<36x8xf32> to vector<1x8xf32>
    %1468 = vector.shape_cast %1467 : vector<1x8xf32> to vector<8xf32>
    %1469 = vector.shape_cast %1468 : vector<8xf32> to vector<8x1xf32>
    %1470 = vector.extract_strided_slice %1436 {offsets = [3, 0], sizes = [1, 512], strides = [1, 1]} : vector<4x512xf32> to vector<1x512xf32>
    %1471 = vector.shape_cast %1470 : vector<1x512xf32> to vector<512xf32>
    %1472 = vector.shape_cast %1471 : vector<512xf32> to vector<1x512xf32>
    %1473 = vector.broadcast %1469 : vector<8x1xf32> to vector<8x512xf32>
    %1474 = vector.broadcast %1472 : vector<1x512xf32> to vector<8x512xf32>
    %1475 = arith.mulf %1473, %1474 : vector<8x512xf32>
    %1476 = arith.addf %1466, %1475 : vector<8x512xf32>
    %1477 = vector.extract_strided_slice %1 {offsets = [4, 0], sizes = [1, 512], strides = [1, 1]} : vector<9x512xf32> to vector<1x512xf32>
    %1478 = vector.shape_cast %1477 : vector<1x512xf32> to vector<512xf32>
    %1479 = vector.shape_cast %1478 : vector<512xf32> to vector<1x512xf32>
    %1480 = vector.broadcast %1479 : vector<1x512xf32> to vector<4x512xf32>
    %1481 = arith.mulf %0, %1480 : vector<4x512xf32>
    %1482 = vector.extract_strided_slice %1280 {offsets = [16, 0], sizes = [1, 8], strides = [1, 1]} : vector<36x8xf32> to vector<1x8xf32>
    %1483 = vector.shape_cast %1482 : vector<1x8xf32> to vector<8xf32>
    %1484 = vector.shape_cast %1483 : vector<8xf32> to vector<8x1xf32>
    %1485 = vector.extract_strided_slice %1481 {offsets = [0, 0], sizes = [1, 512], strides = [1, 1]} : vector<4x512xf32> to vector<1x512xf32>
    %1486 = vector.shape_cast %1485 : vector<1x512xf32> to vector<512xf32>
    %1487 = vector.shape_cast %1486 : vector<512xf32> to vector<1x512xf32>
    %1488 = vector.broadcast %1484 : vector<8x1xf32> to vector<8x512xf32>
    %1489 = vector.broadcast %1487 : vector<1x512xf32> to vector<8x512xf32>
    %1490 = arith.mulf %1488, %1489 : vector<8x512xf32>
    %1491 = arith.addf %1476, %1490 : vector<8x512xf32>
    %1492 = vector.extract_strided_slice %1280 {offsets = [17, 0], sizes = [1, 8], strides = [1, 1]} : vector<36x8xf32> to vector<1x8xf32>
    %1493 = vector.shape_cast %1492 : vector<1x8xf32> to vector<8xf32>
    %1494 = vector.shape_cast %1493 : vector<8xf32> to vector<8x1xf32>
    %1495 = vector.extract_strided_slice %1481 {offsets = [1, 0], sizes = [1, 512], strides = [1, 1]} : vector<4x512xf32> to vector<1x512xf32>
    %1496 = vector.shape_cast %1495 : vector<1x512xf32> to vector<512xf32>
    %1497 = vector.shape_cast %1496 : vector<512xf32> to vector<1x512xf32>
    %1498 = vector.broadcast %1494 : vector<8x1xf32> to vector<8x512xf32>
    %1499 = vector.broadcast %1497 : vector<1x512xf32> to vector<8x512xf32>
    %1500 = arith.mulf %1498, %1499 : vector<8x512xf32>
    %1501 = arith.addf %1491, %1500 : vector<8x512xf32>
    %1502 = vector.extract_strided_slice %1280 {offsets = [18, 0], sizes = [1, 8], strides = [1, 1]} : vector<36x8xf32> to vector<1x8xf32>
    %1503 = vector.shape_cast %1502 : vector<1x8xf32> to vector<8xf32>
    %1504 = vector.shape_cast %1503 : vector<8xf32> to vector<8x1xf32>
    %1505 = vector.extract_strided_slice %1481 {offsets = [2, 0], sizes = [1, 512], strides = [1, 1]} : vector<4x512xf32> to vector<1x512xf32>
    %1506 = vector.shape_cast %1505 : vector<1x512xf32> to vector<512xf32>
    %1507 = vector.shape_cast %1506 : vector<512xf32> to vector<1x512xf32>
    %1508 = vector.broadcast %1504 : vector<8x1xf32> to vector<8x512xf32>
    %1509 = vector.broadcast %1507 : vector<1x512xf32> to vector<8x512xf32>
    %1510 = arith.mulf %1508, %1509 : vector<8x512xf32>
    %1511 = arith.addf %1501, %1510 : vector<8x512xf32>
    %1512 = vector.extract_strided_slice %1280 {offsets = [19, 0], sizes = [1, 8], strides = [1, 1]} : vector<36x8xf32> to vector<1x8xf32>
    %1513 = vector.shape_cast %1512 : vector<1x8xf32> to vector<8xf32>
    %1514 = vector.shape_cast %1513 : vector<8xf32> to vector<8x1xf32>
    %1515 = vector.extract_strided_slice %1481 {offsets = [3, 0], sizes = [1, 512], strides = [1, 1]} : vector<4x512xf32> to vector<1x512xf32>
    %1516 = vector.shape_cast %1515 : vector<1x512xf32> to vector<512xf32>
    %1517 = vector.shape_cast %1516 : vector<512xf32> to vector<1x512xf32>
    %1518 = vector.broadcast %1514 : vector<8x1xf32> to vector<8x512xf32>
    %1519 = vector.broadcast %1517 : vector<1x512xf32> to vector<8x512xf32>
    %1520 = arith.mulf %1518, %1519 : vector<8x512xf32>
    %1521 = arith.addf %1511, %1520 : vector<8x512xf32>
    %1522 = vector.extract_strided_slice %0 {offsets = [0, 1], sizes = [4, 511], strides = [1, 1]} : vector<4x512xf32> to vector<4x511xf32>
    %1523 = vector.extract_strided_slice %0 {offsets = [0, 0], sizes = [4, 1], strides = [1, 1]} : vector<4x512xf32> to vector<4x1xf32>
    %1524 = tpu.concatenate %1522, %1523 in 1 : vector<4x511xf32>, vector<4x1xf32> -> vector<4x512xf32>
    %1525 = vector.extract_strided_slice %1 {offsets = [5, 0], sizes = [1, 512], strides = [1, 1]} : vector<9x512xf32> to vector<1x512xf32>
    %1526 = vector.shape_cast %1525 : vector<1x512xf32> to vector<512xf32>
    %1527 = vector.shape_cast %1526 : vector<512xf32> to vector<1x512xf32>
    %1528 = vector.broadcast %1527 : vector<1x512xf32> to vector<4x512xf32>
    %1529 = arith.mulf %1524, %1528 : vector<4x512xf32>
    %1530 = vector.extract_strided_slice %1280 {offsets = [20, 0], sizes = [1, 8], strides = [1, 1]} : vector<36x8xf32> to vector<1x8xf32>
    %1531 = vector.shape_cast %1530 : vector<1x8xf32> to vector<8xf32>
    %1532 = vector.shape_cast %1531 : vector<8xf32> to vector<8x1xf32>
    %1533 = vector.extract_strided_slice %1529 {offsets = [0, 0], sizes = [1, 512], strides = [1, 1]} : vector<4x512xf32> to vector<1x512xf32>
    %1534 = vector.shape_cast %1533 : vector<1x512xf32> to vector<512xf32>
    %1535 = vector.shape_cast %1534 : vector<512xf32> to vector<1x512xf32>
    %1536 = vector.broadcast %1532 : vector<8x1xf32> to vector<8x512xf32>
    %1537 = vector.broadcast %1535 : vector<1x512xf32> to vector<8x512xf32>
    %1538 = arith.mulf %1536, %1537 : vector<8x512xf32>
    %1539 = arith.addf %1521, %1538 : vector<8x512xf32>
    %1540 = vector.extract_strided_slice %1280 {offsets = [21, 0], sizes = [1, 8], strides = [1, 1]} : vector<36x8xf32> to vector<1x8xf32>
    %1541 = vector.shape_cast %1540 : vector<1x8xf32> to vector<8xf32>
    %1542 = vector.shape_cast %1541 : vector<8xf32> to vector<8x1xf32>
    %1543 = vector.extract_strided_slice %1529 {offsets = [1, 0], sizes = [1, 512], strides = [1, 1]} : vector<4x512xf32> to vector<1x512xf32>
    %1544 = vector.shape_cast %1543 : vector<1x512xf32> to vector<512xf32>
    %1545 = vector.shape_cast %1544 : vector<512xf32> to vector<1x512xf32>
    %1546 = vector.broadcast %1542 : vector<8x1xf32> to vector<8x512xf32>
    %1547 = vector.broadcast %1545 : vector<1x512xf32> to vector<8x512xf32>
    %1548 = arith.mulf %1546, %1547 : vector<8x512xf32>
    %1549 = arith.addf %1539, %1548 : vector<8x512xf32>
    %1550 = vector.extract_strided_slice %1280 {offsets = [22, 0], sizes = [1, 8], strides = [1, 1]} : vector<36x8xf32> to vector<1x8xf32>
    %1551 = vector.shape_cast %1550 : vector<1x8xf32> to vector<8xf32>
    %1552 = vector.shape_cast %1551 : vector<8xf32> to vector<8x1xf32>
    %1553 = vector.extract_strided_slice %1529 {offsets = [2, 0], sizes = [1, 512], strides = [1, 1]} : vector<4x512xf32> to vector<1x512xf32>
    %1554 = vector.shape_cast %1553 : vector<1x512xf32> to vector<512xf32>
    %1555 = vector.shape_cast %1554 : vector<512xf32> to vector<1x512xf32>
    %1556 = vector.broadcast %1552 : vector<8x1xf32> to vector<8x512xf32>
    %1557 = vector.broadcast %1555 : vector<1x512xf32> to vector<8x512xf32>
    %1558 = arith.mulf %1556, %1557 : vector<8x512xf32>
    %1559 = arith.addf %1549, %1558 : vector<8x512xf32>
    %1560 = vector.extract_strided_slice %1280 {offsets = [23, 0], sizes = [1, 8], strides = [1, 1]} : vector<36x8xf32> to vector<1x8xf32>
    %1561 = vector.shape_cast %1560 : vector<1x8xf32> to vector<8xf32>
    %1562 = vector.shape_cast %1561 : vector<8xf32> to vector<8x1xf32>
    %1563 = vector.extract_strided_slice %1529 {offsets = [3, 0], sizes = [1, 512], strides = [1, 1]} : vector<4x512xf32> to vector<1x512xf32>
    %1564 = vector.shape_cast %1563 : vector<1x512xf32> to vector<512xf32>
    %1565 = vector.shape_cast %1564 : vector<512xf32> to vector<1x512xf32>
    %1566 = vector.broadcast %1562 : vector<8x1xf32> to vector<8x512xf32>
    %1567 = vector.broadcast %1565 : vector<1x512xf32> to vector<8x512xf32>
    %1568 = arith.mulf %1566, %1567 : vector<8x512xf32>
    %1569 = arith.addf %1559, %1568 : vector<8x512xf32>
    %1570 = vector.extract_strided_slice %0 {offsets = [0, 15], sizes = [4, 497], strides = [1, 1]} : vector<4x512xf32> to vector<4x497xf32>
    %1571 = vector.extract_strided_slice %0 {offsets = [0, 0], sizes = [4, 15], strides = [1, 1]} : vector<4x512xf32> to vector<4x15xf32>
    %1572 = tpu.concatenate %1570, %1571 in 1 : vector<4x497xf32>, vector<4x15xf32> -> vector<4x512xf32>
    %1573 = vector.extract_strided_slice %1 {offsets = [6, 0], sizes = [1, 512], strides = [1, 1]} : vector<9x512xf32> to vector<1x512xf32>
    %1574 = vector.shape_cast %1573 : vector<1x512xf32> to vector<512xf32>
    %1575 = vector.shape_cast %1574 : vector<512xf32> to vector<1x512xf32>
    %1576 = vector.broadcast %1575 : vector<1x512xf32> to vector<4x512xf32>
    %1577 = arith.mulf %1572, %1576 : vector<4x512xf32>
    %1578 = vector.extract_strided_slice %1280 {offsets = [24, 0], sizes = [1, 8], strides = [1, 1]} : vector<36x8xf32> to vector<1x8xf32>
    %1579 = vector.shape_cast %1578 : vector<1x8xf32> to vector<8xf32>
    %1580 = vector.shape_cast %1579 : vector<8xf32> to vector<8x1xf32>
    %1581 = vector.extract_strided_slice %1577 {offsets = [0, 0], sizes = [1, 512], strides = [1, 1]} : vector<4x512xf32> to vector<1x512xf32>
    %1582 = vector.shape_cast %1581 : vector<1x512xf32> to vector<512xf32>
    %1583 = vector.shape_cast %1582 : vector<512xf32> to vector<1x512xf32>
    %1584 = vector.broadcast %1580 : vector<8x1xf32> to vector<8x512xf32>
    %1585 = vector.broadcast %1583 : vector<1x512xf32> to vector<8x512xf32>
    %1586 = arith.mulf %1584, %1585 : vector<8x512xf32>
    %1587 = arith.addf %1569, %1586 : vector<8x512xf32>
    %1588 = vector.extract_strided_slice %1280 {offsets = [25, 0], sizes = [1, 8], strides = [1, 1]} : vector<36x8xf32> to vector<1x8xf32>
    %1589 = vector.shape_cast %1588 : vector<1x8xf32> to vector<8xf32>
    %1590 = vector.shape_cast %1589 : vector<8xf32> to vector<8x1xf32>
    %1591 = vector.extract_strided_slice %1577 {offsets = [1, 0], sizes = [1, 512], strides = [1, 1]} : vector<4x512xf32> to vector<1x512xf32>
    %1592 = vector.shape_cast %1591 : vector<1x512xf32> to vector<512xf32>
    %1593 = vector.shape_cast %1592 : vector<512xf32> to vector<1x512xf32>
    %1594 = vector.broadcast %1590 : vector<8x1xf32> to vector<8x512xf32>
    %1595 = vector.broadcast %1593 : vector<1x512xf32> to vector<8x512xf32>
    %1596 = arith.mulf %1594, %1595 : vector<8x512xf32>
    %1597 = arith.addf %1587, %1596 : vector<8x512xf32>
    %1598 = vector.extract_strided_slice %1280 {offsets = [26, 0], sizes = [1, 8], strides = [1, 1]} : vector<36x8xf32> to vector<1x8xf32>
    %1599 = vector.shape_cast %1598 : vector<1x8xf32> to vector<8xf32>
    %1600 = vector.shape_cast %1599 : vector<8xf32> to vector<8x1xf32>
    %1601 = vector.extract_strided_slice %1577 {offsets = [2, 0], sizes = [1, 512], strides = [1, 1]} : vector<4x512xf32> to vector<1x512xf32>
    %1602 = vector.shape_cast %1601 : vector<1x512xf32> to vector<512xf32>
    %1603 = vector.shape_cast %1602 : vector<512xf32> to vector<1x512xf32>
    %1604 = vector.broadcast %1600 : vector<8x1xf32> to vector<8x512xf32>
    %1605 = vector.broadcast %1603 : vector<1x512xf32> to vector<8x512xf32>
    %1606 = arith.mulf %1604, %1605 : vector<8x512xf32>
    %1607 = arith.addf %1597, %1606 : vector<8x512xf32>
    %1608 = vector.extract_strided_slice %1280 {offsets = [27, 0], sizes = [1, 8], strides = [1, 1]} : vector<36x8xf32> to vector<1x8xf32>
    %1609 = vector.shape_cast %1608 : vector<1x8xf32> to vector<8xf32>
    %1610 = vector.shape_cast %1609 : vector<8xf32> to vector<8x1xf32>
    %1611 = vector.extract_strided_slice %1577 {offsets = [3, 0], sizes = [1, 512], strides = [1, 1]} : vector<4x512xf32> to vector<1x512xf32>
    %1612 = vector.shape_cast %1611 : vector<1x512xf32> to vector<512xf32>
    %1613 = vector.shape_cast %1612 : vector<512xf32> to vector<1x512xf32>
    %1614 = vector.broadcast %1610 : vector<8x1xf32> to vector<8x512xf32>
    %1615 = vector.broadcast %1613 : vector<1x512xf32> to vector<8x512xf32>
    %1616 = arith.mulf %1614, %1615 : vector<8x512xf32>
    %1617 = arith.addf %1607, %1616 : vector<8x512xf32>
    %1618 = vector.extract_strided_slice %0 {offsets = [0, 16], sizes = [4, 496], strides = [1, 1]} : vector<4x512xf32> to vector<4x496xf32>
    %1619 = vector.extract_strided_slice %0 {offsets = [0, 0], sizes = [4, 16], strides = [1, 1]} : vector<4x512xf32> to vector<4x16xf32>
    %1620 = tpu.concatenate %1618, %1619 in 1 : vector<4x496xf32>, vector<4x16xf32> -> vector<4x512xf32>
    %1621 = vector.extract_strided_slice %1 {offsets = [7, 0], sizes = [1, 512], strides = [1, 1]} : vector<9x512xf32> to vector<1x512xf32>
    %1622 = vector.shape_cast %1621 : vector<1x512xf32> to vector<512xf32>
    %1623 = vector.shape_cast %1622 : vector<512xf32> to vector<1x512xf32>
    %1624 = vector.broadcast %1623 : vector<1x512xf32> to vector<4x512xf32>
    %1625 = arith.mulf %1620, %1624 : vector<4x512xf32>
    %1626 = vector.extract_strided_slice %1280 {offsets = [28, 0], sizes = [1, 8], strides = [1, 1]} : vector<36x8xf32> to vector<1x8xf32>
    %1627 = vector.shape_cast %1626 : vector<1x8xf32> to vector<8xf32>
    %1628 = vector.shape_cast %1627 : vector<8xf32> to vector<8x1xf32>
    %1629 = vector.extract_strided_slice %1625 {offsets = [0, 0], sizes = [1, 512], strides = [1, 1]} : vector<4x512xf32> to vector<1x512xf32>
    %1630 = vector.shape_cast %1629 : vector<1x512xf32> to vector<512xf32>
    %1631 = vector.shape_cast %1630 : vector<512xf32> to vector<1x512xf32>
    %1632 = vector.broadcast %1628 : vector<8x1xf32> to vector<8x512xf32>
    %1633 = vector.broadcast %1631 : vector<1x512xf32> to vector<8x512xf32>
    %1634 = arith.mulf %1632, %1633 : vector<8x512xf32>
    %1635 = arith.addf %1617, %1634 : vector<8x512xf32>
    %1636 = vector.extract_strided_slice %1280 {offsets = [29, 0], sizes = [1, 8], strides = [1, 1]} : vector<36x8xf32> to vector<1x8xf32>
    %1637 = vector.shape_cast %1636 : vector<1x8xf32> to vector<8xf32>
    %1638 = vector.shape_cast %1637 : vector<8xf32> to vector<8x1xf32>
    %1639 = vector.extract_strided_slice %1625 {offsets = [1, 0], sizes = [1, 512], strides = [1, 1]} : vector<4x512xf32> to vector<1x512xf32>
    %1640 = vector.shape_cast %1639 : vector<1x512xf32> to vector<512xf32>
    %1641 = vector.shape_cast %1640 : vector<512xf32> to vector<1x512xf32>
    %1642 = vector.broadcast %1638 : vector<8x1xf32> to vector<8x512xf32>
    %1643 = vector.broadcast %1641 : vector<1x512xf32> to vector<8x512xf32>
    %1644 = arith.mulf %1642, %1643 : vector<8x512xf32>
    %1645 = arith.addf %1635, %1644 : vector<8x512xf32>
    %1646 = vector.extract_strided_slice %1280 {offsets = [30, 0], sizes = [1, 8], strides = [1, 1]} : vector<36x8xf32> to vector<1x8xf32>
    %1647 = vector.shape_cast %1646 : vector<1x8xf32> to vector<8xf32>
    %1648 = vector.shape_cast %1647 : vector<8xf32> to vector<8x1xf32>
    %1649 = vector.extract_strided_slice %1625 {offsets = [2, 0], sizes = [1, 512], strides = [1, 1]} : vector<4x512xf32> to vector<1x512xf32>
    %1650 = vector.shape_cast %1649 : vector<1x512xf32> to vector<512xf32>
    %1651 = vector.shape_cast %1650 : vector<512xf32> to vector<1x512xf32>
    %1652 = vector.broadcast %1648 : vector<8x1xf32> to vector<8x512xf32>
    %1653 = vector.broadcast %1651 : vector<1x512xf32> to vector<8x512xf32>
    %1654 = arith.mulf %1652, %1653 : vector<8x512xf32>
    %1655 = arith.addf %1645, %1654 : vector<8x512xf32>
    %1656 = vector.extract_strided_slice %1280 {offsets = [31, 0], sizes = [1, 8], strides = [1, 1]} : vector<36x8xf32> to vector<1x8xf32>
    %1657 = vector.shape_cast %1656 : vector<1x8xf32> to vector<8xf32>
    %1658 = vector.shape_cast %1657 : vector<8xf32> to vector<8x1xf32>
    %1659 = vector.extract_strided_slice %1625 {offsets = [3, 0], sizes = [1, 512], strides = [1, 1]} : vector<4x512xf32> to vector<1x512xf32>
    %1660 = vector.shape_cast %1659 : vector<1x512xf32> to vector<512xf32>
    %1661 = vector.shape_cast %1660 : vector<512xf32> to vector<1x512xf32>
    %1662 = vector.broadcast %1658 : vector<8x1xf32> to vector<8x512xf32>
    %1663 = vector.broadcast %1661 : vector<1x512xf32> to vector<8x512xf32>
    %1664 = arith.mulf %1662, %1663 : vector<8x512xf32>
    %1665 = arith.addf %1655, %1664 : vector<8x512xf32>
    %1666 = vector.extract_strided_slice %0 {offsets = [0, 17], sizes = [4, 495], strides = [1, 1]} : vector<4x512xf32> to vector<4x495xf32>
    %1667 = vector.extract_strided_slice %0 {offsets = [0, 0], sizes = [4, 17], strides = [1, 1]} : vector<4x512xf32> to vector<4x17xf32>
    %1668 = tpu.concatenate %1666, %1667 in 1 : vector<4x495xf32>, vector<4x17xf32> -> vector<4x512xf32>
    %1669 = vector.extract_strided_slice %1 {offsets = [8, 0], sizes = [1, 512], strides = [1, 1]} : vector<9x512xf32> to vector<1x512xf32>
    %1670 = vector.shape_cast %1669 : vector<1x512xf32> to vector<512xf32>
    %1671 = vector.shape_cast %1670 : vector<512xf32> to vector<1x512xf32>
    %1672 = vector.broadcast %1671 : vector<1x512xf32> to vector<4x512xf32>
    %1673 = arith.mulf %1668, %1672 : vector<4x512xf32>
    %1674 = vector.extract_strided_slice %1280 {offsets = [32, 0], sizes = [1, 8], strides = [1, 1]} : vector<36x8xf32> to vector<1x8xf32>
    %1675 = vector.shape_cast %1674 : vector<1x8xf32> to vector<8xf32>
    %1676 = vector.shape_cast %1675 : vector<8xf32> to vector<8x1xf32>
    %1677 = vector.extract_strided_slice %1673 {offsets = [0, 0], sizes = [1, 512], strides = [1, 1]} : vector<4x512xf32> to vector<1x512xf32>
    %1678 = vector.shape_cast %1677 : vector<1x512xf32> to vector<512xf32>
    %1679 = vector.shape_cast %1678 : vector<512xf32> to vector<1x512xf32>
    %1680 = vector.broadcast %1676 : vector<8x1xf32> to vector<8x512xf32>
    %1681 = vector.broadcast %1679 : vector<1x512xf32> to vector<8x512xf32>
    %1682 = arith.mulf %1680, %1681 : vector<8x512xf32>
    %1683 = arith.addf %1665, %1682 : vector<8x512xf32>
    %1684 = vector.extract_strided_slice %1280 {offsets = [33, 0], sizes = [1, 8], strides = [1, 1]} : vector<36x8xf32> to vector<1x8xf32>
    %1685 = vector.shape_cast %1684 : vector<1x8xf32> to vector<8xf32>
    %1686 = vector.shape_cast %1685 : vector<8xf32> to vector<8x1xf32>
    %1687 = vector.extract_strided_slice %1673 {offsets = [1, 0], sizes = [1, 512], strides = [1, 1]} : vector<4x512xf32> to vector<1x512xf32>
    %1688 = vector.shape_cast %1687 : vector<1x512xf32> to vector<512xf32>
    %1689 = vector.shape_cast %1688 : vector<512xf32> to vector<1x512xf32>
    %1690 = vector.broadcast %1686 : vector<8x1xf32> to vector<8x512xf32>
    %1691 = vector.broadcast %1689 : vector<1x512xf32> to vector<8x512xf32>
    %1692 = arith.mulf %1690, %1691 : vector<8x512xf32>
    %1693 = arith.addf %1683, %1692 : vector<8x512xf32>
    %1694 = vector.extract_strided_slice %1280 {offsets = [34, 0], sizes = [1, 8], strides = [1, 1]} : vector<36x8xf32> to vector<1x8xf32>
    %1695 = vector.shape_cast %1694 : vector<1x8xf32> to vector<8xf32>
    %1696 = vector.shape_cast %1695 : vector<8xf32> to vector<8x1xf32>
    %1697 = vector.extract_strided_slice %1673 {offsets = [2, 0], sizes = [1, 512], strides = [1, 1]} : vector<4x512xf32> to vector<1x512xf32>
    %1698 = vector.shape_cast %1697 : vector<1x512xf32> to vector<512xf32>
    %1699 = vector.shape_cast %1698 : vector<512xf32> to vector<1x512xf32>
    %1700 = vector.broadcast %1696 : vector<8x1xf32> to vector<8x512xf32>
    %1701 = vector.broadcast %1699 : vector<1x512xf32> to vector<8x512xf32>
    %1702 = arith.mulf %1700, %1701 : vector<8x512xf32>
    %1703 = arith.addf %1693, %1702 : vector<8x512xf32>
    %1704 = vector.extract_strided_slice %1280 {offsets = [35, 0], sizes = [1, 8], strides = [1, 1]} : vector<36x8xf32> to vector<1x8xf32>
    %1705 = vector.shape_cast %1704 : vector<1x8xf32> to vector<8xf32>
    %1706 = vector.shape_cast %1705 : vector<8xf32> to vector<8x1xf32>
    %1707 = vector.extract_strided_slice %1673 {offsets = [3, 0], sizes = [1, 512], strides = [1, 1]} : vector<4x512xf32> to vector<1x512xf32>
    %1708 = vector.shape_cast %1707 : vector<1x512xf32> to vector<512xf32>
    %1709 = vector.shape_cast %1708 : vector<512xf32> to vector<1x512xf32>
    %1710 = vector.broadcast %1706 : vector<8x1xf32> to vector<8x512xf32>
    %1711 = vector.broadcast %1709 : vector<1x512xf32> to vector<8x512xf32>
    %1712 = arith.mulf %1710, %1711 : vector<8x512xf32>
    %1713 = arith.addf %1703, %1712 : vector<8x512xf32>
    %c0_37 = arith.constant 0 : index
    %c0_38 = arith.constant 0 : index
    %1714 = vector.load %arg12[%c0_37, %c0_38] : memref<8x1xf32, #tpu.memory_space<vmem>>, vector<8x1xf32>
    %c0_39 = arith.constant 0 : index
    %c0_40 = arith.constant 0 : index
    %1715 = vector.load %arg13[%c0_39, %c0_40] : memref<8x1xf32, #tpu.memory_space<vmem>>, vector<8x1xf32>
    %cst_41 = arith.constant dense<0.000000e+00> : vector<8xf32>
    %1716 = vector.multi_reduction <add>, %1713, %cst_41 [1] : vector<8x512xf32> to vector<8xf32>
    %1717 = vector.shape_cast %1716 : vector<8xf32> to vector<8x1xf32>
    %cst_42 = arith.constant 5.120000e+02 : f32
    %1718 = vector.broadcast %cst_42 : f32 to vector<8x1xf32>
    %1719 = arith.divf %1717, %1718 : vector<8x1xf32>
    %1720 = vector.broadcast %1719 : vector<8x1xf32> to vector<8x512xf32>
    %1721 = arith.subf %1713, %1720 : vector<8x512xf32>
    %1722 = arith.mulf %1721, %1721 : vector<8x512xf32>
    %cst_43 = arith.constant dense<0.000000e+00> : vector<8xf32>
    %1723 = vector.multi_reduction <add>, %1722, %cst_43 [1] : vector<8x512xf32> to vector<8xf32>
    %1724 = vector.shape_cast %1723 : vector<8xf32> to vector<8x1xf32>
    %cst_44 = arith.constant 5.120000e+02 : f32
    %1725 = vector.broadcast %cst_44 : f32 to vector<8x1xf32>
    %1726 = arith.divf %1724, %1725 : vector<8x1xf32>
    %cst_45 = arith.constant 9.99999974E-6 : f32
    %1727 = vector.broadcast %cst_45 : f32 to vector<8x1xf32>
    %1728 = arith.addf %1726, %1727 : vector<8x1xf32>
    %1729 = math.rsqrt %1728 : vector<8x1xf32>
    %1730 = arith.mulf %1714, %1729 : vector<8x1xf32>
    %1731 = arith.mulf %1719, %1730 : vector<8x1xf32>
    %1732 = arith.subf %1715, %1731 : vector<8x1xf32>
    %1733 = vector.broadcast %1730 : vector<8x1xf32> to vector<8x512xf32>
    %1734 = arith.mulf %1713, %1733 : vector<8x512xf32>
    %1735 = arith.addf %1279, %1734 : vector<8x512xf32>
    %1736 = vector.broadcast %1732 : vector<8x1xf32> to vector<8x512xf32>
    %1737 = arith.addf %1735, %1736 : vector<8x512xf32>
    %c0_46 = arith.constant 0 : index
    %c0_47 = arith.constant 0 : index
    %1738 = vector.load %arg14[%c0_46, %c0_47] : memref<8x512xf32, #tpu.memory_space<vmem>>, vector<8x512xf32>
    tpu.vector_store %arg14[%c0_46, %c0_47], %1737 {strides = array<i32>} : memref<8x512xf32, #tpu.memory_space<vmem>>, vector<8x512xf32>,
    return
  }
}

</mosaic_0001>

<llo_original>
// kernel: residual_conv_forward.1
$region0: #{residual_conv_forward.1}
  #allocation0 [shape = 'u32[]', space=smem, size = 0x4, offset = 0x4, fixed_abs, tag = 'smem constant byte address 0x4 - core index']
  #allocation1 [shape = 'u32[144,128]{1,0:T(1,128)}', space=vmem, size = 0x12000, scoped, tag = 'internal scratch']
  %s0 = inlined_call_operand.vmem [shape: f32[4,512], index: 0, kind: input, shape index: {}]
  %s1 = inlined_call_operand.vmem [shape: f32[9,512], index: 1, kind: input, shape index: {}]
  %s2 = inlined_call_operand.vmem [shape: f32[36,8], index: 2, kind: input, shape index: {}]
  %s3 = inlined_call_operand.vmem [shape: f32[8,1], index: 3, kind: input, shape index: {}]
  %s4 = inlined_call_operand.vmem [shape: f32[4,1], index: 4, kind: input, shape index: {}]
  %s5 = inlined_call_operand.vmem [shape: f32[4,1], index: 5, kind: input, shape index: {}]
  %s6 = inlined_call_operand.vmem [shape: f32[8,1], index: 6, kind: input, shape index: {}]
  %s7 = inlined_call_operand.vmem [shape: f32[8,1], index: 7, kind: input, shape index: {}]
  %s8 = inlined_call_operand.vmem [shape: f32[72,8], index: 8, kind: input, shape index: {}]
  %s9 = inlined_call_operand.vmem [shape: f32[8,1], index: 9, kind: input, shape index: {}]
  %s10 = inlined_call_operand.vmem [shape: f32[36,8], index: 10, kind: input, shape index: {}]
  %s11 = inlined_call_operand.vmem [shape: f32[8,1], index: 11, kind: input, shape index: {}]
  %s12 = inlined_call_operand.vmem [shape: f32[8,1], index: 12, kind: input, shape index: {}]
  %s13 = inlined_call_operand.vmem [shape: f32[8,1], index: 13, kind: input, shape index: {}]
  %s14 = inlined_call_operand.vmem [shape: f32[8,512], index: 14, kind: output, shape index: {}]
  %s15 = sld [smem:[#allocation0]]
  $region66: #{residual_conv_forward.1} parent=0
    _
  %s17 = ssub.s32 1, %s15
  %s18 = scalar_select 0, %s17, %s15
  // Predicated region
  $region2: #{residual_conv_forward.1} parent=0 // pred_check
    _
  $region3: #{residual_conv_forward.1} parent=0 // pred_check_branch
    %20 = sbr.rel (0) target = $region5
  $region4: #{residual_conv_forward.1} parent=0 // pred_region
    _
  $region5: #{residual_conv_forward.1} parent=0 // pred_fallthru
    _
  // Predicated region
  $region6: #{residual_conv_forward.1} parent=0 // pred_check
    _
  $region7: #{residual_conv_forward.1} parent=0 // pred_check_branch
    %22 = sbr.rel (0) target = $region9
  $region8: #{residual_conv_forward.1} parent=0 // pred_region
    _
  $region9: #{residual_conv_forward.1} parent=0 // pred_fallthru
    _
  // Predicated region
  $region10: #{residual_conv_forward.1} parent=0 // pred_check
    _
  $region11: #{residual_conv_forward.1} parent=0 // pred_check_branch
    %24 = sbr.rel (0) target = $region13
  $region12: #{residual_conv_forward.1} parent=0 // pred_region
    _
  $region13: #{residual_conv_forward.1} parent=0 // pred_fallthru
    _
  // Predicated region
  $region14: #{residual_conv_forward.1} parent=0 // pred_check
    _
  $region15: #{residual_conv_forward.1} parent=0 // pred_check_branch
    %26 = sbr.rel (0) target = $region17
  $region16: #{residual_conv_forward.1} parent=0 // pred_region
    _
  $region17: #{residual_conv_forward.1} parent=0 // pred_fallthru
    _
  // Predicated region
  $region18: #{residual_conv_forward.1} parent=0 // pred_check
    _
  $region19: #{residual_conv_forward.1} parent=0 // pred_check_branch
    %28 = sbr.rel (0) target = $region21
  $region20: #{residual_conv_forward.1} parent=0 // pred_region
    _
  $region21: #{residual_conv_forward.1} parent=0 // pred_fallthru
    _
  // Predicated region
  $region22: #{residual_conv_forward.1} parent=0 // pred_check
    _
  $region23: #{residual_conv_forward.1} parent=0 // pred_check_branch
    %30 = sbr.rel (0) target = $region25
  $region24: #{residual_conv_forward.1} parent=0 // pred_region
    _
  $region25: #{residual_conv_forward.1} parent=0 // pred_fallthru
    _
  // Predicated region
  $region26: #{residual_conv_forward.1} parent=0 // pred_check
    _
  $region27: #{residual_conv_forward.1} parent=0 // pred_check_branch
    %32 = sbr.rel (0) target = $region29
  $region28: #{residual_conv_forward.1} parent=0 // pred_region
    _
  $region29: #{residual_conv_forward.1} parent=0 // pred_fallthru
    _
  // Predicated region
  $region30: #{residual_conv_forward.1} parent=0 // pred_check
    _
  $region31: #{residual_conv_forward.1} parent=0 // pred_check_branch
    %34 = sbr.rel (0) target = $region33
  $region32: #{residual_conv_forward.1} parent=0 // pred_region
    _
  $region33: #{residual_conv_forward.1} parent=0 // pred_fallthru
    _
  // Predicated region
  $region34: #{residual_conv_forward.1} parent=0 // pred_check
    _
  $region35: #{residual_conv_forward.1} parent=0 // pred_check_branch
    %36 = sbr.rel (0) target = $region37
  $region36: #{residual_conv_forward.1} parent=0 // pred_region
    _
  $region37: #{residual_conv_forward.1} parent=0 // pred_fallthru
    _
  // Predicated region
  $region38: #{residual_conv_forward.1} parent=0 // pred_check
    _
  $region39: #{residual_conv_forward.1} parent=0 // pred_check_branch
    %38 = sbr.rel (0) target = $region41
  $region40: #{residual_conv_forward.1} parent=0 // pred_region
    _
  $region41: #{residual_conv_forward.1} parent=0 // pred_fallthru
    _
  // Predicated region
  $region42: #{residual_conv_forward.1} parent=0 // pred_check
    _
  $region43: #{residual_conv_forward.1} parent=0 // pred_check_branch
    %40 = sbr.rel (0) target = $region45
  $region44: #{residual_conv_forward.1} parent=0 // pred_region
    _
  $region45: #{residual_conv_forward.1} parent=0 // pred_fallthru
    _
  // Predicated region
  $region46: #{residual_conv_forward.1} parent=0 // pred_check
    _
  $region47: #{residual_conv_forward.1} parent=0 // pred_check_branch
    %42 = sbr.rel (0) target = $region49
  $region48: #{residual_conv_forward.1} parent=0 // pred_region
    _
  $region49: #{residual_conv_forward.1} parent=0 // pred_fallthru
    _
  // Predicated region
  $region50: #{residual_conv_forward.1} parent=0 // pred_check
    _
  $region51: #{residual_conv_forward.1} parent=0 // pred_check_branch
    %44 = sbr.rel (0) target = $region53
  $region52: #{residual_conv_forward.1} parent=0 // pred_region
    _
  $region53: #{residual_conv_forward.1} parent=0 // pred_fallthru
    _
  // Predicated region
  $region54: #{residual_conv_forward.1} parent=0 // pred_check
    _
  $region55: #{residual_conv_forward.1} parent=0 // pred_check_branch
    %46 = sbr.rel (0) target = $region57
  $region56: #{residual_conv_forward.1} parent=0 // pred_region
    _
  $region57: #{residual_conv_forward.1} parent=0 // pred_fallthru
    _
  %v47 = vld [vmem:[%s0] sm:$0xff]
  %v48 = vld [vmem:[%s0 + $0x8] sm:$0xff]
  %v49 = vld [vmem:[%s1] sm:$0xff]
  %v50 = vld [vmem:[%s1 + $0x8] sm:$0xff]
  %v51 = vld [vmem:[%s1 + $0x10] sm:$0xff]
  %v52 = vld [vmem:[%s1 + $0x18] sm:$0xff]
  %v53 = vld [vmem:[%s1 + $0x20] sm:$0x1]
  %v54 = vld [vmem:[%s1 + $0x28] sm:$0x1]
  %v55 = vld [vmem:[%s1 + $0x30] sm:$0x1]
  %v56 = vld [vmem:[%s1 + $0x38] sm:$0x1]
  %v57 = vld [vmem:[%s4] sm:$0xf]
  %v58 = vld [vmem:[%s5] sm:$0xf]
  %v61 = vcombine.high %v47, %v47
  %v62 = vcombine.high %v48, %v48
  %vm65 = vcmask 1043456
  %v66 = vsel %vm65, %v47, 0.0
  %v67 = vsel %vm65, %v61, 0.0
  %v68 = vadd.f32 %v66, %v67
  %v69 = vsel %vm65, %v48, 0.0
  %v70 = vadd.f32 %v68, %v69
  %v71 = vsel %vm65, %v62, 0.0
  %v72 = vadd.f32 %v70, %v71
  %73 = vadd.xlane.f32.xlu0 %v72
  %v74 = vpop.xlane.xlu0 %73
  %v75 = vrcp.pop 512.0
  %v76 = vmul.f32 %v74, %v75
  %v79 = vunpack.c.l.s4 839922192
  %v80 = vunpack.c.0.s8 %v79
  %v81 = vlaneseq
  %v82 = vshrl.u32 %v81, 7
  %v83 = vsub.s32 %v80, %v82
  %v84 = vrot.slane %v76, %v83
  %v86 = vsub.f32 %v47, %v84
  %v87 = vsub.f32 %v48, %v84
  %v88 = vmul.f32 %v86, %v86
  %v89 = vmul.f32 %v87, %v87
  %v92 = vcombine.high %v88, %v88
  %v93 = vcombine.high %v89, %v89
  %v96 = vsel %vm65, %v88, 0.0
  %v97 = vsel %vm65, %v92, 0.0
  %v98 = vadd.f32 %v96, %v97
  %v99 = vsel %vm65, %v89, 0.0
  %v100 = vadd.f32 %v98, %v99
  %v101 = vsel %vm65, %v93, 0.0
  %v102 = vadd.f32 %v100, %v101
  %103 = vadd.xlane.f32.xlu0 %v102
  %v104 = vpop.xlane.xlu0 %103
  %v105 = vmul.f32 %v104, %v75
  %v106 = vadd.f32 %v105, 1e-05
  %v107 = vrsqrt.pop %v106
  %v108 = vmul.f32 %v57, %v107
  %v109 = vmul.f32 %v76, %v108
  %v110 = vsub.f32 %v58, %v109
  %112 = vset.pattern.permute.xlu0 0
  %113 = vperm.xlu0 %112, %v108
  %v114 = vpop.permute.xlu0 %113
  %v116 = vunpack.c.l.s4 839922192
  %v117 = vunpack.c.0.s8 %v116
  %v118 = vlaneseq
  %v119 = vshrl.u32 %v118, 7
  %v120 = vsub.s32 %v117, %v119
  %v121 = vrot.slane %v114, %v120
  %v123 = vmul.f32 %v47, %v121
  %v124 = vmul.f32 %v48, %v121
  %126 = vset.pattern.permute.xlu0 0
  %127 = vperm.xlu0 %126, %v110
  %v128 = vpop.permute.xlu0 %127
  %v130 = vunpack.c.l.s4 839922192
  %v131 = vunpack.c.0.s8 %v130
  %v132 = vlaneseq
  %v133 = vshrl.u32 %v132, 7
  %v134 = vsub.s32 %v131, %v133
  %v135 = vrot.slane %v128, %v134
  %v137 = vadd.f32 %v123, %v135
  %v138 = vadd.f32 %v124, %v135
  %v139 = vmax.f32 %v137, 0.0
  %v140 = vmax.f32 %v138, 0.0
  %v141 = vld [vmem:[%s2] sm:$0xff]
  %v142 = vld [vmem:[%s2 + $0x8] sm:$0xff]
  %v143 = vld [vmem:[%s2 + $0x10] sm:$0xff]
  %v144 = vld [vmem:[%s2 + $0x18] sm:$0xff]
  %v145 = vld [vmem:[%s2 + $0x20] sm:$0xf]
  %v146 = vld [vmem:[%s3] sm:$0xff]
  %148 = vset.pattern.permute.xlu0 0
  %149 = vperm.xlu0 %148, %v146
  %v150 = vpop.permute.xlu0 %149
  %v152 = vadd.f32 %v150, 0.0
  %v154 = vcombine.high %v140, %v140
  %155 = vrot.lane.b32.xlu0 %v154, 17
  %v156 = vpop.permute.xlu0 %155
  %v159 = vcombine.high %v139, %v139
  %160 = vrot.lane.b32.xlu0 %v139, 17
  %v161 = vpop.permute.xlu0 %160
  %162 = vrot.lane.b32.xlu0 %v159, 17
  %v163 = vpop.permute.xlu0 %162
  %164 = vrot.lane.b32.xlu0 %v140, 17
  %v165 = vpop.permute.xlu0 %164
  %vm166 = vcmask 138240
  %v167 = vsel %vm166, %v161, %v163
  %v168 = vsel %vm166, %v163, %v165
  %v169 = vsel %vm166, %v165, %v156
  %v174 = vsel %vm166, %v156, %v161
  %v175 = vlaneseq
  %v176 = vshrl.u32 %v175, 7
  %v177 = vsub.s32 0, %v176
  %v178 = vrot.slane %v49, %v177
  %v179 = vlaneseq
  %v180 = vshrl.u32 %v179, 7
  %v181 = vsub.s32 0, %v180
  %v182 = vrot.slane %v50, %v181
  %v183 = vlaneseq
  %v184 = vshrl.u32 %v183, 7
  %v185 = vsub.s32 0, %v184
  %v186 = vrot.slane %v51, %v185
  %v187 = vlaneseq
  %v188 = vshrl.u32 %v187, 7
  %v189 = vsub.s32 0, %v188
  %v190 = vrot.slane %v52, %v189
  %v191 = vmul.f32 %v174, %v178
  %v192 = vmul.f32 %v167, %v182
  %v193 = vmul.f32 %v168, %v186
  %v194 = vmul.f32 %v169, %v190
  %v195 = vlaneseq
  %v196 = vshrl.u32 %v195, 7
  %v197 = vsub.s32 0, %v196
  %v198 = vrot.slane %v141, %v197
  %200 = vbcast.lane.b32.xlu0 %v198, 256
  %v201 = vpop.permute.xlu0 %200
  %v202 = vlaneseq
  %v203 = vshrl.u32 %v202, 7
  %v204 = vsub.s32 0, %v203
  %v205 = vrot.slane %v191, %v204
  %v206 = vlaneseq
  %v207 = vshrl.u32 %v206, 7
  %v208 = vsub.s32 0, %v207
  %v209 = vrot.slane %v192, %v208
  %v210 = vlaneseq
  %v211 = vshrl.u32 %v210, 7
  %v212 = vsub.s32 0, %v211
  %v213 = vrot.slane %v193, %v212
  %v214 = vlaneseq
  %v215 = vshrl.u32 %v214, 7
  %v216 = vsub.s32 0, %v215
  %v217 = vrot.slane %v194, %v216
  %v218 = vmul.f32 %v201, %v205
  %v219 = vmul.f32 %v201, %v209
  %v220 = vmul.f32 %v201, %v213
  %v221 = vmul.f32 %v201, %v217
  %v222 = vadd.f32 %v152, %v218
  %v223 = vadd.f32 %v152, %v219
  %v224 = vadd.f32 %v152, %v220
  %v225 = vadd.f32 %v152, %v221
  %v226 = vlaneseq
  %v227 = vshrl.u32 %v226, 7
  %v228 = vsub.s32 1, %v227
  %v229 = vrot.slane %v141, %v228
  %231 = vbcast.lane.b32.xlu0 %v229, 256
  %v232 = vpop.permute.xlu0 %231
  %v233 = vlaneseq
  %v234 = vshrl.u32 %v233, 7
  %v235 = vsub.s32 1, %v234
  %v236 = vrot.slane %v191, %v235
  %v237 = vlaneseq
  %v238 = vshrl.u32 %v237, 7
  %v239 = vsub.s32 1, %v238
  %v240 = vrot.slane %v192, %v239
  %v241 = vlaneseq
  %v242 = vshrl.u32 %v241, 7
  %v243 = vsub.s32 1, %v242
  %v244 = vrot.slane %v193, %v243
  %v245 = vlaneseq
  %v246 = vshrl.u32 %v245, 7
  %v247 = vsub.s32 1, %v246
  %v248 = vrot.slane %v194, %v247
  %v249 = vmul.f32 %v232, %v236
  %v250 = vmul.f32 %v232, %v240
  %v251 = vmul.f32 %v232, %v244
  %v252 = vmul.f32 %v232, %v248
  %v253 = vadd.f32 %v222, %v249
  %v254 = vadd.f32 %v223, %v250
  %v255 = vadd.f32 %v224, %v251
  %v256 = vadd.f32 %v225, %v252
  %v257 = vlaneseq
  %v258 = vshrl.u32 %v257, 7
  %v259 = vsub.s32 2, %v258
  %v260 = vrot.slane %v141, %v259
  %262 = vbcast.lane.b32.xlu0 %v260, 256
  %v263 = vpop.permute.xlu0 %262
  %v264 = vlaneseq
  %v265 = vshrl.u32 %v264, 7
  %v266 = vsub.s32 2, %v265
  %v267 = vrot.slane %v191, %v266
  %v268 = vlaneseq
  %v269 = vshrl.u32 %v268, 7
  %v270 = vsub.s32 2, %v269
  %v271 = vrot.slane %v192, %v270
  %v272 = vlaneseq
  %v273 = vshrl.u32 %v272, 7
  %v274 = vsub.s32 2, %v273
  %v275 = vrot.slane %v193, %v274
  %v276 = vlaneseq
  %v277 = vshrl.u32 %v276, 7
  %v278 = vsub.s32 2, %v277
  %v279 = vrot.slane %v194, %v278
  %v280 = vmul.f32 %v263, %v267
  %v281 = vmul.f32 %v263, %v271
  %v282 = vmul.f32 %v263, %v275
  %v283 = vmul.f32 %v263, %v279
  %v284 = vadd.f32 %v253, %v280
  %v285 = vadd.f32 %v254, %v281
  %v286 = vadd.f32 %v255, %v282
  %v287 = vadd.f32 %v256, %v283
  %v288 = vlaneseq
  %v289 = vshrl.u32 %v288, 7
  %v290 = vsub.s32 3, %v289
  %v291 = vrot.slane %v141, %v290
  %293 = vbcast.lane.b32.xlu0 %v291, 256
  %v294 = vpop.permute.xlu0 %293
  %v295 = vlaneseq
  %v296 = vshrl.u32 %v295, 7
  %v297 = vsub.s32 3, %v296
  %v298 = vrot.slane %v191, %v297
  %v299 = vlaneseq
  %v300 = vshrl.u32 %v299, 7
  %v301 = vsub.s32 3, %v300
  %v302 = vrot.slane %v192, %v301
  %v303 = vlaneseq
  %v304 = vshrl.u32 %v303, 7
  %v305 = vsub.s32 3, %v304
  %v306 = vrot.slane %v193, %v305
  %v307 = vlaneseq
  %v308 = vshrl.u32 %v307, 7
  %v309 = vsub.s32 3, %v308
  %v310 = vrot.slane %v194, %v309
  %v311 = vmul.f32 %v294, %v298
  %v312 = vmul.f32 %v294, %v302
  %v313 = vmul.f32 %v294, %v306
  %v314 = vmul.f32 %v294, %v310
  %v315 = vadd.f32 %v284, %v311
  %v316 = vadd.f32 %v285, %v312
  %v317 = vadd.f32 %v286, %v313
  %v318 = vadd.f32 %v287, %v314
  %319 = vrot.lane.b32.xlu0 %v154, 16
  %v320 = vpop.permute.xlu0 %319
  %322 = vrot.lane.b32.xlu0 %v139, 16
  %v323 = vpop.permute.xlu0 %322
  %324 = vrot.lane.b32.xlu0 %v159, 16
  %v325 = vpop.permute.xlu0 %324
  %326 = vrot.lane.b32.xlu0 %v140, 16
  %v327 = vpop.permute.xlu0 %326
  %vm328 = vcmask 130048
  %v329 = vsel %vm328, %v323, %v325
  %v330 = vsel %vm328, %v325, %v327
  %v331 = vsel %vm328, %v327, %v320
  %v336 = vsel %vm328, %v320, %v323
  %v337 = vlaneseq
  %v338 = vshrl.u32 %v337, 7
  %v339 = vsub.s32 1, %v338
  %v340 = vrot.slane %v49, %v339
  %v341 = vlaneseq
  %v342 = vshrl.u32 %v341, 7
  %v343 = vsub.s32 1, %v342
  %v344 = vrot.slane %v50, %v343
  %v345 = vlaneseq
  %v346 = vshrl.u32 %v345, 7
  %v347 = vsub.s32 1, %v346
  %v348 = vrot.slane %v51, %v347
  %v349 = vlaneseq
  %v350 = vshrl.u32 %v349, 7
  %v351 = vsub.s32 1, %v350
  %v352 = vrot.slane %v52, %v351
  %v353 = vmul.f32 %v336, %v340
  %v354 = vmul.f32 %v329, %v344
  %v355 = vmul.f32 %v330, %v348
  %v356 = vmul.f32 %v331, %v352
  %v357 = vlaneseq
  %v358 = vshrl.u32 %v357, 7
  %v359 = vsub.s32 4, %v358
  %v360 = vrot.slane %v141, %v359
  %362 = vbcast.lane.b32.xlu0 %v360, 256
  %v363 = vpop.permute.xlu0 %362
  %v364 = vlaneseq
  %v365 = vshrl.u32 %v364, 7
  %v366 = vsub.s32 0, %v365
  %v367 = vrot.slane %v353, %v366
  %v368 = vlaneseq
  %v369 = vshrl.u32 %v368, 7
  %v370 = vsub.s32 0, %v369
  %v371 = vrot.slane %v354, %v370
  %v372 = vlaneseq
  %v373 = vshrl.u32 %v372, 7
  %v374 = vsub.s32 0, %v373
  %v375 = vrot.slane %v355, %v374
  %v376 = vlaneseq
  %v377 = vshrl.u32 %v376, 7
  %v378 = vsub.s32 0, %v377
  %v379 = vrot.slane %v356, %v378
  %v380 = vmul.f32 %v363, %v367
  %v381 = vmul.f32 %v363, %v371
  %v382 = vmul.f32 %v363, %v375
  %v383 = vmul.f32 %v363, %v379
  %v384 = vadd.f32 %v315, %v380
  %v385 = vadd.f32 %v316, %v381
  %v386 = vadd.f32 %v317, %v382
  %v387 = vadd.f32 %v318, %v383
  %v388 = vlaneseq
  %v389 = vshrl.u32 %v388, 7
  %v390 = vsub.s32 5, %v389
  %v391 = vrot.slane %v141, %v390
  %393 = vbcast.lane.b32.xlu0 %v391, 256
  %v394 = vpop.permute.xlu0 %393
  %v395 = vlaneseq
  %v396 = vshrl.u32 %v395, 7
  %v397 = vsub.s32 1, %v396
  %v398 = vrot.slane %v353, %v397
  %v399 = vlaneseq
  %v400 = vshrl.u32 %v399, 7
  %v401 = vsub.s32 1, %v400
  %v402 = vrot.slane %v354, %v401
  %v403 = vlaneseq
  %v404 = vshrl.u32 %v403, 7
  %v405 = vsub.s32 1, %v404
  %v406 = vrot.slane %v355, %v405
  %v407 = vlaneseq
  %v408 = vshrl.u32 %v407, 7
  %v409 = vsub.s32 1, %v408
  %v410 = vrot.slane %v356, %v409
  %v411 = vmul.f32 %v394, %v398
  %v412 = vmul.f32 %v394, %v402
  %v413 = vmul.f32 %v394, %v406
  %v414 = vmul.f32 %v394, %v410
  %v415 = vadd.f32 %v384, %v411
  %v416 = vadd.f32 %v385, %v412
  %v417 = vadd.f32 %v386, %v413
  %v418 = vadd.f32 %v387, %v414
  %v419 = vlaneseq
  %v420 = vshrl.u32 %v419, 7
  %v421 = vsub.s32 6, %v420
  %v422 = vrot.slane %v141, %v421
  %424 = vbcast.lane.b32.xlu0 %v422, 256
  %v425 = vpop.permute.xlu0 %424
  %v426 = vlaneseq
  %v427 = vshrl.u32 %v426, 7
  %v428 = vsub.s32 2, %v427
  %v429 = vrot.slane %v353, %v428
  %v430 = vlaneseq
  %v431 = vshrl.u32 %v430, 7
  %v432 = vsub.s32 2, %v431
  %v433 = vrot.slane %v354, %v432
  %v434 = vlaneseq
  %v435 = vshrl.u32 %v434, 7
  %v436 = vsub.s32 2, %v435
  %v437 = vrot.slane %v355, %v436
  %v438 = vlaneseq
  %v439 = vshrl.u32 %v438, 7
  %v440 = vsub.s32 2, %v439
  %v441 = vrot.slane %v356, %v440
  %v442 = vmul.f32 %v425, %v429
  %v443 = vmul.f32 %v425, %v433
  %v444 = vmul.f32 %v425, %v437
  %v445 = vmul.f32 %v425, %v441
  %v446 = vadd.f32 %v415, %v442
  %v447 = vadd.f32 %v416, %v443
  %v448 = vadd.f32 %v417, %v444
  %v449 = vadd.f32 %v418, %v445
  %v450 = vlaneseq
  %v451 = vshrl.u32 %v450, 7
  %v452 = vsub.s32 7, %v451
  %v453 = vrot.slane %v141, %v452
  %455 = vbcast.lane.b32.xlu0 %v453, 256
  %v456 = vpop.permute.xlu0 %455
  %v457 = vlaneseq
  %v458 = vshrl.u32 %v457, 7
  %v459 = vsub.s32 3, %v458
  %v460 = vrot.slane %v353, %v459
  %v461 = vlaneseq
  %v462 = vshrl.u32 %v461, 7
  %v463 = vsub.s32 3, %v462
  %v464 = vrot.slane %v354, %v463
  %v465 = vlaneseq
  %v466 = vshrl.u32 %v465, 7
  %v467 = vsub.s32 3, %v466
  %v468 = vrot.slane %v355, %v467
  %v469 = vlaneseq
  %v470 = vshrl.u32 %v469, 7
  %v471 = vsub.s32 3, %v470
  %v472 = vrot.slane %v356, %v471
  %v473 = vmul.f32 %v456, %v460
  %v474 = vmul.f32 %v456, %v464
  %v475 = vmul.f32 %v456, %v468
  %v476 = vmul.f32 %v456, %v472
  %v477 = vadd.f32 %v446, %v473
  %v478 = vadd.f32 %v447, %v474
  %v479 = vadd.f32 %v448, %v475
  %v480 = vadd.f32 %v449, %v476
  %481 = vrot.lane.b32.xlu0 %v154, 15
  %v482 = vpop.permute.xlu0 %481
  %484 = vrot.lane.b32.xlu0 %v139, 15
  %v485 = vpop.permute.xlu0 %484
  %486 = vrot.lane.b32.xlu0 %v159, 15
  %v487 = vpop.permute.xlu0 %486
  %488 = vrot.lane.b32.xlu0 %v140, 15
  %v489 = vpop.permute.xlu0 %488
  %vm490 = vcmask 121856
  %v491 = vsel %vm490, %v485, %v487
  %v492 = vsel %vm490, %v487, %v489
  %v493 = vsel %vm490, %v489, %v482
  %v498 = vsel %vm490, %v482, %v485
  %v499 = vlaneseq
  %v500 = vshrl.u32 %v499, 7
  %v501 = vsub.s32 2, %v500
  %v502 = vrot.slane %v49, %v501
  %v503 = vlaneseq
  %v504 = vshrl.u32 %v503, 7
  %v505 = vsub.s32 2, %v504
  %v506 = vrot.slane %v50, %v505
  %v507 = vlaneseq
  %v508 = vshrl.u32 %v507, 7
  %v509 = vsub.s32 2, %v508
  %v510 = vrot.slane %v51, %v509
  %v511 = vlaneseq
  %v512 = vshrl.u32 %v511, 7
  %v513 = vsub.s32 2, %v512
  %v514 = vrot.slane %v52, %v513
  %v515 = vmul.f32 %v498, %v502
  %v516 = vmul.f32 %v491, %v506
  %v517 = vmul.f32 %v492, %v510
  %v518 = vmul.f32 %v493, %v514
  %v519 = vlaneseq
  %v520 = vshrl.u32 %v519, 7
  %v521 = vsub.s32 0, %v520
  %v522 = vrot.slane %v142, %v521
  %524 = vbcast.lane.b32.xlu0 %v522, 256
  %v525 = vpop.permute.xlu0 %524
  %v526 = vlaneseq
  %v527 = vshrl.u32 %v526, 7
  %v528 = vsub.s32 0, %v527
  %v529 = vrot.slane %v515, %v528
  %v530 = vlaneseq
  %v531 = vshrl.u32 %v530, 7
  %v532 = vsub.s32 0, %v531
  %v533 = vrot.slane %v516, %v532
  %v534 = vlaneseq
  %v535 = vshrl.u32 %v534, 7
  %v536 = vsub.s32 0, %v535
  %v537 = vrot.slane %v517, %v536
  %v538 = vlaneseq
  %v539 = vshrl.u32 %v538, 7
  %v540 = vsub.s32 0, %v539
  %v541 = vrot.slane %v518, %v540
  %v542 = vmul.f32 %v525, %v529
  %v543 = vmul.f32 %v525, %v533
  %v544 = vmul.f32 %v525, %v537
  %v545 = vmul.f32 %v525, %v541
  %v546 = vadd.f32 %v477, %v542
  %v547 = vadd.f32 %v478, %v543
  %v548 = vadd.f32 %v479, %v544
  %v549 = vadd.f32 %v480, %v545
  %v550 = vlaneseq
  %v551 = vshrl.u32 %v550, 7
  %v552 = vsub.s32 1, %v551
  %v553 = vrot.slane %v142, %v552
  %555 = vbcast.lane.b32.xlu0 %v553, 256
  %v556 = vpop.permute.xlu0 %555
  %v557 = vlaneseq
  %v558 = vshrl.u32 %v557, 7
  %v559 = vsub.s32 1, %v558
  %v560 = vrot.slane %v515, %v559
  %v561 = vlaneseq
  %v562 = vshrl.u32 %v561, 7
  %v563 = vsub.s32 1, %v562
  %v564 = vrot.slane %v516, %v563
  %v565 = vlaneseq
  %v566 = vshrl.u32 %v565, 7
  %v567 = vsub.s32 1, %v566
  %v568 = vrot.slane %v517, %v567
  %v569 = vlaneseq
  %v570 = vshrl.u32 %v569, 7
  %v571 = vsub.s32 1, %v570
  %v572 = vrot.slane %v518, %v571
  %v573 = vmul.f32 %v556, %v560
  %v574 = vmul.f32 %v556, %v564
  %v575 = vmul.f32 %v556, %v568
  %v576 = vmul.f32 %v556, %v572
  %v577 = vadd.f32 %v546, %v573
  %v578 = vadd.f32 %v547, %v574
  %v579 = vadd.f32 %v548, %v575
  %v580 = vadd.f32 %v549, %v576
  %v581 = vlaneseq
  %v582 = vshrl.u32 %v581, 7
  %v583 = vsub.s32 2, %v582
  %v584 = vrot.slane %v142, %v583
  %586 = vbcast.lane.b32.xlu0 %v584, 256
  %v587 = vpop.permute.xlu0 %586
  %v588 = vlaneseq
  %v589 = vshrl.u32 %v588, 7
  %v590 = vsub.s32 2, %v589
  %v591 = vrot.slane %v515, %v590
  %v592 = vlaneseq
  %v593 = vshrl.u32 %v592, 7
  %v594 = vsub.s32 2, %v593
  %v595 = vrot.slane %v516, %v594
  %v596 = vlaneseq
  %v597 = vshrl.u32 %v596, 7
  %v598 = vsub.s32 2, %v597
  %v599 = vrot.slane %v517, %v598
  %v600 = vlaneseq
  %v601 = vshrl.u32 %v600, 7
  %v602 = vsub.s32 2, %v601
  %v603 = vrot.slane %v518, %v602
  %v604 = vmul.f32 %v587, %v591
  %v605 = vmul.f32 %v587, %v595
  %v606 = vmul.f32 %v587, %v599
  %v607 = vmul.f32 %v587, %v603
  %v608 = vadd.f32 %v577, %v604
  %v609 = vadd.f32 %v578, %v605
  %v610 = vadd.f32 %v579, %v606
  %v611 = vadd.f32 %v580, %v607
  %v612 = vlaneseq
  %v613 = vshrl.u32 %v612, 7
  %v614 = vsub.s32 3, %v613
  %v615 = vrot.slane %v142, %v614
  %617 = vbcast.lane.b32.xlu0 %v615, 256
  %v618 = vpop.permute.xlu0 %617
  %v619 = vlaneseq
  %v620 = vshrl.u32 %v619, 7
  %v621 = vsub.s32 3, %v620
  %v622 = vrot.slane %v515, %v621
  %v623 = vlaneseq
  %v624 = vshrl.u32 %v623, 7
  %v625 = vsub.s32 3, %v624
  %v626 = vrot.slane %v516, %v625
  %v627 = vlaneseq
  %v628 = vshrl.u32 %v627, 7
  %v629 = vsub.s32 3, %v628
  %v630 = vrot.slane %v517, %v629
  %v631 = vlaneseq
  %v632 = vshrl.u32 %v631, 7
  %v633 = vsub.s32 3, %v632
  %v634 = vrot.slane %v518, %v633
  %v635 = vmul.f32 %v618, %v622
  %v636 = vmul.f32 %v618, %v626
  %v637 = vmul.f32 %v618, %v630
  %v638 = vmul.f32 %v618, %v634
  %v639 = vadd.f32 %v608, %v635
  %v640 = vadd.f32 %v609, %v636
  %v641 = vadd.f32 %v610, %v637
  %v642 = vadd.f32 %v611, %v638
  %643 = vrot.lane.b32.xlu0 %v154, 1
  %v644 = vpop.permute.xlu0 %643
  %646 = vrot.lane.b32.xlu0 %v139, 1
  %v647 = vpop.permute.xlu0 %646
  %648 = vrot.lane.b32.xlu0 %v159, 1
  %v649 = vpop.permute.xlu0 %648
  %650 = vrot.lane.b32.xlu0 %v140, 1
  %v651 = vpop.permute.xlu0 %650
  %vm652 = vcmask 7168
  %v653 = vsel %vm652, %v647, %v649
  %v654 = vsel %vm652, %v649, %v651
  %v655 = vsel %vm652, %v651, %v644
  %v660 = vsel %vm652, %v644, %v647
  %v661 = vlaneseq
  %v662 = vshrl.u32 %v661, 7
  %v663 = vsub.s32 3, %v662
  %v664 = vrot.slane %v49, %v663
  %v665 = vlaneseq
  %v666 = vshrl.u32 %v665, 7
  %v667 = vsub.s32 3, %v666
  %v668 = vrot.slane %v50, %v667
  %v669 = vlaneseq
  %v670 = vshrl.u32 %v669, 7
  %v671 = vsub.s32 3, %v670
  %v672 = vrot.slane %v51, %v671
  %v673 = vlaneseq
  %v674 = vshrl.u32 %v673, 7
  %v675 = vsub.s32 3, %v674
  %v676 = vrot.slane %v52, %v675
  %v677 = vmul.f32 %v660, %v664
  %v678 = vmul.f32 %v653, %v668
  %v679 = vmul.f32 %v654, %v672
  %v680 = vmul.f32 %v655, %v676
  %v681 = vlaneseq
  %v682 = vshrl.u32 %v681, 7
  %v683 = vsub.s32 4, %v682
  %v684 = vrot.slane %v142, %v683
  %686 = vbcast.lane.b32.xlu0 %v684, 256
  %v687 = vpop.permute.xlu0 %686
  %v688 = vlaneseq
  %v689 = vshrl.u32 %v688, 7
  %v690 = vsub.s32 0, %v689
  %v691 = vrot.slane %v677, %v690
  %v692 = vlaneseq
  %v693 = vshrl.u32 %v692, 7
  %v694 = vsub.s32 0, %v693
  %v695 = vrot.slane %v678, %v694
  %v696 = vlaneseq
  %v697 = vshrl.u32 %v696, 7
  %v698 = vsub.s32 0, %v697
  %v699 = vrot.slane %v679, %v698
  %v700 = vlaneseq
  %v701 = vshrl.u32 %v700, 7
  %v702 = vsub.s32 0, %v701
  %v703 = vrot.slane %v680, %v702
  %v704 = vmul.f32 %v687, %v691
  %v705 = vmul.f32 %v687, %v695
  %v706 = vmul.f32 %v687, %v699
  %v707 = vmul.f32 %v687, %v703
  %v708 = vadd.f32 %v639, %v704
  %v709 = vadd.f32 %v640, %v705
  %v710 = vadd.f32 %v641, %v706
  %v711 = vadd.f32 %v642, %v707
  %v712 = vlaneseq
  %v713 = vshrl.u32 %v712, 7
  %v714 = vsub.s32 5, %v713
  %v715 = vrot.slane %v142, %v714
  %717 = vbcast.lane.b32.xlu0 %v715, 256
  %v718 = vpop.permute.xlu0 %717
  %v719 = vlaneseq
  %v720 = vshrl.u32 %v719, 7
  %v721 = vsub.s32 1, %v720
  %v722 = vrot.slane %v677, %v721
  %v723 = vlaneseq
  %v724 = vshrl.u32 %v723, 7
  %v725 = vsub.s32 1, %v724
  %v726 = vrot.slane %v678, %v725
  %v727 = vlaneseq
  %v728 = vshrl.u32 %v727, 7
  %v729 = vsub.s32 1, %v728
  %v730 = vrot.slane %v679, %v729
  %v731 = vlaneseq
  %v732 = vshrl.u32 %v731, 7
  %v733 = vsub.s32 1, %v732
  %v734 = vrot.slane %v680, %v733
  %v735 = vmul.f32 %v718, %v722
  %v736 = vmul.f32 %v718, %v726
  %v737 = vmul.f32 %v718, %v730
  %v738 = vmul.f32 %v718, %v734
  %v739 = vadd.f32 %v708, %v735
  %v740 = vadd.f32 %v709, %v736
  %v741 = vadd.f32 %v710, %v737
  %v742 = vadd.f32 %v711, %v738
  %v743 = vlaneseq
  %v744 = vshrl.u32 %v743, 7
  %v745 = vsub.s32 6, %v744
  %v746 = vrot.slane %v142, %v745
  %748 = vbcast.lane.b32.xlu0 %v746, 256
  %v749 = vpop.permute.xlu0 %748
  %v750 = vlaneseq
  %v751 = vshrl.u32 %v750, 7
  %v752 = vsub.s32 2, %v751
  %v753 = vrot.slane %v677, %v752
  %v754 = vlaneseq
  %v755 = vshrl.u32 %v754, 7
  %v756 = vsub.s32 2, %v755
  %v757 = vrot.slane %v678, %v756
  %v758 = vlaneseq
  %v759 = vshrl.u32 %v758, 7
  %v760 = vsub.s32 2, %v759
  %v761 = vrot.slane %v679, %v760
  %v762 = vlaneseq
  %v763 = vshrl.u32 %v762, 7
  %v764 = vsub.s32 2, %v763
  %v765 = vrot.slane %v680, %v764
  %v766 = vmul.f32 %v749, %v753
  %v767 = vmul.f32 %v749, %v757
  %v768 = vmul.f32 %v749, %v761
  %v769 = vmul.f32 %v749, %v765
  %v770 = vadd.f32 %v739, %v766
  %v771 = vadd.f32 %v740, %v767
  %v772 = vadd.f32 %v741, %v768
  %v773 = vadd.f32 %v742, %v769
  %v774 = vlaneseq
  %v775 = vshrl.u32 %v774, 7
  %v776 = vsub.s32 7, %v775
  %v777 = vrot.slane %v142, %v776
  %779 = vbcast.lane.b32.xlu0 %v777, 256
  %v780 = vpop.permute.xlu0 %779
  %v781 = vlaneseq
  %v782 = vshrl.u32 %v781, 7
  %v783 = vsub.s32 3, %v782
  %v784 = vrot.slane %v677, %v783
  %v785 = vlaneseq
  %v786 = vshrl.u32 %v785, 7
  %v787 = vsub.s32 3, %v786
  %v788 = vrot.slane %v678, %v787
  %v789 = vlaneseq
  %v790 = vshrl.u32 %v789, 7
  %v791 = vsub.s32 3, %v790
  %v792 = vrot.slane %v679, %v791
  %v793 = vlaneseq
  %v794 = vshrl.u32 %v793, 7
  %v795 = vsub.s32 3, %v794
  %v796 = vrot.slane %v680, %v795
  %v797 = vmul.f32 %v780, %v784
  %v798 = vmul.f32 %v780, %v788
  %v799 = vmul.f32 %v780, %v792
  %v800 = vmul.f32 %v780, %v796
  %v801 = vadd.f32 %v770, %v797
  %v802 = vadd.f32 %v771, %v798
  %v803 = vadd.f32 %v772, %v799
  %v804 = vadd.f32 %v773, %v800
  %v805 = vlaneseq
  %v806 = vshrl.u32 %v805, 7
  %v807 = vsub.s32 4, %v806
  %v808 = vrot.slane %v49, %v807
  %v809 = vlaneseq
  %v810 = vshrl.u32 %v809, 7
  %v811 = vsub.s32 4, %v810
  %v812 = vrot.slane %v50, %v811
  %v813 = vlaneseq
  %v814 = vshrl.u32 %v813, 7
  %v815 = vsub.s32 4, %v814
  %v816 = vrot.slane %v51, %v815
  %v817 = vlaneseq
  %v818 = vshrl.u32 %v817, 7
  %v819 = vsub.s32 4, %v818
  %v820 = vrot.slane %v52, %v819
  %v825 = vcombine.low %v808, %v812
  %v826 = vcombine.low %v816, %v820
  %v829 = vmul.f32 %v139, %v825
  %v830 = vmul.f32 %v140, %v826
  %v831 = vlaneseq
  %v832 = vshrl.u32 %v831, 7
  %v833 = vsub.s32 0, %v832
  %v834 = vrot.slane %v143, %v833
  %836 = vbcast.lane.b32.xlu0 %v834, 256
  %v837 = vpop.permute.xlu0 %836
  %v840 = vlaneseq
  %v841 = vshrl.u32 %v840, 7
  %v842 = vsub.s32 0, %v841
  %v843 = vrot.slane %v829, %v842
  %v844 = vlaneseq
  %v845 = vshrl.u32 %v844, 7
  %v846 = vsub.s32 4, %v845
  %v847 = vrot.slane %v829, %v846
  %v848 = vlaneseq
  %v849 = vshrl.u32 %v848, 7
  %v850 = vsub.s32 0, %v849
  %v851 = vrot.slane %v830, %v850
  %v852 = vlaneseq
  %v853 = vshrl.u32 %v852, 7
  %v854 = vsub.s32 4, %v853
  %v855 = vrot.slane %v830, %v854
  %v860 = vlaneseq
  %v861 = vshrl.u32 %v860, 7
  %v862 = vsub.s32 0, %v861
  %v863 = vrot.slane %v843, %v862
  %v864 = vlaneseq
  %v865 = vshrl.u32 %v864, 7
  %v866 = vsub.s32 0, %v865
  %v867 = vrot.slane %v847, %v866
  %v868 = vlaneseq
  %v869 = vshrl.u32 %v868, 7
  %v870 = vsub.s32 0, %v869
  %v871 = vrot.slane %v851, %v870
  %v872 = vlaneseq
  %v873 = vshrl.u32 %v872, 7
  %v874 = vsub.s32 0, %v873
  %v875 = vrot.slane %v855, %v874
  %v876 = vmul.f32 %v837, %v863
  %v877 = vmul.f32 %v837, %v867
  %v878 = vmul.f32 %v837, %v871
  %v879 = vmul.f32 %v837, %v875
  %v880 = vadd.f32 %v801, %v876
  %v881 = vadd.f32 %v802, %v877
  %v882 = vadd.f32 %v803, %v878
  %v883 = vadd.f32 %v804, %v879
  %v884 = vlaneseq
  %v885 = vshrl.u32 %v884, 7
  %v886 = vsub.s32 1, %v885
  %v887 = vrot.slane %v143, %v886
  %889 = vbcast.lane.b32.xlu0 %v887, 256
  %v890 = vpop.permute.xlu0 %889
  %v891 = vlaneseq
  %v892 = vshrl.u32 %v891, 7
  %v893 = vsub.s32 1, %v892
  %v894 = vrot.slane %v829, %v893
  %v895 = vlaneseq
  %v896 = vshrl.u32 %v895, 7
  %v897 = vsub.s32 5, %v896
  %v898 = vrot.slane %v829, %v897
  %v899 = vlaneseq
  %v900 = vshrl.u32 %v899, 7
  %v901 = vsub.s32 1, %v900
  %v902 = vrot.slane %v830, %v901
  %v903 = vlaneseq
  %v904 = vshrl.u32 %v903, 7
  %v905 = vsub.s32 5, %v904
  %v906 = vrot.slane %v830, %v905
  %v911 = vlaneseq
  %v912 = vshrl.u32 %v911, 7
  %v913 = vsub.s32 1, %v912
  %v914 = vrot.slane %v894, %v913
  %v915 = vlaneseq
  %v916 = vshrl.u32 %v915, 7
  %v917 = vsub.s32 1, %v916
  %v918 = vrot.slane %v898, %v917
  %v919 = vlaneseq
  %v920 = vshrl.u32 %v919, 7
  %v921 = vsub.s32 1, %v920
  %v922 = vrot.slane %v902, %v921
  %v923 = vlaneseq
  %v924 = vshrl.u32 %v923, 7
  %v925 = vsub.s32 1, %v924
  %v926 = vrot.slane %v906, %v925
  %v927 = vmul.f32 %v890, %v914
  %v928 = vmul.f32 %v890, %v918
  %v929 = vmul.f32 %v890, %v922
  %v930 = vmul.f32 %v890, %v926
  %v931 = vadd.f32 %v880, %v927
  %v932 = vadd.f32 %v881, %v928
  %v933 = vadd.f32 %v882, %v929
  %v934 = vadd.f32 %v883, %v930
  %v935 = vlaneseq
  %v936 = vshrl.u32 %v935, 7
  %v937 = vsub.s32 2, %v936
  %v938 = vrot.slane %v143, %v937
  %940 = vbcast.lane.b32.xlu0 %v938, 256
  %v941 = vpop.permute.xlu0 %940
  %v942 = vlaneseq
  %v943 = vshrl.u32 %v942, 7
  %v944 = vsub.s32 2, %v943
  %v945 = vrot.slane %v829, %v944
  %v946 = vlaneseq
  %v947 = vshrl.u32 %v946, 7
  %v948 = vsub.s32 6, %v947
  %v949 = vrot.slane %v829, %v948
  %v950 = vlaneseq
  %v951 = vshrl.u32 %v950, 7
  %v952 = vsub.s32 2, %v951
  %v953 = vrot.slane %v830, %v952
  %v954 = vlaneseq
  %v955 = vshrl.u32 %v954, 7
  %v956 = vsub.s32 6, %v955
  %v957 = vrot.slane %v830, %v956
  %v962 = vlaneseq
  %v963 = vshrl.u32 %v962, 7
  %v964 = vsub.s32 2, %v963
  %v965 = vrot.slane %v945, %v964
  %v966 = vlaneseq
  %v967 = vshrl.u32 %v966, 7
  %v968 = vsub.s32 2, %v967
  %v969 = vrot.slane %v949, %v968
  %v970 = vlaneseq
  %v971 = vshrl.u32 %v970, 7
  %v972 = vsub.s32 2, %v971
  %v973 = vrot.slane %v953, %v972
  %v974 = vlaneseq
  %v975 = vshrl.u32 %v974, 7
  %v976 = vsub.s32 2, %v975
  %v977 = vrot.slane %v957, %v976
  %v978 = vmul.f32 %v941, %v965
  %v979 = vmul.f32 %v941, %v969
  %v980 = vmul.f32 %v941, %v973
  %v981 = vmul.f32 %v941, %v977
  %v982 = vadd.f32 %v931, %v978
  %v983 = vadd.f32 %v932, %v979
  %v984 = vadd.f32 %v933, %v980
  %v985 = vadd.f32 %v934, %v981
  %v986 = vlaneseq
  %v987 = vshrl.u32 %v986, 7
  %v988 = vsub.s32 3, %v987
  %v989 = vrot.slane %v143, %v988
  %991 = vbcast.lane.b32.xlu0 %v989, 256
  %v992 = vpop.permute.xlu0 %991
  %v993 = vlaneseq
  %v994 = vshrl.u32 %v993, 7
  %v995 = vsub.s32 3, %v994
  %v996 = vrot.slane %v829, %v995
  %v997 = vlaneseq
  %v998 = vshrl.u32 %v997, 7
  %v999 = vsub.s32 7, %v998
  %v1000 = vrot.slane %v829, %v999
  %v1001 = vlaneseq
  %v1002 = vshrl.u32 %v1001, 7
  %v1003 = vsub.s32 3, %v1002
  %v1004 = vrot.slane %v830, %v1003
  %v1005 = vlaneseq
  %v1006 = vshrl.u32 %v1005, 7
  %v1007 = vsub.s32 7, %v1006
  %v1008 = vrot.slane %v830, %v1007
  %v1013 = vlaneseq
  %v1014 = vshrl.u32 %v1013, 7
  %v1015 = vsub.s32 3, %v1014
  %v1016 = vrot.slane %v996, %v1015
  %v1017 = vlaneseq
  %v1018 = vshrl.u32 %v1017, 7
  %v1019 = vsub.s32 3, %v1018
  %v1020 = vrot.slane %v1000, %v1019
  %v1021 = vlaneseq
  %v1022 = vshrl.u32 %v1021, 7
  %v1023 = vsub.s32 3, %v1022
  %v1024 = vrot.slane %v1004, %v1023
  %v1025 = vlaneseq
  %v1026 = vshrl.u32 %v1025, 7
  %v1027 = vsub.s32 3, %v1026
  %v1028 = vrot.slane %v1008, %v1027
  %v1029 = vmul.f32 %v992, %v1016
  %v1030 = vmul.f32 %v992, %v1020
  %v1031 = vmul.f32 %v992, %v1024
  %v1032 = vmul.f32 %v992, %v1028
  %v1033 = vadd.f32 %v982, %v1029
  %v1034 = vadd.f32 %v983, %v1030
  %v1035 = vadd.f32 %v984, %v1031
  %v1036 = vadd.f32 %v985, %v1032
  %1037 = vrot.lane.b32.xlu0 %v139, 127
  %v1038 = vpop.permute.xlu0 %1037
  %1039 = vrot.lane.b32.xlu0 %v159, 127
  %v1040 = vpop.permute.xlu0 %1039
  %1041 = vrot.lane.b32.xlu0 %v140, 127
  %v1042 = vpop.permute.xlu0 %1041
  %1043 = vrot.lane.b32.xlu0 %v154, 127
  %v1044 = vpop.permute.xlu0 %1043
  %vm1045 = vcmask 1039360
  %v1046 = vsel %vm1045, %v1038, %v1040
  %v1047 = vsel %vm1045, %v1040, %v1042
  %v1048 = vsel %vm1045, %v1042, %v1044
  %v1054 = vsel %vm1045, %v1044, %v1038
  %v1055 = vlaneseq
  %v1056 = vshrl.u32 %v1055, 7
  %v1057 = vsub.s32 5, %v1056
  %v1058 = vrot.slane %v49, %v1057
  %v1059 = vlaneseq
  %v1060 = vshrl.u32 %v1059, 7
  %v1061 = vsub.s32 5, %v1060
  %v1062 = vrot.slane %v50, %v1061
  %v1063 = vlaneseq
  %v1064 = vshrl.u32 %v1063, 7
  %v1065 = vsub.s32 5, %v1064
  %v1066 = vrot.slane %v51, %v1065
  %v1067 = vlaneseq
  %v1068 = vshrl.u32 %v1067, 7
  %v1069 = vsub.s32 5, %v1068
  %v1070 = vrot.slane %v52, %v1069
  %v1071 = vmul.f32 %v1046, %v1058
  %v1072 = vmul.f32 %v1047, %v1062
  %v1073 = vmul.f32 %v1048, %v1066
  %v1074 = vmul.f32 %v1054, %v1070
  %v1075 = vlaneseq
  %v1076 = vshrl.u32 %v1075, 7
  %v1077 = vsub.s32 4, %v1076
  %v1078 = vrot.slane %v143, %v1077
  %1080 = vbcast.lane.b32.xlu0 %v1078, 256
  %v1081 = vpop.permute.xlu0 %1080
  %v1082 = vlaneseq
  %v1083 = vshrl.u32 %v1082, 7
  %v1084 = vsub.s32 0, %v1083
  %v1085 = vrot.slane %v1071, %v1084
  %v1086 = vlaneseq
  %v1087 = vshrl.u32 %v1086, 7
  %v1088 = vsub.s32 0, %v1087
  %v1089 = vrot.slane %v1072, %v1088
  %v1090 = vlaneseq
  %v1091 = vshrl.u32 %v1090, 7
  %v1092 = vsub.s32 0, %v1091
  %v1093 = vrot.slane %v1073, %v1092
  %v1094 = vlaneseq
  %v1095 = vshrl.u32 %v1094, 7
  %v1096 = vsub.s32 0, %v1095
  %v1097 = vrot.slane %v1074, %v1096
  %v1098 = vmul.f32 %v1081, %v1085
  %v1099 = vmul.f32 %v1081, %v1089
  %v1100 = vmul.f32 %v1081, %v1093
  %v1101 = vmul.f32 %v1081, %v1097
  %v1102 = vadd.f32 %v1033, %v1098
  %v1103 = vadd.f32 %v1034, %v1099
  %v1104 = vadd.f32 %v1035, %v1100
  %v1105 = vadd.f32 %v1036, %v1101
  %v1106 = vlaneseq
  %v1107 = vshrl.u32 %v1106, 7
  %v1108 = vsub.s32 5, %v1107
  %v1109 = vrot.slane %v143, %v1108
  %1111 = vbcast.lane.b32.xlu0 %v1109, 256
  %v1112 = vpop.permute.xlu0 %1111
  %v1113 = vlaneseq
  %v1114 = vshrl.u32 %v1113, 7
  %v1115 = vsub.s32 1, %v1114
  %v1116 = vrot.slane %v1071, %v1115
  %v1117 = vlaneseq
  %v1118 = vshrl.u32 %v1117, 7
  %v1119 = vsub.s32 1, %v1118
  %v1120 = vrot.slane %v1072, %v1119
  %v1121 = vlaneseq
  %v1122 = vshrl.u32 %v1121, 7
  %v1123 = vsub.s32 1, %v1122
  %v1124 = vrot.slane %v1073, %v1123
  %v1125 = vlaneseq
  %v1126 = vshrl.u32 %v1125, 7
  %v1127 = vsub.s32 1, %v1126
  %v1128 = vrot.slane %v1074, %v1127
  %v1129 = vmul.f32 %v1112, %v1116
  %v1130 = vmul.f32 %v1112, %v1120
  %v1131 = vmul.f32 %v1112, %v1124
  %v1132 = vmul.f32 %v1112, %v1128
  %v1133 = vadd.f32 %v1102, %v1129
  %v1134 = vadd.f32 %v1103, %v1130
  %v1135 = vadd.f32 %v1104, %v1131
  %v1136 = vadd.f32 %v1105, %v1132
  %v1137 = vlaneseq
  %v1138 = vshrl.u32 %v1137, 7
  %v1139 = vsub.s32 6, %v1138
  %v1140 = vrot.slane %v143, %v1139
  %1142 = vbcast.lane.b32.xlu0 %v1140, 256
  %v1143 = vpop.permute.xlu0 %1142
  %v1144 = vlaneseq
  %v1145 = vshrl.u32 %v1144, 7
  %v1146 = vsub.s32 2, %v1145
  %v1147 = vrot.slane %v1071, %v1146
  %v1148 = vlaneseq
  %v1149 = vshrl.u32 %v1148, 7
  %v1150 = vsub.s32 2, %v1149
  %v1151 = vrot.slane %v1072, %v1150
  %v1152 = vlaneseq
  %v1153 = vshrl.u32 %v1152, 7
  %v1154 = vsub.s32 2, %v1153
  %v1155 = vrot.slane %v1073, %v1154
  %v1156 = vlaneseq
  %v1157 = vshrl.u32 %v1156, 7
  %v1158 = vsub.s32 2, %v1157
  %v1159 = vrot.slane %v1074, %v1158
  %v1160 = vmul.f32 %v1143, %v1147
  %v1161 = vmul.f32 %v1143, %v1151
  %v1162 = vmul.f32 %v1143, %v1155
  %v1163 = vmul.f32 %v1143, %v1159
  %v1164 = vadd.f32 %v1133, %v1160
  %v1165 = vadd.f32 %v1134, %v1161
  %v1166 = vadd.f32 %v1135, %v1162
  %v1167 = vadd.f32 %v1136, %v1163
  %v1168 = vlaneseq
  %v1169 = vshrl.u32 %v1168, 7
  %v1170 = vsub.s32 7, %v1169
  %v1171 = vrot.slane %v143, %v1170
  %1173 = vbcast.lane.b32.xlu0 %v1171, 256
  %v1174 = vpop.permute.xlu0 %1173
  %v1175 = vlaneseq
  %v1176 = vshrl.u32 %v1175, 7
  %v1177 = vsub.s32 3, %v1176
  %v1178 = vrot.slane %v1071, %v1177
  %v1179 = vlaneseq
  %v1180 = vshrl.u32 %v1179, 7
  %v1181 = vsub.s32 3, %v1180
  %v1182 = vrot.slane %v1072, %v1181
  %v1183 = vlaneseq
  %v1184 = vshrl.u32 %v1183, 7
  %v1185 = vsub.s32 3, %v1184
  %v1186 = vrot.slane %v1073, %v1185
  %v1187 = vlaneseq
  %v1188 = vshrl.u32 %v1187, 7
  %v1189 = vsub.s32 3, %v1188
  %v1190 = vrot.slane %v1074, %v1189
  %v1191 = vmul.f32 %v1174, %v1178
  %v1192 = vmul.f32 %v1174, %v1182
  %v1193 = vmul.f32 %v1174, %v1186
  %v1194 = vmul.f32 %v1174, %v1190
  %v1195 = vadd.f32 %v1164, %v1191
  %v1196 = vadd.f32 %v1165, %v1192
  %v1197 = vadd.f32 %v1166, %v1193
  %v1198 = vadd.f32 %v1167, %v1194
  %1199 = vrot.lane.b32.xlu0 %v139, 113
  %v1200 = vpop.permute.xlu0 %1199
  %1201 = vrot.lane.b32.xlu0 %v159, 113
  %v1202 = vpop.permute.xlu0 %1201
  %1203 = vrot.lane.b32.xlu0 %v140, 113
  %v1204 = vpop.permute.xlu0 %1203
  %1205 = vrot.lane.b32.xlu0 %v154, 113
  %v1206 = vpop.permute.xlu0 %1205
  %vm1207 = vcmask 924672
  %v1208 = vsel %vm1207, %v1200, %v1202
  %v1209 = vsel %vm1207, %v1202, %v1204
  %v1210 = vsel %vm1207, %v1204, %v1206
  %v1216 = vsel %vm1207, %v1206, %v1200
  %v1217 = vlaneseq
  %v1218 = vshrl.u32 %v1217, 7
  %v1219 = vsub.s32 6, %v1218
  %v1220 = vrot.slane %v49, %v1219
  %v1221 = vlaneseq
  %v1222 = vshrl.u32 %v1221, 7
  %v1223 = vsub.s32 6, %v1222
  %v1224 = vrot.slane %v50, %v1223
  %v1225 = vlaneseq
  %v1226 = vshrl.u32 %v1225, 7
  %v1227 = vsub.s32 6, %v1226
  %v1228 = vrot.slane %v51, %v1227
  %v1229 = vlaneseq
  %v1230 = vshrl.u32 %v1229, 7
  %v1231 = vsub.s32 6, %v1230
  %v1232 = vrot.slane %v52, %v1231
  %v1233 = vmul.f32 %v1208, %v1220
  %v1234 = vmul.f32 %v1209, %v1224
  %v1235 = vmul.f32 %v1210, %v1228
  %v1236 = vmul.f32 %v1216, %v1232
  %v1237 = vlaneseq
  %v1238 = vshrl.u32 %v1237, 7
  %v1239 = vsub.s32 0, %v1238
  %v1240 = vrot.slane %v144, %v1239
  %1242 = vbcast.lane.b32.xlu0 %v1240, 256
  %v1243 = vpop.permute.xlu0 %1242
  %v1244 = vlaneseq
  %v1245 = vshrl.u32 %v1244, 7
  %v1246 = vsub.s32 0, %v1245
  %v1247 = vrot.slane %v1233, %v1246
  %v1248 = vlaneseq
  %v1249 = vshrl.u32 %v1248, 7
  %v1250 = vsub.s32 0, %v1249
  %v1251 = vrot.slane %v1234, %v1250
  %v1252 = vlaneseq
  %v1253 = vshrl.u32 %v1252, 7
  %v1254 = vsub.s32 0, %v1253
  %v1255 = vrot.slane %v1235, %v1254
  %v1256 = vlaneseq
  %v1257 = vshrl.u32 %v1256, 7
  %v1258 = vsub.s32 0, %v1257
  %v1259 = vrot.slane %v1236, %v1258
  %v1260 = vmul.f32 %v1243, %v1247
  %v1261 = vmul.f32 %v1243, %v1251
  %v1262 = vmul.f32 %v1243, %v1255
  %v1263 = vmul.f32 %v1243, %v1259
  %v1264 = vadd.f32 %v1195, %v1260
  %v1265 = vadd.f32 %v1196, %v1261
  %v1266 = vadd.f32 %v1197, %v1262
  %v1267 = vadd.f32 %v1198, %v1263
  %v1268 = vlaneseq
  %v1269 = vshrl.u32 %v1268, 7
  %v1270 = vsub.s32 1, %v1269
  %v1271 = vrot.slane %v144, %v1270
  %1273 = vbcast.lane.b32.xlu0 %v1271, 256
  %v1274 = vpop.permute.xlu0 %1273
  %v1275 = vlaneseq
  %v1276 = vshrl.u32 %v1275, 7
  %v1277 = vsub.s32 1, %v1276
  %v1278 = vrot.slane %v1233, %v1277
  %v1279 = vlaneseq
  %v1280 = vshrl.u32 %v1279, 7
  %v1281 = vsub.s32 1, %v1280
  %v1282 = vrot.slane %v1234, %v1281
  %v1283 = vlaneseq
  %v1284 = vshrl.u32 %v1283, 7
  %v1285 = vsub.s32 1, %v1284
  %v1286 = vrot.slane %v1235, %v1285
  %v1287 = vlaneseq
  %v1288 = vshrl.u32 %v1287, 7
  %v1289 = vsub.s32 1, %v1288
  %v1290 = vrot.slane %v1236, %v1289
  %v1291 = vmul.f32 %v1274, %v1278
  %v1292 = vmul.f32 %v1274, %v1282
  %v1293 = vmul.f32 %v1274, %v1286
  %v1294 = vmul.f32 %v1274, %v1290
  %v1295 = vadd.f32 %v1264, %v1291
  %v1296 = vadd.f32 %v1265, %v1292
  %v1297 = vadd.f32 %v1266, %v1293
  %v1298 = vadd.f32 %v1267, %v1294
  %v1299 = vlaneseq
  %v1300 = vshrl.u32 %v1299, 7
  %v1301 = vsub.s32 2, %v1300
  %v1302 = vrot.slane %v144, %v1301
  %1304 = vbcast.lane.b32.xlu0 %v1302, 256
  %v1305 = vpop.permute.xlu0 %1304
  %v1306 = vlaneseq
  %v1307 = vshrl.u32 %v1306, 7
  %v1308 = vsub.s32 2, %v1307
  %v1309 = vrot.slane %v1233, %v1308
  %v1310 = vlaneseq
  %v1311 = vshrl.u32 %v1310, 7
  %v1312 = vsub.s32 2, %v1311
  %v1313 = vrot.slane %v1234, %v1312
  %v1314 = vlaneseq
  %v1315 = vshrl.u32 %v1314, 7
  %v1316 = vsub.s32 2, %v1315
  %v1317 = vrot.slane %v1235, %v1316
  %v1318 = vlaneseq
  %v1319 = vshrl.u32 %v1318, 7
  %v1320 = vsub.s32 2, %v1319
  %v1321 = vrot.slane %v1236, %v1320
  %v1322 = vmul.f32 %v1305, %v1309
  %v1323 = vmul.f32 %v1305, %v1313
  %v1324 = vmul.f32 %v1305, %v1317
  %v1325 = vmul.f32 %v1305, %v1321
  %v1326 = vadd.f32 %v1295, %v1322
  %v1327 = vadd.f32 %v1296, %v1323
  %v1328 = vadd.f32 %v1297, %v1324
  %v1329 = vadd.f32 %v1298, %v1325
  %v1330 = vlaneseq
  %v1331 = vshrl.u32 %v1330, 7
  %v1332 = vsub.s32 3, %v1331
  %v1333 = vrot.slane %v144, %v1332
  %1335 = vbcast.lane.b32.xlu0 %v1333, 256
  %v1336 = vpop.permute.xlu0 %1335
  %v1337 = vlaneseq
  %v1338 = vshrl.u32 %v1337, 7
  %v1339 = vsub.s32 3, %v1338
  %v1340 = vrot.slane %v1233, %v1339
  %v1341 = vlaneseq
  %v1342 = vshrl.u32 %v1341, 7
  %v1343 = vsub.s32 3, %v1342
  %v1344 = vrot.slane %v1234, %v1343
  %v1345 = vlaneseq
  %v1346 = vshrl.u32 %v1345, 7
  %v1347 = vsub.s32 3, %v1346
  %v1348 = vrot.slane %v1235, %v1347
  %v1349 = vlaneseq
  %v1350 = vshrl.u32 %v1349, 7
  %v1351 = vsub.s32 3, %v1350
  %v1352 = vrot.slane %v1236, %v1351
  %v1353 = vmul.f32 %v1336, %v1340
  %v1354 = vmul.f32 %v1336, %v1344
  %v1355 = vmul.f32 %v1336, %v1348
  %v1356 = vmul.f32 %v1336, %v1352
  %v1357 = vadd.f32 %v1326, %v1353
  %v1358 = vadd.f32 %v1327, %v1354
  %v1359 = vadd.f32 %v1328, %v1355
  %v1360 = vadd.f32 %v1329, %v1356
  %1361 = vrot.lane.b32.xlu0 %v139, 112
  %v1362 = vpop.permute.xlu0 %1361
  %1363 = vrot.lane.b32.xlu0 %v159, 112
  %v1364 = vpop.permute.xlu0 %1363
  %1365 = vrot.lane.b32.xlu0 %v140, 112
  %v1366 = vpop.permute.xlu0 %1365
  %1367 = vrot.lane.b32.xlu0 %v154, 112
  %v1368 = vpop.permute.xlu0 %1367
  %vm1369 = vcmask 916480
  %v1370 = vsel %vm1369, %v1362, %v1364
  %v1371 = vsel %vm1369, %v1364, %v1366
  %v1372 = vsel %vm1369, %v1366, %v1368
  %v1378 = vsel %vm1369, %v1368, %v1362
  %v1379 = vlaneseq
  %v1380 = vshrl.u32 %v1379, 7
  %v1381 = vsub.s32 7, %v1380
  %v1382 = vrot.slane %v49, %v1381
  %v1383 = vlaneseq
  %v1384 = vshrl.u32 %v1383, 7
  %v1385 = vsub.s32 7, %v1384
  %v1386 = vrot.slane %v50, %v1385
  %v1387 = vlaneseq
  %v1388 = vshrl.u32 %v1387, 7
  %v1389 = vsub.s32 7, %v1388
  %v1390 = vrot.slane %v51, %v1389
  %v1391 = vlaneseq
  %v1392 = vshrl.u32 %v1391, 7
  %v1393 = vsub.s32 7, %v1392
  %v1394 = vrot.slane %v52, %v1393
  %v1395 = vmul.f32 %v1370, %v1382
  %v1396 = vmul.f32 %v1371, %v1386
  %v1397 = vmul.f32 %v1372, %v1390
  %v1398 = vmul.f32 %v1378, %v1394
  %v1399 = vlaneseq
  %v1400 = vshrl.u32 %v1399, 7
  %v1401 = vsub.s32 4, %v1400
  %v1402 = vrot.slane %v144, %v1401
  %1404 = vbcast.lane.b32.xlu0 %v1402, 256
  %v1405 = vpop.permute.xlu0 %1404
  %v1406 = vlaneseq
  %v1407 = vshrl.u32 %v1406, 7
  %v1408 = vsub.s32 0, %v1407
  %v1409 = vrot.slane %v1395, %v1408
  %v1410 = vlaneseq
  %v1411 = vshrl.u32 %v1410, 7
  %v1412 = vsub.s32 0, %v1411
  %v1413 = vrot.slane %v1396, %v1412
  %v1414 = vlaneseq
  %v1415 = vshrl.u32 %v1414, 7
  %v1416 = vsub.s32 0, %v1415
  %v1417 = vrot.slane %v1397, %v1416
  %v1418 = vlaneseq
  %v1419 = vshrl.u32 %v1418, 7
  %v1420 = vsub.s32 0, %v1419
  %v1421 = vrot.slane %v1398, %v1420
  %v1422 = vmul.f32 %v1405, %v1409
  %v1423 = vmul.f32 %v1405, %v1413
  %v1424 = vmul.f32 %v1405, %v1417
  %v1425 = vmul.f32 %v1405, %v1421
  %v1426 = vadd.f32 %v1357, %v1422
  %v1427 = vadd.f32 %v1358, %v1423
  %v1428 = vadd.f32 %v1359, %v1424
  %v1429 = vadd.f32 %v1360, %v1425
  %v1430 = vlaneseq
  %v1431 = vshrl.u32 %v1430, 7
  %v1432 = vsub.s32 5, %v1431
  %v1433 = vrot.slane %v144, %v1432
  %1435 = vbcast.lane.b32.xlu0 %v1433, 256
  %v1436 = vpop.permute.xlu0 %1435
  %v1437 = vlaneseq
  %v1438 = vshrl.u32 %v1437, 7
  %v1439 = vsub.s32 1, %v1438
  %v1440 = vrot.slane %v1395, %v1439
  %v1441 = vlaneseq
  %v1442 = vshrl.u32 %v1441, 7
  %v1443 = vsub.s32 1, %v1442
  %v1444 = vrot.slane %v1396, %v1443
  %v1445 = vlaneseq
  %v1446 = vshrl.u32 %v1445, 7
  %v1447 = vsub.s32 1, %v1446
  %v1448 = vrot.slane %v1397, %v1447
  %v1449 = vlaneseq
  %v1450 = vshrl.u32 %v1449, 7
  %v1451 = vsub.s32 1, %v1450
  %v1452 = vrot.slane %v1398, %v1451
  %v1453 = vmul.f32 %v1436, %v1440
  %v1454 = vmul.f32 %v1436, %v1444
  %v1455 = vmul.f32 %v1436, %v1448
  %v1456 = vmul.f32 %v1436, %v1452
  %v1457 = vadd.f32 %v1426, %v1453
  %v1458 = vadd.f32 %v1427, %v1454
  %v1459 = vadd.f32 %v1428, %v1455
  %v1460 = vadd.f32 %v1429, %v1456
  %v1461 = vlaneseq
  %v1462 = vshrl.u32 %v1461, 7
  %v1463 = vsub.s32 6, %v1462
  %v1464 = vrot.slane %v144, %v1463
  %1466 = vbcast.lane.b32.xlu0 %v1464, 256
  %v1467 = vpop.permute.xlu0 %1466
  %v1468 = vlaneseq
  %v1469 = vshrl.u32 %v1468, 7
  %v1470 = vsub.s32 2, %v1469
  %v1471 = vrot.slane %v1395, %v1470
  %v1472 = vlaneseq
  %v1473 = vshrl.u32 %v1472, 7
  %v1474 = vsub.s32 2, %v1473
  %v1475 = vrot.slane %v1396, %v1474
  %v1476 = vlaneseq
  %v1477 = vshrl.u32 %v1476, 7
  %v1478 = vsub.s32 2, %v1477
  %v1479 = vrot.slane %v1397, %v1478
  %v1480 = vlaneseq
  %v1481 = vshrl.u32 %v1480, 7
  %v1482 = vsub.s32 2, %v1481
  %v1483 = vrot.slane %v1398, %v1482
  %v1484 = vmul.f32 %v1467, %v1471
  %v1485 = vmul.f32 %v1467, %v1475
  %v1486 = vmul.f32 %v1467, %v1479
  %v1487 = vmul.f32 %v1467, %v1483
  %v1488 = vadd.f32 %v1457, %v1484
  %v1489 = vadd.f32 %v1458, %v1485
  %v1490 = vadd.f32 %v1459, %v1486
  %v1491 = vadd.f32 %v1460, %v1487
  %v1492 = vlaneseq
  %v1493 = vshrl.u32 %v1492, 7
  %v1494 = vsub.s32 7, %v1493
  %v1495 = vrot.slane %v144, %v1494
  %1497 = vbcast.lane.b32.xlu0 %v1495, 256
  %v1498 = vpop.permute.xlu0 %1497
  %v1499 = vlaneseq
  %v1500 = vshrl.u32 %v1499, 7
  %v1501 = vsub.s32 3, %v1500
  %v1502 = vrot.slane %v1395, %v1501
  %v1503 = vlaneseq
  %v1504 = vshrl.u32 %v1503, 7
  %v1505 = vsub.s32 3, %v1504
  %v1506 = vrot.slane %v1396, %v1505
  %v1507 = vlaneseq
  %v1508 = vshrl.u32 %v1507, 7
  %v1509 = vsub.s32 3, %v1508
  %v1510 = vrot.slane %v1397, %v1509
  %v1511 = vlaneseq
  %v1512 = vshrl.u32 %v1511, 7
  %v1513 = vsub.s32 3, %v1512
  %v1514 = vrot.slane %v1398, %v1513
  %v1515 = vmul.f32 %v1498, %v1502
  %v1516 = vmul.f32 %v1498, %v1506
  %v1517 = vmul.f32 %v1498, %v1510
  %v1518 = vmul.f32 %v1498, %v1514
  %v1519 = vadd.f32 %v1488, %v1515
  %v1520 = vadd.f32 %v1489, %v1516
  %v1521 = vadd.f32 %v1490, %v1517
  %v1522 = vadd.f32 %v1491, %v1518
  %1523 = vrot.lane.b32.xlu0 %v139, 111
  %v1524 = vpop.permute.xlu0 %1523
  %1525 = vrot.lane.b32.xlu0 %v159, 111
  %v1526 = vpop.permute.xlu0 %1525
  %1527 = vrot.lane.b32.xlu0 %v140, 111
  %v1528 = vpop.permute.xlu0 %1527
  %1529 = vrot.lane.b32.xlu0 %v154, 111
  %v1530 = vpop.permute.xlu0 %1529
  %vm1531 = vcmask 908288
  %v1532 = vsel %vm1531, %v1524, %v1526
  %v1533 = vsel %vm1531, %v1526, %v1528
  %v1534 = vsel %vm1531, %v1528, %v1530
  %v1540 = vsel %vm1531, %v1530, %v1524
  %v1541 = vlaneseq
  %v1542 = vshrl.u32 %v1541, 7
  %v1543 = vsub.s32 0, %v1542
  %v1544 = vrot.slane %v53, %v1543
  %v1545 = vlaneseq
  %v1546 = vshrl.u32 %v1545, 7
  %v1547 = vsub.s32 0, %v1546
  %v1548 = vrot.slane %v54, %v1547
  %v1549 = vlaneseq
  %v1550 = vshrl.u32 %v1549, 7
  %v1551 = vsub.s32 0, %v1550
  %v1552 = vrot.slane %v55, %v1551
  %v1553 = vlaneseq
  %v1554 = vshrl.u32 %v1553, 7
  %v1555 = vsub.s32 0, %v1554
  %v1556 = vrot.slane %v56, %v1555
  %v1557 = vmul.f32 %v1532, %v1544
  %v1558 = vmul.f32 %v1533, %v1548
  %v1559 = vmul.f32 %v1534, %v1552
  %v1560 = vmul.f32 %v1540, %v1556
  %v1561 = vlaneseq
  %v1562 = vshrl.u32 %v1561, 7
  %v1563 = vsub.s32 0, %v1562
  %v1564 = vrot.slane %v145, %v1563
  %1566 = vbcast.lane.b32.xlu0 %v1564, 256
  %v1567 = vpop.permute.xlu0 %1566
  %v1568 = vlaneseq
  %v1569 = vshrl.u32 %v1568, 7
  %v1570 = vsub.s32 0, %v1569
  %v1571 = vrot.slane %v1557, %v1570
  %v1572 = vlaneseq
  %v1573 = vshrl.u32 %v1572, 7
  %v1574 = vsub.s32 0, %v1573
  %v1575 = vrot.slane %v1558, %v1574
  %v1576 = vlaneseq
  %v1577 = vshrl.u32 %v1576, 7
  %v1578 = vsub.s32 0, %v1577
  %v1579 = vrot.slane %v1559, %v1578
  %v1580 = vlaneseq
  %v1581 = vshrl.u32 %v1580, 7
  %v1582 = vsub.s32 0, %v1581
  %v1583 = vrot.slane %v1560, %v1582
  %v1584 = vmul.f32 %v1567, %v1571
  %v1585 = vmul.f32 %v1567, %v1575
  %v1586 = vmul.f32 %v1567, %v1579
  %v1587 = vmul.f32 %v1567, %v1583
  %v1588 = vadd.f32 %v1519, %v1584
  %v1589 = vadd.f32 %v1520, %v1585
  %v1590 = vadd.f32 %v1521, %v1586
  %v1591 = vadd.f32 %v1522, %v1587
  %v1592 = vlaneseq
  %v1593 = vshrl.u32 %v1592, 7
  %v1594 = vsub.s32 1, %v1593
  %v1595 = vrot.slane %v145, %v1594
  %1597 = vbcast.lane.b32.xlu0 %v1595, 256
  %v1598 = vpop.permute.xlu0 %1597
  %v1599 = vlaneseq
  %v1600 = vshrl.u32 %v1599, 7
  %v1601 = vsub.s32 1, %v1600
  %v1602 = vrot.slane %v1557, %v1601
  %v1603 = vlaneseq
  %v1604 = vshrl.u32 %v1603, 7
  %v1605 = vsub.s32 1, %v1604
  %v1606 = vrot.slane %v1558, %v1605
  %v1607 = vlaneseq
  %v1608 = vshrl.u32 %v1607, 7
  %v1609 = vsub.s32 1, %v1608
  %v1610 = vrot.slane %v1559, %v1609
  %v1611 = vlaneseq
  %v1612 = vshrl.u32 %v1611, 7
  %v1613 = vsub.s32 1, %v1612
  %v1614 = vrot.slane %v1560, %v1613
  %v1615 = vmul.f32 %v1598, %v1602
  %v1616 = vmul.f32 %v1598, %v1606
  %v1617 = vmul.f32 %v1598, %v1610
  %v1618 = vmul.f32 %v1598, %v1614
  %v1619 = vadd.f32 %v1588, %v1615
  %v1620 = vadd.f32 %v1589, %v1616
  %v1621 = vadd.f32 %v1590, %v1617
  %v1622 = vadd.f32 %v1591, %v1618
  %v1623 = vlaneseq
  %v1624 = vshrl.u32 %v1623, 7
  %v1625 = vsub.s32 2, %v1624
  %v1626 = vrot.slane %v145, %v1625
  %1628 = vbcast.lane.b32.xlu0 %v1626, 256
  %v1629 = vpop.permute.xlu0 %1628
  %v1630 = vlaneseq
  %v1631 = vshrl.u32 %v1630, 7
  %v1632 = vsub.s32 2, %v1631
  %v1633 = vrot.slane %v1557, %v1632
  %v1634 = vlaneseq
  %v1635 = vshrl.u32 %v1634, 7
  %v1636 = vsub.s32 2, %v1635
  %v1637 = vrot.slane %v1558, %v1636
  %v1638 = vlaneseq
  %v1639 = vshrl.u32 %v1638, 7
  %v1640 = vsub.s32 2, %v1639
  %v1641 = vrot.slane %v1559, %v1640
  %v1642 = vlaneseq
  %v1643 = vshrl.u32 %v1642, 7
  %v1644 = vsub.s32 2, %v1643
  %v1645 = vrot.slane %v1560, %v1644
  %v1646 = vmul.f32 %v1629, %v1633
  %v1647 = vmul.f32 %v1629, %v1637
  %v1648 = vmul.f32 %v1629, %v1641
  %v1649 = vmul.f32 %v1629, %v1645
  %v1650 = vadd.f32 %v1619, %v1646
  %v1651 = vadd.f32 %v1620, %v1647
  %v1652 = vadd.f32 %v1621, %v1648
  %v1653 = vadd.f32 %v1622, %v1649
  %v1654 = vlaneseq
  %v1655 = vshrl.u32 %v1654, 7
  %v1656 = vsub.s32 3, %v1655
  %v1657 = vrot.slane %v145, %v1656
  %1659 = vbcast.lane.b32.xlu0 %v1657, 256
  %v1660 = vpop.permute.xlu0 %1659
  %v1661 = vlaneseq
  %v1662 = vshrl.u32 %v1661, 7
  %v1663 = vsub.s32 3, %v1662
  %v1664 = vrot.slane %v1557, %v1663
  %v1665 = vlaneseq
  %v1666 = vshrl.u32 %v1665, 7
  %v1667 = vsub.s32 3, %v1666
  %v1668 = vrot.slane %v1558, %v1667
  %v1669 = vlaneseq
  %v1670 = vshrl.u32 %v1669, 7
  %v1671 = vsub.s32 3, %v1670
  %v1672 = vrot.slane %v1559, %v1671
  %v1673 = vlaneseq
  %v1674 = vshrl.u32 %v1673, 7
  %v1675 = vsub.s32 3, %v1674
  %v1676 = vrot.slane %v1560, %v1675
  %v1677 = vmul.f32 %v1660, %v1664
  %v1678 = vmul.f32 %v1660, %v1668
  %v1679 = vmul.f32 %v1660, %v1672
  %v1680 = vmul.f32 %v1660, %v1676
  %v1681 = vadd.f32 %v1650, %v1677
  %v1682 = vadd.f32 %v1651, %v1678
  %v1683 = vadd.f32 %v1652, %v1679
  %v1684 = vadd.f32 %v1653, %v1680
  %v1685 = vld [vmem:[%s6] sm:$0xff]
  %v1686 = vld [vmem:[%s7] sm:$0xff]
  %v1687 = vadd.f32 %v1681, %v1682
  %v1688 = vadd.f32 %v1687, %v1683
  %v1689 = vadd.f32 %v1688, %v1684
  %1690 = vadd.xlane.f32.xlu0 %v1689
  %v1691 = vpop.xlane.xlu0 %1690
  %v1692 = vmul.f32 %v1691, %v75
  %v1693 = vsub.f32 %v1681, %v1692
  %v1694 = vsub.f32 %v1682, %v1692
  %v1695 = vsub.f32 %v1683, %v1692
  %v1696 = vsub.f32 %v1684, %v1692
  %v1697 = vmul.f32 %v1693, %v1693
  %v1698 = vmul.f32 %v1694, %v1694
  %v1699 = vmul.f32 %v1695, %v1695
  %v1700 = vmul.f32 %v1696, %v1696
  %v1701 = vadd.f32 %v1697, %v1698
  %v1702 = vadd.f32 %v1701, %v1699
  %v1703 = vadd.f32 %v1702, %v1700
  %1704 = vadd.xlane.f32.xlu0 %v1703
  %v1705 = vpop.xlane.xlu0 %1704
  %v1706 = vmul.f32 %v1705, %v75
  %v1707 = vadd.f32 %v1706, 1e-05
  %v1708 = vrsqrt.pop %v1707
  %v1709 = vmul.f32 %v1685, %v1708
  %v1710 = vmul.f32 %v1692, %v1709
  %v1711 = vsub.f32 %v1686, %v1710
  %1713 = vset.pattern.permute.xlu0 0
  %1714 = vperm.xlu0 %1713, %v1709
  %v1715 = vpop.permute.xlu0 %1714
  %v1717 = vmul.f32 %v1681, %v1715
  %v1718 = vmul.f32 %v1682, %v1715
  %v1719 = vmul.f32 %v1683, %v1715
  %v1720 = vmul.f32 %v1684, %v1715
  %1722 = vset.pattern.permute.xlu0 0
  %1723 = vperm.xlu0 %1722, %v1711
  %v1724 = vpop.permute.xlu0 %1723
  %v1726 = vadd.f32 %v1717, %v1724
  %v1727 = vadd.f32 %v1718, %v1724
  %v1728 = vadd.f32 %v1719, %v1724
  %v1729 = vadd.f32 %v1720, %v1724
  %v1730 = vmax.f32 %v1726, 0.0
  %v1731 = vmax.f32 %v1727, 0.0
  %v1732 = vmax.f32 %v1728, 0.0
  %v1733 = vmax.f32 %v1729, 0.0
  %v1734 = vld [vmem:[%s8] sm:$0xff]
  %v1735 = vld [vmem:[%s8 + $0x8] sm:$0xff]
  %v1736 = vld [vmem:[%s8 + $0x10] sm:$0xff]
  %v1737 = vld [vmem:[%s8 + $0x18] sm:$0xff]
  %v1738 = vld [vmem:[%s8 + $0x20] sm:$0xff]
  %v1739 = vld [vmem:[%s8 + $0x28] sm:$0xff]
  %v1740 = vld [vmem:[%s8 + $0x30] sm:$0xff]
  %v1741 = vld [vmem:[%s8 + $0x38] sm:$0xff]
  %v1742 = vld [vmem:[%s8 + $0x40] sm:$0xff]
  %v1743 = vld [vmem:[%s9] sm:$0xff]
  %1745 = vset.pattern.permute.xlu0 0
  %1746 = vperm.xlu0 %1745, %v1743
  %v1747 = vpop.permute.xlu0 %1746
  %v1749 = vadd.f32 %v1747, 0.0
  %1751 = vrot.lane.b32.xlu0 %v1733, 17
  %v1752 = vpop.permute.xlu0 %1751
  %1757 = vrot.lane.b32.xlu0 %v1730, 17
  %v1758 = vpop.permute.xlu0 %1757
  %1759 = vrot.lane.b32.xlu0 %v1731, 17
  %v1760 = vpop.permute.xlu0 %1759
  %1761 = vrot.lane.b32.xlu0 %v1732, 17
  %v1762 = vpop.permute.xlu0 %1761
  %v1763 = vsel %vm166, %v1758, %v1760
  %v1764 = vsel %vm166, %v1760, %v1762
  %v1765 = vsel %vm166, %v1762, %v1752
  %v1770 = vsel %vm166, %v1752, %v1758
  %v1771 = vmul.f32 %v1770, %v178
  %v1772 = vmul.f32 %v1763, %v182
  %v1773 = vmul.f32 %v1764, %v186
  %v1774 = vmul.f32 %v1765, %v190
  %v1775 = vlaneseq
  %v1776 = vshrl.u32 %v1775, 7
  %v1777 = vsub.s32 0, %v1776
  %v1778 = vrot.slane %v1734, %v1777
  %1780 = vbcast.lane.b32.xlu0 %v1778, 256
  %v1781 = vpop.permute.xlu0 %1780
  %v1782 = vlaneseq
  %v1783 = vshrl.u32 %v1782, 7
  %v1784 = vsub.s32 0, %v1783
  %v1785 = vrot.slane %v1771, %v1784
  %v1786 = vlaneseq
  %v1787 = vshrl.u32 %v1786, 7
  %v1788 = vsub.s32 0, %v1787
  %v1789 = vrot.slane %v1772, %v1788
  %v1790 = vlaneseq
  %v1791 = vshrl.u32 %v1790, 7
  %v1792 = vsub.s32 0, %v1791
  %v1793 = vrot.slane %v1773, %v1792
  %v1794 = vlaneseq
  %v1795 = vshrl.u32 %v1794, 7
  %v1796 = vsub.s32 0, %v1795
  %v1797 = vrot.slane %v1774, %v1796
  %v1798 = vmul.f32 %v1781, %v1785
  %v1799 = vmul.f32 %v1781, %v1789
  %v1800 = vmul.f32 %v1781, %v1793
  %v1801 = vmul.f32 %v1781, %v1797
  %v1802 = vadd.f32 %v1749, %v1798
  %v1803 = vadd.f32 %v1749, %v1799
  %v1804 = vadd.f32 %v1749, %v1800
  %v1805 = vadd.f32 %v1749, %v1801
  %v1806 = vlaneseq
  %v1807 = vshrl.u32 %v1806, 7
  %v1808 = vsub.s32 1, %v1807
  %v1809 = vrot.slane %v1734, %v1808
  %1811 = vbcast.lane.b32.xlu0 %v1809, 256
  %v1812 = vpop.permute.xlu0 %1811
  %v1813 = vlaneseq
  %v1814 = vshrl.u32 %v1813, 7
  %v1815 = vsub.s32 1, %v1814
  %v1816 = vrot.slane %v1771, %v1815
  %v1817 = vlaneseq
  %v1818 = vshrl.u32 %v1817, 7
  %v1819 = vsub.s32 1, %v1818
  %v1820 = vrot.slane %v1772, %v1819
  %v1821 = vlaneseq
  %v1822 = vshrl.u32 %v1821, 7
  %v1823 = vsub.s32 1, %v1822
  %v1824 = vrot.slane %v1773, %v1823
  %v1825 = vlaneseq
  %v1826 = vshrl.u32 %v1825, 7
  %v1827 = vsub.s32 1, %v1826
  %v1828 = vrot.slane %v1774, %v1827
  %v1829 = vmul.f32 %v1812, %v1816
  %v1830 = vmul.f32 %v1812, %v1820
  %v1831 = vmul.f32 %v1812, %v1824
  %v1832 = vmul.f32 %v1812, %v1828
  %v1833 = vadd.f32 %v1802, %v1829
  %v1834 = vadd.f32 %v1803, %v1830
  %v1835 = vadd.f32 %v1804, %v1831
  %v1836 = vadd.f32 %v1805, %v1832
  %v1837 = vlaneseq
  %v1838 = vshrl.u32 %v1837, 7
  %v1839 = vsub.s32 2, %v1838
  %v1840 = vrot.slane %v1734, %v1839
  %1842 = vbcast.lane.b32.xlu0 %v1840, 256
  %v1843 = vpop.permute.xlu0 %1842
  %v1844 = vlaneseq
  %v1845 = vshrl.u32 %v1844, 7
  %v1846 = vsub.s32 2, %v1845
  %v1847 = vrot.slane %v1771, %v1846
  %v1848 = vlaneseq
  %v1849 = vshrl.u32 %v1848, 7
  %v1850 = vsub.s32 2, %v1849
  %v1851 = vrot.slane %v1772, %v1850
  %v1852 = vlaneseq
  %v1853 = vshrl.u32 %v1852, 7
  %v1854 = vsub.s32 2, %v1853
  %v1855 = vrot.slane %v1773, %v1854
  %v1856 = vlaneseq
  %v1857 = vshrl.u32 %v1856, 7
  %v1858 = vsub.s32 2, %v1857
  %v1859 = vrot.slane %v1774, %v1858
  %v1860 = vmul.f32 %v1843, %v1847
  %v1861 = vmul.f32 %v1843, %v1851
  %v1862 = vmul.f32 %v1843, %v1855
  %v1863 = vmul.f32 %v1843, %v1859
  %v1864 = vadd.f32 %v1833, %v1860
  %v1865 = vadd.f32 %v1834, %v1861
  %v1866 = vadd.f32 %v1835, %v1862
  %v1867 = vadd.f32 %v1836, %v1863
  %v1868 = vlaneseq
  %v1869 = vshrl.u32 %v1868, 7
  %v1870 = vsub.s32 3, %v1869
  %v1871 = vrot.slane %v1734, %v1870
  %1873 = vbcast.lane.b32.xlu0 %v1871, 256
  %v1874 = vpop.permute.xlu0 %1873
  %v1875 = vlaneseq
  %v1876 = vshrl.u32 %v1875, 7
  %v1877 = vsub.s32 3, %v1876
  %v1878 = vrot.slane %v1771, %v1877
  %v1879 = vlaneseq
  %v1880 = vshrl.u32 %v1879, 7
  %v1881 = vsub.s32 3, %v1880
  %v1882 = vrot.slane %v1772, %v1881
  %v1883 = vlaneseq
  %v1884 = vshrl.u32 %v1883, 7
  %v1885 = vsub.s32 3, %v1884
  %v1886 = vrot.slane %v1773, %v1885
  %v1887 = vlaneseq
  %v1888 = vshrl.u32 %v1887, 7
  %v1889 = vsub.s32 3, %v1888
  %v1890 = vrot.slane %v1774, %v1889
  %v1891 = vmul.f32 %v1874, %v1878
  %v1892 = vmul.f32 %v1874, %v1882
  %v1893 = vmul.f32 %v1874, %v1886
  %v1894 = vmul.f32 %v1874, %v1890
  %v1895 = vadd.f32 %v1864, %v1891
  %v1896 = vadd.f32 %v1865, %v1892
  %v1897 = vadd.f32 %v1866, %v1893
  %v1898 = vadd.f32 %v1867, %v1894
  %v1899 = vlaneseq
  %v1900 = vshrl.u32 %v1899, 7
  %v1901 = vsub.s32 4, %v1900
  %v1902 = vrot.slane %v1734, %v1901
  %1904 = vbcast.lane.b32.xlu0 %v1902, 256
  %v1905 = vpop.permute.xlu0 %1904
  %v1906 = vlaneseq
  %v1907 = vshrl.u32 %v1906, 7
  %v1908 = vsub.s32 4, %v1907
  %v1909 = vrot.slane %v1771, %v1908
  %v1910 = vlaneseq
  %v1911 = vshrl.u32 %v1910, 7
  %v1912 = vsub.s32 4, %v1911
  %v1913 = vrot.slane %v1772, %v1912
  %v1914 = vlaneseq
  %v1915 = vshrl.u32 %v1914, 7
  %v1916 = vsub.s32 4, %v1915
  %v1917 = vrot.slane %v1773, %v1916
  %v1918 = vlaneseq
  %v1919 = vshrl.u32 %v1918, 7
  %v1920 = vsub.s32 4, %v1919
  %v1921 = vrot.slane %v1774, %v1920
  %v1922 = vmul.f32 %v1905, %v1909
  %v1923 = vmul.f32 %v1905, %v1913
  %v1924 = vmul.f32 %v1905, %v1917
  %v1925 = vmul.f32 %v1905, %v1921
  %v1926 = vadd.f32 %v1895, %v1922
  %v1927 = vadd.f32 %v1896, %v1923
  %v1928 = vadd.f32 %v1897, %v1924
  %v1929 = vadd.f32 %v1898, %v1925
  %v1930 = vlaneseq
  %v1931 = vshrl.u32 %v1930, 7
  %v1932 = vsub.s32 5, %v1931
  %v1933 = vrot.slane %v1734, %v1932
  %1935 = vbcast.lane.b32.xlu0 %v1933, 256
  %v1936 = vpop.permute.xlu0 %1935
  %v1937 = vlaneseq
  %v1938 = vshrl.u32 %v1937, 7
  %v1939 = vsub.s32 5, %v1938
  %v1940 = vrot.slane %v1771, %v1939
  %v1941 = vlaneseq
  %v1942 = vshrl.u32 %v1941, 7
  %v1943 = vsub.s32 5, %v1942
  %v1944 = vrot.slane %v1772, %v1943
  %v1945 = vlaneseq
  %v1946 = vshrl.u32 %v1945, 7
  %v1947 = vsub.s32 5, %v1946
  %v1948 = vrot.slane %v1773, %v1947
  %v1949 = vlaneseq
  %v1950 = vshrl.u32 %v1949, 7
  %v1951 = vsub.s32 5, %v1950
  %v1952 = vrot.slane %v1774, %v1951
  %v1953 = vmul.f32 %v1936, %v1940
  %v1954 = vmul.f32 %v1936, %v1944
  %v1955 = vmul.f32 %v1936, %v1948
  %v1956 = vmul.f32 %v1936, %v1952
  %v1957 = vadd.f32 %v1926, %v1953
  %v1958 = vadd.f32 %v1927, %v1954
  %v1959 = vadd.f32 %v1928, %v1955
  %v1960 = vadd.f32 %v1929, %v1956
  %v1961 = vlaneseq
  %v1962 = vshrl.u32 %v1961, 7
  %v1963 = vsub.s32 6, %v1962
  %v1964 = vrot.slane %v1734, %v1963
  %1966 = vbcast.lane.b32.xlu0 %v1964, 256
  %v1967 = vpop.permute.xlu0 %1966
  %v1968 = vlaneseq
  %v1969 = vshrl.u32 %v1968, 7
  %v1970 = vsub.s32 6, %v1969
  %v1971 = vrot.slane %v1771, %v1970
  %v1972 = vlaneseq
  %v1973 = vshrl.u32 %v1972, 7
  %v1974 = vsub.s32 6, %v1973
  %v1975 = vrot.slane %v1772, %v1974
  %v1976 = vlaneseq
  %v1977 = vshrl.u32 %v1976, 7
  %v1978 = vsub.s32 6, %v1977
  %v1979 = vrot.slane %v1773, %v1978
  %v1980 = vlaneseq
  %v1981 = vshrl.u32 %v1980, 7
  %v1982 = vsub.s32 6, %v1981
  %v1983 = vrot.slane %v1774, %v1982
  %v1984 = vmul.f32 %v1967, %v1971
  %v1985 = vmul.f32 %v1967, %v1975
  %v1986 = vmul.f32 %v1967, %v1979
  %v1987 = vmul.f32 %v1967, %v1983
  %v1988 = vadd.f32 %v1957, %v1984
  %v1989 = vadd.f32 %v1958, %v1985
  %v1990 = vadd.f32 %v1959, %v1986
  %v1991 = vadd.f32 %v1960, %v1987
  %v1992 = vlaneseq
  %v1993 = vshrl.u32 %v1992, 7
  %v1994 = vsub.s32 7, %v1993
  %v1995 = vrot.slane %v1734, %v1994
  %1997 = vbcast.lane.b32.xlu0 %v1995, 256
  %v1998 = vpop.permute.xlu0 %1997
  %v1999 = vlaneseq
  %v2000 = vshrl.u32 %v1999, 7
  %v2001 = vsub.s32 7, %v2000
  %v2002 = vrot.slane %v1771, %v2001
  %v2003 = vlaneseq
  %v2004 = vshrl.u32 %v2003, 7
  %v2005 = vsub.s32 7, %v2004
  %v2006 = vrot.slane %v1772, %v2005
  %v2007 = vlaneseq
  %v2008 = vshrl.u32 %v2007, 7
  %v2009 = vsub.s32 7, %v2008
  %v2010 = vrot.slane %v1773, %v2009
  %v2011 = vlaneseq
  %v2012 = vshrl.u32 %v2011, 7
  %v2013 = vsub.s32 7, %v2012
  %v2014 = vrot.slane %v1774, %v2013
  %v2015 = vmul.f32 %v1998, %v2002
  %v2016 = vmul.f32 %v1998, %v2006
  %v2017 = vmul.f32 %v1998, %v2010
  %v2018 = vmul.f32 %v1998, %v2014
  %v2019 = vadd.f32 %v1988, %v2015
  %v2020 = vadd.f32 %v1989, %v2016
  %v2021 = vadd.f32 %v1990, %v2017
  %v2022 = vadd.f32 %v1991, %v2018
  %2023 = vrot.lane.b32.xlu0 %v1733, 16
  %v2024 = vpop.permute.xlu0 %2023
  %2026 = vrot.lane.b32.xlu0 %v1730, 16
  %v2027 = vpop.permute.xlu0 %2026
  %2028 = vrot.lane.b32.xlu0 %v1731, 16
  %v2029 = vpop.permute.xlu0 %2028
  %2030 = vrot.lane.b32.xlu0 %v1732, 16
  %v2031 = vpop.permute.xlu0 %2030
  %v2032 = vsel %vm328, %v2027, %v2029
  %v2033 = vsel %vm328, %v2029, %v2031
  %v2034 = vsel %vm328, %v2031, %v2024
  %v2039 = vsel %vm328, %v2024, %v2027
  %v2040 = vmul.f32 %v2039, %v340
  %v2041 = vmul.f32 %v2032, %v344
  %v2042 = vmul.f32 %v2033, %v348
  %v2043 = vmul.f32 %v2034, %v352
  %v2044 = vlaneseq
  %v2045 = vshrl.u32 %v2044, 7
  %v2046 = vsub.s32 0, %v2045
  %v2047 = vrot.slane %v1735, %v2046
  %2049 = vbcast.lane.b32.xlu0 %v2047, 256
  %v2050 = vpop.permute.xlu0 %2049
  %v2051 = vlaneseq
  %v2052 = vshrl.u32 %v2051, 7
  %v2053 = vsub.s32 0, %v2052
  %v2054 = vrot.slane %v2040, %v2053
  %v2055 = vlaneseq
  %v2056 = vshrl.u32 %v2055, 7
  %v2057 = vsub.s32 0, %v2056
  %v2058 = vrot.slane %v2041, %v2057
  %v2059 = vlaneseq
  %v2060 = vshrl.u32 %v2059, 7
  %v2061 = vsub.s32 0, %v2060
  %v2062 = vrot.slane %v2042, %v2061
  %v2063 = vlaneseq
  %v2064 = vshrl.u32 %v2063, 7
  %v2065 = vsub.s32 0, %v2064
  %v2066 = vrot.slane %v2043, %v2065
  %v2067 = vmul.f32 %v2050, %v2054
  %v2068 = vmul.f32 %v2050, %v2058
  %v2069 = vmul.f32 %v2050, %v2062
  %v2070 = vmul.f32 %v2050, %v2066
  %v2071 = vadd.f32 %v2019, %v2067
  %v2072 = vadd.f32 %v2020, %v2068
  %v2073 = vadd.f32 %v2021, %v2069
  %v2074 = vadd.f32 %v2022, %v2070
  %v2075 = vlaneseq
  %v2076 = vshrl.u32 %v2075, 7
  %v2077 = vsub.s32 1, %v2076
  %v2078 = vrot.slane %v1735, %v2077
  %2080 = vbcast.lane.b32.xlu0 %v2078, 256
  %v2081 = vpop.permute.xlu0 %2080
  %v2082 = vlaneseq
  %v2083 = vshrl.u32 %v2082, 7
  %v2084 = vsub.s32 1, %v2083
  %v2085 = vrot.slane %v2040, %v2084
  %v2086 = vlaneseq
  %v2087 = vshrl.u32 %v2086, 7
  %v2088 = vsub.s32 1, %v2087
  %v2089 = vrot.slane %v2041, %v2088
  %v2090 = vlaneseq
  %v2091 = vshrl.u32 %v2090, 7
  %v2092 = vsub.s32 1, %v2091
  %v2093 = vrot.slane %v2042, %v2092
  %v2094 = vlaneseq
  %v2095 = vshrl.u32 %v2094, 7
  %v2096 = vsub.s32 1, %v2095
  %v2097 = vrot.slane %v2043, %v2096
  %v2098 = vmul.f32 %v2081, %v2085
  %v2099 = vmul.f32 %v2081, %v2089
  %v2100 = vmul.f32 %v2081, %v2093
  %v2101 = vmul.f32 %v2081, %v2097
  %v2102 = vadd.f32 %v2071, %v2098
  %v2103 = vadd.f32 %v2072, %v2099
  %v2104 = vadd.f32 %v2073, %v2100
  %v2105 = vadd.f32 %v2074, %v2101
  %v2106 = vlaneseq
  %v2107 = vshrl.u32 %v2106, 7
  %v2108 = vsub.s32 2, %v2107
  %v2109 = vrot.slane %v1735, %v2108
  %2111 = vbcast.lane.b32.xlu0 %v2109, 256
  %v2112 = vpop.permute.xlu0 %2111
  %v2113 = vlaneseq
  %v2114 = vshrl.u32 %v2113, 7
  %v2115 = vsub.s32 2, %v2114
  %v2116 = vrot.slane %v2040, %v2115
  %v2117 = vlaneseq
  %v2118 = vshrl.u32 %v2117, 7
  %v2119 = vsub.s32 2, %v2118
  %v2120 = vrot.slane %v2041, %v2119
  %v2121 = vlaneseq
  %v2122 = vshrl.u32 %v2121, 7
  %v2123 = vsub.s32 2, %v2122
  %v2124 = vrot.slane %v2042, %v2123
  %v2125 = vlaneseq
  %v2126 = vshrl.u32 %v2125, 7
  %v2127 = vsub.s32 2, %v2126
  %v2128 = vrot.slane %v2043, %v2127
  %v2129 = vmul.f32 %v2112, %v2116
  %v2130 = vmul.f32 %v2112, %v2120
  %v2131 = vmul.f32 %v2112, %v2124
  %v2132 = vmul.f32 %v2112, %v2128
  %v2133 = vadd.f32 %v2102, %v2129
  %v2134 = vadd.f32 %v2103, %v2130
  %v2135 = vadd.f32 %v2104, %v2131
  %v2136 = vadd.f32 %v2105, %v2132
  %v2137 = vlaneseq
  %v2138 = vshrl.u32 %v2137, 7
  %v2139 = vsub.s32 3, %v2138
  %v2140 = vrot.slane %v1735, %v2139
  %2142 = vbcast.lane.b32.xlu0 %v2140, 256
  %v2143 = vpop.permute.xlu0 %2142
  %v2144 = vlaneseq
  %v2145 = vshrl.u32 %v2144, 7
  %v2146 = vsub.s32 3, %v2145
  %v2147 = vrot.slane %v2040, %v2146
  %v2148 = vlaneseq
  %v2149 = vshrl.u32 %v2148, 7
  %v2150 = vsub.s32 3, %v2149
  %v2151 = vrot.slane %v2041, %v2150
  %v2152 = vlaneseq
  %v2153 = vshrl.u32 %v2152, 7
  %v2154 = vsub.s32 3, %v2153
  %v2155 = vrot.slane %v2042, %v2154
  %v2156 = vlaneseq
  %v2157 = vshrl.u32 %v2156, 7
  %v2158 = vsub.s32 3, %v2157
  %v2159 = vrot.slane %v2043, %v2158
  %v2160 = vmul.f32 %v2143, %v2147
  %v2161 = vmul.f32 %v2143, %v2151
  %v2162 = vmul.f32 %v2143, %v2155
  %v2163 = vmul.f32 %v2143, %v2159
  %v2164 = vadd.f32 %v2133, %v2160
  %v2165 = vadd.f32 %v2134, %v2161
  %v2166 = vadd.f32 %v2135, %v2162
  %v2167 = vadd.f32 %v2136, %v2163
  %v2168 = vlaneseq
  %v2169 = vshrl.u32 %v2168, 7
  %v2170 = vsub.s32 4, %v2169
  %v2171 = vrot.slane %v1735, %v2170
  %2173 = vbcast.lane.b32.xlu0 %v2171, 256
  %v2174 = vpop.permute.xlu0 %2173
  %v2175 = vlaneseq
  %v2176 = vshrl.u32 %v2175, 7
  %v2177 = vsub.s32 4, %v2176
  %v2178 = vrot.slane %v2040, %v2177
  %v2179 = vlaneseq
  %v2180 = vshrl.u32 %v2179, 7
  %v2181 = vsub.s32 4, %v2180
  %v2182 = vrot.slane %v2041, %v2181
  %v2183 = vlaneseq
  %v2184 = vshrl.u32 %v2183, 7
  %v2185 = vsub.s32 4, %v2184
  %v2186 = vrot.slane %v2042, %v2185
  %v2187 = vlaneseq
  %v2188 = vshrl.u32 %v2187, 7
  %v2189 = vsub.s32 4, %v2188
  %v2190 = vrot.slane %v2043, %v2189
  %v2191 = vmul.f32 %v2174, %v2178
  %v2192 = vmul.f32 %v2174, %v2182
  %v2193 = vmul.f32 %v2174, %v2186
  %v2194 = vmul.f32 %v2174, %v2190
  %v2195 = vadd.f32 %v2164, %v2191
  %v2196 = vadd.f32 %v2165, %v2192
  %v2197 = vadd.f32 %v2166, %v2193
  %v2198 = vadd.f32 %v2167, %v2194
  %v2199 = vlaneseq
  %v2200 = vshrl.u32 %v2199, 7
  %v2201 = vsub.s32 5, %v2200
  %v2202 = vrot.slane %v1735, %v2201
  %2204 = vbcast.lane.b32.xlu0 %v2202, 256
  %v2205 = vpop.permute.xlu0 %2204
  %v2206 = vlaneseq
  %v2207 = vshrl.u32 %v2206, 7
  %v2208 = vsub.s32 5, %v2207
  %v2209 = vrot.slane %v2040, %v2208
  %v2210 = vlaneseq
  %v2211 = vshrl.u32 %v2210, 7
  %v2212 = vsub.s32 5, %v2211
  %v2213 = vrot.slane %v2041, %v2212
  %v2214 = vlaneseq
  %v2215 = vshrl.u32 %v2214, 7
  %v2216 = vsub.s32 5, %v2215
  %v2217 = vrot.slane %v2042, %v2216
  %v2218 = vlaneseq
  %v2219 = vshrl.u32 %v2218, 7
  %v2220 = vsub.s32 5, %v2219
  %v2221 = vrot.slane %v2043, %v2220
  %v2222 = vmul.f32 %v2205, %v2209
  %v2223 = vmul.f32 %v2205, %v2213
  %v2224 = vmul.f32 %v2205, %v2217
  %v2225 = vmul.f32 %v2205, %v2221
  %v2226 = vadd.f32 %v2195, %v2222
  %v2227 = vadd.f32 %v2196, %v2223
  %v2228 = vadd.f32 %v2197, %v2224
  %v2229 = vadd.f32 %v2198, %v2225
  %v2230 = vlaneseq
  %v2231 = vshrl.u32 %v2230, 7
  %v2232 = vsub.s32 6, %v2231
  %v2233 = vrot.slane %v1735, %v2232
  %2235 = vbcast.lane.b32.xlu0 %v2233, 256
  %v2236 = vpop.permute.xlu0 %2235
  %v2237 = vlaneseq
  %v2238 = vshrl.u32 %v2237, 7
  %v2239 = vsub.s32 6, %v2238
  %v2240 = vrot.slane %v2040, %v2239
  %v2241 = vlaneseq
  %v2242 = vshrl.u32 %v2241, 7
  %v2243 = vsub.s32 6, %v2242
  %v2244 = vrot.slane %v2041, %v2243
  %v2245 = vlaneseq
  %v2246 = vshrl.u32 %v2245, 7
  %v2247 = vsub.s32 6, %v2246
  %v2248 = vrot.slane %v2042, %v2247
  %v2249 = vlaneseq
  %v2250 = vshrl.u32 %v2249, 7
  %v2251 = vsub.s32 6, %v2250
  %v2252 = vrot.slane %v2043, %v2251
  %v2253 = vmul.f32 %v2236, %v2240
  %v2254 = vmul.f32 %v2236, %v2244
  %v2255 = vmul.f32 %v2236, %v2248
  %v2256 = vmul.f32 %v2236, %v2252
  %v2257 = vadd.f32 %v2226, %v2253
  %v2258 = vadd.f32 %v2227, %v2254
  %v2259 = vadd.f32 %v2228, %v2255
  %v2260 = vadd.f32 %v2229, %v2256
  %v2261 = vlaneseq
  %v2262 = vshrl.u32 %v2261, 7
  %v2263 = vsub.s32 7, %v2262
  %v2264 = vrot.slane %v1735, %v2263
  %2266 = vbcast.lane.b32.xlu0 %v2264, 256
  %v2267 = vpop.permute.xlu0 %2266
  %v2268 = vlaneseq
  %v2269 = vshrl.u32 %v2268, 7
  %v2270 = vsub.s32 7, %v2269
  %v2271 = vrot.slane %v2040, %v2270
  %v2272 = vlaneseq
  %v2273 = vshrl.u32 %v2272, 7
  %v2274 = vsub.s32 7, %v2273
  %v2275 = vrot.slane %v2041, %v2274
  %v2276 = vlaneseq
  %v2277 = vshrl.u32 %v2276, 7
  %v2278 = vsub.s32 7, %v2277
  %v2279 = vrot.slane %v2042, %v2278
  %v2280 = vlaneseq
  %v2281 = vshrl.u32 %v2280, 7
  %v2282 = vsub.s32 7, %v2281
  %v2283 = vrot.slane %v2043, %v2282
  %v2284 = vmul.f32 %v2267, %v2271
  %v2285 = vmul.f32 %v2267, %v2275
  %v2286 = vmul.f32 %v2267, %v2279
  %v2287 = vmul.f32 %v2267, %v2283
  %v2288 = vadd.f32 %v2257, %v2284
  %v2289 = vadd.f32 %v2258, %v2285
  %v2290 = vadd.f32 %v2259, %v2286
  %v2291 = vadd.f32 %v2260, %v2287
  %2292 = vrot.lane.b32.xlu0 %v1733, 15
  %v2293 = vpop.permute.xlu0 %2292
  %2295 = vrot.lane.b32.xlu0 %v1730, 15
  %v2296 = vpop.permute.xlu0 %2295
  %2297 = vrot.lane.b32.xlu0 %v1731, 15
  %v2298 = vpop.permute.xlu0 %2297
  %2299 = vrot.lane.b32.xlu0 %v1732, 15
  %v2300 = vpop.permute.xlu0 %2299
  %v2301 = vsel %vm490, %v2296, %v2298
  %v2302 = vsel %vm490, %v2298, %v2300
  %v2303 = vsel %vm490, %v2300, %v2293
  %v2308 = vsel %vm490, %v2293, %v2296
  %v2309 = vmul.f32 %v2308, %v502
  %v2310 = vmul.f32 %v2301, %v506
  %v2311 = vmul.f32 %v2302, %v510
  %v2312 = vmul.f32 %v2303, %v514
  %v2313 = vlaneseq
  %v2314 = vshrl.u32 %v2313, 7
  %v2315 = vsub.s32 0, %v2314
  %v2316 = vrot.slane %v1736, %v2315
  %2318 = vbcast.lane.b32.xlu0 %v2316, 256
  %v2319 = vpop.permute.xlu0 %2318
  %v2320 = vlaneseq
  %v2321 = vshrl.u32 %v2320, 7
  %v2322 = vsub.s32 0, %v2321
  %v2323 = vrot.slane %v2309, %v2322
  %v2324 = vlaneseq
  %v2325 = vshrl.u32 %v2324, 7
  %v2326 = vsub.s32 0, %v2325
  %v2327 = vrot.slane %v2310, %v2326
  %v2328 = vlaneseq
  %v2329 = vshrl.u32 %v2328, 7
  %v2330 = vsub.s32 0, %v2329
  %v2331 = vrot.slane %v2311, %v2330
  %v2332 = vlaneseq
  %v2333 = vshrl.u32 %v2332, 7
  %v2334 = vsub.s32 0, %v2333
  %v2335 = vrot.slane %v2312, %v2334
  %v2336 = vmul.f32 %v2319, %v2323
  %v2337 = vmul.f32 %v2319, %v2327
  %v2338 = vmul.f32 %v2319, %v2331
  %v2339 = vmul.f32 %v2319, %v2335
  %v2340 = vadd.f32 %v2288, %v2336
  %v2341 = vadd.f32 %v2289, %v2337
  %v2342 = vadd.f32 %v2290, %v2338
  %v2343 = vadd.f32 %v2291, %v2339
  %v2344 = vlaneseq
  %v2345 = vshrl.u32 %v2344, 7
  %v2346 = vsub.s32 1, %v2345
  %v2347 = vrot.slane %v1736, %v2346
  %2349 = vbcast.lane.b32.xlu0 %v2347, 256
  %v2350 = vpop.permute.xlu0 %2349
  %v2351 = vlaneseq
  %v2352 = vshrl.u32 %v2351, 7
  %v2353 = vsub.s32 1, %v2352
  %v2354 = vrot.slane %v2309, %v2353
  %v2355 = vlaneseq
  %v2356 = vshrl.u32 %v2355, 7
  %v2357 = vsub.s32 1, %v2356
  %v2358 = vrot.slane %v2310, %v2357
  %v2359 = vlaneseq
  %v2360 = vshrl.u32 %v2359, 7
  %v2361 = vsub.s32 1, %v2360
  %v2362 = vrot.slane %v2311, %v2361
  %v2363 = vlaneseq
  %v2364 = vshrl.u32 %v2363, 7
  %v2365 = vsub.s32 1, %v2364
  %v2366 = vrot.slane %v2312, %v2365
  %v2367 = vmul.f32 %v2350, %v2354
  %v2368 = vmul.f32 %v2350, %v2358
  %v2369 = vmul.f32 %v2350, %v2362
  %v2370 = vmul.f32 %v2350, %v2366
  %v2371 = vadd.f32 %v2340, %v2367
  %v2372 = vadd.f32 %v2341, %v2368
  %v2373 = vadd.f32 %v2342, %v2369
  %v2374 = vadd.f32 %v2343, %v2370
  %v2375 = vlaneseq
  %v2376 = vshrl.u32 %v2375, 7
  %v2377 = vsub.s32 2, %v2376
  %v2378 = vrot.slane %v1736, %v2377
  %2380 = vbcast.lane.b32.xlu0 %v2378, 256
  %v2381 = vpop.permute.xlu0 %2380
  %v2382 = vlaneseq
  %v2383 = vshrl.u32 %v2382, 7
  %v2384 = vsub.s32 2, %v2383
  %v2385 = vrot.slane %v2309, %v2384
  %v2386 = vlaneseq
  %v2387 = vshrl.u32 %v2386, 7
  %v2388 = vsub.s32 2, %v2387
  %v2389 = vrot.slane %v2310, %v2388
  %v2390 = vlaneseq
  %v2391 = vshrl.u32 %v2390, 7
  %v2392 = vsub.s32 2, %v2391
  %v2393 = vrot.slane %v2311, %v2392
  %v2394 = vlaneseq
  %v2395 = vshrl.u32 %v2394, 7
  %v2396 = vsub.s32 2, %v2395
  %v2397 = vrot.slane %v2312, %v2396
  %v2398 = vmul.f32 %v2381, %v2385
  %v2399 = vmul.f32 %v2381, %v2389
  %v2400 = vmul.f32 %v2381, %v2393
  %v2401 = vmul.f32 %v2381, %v2397
  %v2402 = vadd.f32 %v2371, %v2398
  %v2403 = vadd.f32 %v2372, %v2399
  %v2404 = vadd.f32 %v2373, %v2400
  %v2405 = vadd.f32 %v2374, %v2401
  %v2406 = vlaneseq
  %v2407 = vshrl.u32 %v2406, 7
  %v2408 = vsub.s32 3, %v2407
  %v2409 = vrot.slane %v1736, %v2408
  %2411 = vbcast.lane.b32.xlu0 %v2409, 256
  %v2412 = vpop.permute.xlu0 %2411
  %v2413 = vlaneseq
  %v2414 = vshrl.u32 %v2413, 7
  %v2415 = vsub.s32 3, %v2414
  %v2416 = vrot.slane %v2309, %v2415
  %v2417 = vlaneseq
  %v2418 = vshrl.u32 %v2417, 7
  %v2419 = vsub.s32 3, %v2418
  %v2420 = vrot.slane %v2310, %v2419
  %v2421 = vlaneseq
  %v2422 = vshrl.u32 %v2421, 7
  %v2423 = vsub.s32 3, %v2422
  %v2424 = vrot.slane %v2311, %v2423
  %v2425 = vlaneseq
  %v2426 = vshrl.u32 %v2425, 7
  %v2427 = vsub.s32 3, %v2426
  %v2428 = vrot.slane %v2312, %v2427
  %v2429 = vmul.f32 %v2412, %v2416
  %v2430 = vmul.f32 %v2412, %v2420
  %v2431 = vmul.f32 %v2412, %v2424
  %v2432 = vmul.f32 %v2412, %v2428
  %v2433 = vadd.f32 %v2402, %v2429
  %v2434 = vadd.f32 %v2403, %v2430
  %v2435 = vadd.f32 %v2404, %v2431
  %v2436 = vadd.f32 %v2405, %v2432
  %v2437 = vlaneseq
  %v2438 = vshrl.u32 %v2437, 7
  %v2439 = vsub.s32 4, %v2438
  %v2440 = vrot.slane %v1736, %v2439
  %2442 = vbcast.lane.b32.xlu0 %v2440, 256
  %v2443 = vpop.permute.xlu0 %2442
  %v2444 = vlaneseq
  %v2445 = vshrl.u32 %v2444, 7
  %v2446 = vsub.s32 4, %v2445
  %v2447 = vrot.slane %v2309, %v2446
  %v2448 = vlaneseq
  %v2449 = vshrl.u32 %v2448, 7
  %v2450 = vsub.s32 4, %v2449
  %v2451 = vrot.slane %v2310, %v2450
  %v2452 = vlaneseq
  %v2453 = vshrl.u32 %v2452, 7
  %v2454 = vsub.s32 4, %v2453
  %v2455 = vrot.slane %v2311, %v2454
  %v2456 = vlaneseq
  %v2457 = vshrl.u32 %v2456, 7
  %v2458 = vsub.s32 4, %v2457
  %v2459 = vrot.slane %v2312, %v2458
  %v2460 = vmul.f32 %v2443, %v2447
  %v2461 = vmul.f32 %v2443, %v2451
  %v2462 = vmul.f32 %v2443, %v2455
  %v2463 = vmul.f32 %v2443, %v2459
  %v2464 = vadd.f32 %v2433, %v2460
  %v2465 = vadd.f32 %v2434, %v2461
  %v2466 = vadd.f32 %v2435, %v2462
  %v2467 = vadd.f32 %v2436, %v2463
  %v2468 = vlaneseq
  %v2469 = vshrl.u32 %v2468, 7
  %v2470 = vsub.s32 5, %v2469
  %v2471 = vrot.slane %v1736, %v2470
  %2473 = vbcast.lane.b32.xlu0 %v2471, 256
  %v2474 = vpop.permute.xlu0 %2473
  %v2475 = vlaneseq
  %v2476 = vshrl.u32 %v2475, 7
  %v2477 = vsub.s32 5, %v2476
  %v2478 = vrot.slane %v2309, %v2477
  %v2479 = vlaneseq
  %v2480 = vshrl.u32 %v2479, 7
  %v2481 = vsub.s32 5, %v2480
  %v2482 = vrot.slane %v2310, %v2481
  %v2483 = vlaneseq
  %v2484 = vshrl.u32 %v2483, 7
  %v2485 = vsub.s32 5, %v2484
  %v2486 = vrot.slane %v2311, %v2485
  %v2487 = vlaneseq
  %v2488 = vshrl.u32 %v2487, 7
  %v2489 = vsub.s32 5, %v2488
  %v2490 = vrot.slane %v2312, %v2489
  %v2491 = vmul.f32 %v2474, %v2478
  %v2492 = vmul.f32 %v2474, %v2482
  %v2493 = vmul.f32 %v2474, %v2486
  %v2494 = vmul.f32 %v2474, %v2490
  %v2495 = vadd.f32 %v2464, %v2491
  %v2496 = vadd.f32 %v2465, %v2492
  %v2497 = vadd.f32 %v2466, %v2493
  %v2498 = vadd.f32 %v2467, %v2494
  %v2499 = vlaneseq
  %v2500 = vshrl.u32 %v2499, 7
  %v2501 = vsub.s32 6, %v2500
  %v2502 = vrot.slane %v1736, %v2501
  %2504 = vbcast.lane.b32.xlu0 %v2502, 256
  %v2505 = vpop.permute.xlu0 %2504
  %v2506 = vlaneseq
  %v2507 = vshrl.u32 %v2506, 7
  %v2508 = vsub.s32 6, %v2507
  %v2509 = vrot.slane %v2309, %v2508
  %v2510 = vlaneseq
  %v2511 = vshrl.u32 %v2510, 7
  %v2512 = vsub.s32 6, %v2511
  %v2513 = vrot.slane %v2310, %v2512
  %v2514 = vlaneseq
  %v2515 = vshrl.u32 %v2514, 7
  %v2516 = vsub.s32 6, %v2515
  %v2517 = vrot.slane %v2311, %v2516
  %v2518 = vlaneseq
  %v2519 = vshrl.u32 %v2518, 7
  %v2520 = vsub.s32 6, %v2519
  %v2521 = vrot.slane %v2312, %v2520
  %v2522 = vmul.f32 %v2505, %v2509
  %v2523 = vmul.f32 %v2505, %v2513
  %v2524 = vmul.f32 %v2505, %v2517
  %v2525 = vmul.f32 %v2505, %v2521
  %v2526 = vadd.f32 %v2495, %v2522
  %v2527 = vadd.f32 %v2496, %v2523
  %v2528 = vadd.f32 %v2497, %v2524
  %v2529 = vadd.f32 %v2498, %v2525
  %v2530 = vlaneseq
  %v2531 = vshrl.u32 %v2530, 7
  %v2532 = vsub.s32 7, %v2531
  %v2533 = vrot.slane %v1736, %v2532
  %2535 = vbcast.lane.b32.xlu0 %v2533, 256
  %v2536 = vpop.permute.xlu0 %2535
  %v2537 = vlaneseq
  %v2538 = vshrl.u32 %v2537, 7
  %v2539 = vsub.s32 7, %v2538
  %v2540 = vrot.slane %v2309, %v2539
  %v2541 = vlaneseq
  %v2542 = vshrl.u32 %v2541, 7
  %v2543 = vsub.s32 7, %v2542
  %v2544 = vrot.slane %v2310, %v2543
  %v2545 = vlaneseq
  %v2546 = vshrl.u32 %v2545, 7
  %v2547 = vsub.s32 7, %v2546
  %v2548 = vrot.slane %v2311, %v2547
  %v2549 = vlaneseq
  %v2550 = vshrl.u32 %v2549, 7
  %v2551 = vsub.s32 7, %v2550
  %v2552 = vrot.slane %v2312, %v2551
  %v2553 = vmul.f32 %v2536, %v2540
  %v2554 = vmul.f32 %v2536, %v2544
  %v2555 = vmul.f32 %v2536, %v2548
  %v2556 = vmul.f32 %v2536, %v2552
  %v2557 = vadd.f32 %v2526, %v2553
  %v2558 = vadd.f32 %v2527, %v2554
  %v2559 = vadd.f32 %v2528, %v2555
  %v2560 = vadd.f32 %v2529, %v2556
  %2561 = vrot.lane.b32.xlu0 %v1733, 1
  %v2562 = vpop.permute.xlu0 %2561
  %2564 = vrot.lane.b32.xlu0 %v1730, 1
  %v2565 = vpop.permute.xlu0 %2564
  %2566 = vrot.lane.b32.xlu0 %v1731, 1
  %v2567 = vpop.permute.xlu0 %2566
  %2568 = vrot.lane.b32.xlu0 %v1732, 1
  %v2569 = vpop.permute.xlu0 %2568
  %v2570 = vsel %vm652, %v2565, %v2567
  %v2571 = vsel %vm652, %v2567, %v2569
  %v2572 = vsel %vm652, %v2569, %v2562
  %v2577 = vsel %vm652, %v2562, %v2565
  %v2578 = vmul.f32 %v2577, %v664
  %v2579 = vmul.f32 %v2570, %v668
  %v2580 = vmul.f32 %v2571, %v672
  %v2581 = vmul.f32 %v2572, %v676
  %v2582 = vlaneseq
  %v2583 = vshrl.u32 %v2582, 7
  %v2584 = vsub.s32 0, %v2583
  %v2585 = vrot.slane %v1737, %v2584
  %2587 = vbcast.lane.b32.xlu0 %v2585, 256
  %v2588 = vpop.permute.xlu0 %2587
  %v2589 = vlaneseq
  %v2590 = vshrl.u32 %v2589, 7
  %v2591 = vsub.s32 0, %v2590
  %v2592 = vrot.slane %v2578, %v2591
  %v2593 = vlaneseq
  %v2594 = vshrl.u32 %v2593, 7
  %v2595 = vsub.s32 0, %v2594
  %v2596 = vrot.slane %v2579, %v2595
  %v2597 = vlaneseq
  %v2598 = vshrl.u32 %v2597, 7
  %v2599 = vsub.s32 0, %v2598
  %v2600 = vrot.slane %v2580, %v2599
  %v2601 = vlaneseq
  %v2602 = vshrl.u32 %v2601, 7
  %v2603 = vsub.s32 0, %v2602
  %v2604 = vrot.slane %v2581, %v2603
  %v2605 = vmul.f32 %v2588, %v2592
  %v2606 = vmul.f32 %v2588, %v2596
  %v2607 = vmul.f32 %v2588, %v2600
  %v2608 = vmul.f32 %v2588, %v2604
  %v2609 = vadd.f32 %v2557, %v2605
  %v2610 = vadd.f32 %v2558, %v2606
  %v2611 = vadd.f32 %v2559, %v2607
  %v2612 = vadd.f32 %v2560, %v2608
  %v2613 = vlaneseq
  %v2614 = vshrl.u32 %v2613, 7
  %v2615 = vsub.s32 1, %v2614
  %v2616 = vrot.slane %v1737, %v2615
  %2618 = vbcast.lane.b32.xlu0 %v2616, 256
  %v2619 = vpop.permute.xlu0 %2618
  %v2620 = vlaneseq
  %v2621 = vshrl.u32 %v2620, 7
  %v2622 = vsub.s32 1, %v2621
  %v2623 = vrot.slane %v2578, %v2622
  %v2624 = vlaneseq
  %v2625 = vshrl.u32 %v2624, 7
  %v2626 = vsub.s32 1, %v2625
  %v2627 = vrot.slane %v2579, %v2626
  %v2628 = vlaneseq
  %v2629 = vshrl.u32 %v2628, 7
  %v2630 = vsub.s32 1, %v2629
  %v2631 = vrot.slane %v2580, %v2630
  %v2632 = vlaneseq
  %v2633 = vshrl.u32 %v2632, 7
  %v2634 = vsub.s32 1, %v2633
  %v2635 = vrot.slane %v2581, %v2634
  %v2636 = vmul.f32 %v2619, %v2623
  %v2637 = vmul.f32 %v2619, %v2627
  %v2638 = vmul.f32 %v2619, %v2631
  %v2639 = vmul.f32 %v2619, %v2635
  %v2640 = vadd.f32 %v2609, %v2636
  %v2641 = vadd.f32 %v2610, %v2637
  %v2642 = vadd.f32 %v2611, %v2638
  %v2643 = vadd.f32 %v2612, %v2639
  %v2644 = vlaneseq
  %v2645 = vshrl.u32 %v2644, 7
  %v2646 = vsub.s32 2, %v2645
  %v2647 = vrot.slane %v1737, %v2646
  %2649 = vbcast.lane.b32.xlu0 %v2647, 256
  %v2650 = vpop.permute.xlu0 %2649
  %v2651 = vlaneseq
  %v2652 = vshrl.u32 %v2651, 7
  %v2653 = vsub.s32 2, %v2652
  %v2654 = vrot.slane %v2578, %v2653
  %v2655 = vlaneseq
  %v2656 = vshrl.u32 %v2655, 7
  %v2657 = vsub.s32 2, %v2656
  %v2658 = vrot.slane %v2579, %v2657
  %v2659 = vlaneseq
  %v2660 = vshrl.u32 %v2659, 7
  %v2661 = vsub.s32 2, %v2660
  %v2662 = vrot.slane %v2580, %v2661
  %v2663 = vlaneseq
  %v2664 = vshrl.u32 %v2663, 7
  %v2665 = vsub.s32 2, %v2664
  %v2666 = vrot.slane %v2581, %v2665
  %v2667 = vmul.f32 %v2650, %v2654
  %v2668 = vmul.f32 %v2650, %v2658
  %v2669 = vmul.f32 %v2650, %v2662
  %v2670 = vmul.f32 %v2650, %v2666
  %v2671 = vadd.f32 %v2640, %v2667
  %v2672 = vadd.f32 %v2641, %v2668
  %v2673 = vadd.f32 %v2642, %v2669
  %v2674 = vadd.f32 %v2643, %v2670
  %v2675 = vlaneseq
  %v2676 = vshrl.u32 %v2675, 7
  %v2677 = vsub.s32 3, %v2676
  %v2678 = vrot.slane %v1737, %v2677
  %2680 = vbcast.lane.b32.xlu0 %v2678, 256
  %v2681 = vpop.permute.xlu0 %2680
  %v2682 = vlaneseq
  %v2683 = vshrl.u32 %v2682, 7
  %v2684 = vsub.s32 3, %v2683
  %v2685 = vrot.slane %v2578, %v2684
  %v2686 = vlaneseq
  %v2687 = vshrl.u32 %v2686, 7
  %v2688 = vsub.s32 3, %v2687
  %v2689 = vrot.slane %v2579, %v2688
  %v2690 = vlaneseq
  %v2691 = vshrl.u32 %v2690, 7
  %v2692 = vsub.s32 3, %v2691
  %v2693 = vrot.slane %v2580, %v2692
  %v2694 = vlaneseq
  %v2695 = vshrl.u32 %v2694, 7
  %v2696 = vsub.s32 3, %v2695
  %v2697 = vrot.slane %v2581, %v2696
  %v2698 = vmul.f32 %v2681, %v2685
  %v2699 = vmul.f32 %v2681, %v2689
  %v2700 = vmul.f32 %v2681, %v2693
  %v2701 = vmul.f32 %v2681, %v2697
  %v2702 = vadd.f32 %v2671, %v2698
  %v2703 = vadd.f32 %v2672, %v2699
  %v2704 = vadd.f32 %v2673, %v2700
  %v2705 = vadd.f32 %v2674, %v2701
  %v2706 = vlaneseq
  %v2707 = vshrl.u32 %v2706, 7
  %v2708 = vsub.s32 4, %v2707
  %v2709 = vrot.slane %v1737, %v2708
  %2711 = vbcast.lane.b32.xlu0 %v2709, 256
  %v2712 = vpop.permute.xlu0 %2711
  %v2713 = vlaneseq
  %v2714 = vshrl.u32 %v2713, 7
  %v2715 = vsub.s32 4, %v2714
  %v2716 = vrot.slane %v2578, %v2715
  %v2717 = vlaneseq
  %v2718 = vshrl.u32 %v2717, 7
  %v2719 = vsub.s32 4, %v2718
  %v2720 = vrot.slane %v2579, %v2719
  %v2721 = vlaneseq
  %v2722 = vshrl.u32 %v2721, 7
  %v2723 = vsub.s32 4, %v2722
  %v2724 = vrot.slane %v2580, %v2723
  %v2725 = vlaneseq
  %v2726 = vshrl.u32 %v2725, 7
  %v2727 = vsub.s32 4, %v2726
  %v2728 = vrot.slane %v2581, %v2727
  %v2729 = vmul.f32 %v2712, %v2716
  %v2730 = vmul.f32 %v2712, %v2720
  %v2731 = vmul.f32 %v2712, %v2724
  %v2732 = vmul.f32 %v2712, %v2728
  %v2733 = vadd.f32 %v2702, %v2729
  %v2734 = vadd.f32 %v2703, %v2730
  %v2735 = vadd.f32 %v2704, %v2731
  %v2736 = vadd.f32 %v2705, %v2732
  %v2737 = vlaneseq
  %v2738 = vshrl.u32 %v2737, 7
  %v2739 = vsub.s32 5, %v2738
  %v2740 = vrot.slane %v1737, %v2739
  %2742 = vbcast.lane.b32.xlu0 %v2740, 256
  %v2743 = vpop.permute.xlu0 %2742
  %v2744 = vlaneseq
  %v2745 = vshrl.u32 %v2744, 7
  %v2746 = vsub.s32 5, %v2745
  %v2747 = vrot.slane %v2578, %v2746
  %v2748 = vlaneseq
  %v2749 = vshrl.u32 %v2748, 7
  %v2750 = vsub.s32 5, %v2749
  %v2751 = vrot.slane %v2579, %v2750
  %v2752 = vlaneseq
  %v2753 = vshrl.u32 %v2752, 7
  %v2754 = vsub.s32 5, %v2753
  %v2755 = vrot.slane %v2580, %v2754
  %v2756 = vlaneseq
  %v2757 = vshrl.u32 %v2756, 7
  %v2758 = vsub.s32 5, %v2757
  %v2759 = vrot.slane %v2581, %v2758
  %v2760 = vmul.f32 %v2743, %v2747
  %v2761 = vmul.f32 %v2743, %v2751
  %v2762 = vmul.f32 %v2743, %v2755
  %v2763 = vmul.f32 %v2743, %v2759
  %v2764 = vadd.f32 %v2733, %v2760
  %v2765 = vadd.f32 %v2734, %v2761
  %v2766 = vadd.f32 %v2735, %v2762
  %v2767 = vadd.f32 %v2736, %v2763
  %v2768 = vlaneseq
  %v2769 = vshrl.u32 %v2768, 7
  %v2770 = vsub.s32 6, %v2769
  %v2771 = vrot.slane %v1737, %v2770
  %2773 = vbcast.lane.b32.xlu0 %v2771, 256
  %v2774 = vpop.permute.xlu0 %2773
  %v2775 = vlaneseq
  %v2776 = vshrl.u32 %v2775, 7
  %v2777 = vsub.s32 6, %v2776
  %v2778 = vrot.slane %v2578, %v2777
  %v2779 = vlaneseq
  %v2780 = vshrl.u32 %v2779, 7
  %v2781 = vsub.s32 6, %v2780
  %v2782 = vrot.slane %v2579, %v2781
  %v2783 = vlaneseq
  %v2784 = vshrl.u32 %v2783, 7
  %v2785 = vsub.s32 6, %v2784
  %v2786 = vrot.slane %v2580, %v2785
  %v2787 = vlaneseq
  %v2788 = vshrl.u32 %v2787, 7
  %v2789 = vsub.s32 6, %v2788
  %v2790 = vrot.slane %v2581, %v2789
  %v2791 = vmul.f32 %v2774, %v2778
  %v2792 = vmul.f32 %v2774, %v2782
  %v2793 = vmul.f32 %v2774, %v2786
  %v2794 = vmul.f32 %v2774, %v2790
  %v2795 = vadd.f32 %v2764, %v2791
  %v2796 = vadd.f32 %v2765, %v2792
  %v2797 = vadd.f32 %v2766, %v2793
  %v2798 = vadd.f32 %v2767, %v2794
  %v2799 = vlaneseq
  %v2800 = vshrl.u32 %v2799, 7
  %v2801 = vsub.s32 7, %v2800
  %v2802 = vrot.slane %v1737, %v2801
  %2804 = vbcast.lane.b32.xlu0 %v2802, 256
  %v2805 = vpop.permute.xlu0 %2804
  %v2806 = vlaneseq
  %v2807 = vshrl.u32 %v2806, 7
  %v2808 = vsub.s32 7, %v2807
  %v2809 = vrot.slane %v2578, %v2808
  %v2810 = vlaneseq
  %v2811 = vshrl.u32 %v2810, 7
  %v2812 = vsub.s32 7, %v2811
  %v2813 = vrot.slane %v2579, %v2812
  %v2814 = vlaneseq
  %v2815 = vshrl.u32 %v2814, 7
  %v2816 = vsub.s32 7, %v2815
  %v2817 = vrot.slane %v2580, %v2816
  %v2818 = vlaneseq
  %v2819 = vshrl.u32 %v2818, 7
  %v2820 = vsub.s32 7, %v2819
  %v2821 = vrot.slane %v2581, %v2820
  %v2822 = vmul.f32 %v2805, %v2809
  %v2823 = vmul.f32 %v2805, %v2813
  %v2824 = vmul.f32 %v2805, %v2817
  %v2825 = vmul.f32 %v2805, %v2821
  %v2826 = vadd.f32 %v2795, %v2822
  %v2827 = vadd.f32 %v2796, %v2823
  %v2828 = vadd.f32 %v2797, %v2824
  %v2829 = vadd.f32 %v2798, %v2825
  %v2830 = vmul.f32 %v1730, %v808
  %v2831 = vmul.f32 %v1731, %v812
  %v2832 = vmul.f32 %v1732, %v816
  %v2833 = vmul.f32 %v1733, %v820
  %v2834 = vlaneseq
  %v2835 = vshrl.u32 %v2834, 7
  %v2836 = vsub.s32 0, %v2835
  %v2837 = vrot.slane %v1738, %v2836
  %2839 = vbcast.lane.b32.xlu0 %v2837, 256
  %v2840 = vpop.permute.xlu0 %2839
  %v2841 = vlaneseq
  %v2842 = vshrl.u32 %v2841, 7
  %v2843 = vsub.s32 0, %v2842
  %v2844 = vrot.slane %v2830, %v2843
  %v2845 = vlaneseq
  %v2846 = vshrl.u32 %v2845, 7
  %v2847 = vsub.s32 0, %v2846
  %v2848 = vrot.slane %v2831, %v2847
  %v2849 = vlaneseq
  %v2850 = vshrl.u32 %v2849, 7
  %v2851 = vsub.s32 0, %v2850
  %v2852 = vrot.slane %v2832, %v2851
  %v2853 = vlaneseq
  %v2854 = vshrl.u32 %v2853, 7
  %v2855 = vsub.s32 0, %v2854
  %v2856 = vrot.slane %v2833, %v2855
  %v2857 = vmul.f32 %v2840, %v2844
  %v2858 = vmul.f32 %v2840, %v2848
  %v2859 = vmul.f32 %v2840, %v2852
  %v2860 = vmul.f32 %v2840, %v2856
  %v2861 = vadd.f32 %v2826, %v2857
  %v2862 = vadd.f32 %v2827, %v2858
  %v2863 = vadd.f32 %v2828, %v2859
  %v2864 = vadd.f32 %v2829, %v2860
  %v2865 = vlaneseq
  %v2866 = vshrl.u32 %v2865, 7
  %v2867 = vsub.s32 1, %v2866
  %v2868 = vrot.slane %v1738, %v2867
  %2870 = vbcast.lane.b32.xlu0 %v2868, 256
  %v2871 = vpop.permute.xlu0 %2870
  %v2872 = vlaneseq
  %v2873 = vshrl.u32 %v2872, 7
  %v2874 = vsub.s32 1, %v2873
  %v2875 = vrot.slane %v2830, %v2874
  %v2876 = vlaneseq
  %v2877 = vshrl.u32 %v2876, 7
  %v2878 = vsub.s32 1, %v2877
  %v2879 = vrot.slane %v2831, %v2878
  %v2880 = vlaneseq
  %v2881 = vshrl.u32 %v2880, 7
  %v2882 = vsub.s32 1, %v2881
  %v2883 = vrot.slane %v2832, %v2882
  %v2884 = vlaneseq
  %v2885 = vshrl.u32 %v2884, 7
  %v2886 = vsub.s32 1, %v2885
  %v2887 = vrot.slane %v2833, %v2886
  %v2888 = vmul.f32 %v2871, %v2875
  %v2889 = vmul.f32 %v2871, %v2879
  %v2890 = vmul.f32 %v2871, %v2883
  %v2891 = vmul.f32 %v2871, %v2887
  %v2892 = vadd.f32 %v2861, %v2888
  %v2893 = vadd.f32 %v2862, %v2889
  %v2894 = vadd.f32 %v2863, %v2890
  %v2895 = vadd.f32 %v2864, %v2891
  %v2896 = vlaneseq
  %v2897 = vshrl.u32 %v2896, 7
  %v2898 = vsub.s32 2, %v2897
  %v2899 = vrot.slane %v1738, %v2898
  %2901 = vbcast.lane.b32.xlu0 %v2899, 256
  %v2902 = vpop.permute.xlu0 %2901
  %v2903 = vlaneseq
  %v2904 = vshrl.u32 %v2903, 7
  %v2905 = vsub.s32 2, %v2904
  %v2906 = vrot.slane %v2830, %v2905
  %v2907 = vlaneseq
  %v2908 = vshrl.u32 %v2907, 7
  %v2909 = vsub.s32 2, %v2908
  %v2910 = vrot.slane %v2831, %v2909
  %v2911 = vlaneseq
  %v2912 = vshrl.u32 %v2911, 7
  %v2913 = vsub.s32 2, %v2912
  %v2914 = vrot.slane %v2832, %v2913
  %v2915 = vlaneseq
  %v2916 = vshrl.u32 %v2915, 7
  %v2917 = vsub.s32 2, %v2916
  %v2918 = vrot.slane %v2833, %v2917
  %v2919 = vmul.f32 %v2902, %v2906
  %v2920 = vmul.f32 %v2902, %v2910
  %v2921 = vmul.f32 %v2902, %v2914
  %v2922 = vmul.f32 %v2902, %v2918
  %v2923 = vadd.f32 %v2892, %v2919
  %v2924 = vadd.f32 %v2893, %v2920
  %v2925 = vadd.f32 %v2894, %v2921
  %v2926 = vadd.f32 %v2895, %v2922
  %v2927 = vlaneseq
  %v2928 = vshrl.u32 %v2927, 7
  %v2929 = vsub.s32 3, %v2928
  %v2930 = vrot.slane %v1738, %v2929
  %2932 = vbcast.lane.b32.xlu0 %v2930, 256
  %v2933 = vpop.permute.xlu0 %2932
  %v2934 = vlaneseq
  %v2935 = vshrl.u32 %v2934, 7
  %v2936 = vsub.s32 3, %v2935
  %v2937 = vrot.slane %v2830, %v2936
  %v2938 = vlaneseq
  %v2939 = vshrl.u32 %v2938, 7
  %v2940 = vsub.s32 3, %v2939
  %v2941 = vrot.slane %v2831, %v2940
  %v2942 = vlaneseq
  %v2943 = vshrl.u32 %v2942, 7
  %v2944 = vsub.s32 3, %v2943
  %v2945 = vrot.slane %v2832, %v2944
  %v2946 = vlaneseq
  %v2947 = vshrl.u32 %v2946, 7
  %v2948 = vsub.s32 3, %v2947
  %v2949 = vrot.slane %v2833, %v2948
  %v2950 = vmul.f32 %v2933, %v2937
  %v2951 = vmul.f32 %v2933, %v2941
  %v2952 = vmul.f32 %v2933, %v2945
  %v2953 = vmul.f32 %v2933, %v2949
  %v2954 = vadd.f32 %v2923, %v2950
  %v2955 = vadd.f32 %v2924, %v2951
  %v2956 = vadd.f32 %v2925, %v2952
  %v2957 = vadd.f32 %v2926, %v2953
  %v2958 = vlaneseq
  %v2959 = vshrl.u32 %v2958, 7
  %v2960 = vsub.s32 4, %v2959
  %v2961 = vrot.slane %v1738, %v2960
  %2963 = vbcast.lane.b32.xlu0 %v2961, 256
  %v2964 = vpop.permute.xlu0 %2963
  %v2965 = vlaneseq
  %v2966 = vshrl.u32 %v2965, 7
  %v2967 = vsub.s32 4, %v2966
  %v2968 = vrot.slane %v2830, %v2967
  %v2969 = vlaneseq
  %v2970 = vshrl.u32 %v2969, 7
  %v2971 = vsub.s32 4, %v2970
  %v2972 = vrot.slane %v2831, %v2971
  %v2973 = vlaneseq
  %v2974 = vshrl.u32 %v2973, 7
  %v2975 = vsub.s32 4, %v2974
  %v2976 = vrot.slane %v2832, %v2975
  %v2977 = vlaneseq
  %v2978 = vshrl.u32 %v2977, 7
  %v2979 = vsub.s32 4, %v2978
  %v2980 = vrot.slane %v2833, %v2979
  %v2981 = vmul.f32 %v2964, %v2968
  %v2982 = vmul.f32 %v2964, %v2972
  %v2983 = vmul.f32 %v2964, %v2976
  %v2984 = vmul.f32 %v2964, %v2980
  %v2985 = vadd.f32 %v2954, %v2981
  %v2986 = vadd.f32 %v2955, %v2982
  %v2987 = vadd.f32 %v2956, %v2983
  %v2988 = vadd.f32 %v2957, %v2984
  %v2989 = vlaneseq
  %v2990 = vshrl.u32 %v2989, 7
  %v2991 = vsub.s32 5, %v2990
  %v2992 = vrot.slane %v1738, %v2991
  %2994 = vbcast.lane.b32.xlu0 %v2992, 256
  %v2995 = vpop.permute.xlu0 %2994
  %v2996 = vlaneseq
  %v2997 = vshrl.u32 %v2996, 7
  %v2998 = vsub.s32 5, %v2997
  %v2999 = vrot.slane %v2830, %v2998
  %v3000 = vlaneseq
  %v3001 = vshrl.u32 %v3000, 7
  %v3002 = vsub.s32 5, %v3001
  %v3003 = vrot.slane %v2831, %v3002
  %v3004 = vlaneseq
  %v3005 = vshrl.u32 %v3004, 7
  %v3006 = vsub.s32 5, %v3005
  %v3007 = vrot.slane %v2832, %v3006
  %v3008 = vlaneseq
  %v3009 = vshrl.u32 %v3008, 7
  %v3010 = vsub.s32 5, %v3009
  %v3011 = vrot.slane %v2833, %v3010
  %v3012 = vmul.f32 %v2995, %v2999
  %v3013 = vmul.f32 %v2995, %v3003
  %v3014 = vmul.f32 %v2995, %v3007
  %v3015 = vmul.f32 %v2995, %v3011
  %v3016 = vadd.f32 %v2985, %v3012
  %v3017 = vadd.f32 %v2986, %v3013
  %v3018 = vadd.f32 %v2987, %v3014
  %v3019 = vadd.f32 %v2988, %v3015
  %v3020 = vlaneseq
  %v3021 = vshrl.u32 %v3020, 7
  %v3022 = vsub.s32 6, %v3021
  %v3023 = vrot.slane %v1738, %v3022
  %3025 = vbcast.lane.b32.xlu0 %v3023, 256
  %v3026 = vpop.permute.xlu0 %3025
  %v3027 = vlaneseq
  %v3028 = vshrl.u32 %v3027, 7
  %v3029 = vsub.s32 6, %v3028
  %v3030 = vrot.slane %v2830, %v3029
  %v3031 = vlaneseq
  %v3032 = vshrl.u32 %v3031, 7
  %v3033 = vsub.s32 6, %v3032
  %v3034 = vrot.slane %v2831, %v3033
  %v3035 = vlaneseq
  %v3036 = vshrl.u32 %v3035, 7
  %v3037 = vsub.s32 6, %v3036
  %v3038 = vrot.slane %v2832, %v3037
  %v3039 = vlaneseq
  %v3040 = vshrl.u32 %v3039, 7
  %v3041 = vsub.s32 6, %v3040
  %v3042 = vrot.slane %v2833, %v3041
  %v3043 = vmul.f32 %v3026, %v3030
  %v3044 = vmul.f32 %v3026, %v3034
  %v3045 = vmul.f32 %v3026, %v3038
  %v3046 = vmul.f32 %v3026, %v3042
  %v3047 = vadd.f32 %v3016, %v3043
  %v3048 = vadd.f32 %v3017, %v3044
  %v3049 = vadd.f32 %v3018, %v3045
  %v3050 = vadd.f32 %v3019, %v3046
  %v3051 = vlaneseq
  %v3052 = vshrl.u32 %v3051, 7
  %v3053 = vsub.s32 7, %v3052
  %v3054 = vrot.slane %v1738, %v3053
  %3056 = vbcast.lane.b32.xlu0 %v3054, 256
  %v3057 = vpop.permute.xlu0 %3056
  %v3058 = vlaneseq
  %v3059 = vshrl.u32 %v3058, 7
  %v3060 = vsub.s32 7, %v3059
  %v3061 = vrot.slane %v2830, %v3060
  %v3062 = vlaneseq
  %v3063 = vshrl.u32 %v3062, 7
  %v3064 = vsub.s32 7, %v3063
  %v3065 = vrot.slane %v2831, %v3064
  %v3066 = vlaneseq
  %v3067 = vshrl.u32 %v3066, 7
  %v3068 = vsub.s32 7, %v3067
  %v3069 = vrot.slane %v2832, %v3068
  %v3070 = vlaneseq
  %v3071 = vshrl.u32 %v3070, 7
  %v3072 = vsub.s32 7, %v3071
  %v3073 = vrot.slane %v2833, %v3072
  %v3074 = vmul.f32 %v3057, %v3061
  %v3075 = vmul.f32 %v3057, %v3065
  %v3076 = vmul.f32 %v3057, %v3069
  %v3077 = vmul.f32 %v3057, %v3073
  %v3078 = vadd.f32 %v3047, %v3074
  %v3079 = vadd.f32 %v3048, %v3075
  %v3080 = vadd.f32 %v3049, %v3076
  %v3081 = vadd.f32 %v3050, %v3077
  %3082 = vrot.lane.b32.xlu0 %v1730, 127
  %v3083 = vpop.permute.xlu0 %3082
  %3084 = vrot.lane.b32.xlu0 %v1731, 127
  %v3085 = vpop.permute.xlu0 %3084
  %3086 = vrot.lane.b32.xlu0 %v1732, 127
  %v3087 = vpop.permute.xlu0 %3086
  %3088 = vrot.lane.b32.xlu0 %v1733, 127
  %v3089 = vpop.permute.xlu0 %3088
  %v3090 = vsel %vm1045, %v3083, %v3085
  %v3091 = vsel %vm1045, %v3085, %v3087
  %v3092 = vsel %vm1045, %v3087, %v3089
  %v3098 = vsel %vm1045, %v3089, %v3083
  %v3099 = vmul.f32 %v3090, %v1058
  %v3100 = vmul.f32 %v3091, %v1062
  %v3101 = vmul.f32 %v3092, %v1066
  %v3102 = vmul.f32 %v3098, %v1070
  %v3103 = vlaneseq
  %v3104 = vshrl.u32 %v3103, 7
  %v3105 = vsub.s32 0, %v3104
  %v3106 = vrot.slane %v1739, %v3105
  %3108 = vbcast.lane.b32.xlu0 %v3106, 256
  %v3109 = vpop.permute.xlu0 %3108
  %v3110 = vlaneseq
  %v3111 = vshrl.u32 %v3110, 7
  %v3112 = vsub.s32 0, %v3111
  %v3113 = vrot.slane %v3099, %v3112
  %v3114 = vlaneseq
  %v3115 = vshrl.u32 %v3114, 7
  %v3116 = vsub.s32 0, %v3115
  %v3117 = vrot.slane %v3100, %v3116
  %v3118 = vlaneseq
  %v3119 = vshrl.u32 %v3118, 7
  %v3120 = vsub.s32 0, %v3119
  %v3121 = vrot.slane %v3101, %v3120
  %v3122 = vlaneseq
  %v3123 = vshrl.u32 %v3122, 7
  %v3124 = vsub.s32 0, %v3123
  %v3125 = vrot.slane %v3102, %v3124
  %v3126 = vmul.f32 %v3109, %v3113
  %v3127 = vmul.f32 %v3109, %v3117
  %v3128 = vmul.f32 %v3109, %v3121
  %v3129 = vmul.f32 %v3109, %v3125
  %v3130 = vadd.f32 %v3078, %v3126
  %v3131 = vadd.f32 %v3079, %v3127
  %v3132 = vadd.f32 %v3080, %v3128
  %v3133 = vadd.f32 %v3081, %v3129
  %v3134 = vlaneseq
  %v3135 = vshrl.u32 %v3134, 7
  %v3136 = vsub.s32 1, %v3135
  %v3137 = vrot.slane %v1739, %v3136
  %3139 = vbcast.lane.b32.xlu0 %v3137, 256
  %v3140 = vpop.permute.xlu0 %3139
  %v3141 = vlaneseq
  %v3142 = vshrl.u32 %v3141, 7
  %v3143 = vsub.s32 1, %v3142
  %v3144 = vrot.slane %v3099, %v3143
  %v3145 = vlaneseq
  %v3146 = vshrl.u32 %v3145, 7
  %v3147 = vsub.s32 1, %v3146
  %v3148 = vrot.slane %v3100, %v3147
  %v3149 = vlaneseq
  %v3150 = vshrl.u32 %v3149, 7
  %v3151 = vsub.s32 1, %v3150
  %v3152 = vrot.slane %v3101, %v3151
  %v3153 = vlaneseq
  %v3154 = vshrl.u32 %v3153, 7
  %v3155 = vsub.s32 1, %v3154
  %v3156 = vrot.slane %v3102, %v3155
  %v3157 = vmul.f32 %v3140, %v3144
  %v3158 = vmul.f32 %v3140, %v3148
  %v3159 = vmul.f32 %v3140, %v3152
  %v3160 = vmul.f32 %v3140, %v3156
  %v3161 = vadd.f32 %v3130, %v3157
  %v3162 = vadd.f32 %v3131, %v3158
  %v3163 = vadd.f32 %v3132, %v3159
  %v3164 = vadd.f32 %v3133, %v3160
  %v3165 = vlaneseq
  %v3166 = vshrl.u32 %v3165, 7
  %v3167 = vsub.s32 2, %v3166
  %v3168 = vrot.slane %v1739, %v3167
  %3170 = vbcast.lane.b32.xlu0 %v3168, 256
  %v3171 = vpop.permute.xlu0 %3170
  %v3172 = vlaneseq
  %v3173 = vshrl.u32 %v3172, 7
  %v3174 = vsub.s32 2, %v3173
  %v3175 = vrot.slane %v3099, %v3174
  %v3176 = vlaneseq
  %v3177 = vshrl.u32 %v3176, 7
  %v3178 = vsub.s32 2, %v3177
  %v3179 = vrot.slane %v3100, %v3178
  %v3180 = vlaneseq
  %v3181 = vshrl.u32 %v3180, 7
  %v3182 = vsub.s32 2, %v3181
  %v3183 = vrot.slane %v3101, %v3182
  %v3184 = vlaneseq
  %v3185 = vshrl.u32 %v3184, 7
  %v3186 = vsub.s32 2, %v3185
  %v3187 = vrot.slane %v3102, %v3186
  %v3188 = vmul.f32 %v3171, %v3175
  %v3189 = vmul.f32 %v3171, %v3179
  %v3190 = vmul.f32 %v3171, %v3183
  %v3191 = vmul.f32 %v3171, %v3187
  %v3192 = vadd.f32 %v3161, %v3188
  %v3193 = vadd.f32 %v3162, %v3189
  %v3194 = vadd.f32 %v3163, %v3190
  %v3195 = vadd.f32 %v3164, %v3191
  %v3196 = vlaneseq
  %v3197 = vshrl.u32 %v3196, 7
  %v3198 = vsub.s32 3, %v3197
  %v3199 = vrot.slane %v1739, %v3198
  %3201 = vbcast.lane.b32.xlu0 %v3199, 256
  %v3202 = vpop.permute.xlu0 %3201
  %v3203 = vlaneseq
  %v3204 = vshrl.u32 %v3203, 7
  %v3205 = vsub.s32 3, %v3204
  %v3206 = vrot.slane %v3099, %v3205
  %v3207 = vlaneseq
  %v3208 = vshrl.u32 %v3207, 7
  %v3209 = vsub.s32 3, %v3208
  %v3210 = vrot.slane %v3100, %v3209
  %v3211 = vlaneseq
  %v3212 = vshrl.u32 %v3211, 7
  %v3213 = vsub.s32 3, %v3212
  %v3214 = vrot.slane %v3101, %v3213
  %v3215 = vlaneseq
  %v3216 = vshrl.u32 %v3215, 7
  %v3217 = vsub.s32 3, %v3216
  %v3218 = vrot.slane %v3102, %v3217
  %v3219 = vmul.f32 %v3202, %v3206
  %v3220 = vmul.f32 %v3202, %v3210
  %v3221 = vmul.f32 %v3202, %v3214
  %v3222 = vmul.f32 %v3202, %v3218
  %v3223 = vadd.f32 %v3192, %v3219
  %v3224 = vadd.f32 %v3193, %v3220
  %v3225 = vadd.f32 %v3194, %v3221
  %v3226 = vadd.f32 %v3195, %v3222
  %v3227 = vlaneseq
  %v3228 = vshrl.u32 %v3227, 7
  %v3229 = vsub.s32 4, %v3228
  %v3230 = vrot.slane %v1739, %v3229
  %3232 = vbcast.lane.b32.xlu0 %v3230, 256
  %v3233 = vpop.permute.xlu0 %3232
  %v3234 = vlaneseq
  %v3235 = vshrl.u32 %v3234, 7
  %v3236 = vsub.s32 4, %v3235
  %v3237 = vrot.slane %v3099, %v3236
  %v3238 = vlaneseq
  %v3239 = vshrl.u32 %v3238, 7
  %v3240 = vsub.s32 4, %v3239
  %v3241 = vrot.slane %v3100, %v3240
  %v3242 = vlaneseq
  %v3243 = vshrl.u32 %v3242, 7
  %v3244 = vsub.s32 4, %v3243
  %v3245 = vrot.slane %v3101, %v3244
  %v3246 = vlaneseq
  %v3247 = vshrl.u32 %v3246, 7
  %v3248 = vsub.s32 4, %v3247
  %v3249 = vrot.slane %v3102, %v3248
  %v3250 = vmul.f32 %v3233, %v3237
  %v3251 = vmul.f32 %v3233, %v3241
  %v3252 = vmul.f32 %v3233, %v3245
  %v3253 = vmul.f32 %v3233, %v3249
  %v3254 = vadd.f32 %v3223, %v3250
  %v3255 = vadd.f32 %v3224, %v3251
  %v3256 = vadd.f32 %v3225, %v3252
  %v3257 = vadd.f32 %v3226, %v3253
  %v3258 = vlaneseq
  %v3259 = vshrl.u32 %v3258, 7
  %v3260 = vsub.s32 5, %v3259
  %v3261 = vrot.slane %v1739, %v3260
  %3263 = vbcast.lane.b32.xlu0 %v3261, 256
  %v3264 = vpop.permute.xlu0 %3263
  %v3265 = vlaneseq
  %v3266 = vshrl.u32 %v3265, 7
  %v3267 = vsub.s32 5, %v3266
  %v3268 = vrot.slane %v3099, %v3267
  %v3269 = vlaneseq
  %v3270 = vshrl.u32 %v3269, 7
  %v3271 = vsub.s32 5, %v3270
  %v3272 = vrot.slane %v3100, %v3271
  %v3273 = vlaneseq
  %v3274 = vshrl.u32 %v3273, 7
  %v3275 = vsub.s32 5, %v3274
  %v3276 = vrot.slane %v3101, %v3275
  %v3277 = vlaneseq
  %v3278 = vshrl.u32 %v3277, 7
  %v3279 = vsub.s32 5, %v3278
  %v3280 = vrot.slane %v3102, %v3279
  %v3281 = vmul.f32 %v3264, %v3268
  %v3282 = vmul.f32 %v3264, %v3272
  %v3283 = vmul.f32 %v3264, %v3276
  %v3284 = vmul.f32 %v3264, %v3280
  %v3285 = vadd.f32 %v3254, %v3281
  %v3286 = vadd.f32 %v3255, %v3282
  %v3287 = vadd.f32 %v3256, %v3283
  %v3288 = vadd.f32 %v3257, %v3284
  %v3289 = vlaneseq
  %v3290 = vshrl.u32 %v3289, 7
  %v3291 = vsub.s32 6, %v3290
  %v3292 = vrot.slane %v1739, %v3291
  %3294 = vbcast.lane.b32.xlu0 %v3292, 256
  %v3295 = vpop.permute.xlu0 %3294
  %v3296 = vlaneseq
  %v3297 = vshrl.u32 %v3296, 7
  %v3298 = vsub.s32 6, %v3297
  %v3299 = vrot.slane %v3099, %v3298
  %v3300 = vlaneseq
  %v3301 = vshrl.u32 %v3300, 7
  %v3302 = vsub.s32 6, %v3301
  %v3303 = vrot.slane %v3100, %v3302
  %v3304 = vlaneseq
  %v3305 = vshrl.u32 %v3304, 7
  %v3306 = vsub.s32 6, %v3305
  %v3307 = vrot.slane %v3101, %v3306
  %v3308 = vlaneseq
  %v3309 = vshrl.u32 %v3308, 7
  %v3310 = vsub.s32 6, %v3309
  %v3311 = vrot.slane %v3102, %v3310
  %v3312 = vmul.f32 %v3295, %v3299
  %v3313 = vmul.f32 %v3295, %v3303
  %v3314 = vmul.f32 %v3295, %v3307
  %v3315 = vmul.f32 %v3295, %v3311
  %v3316 = vadd.f32 %v3285, %v3312
  %v3317 = vadd.f32 %v3286, %v3313
  %v3318 = vadd.f32 %v3287, %v3314
  %v3319 = vadd.f32 %v3288, %v3315
  %v3320 = vlaneseq
  %v3321 = vshrl.u32 %v3320, 7
  %v3322 = vsub.s32 7, %v3321
  %v3323 = vrot.slane %v1739, %v3322
  %3325 = vbcast.lane.b32.xlu0 %v3323, 256
  %v3326 = vpop.permute.xlu0 %3325
  %v3327 = vlaneseq
  %v3328 = vshrl.u32 %v3327, 7
  %v3329 = vsub.s32 7, %v3328
  %v3330 = vrot.slane %v3099, %v3329
  %v3331 = vlaneseq
  %v3332 = vshrl.u32 %v3331, 7
  %v3333 = vsub.s32 7, %v3332
  %v3334 = vrot.slane %v3100, %v3333
  %v3335 = vlaneseq
  %v3336 = vshrl.u32 %v3335, 7
  %v3337 = vsub.s32 7, %v3336
  %v3338 = vrot.slane %v3101, %v3337
  %v3339 = vlaneseq
  %v3340 = vshrl.u32 %v3339, 7
  %v3341 = vsub.s32 7, %v3340
  %v3342 = vrot.slane %v3102, %v3341
  %v3343 = vmul.f32 %v3326, %v3330
  %v3344 = vmul.f32 %v3326, %v3334
  %v3345 = vmul.f32 %v3326, %v3338
  %v3346 = vmul.f32 %v3326, %v3342
  %v3347 = vadd.f32 %v3316, %v3343
  %v3348 = vadd.f32 %v3317, %v3344
  %v3349 = vadd.f32 %v3318, %v3345
  %v3350 = vadd.f32 %v3319, %v3346
  %3351 = vrot.lane.b32.xlu0 %v1730, 113
  %v3352 = vpop.permute.xlu0 %3351
  %3353 = vrot.lane.b32.xlu0 %v1731, 113
  %v3354 = vpop.permute.xlu0 %3353
  %3355 = vrot.lane.b32.xlu0 %v1732, 113
  %v3356 = vpop.permute.xlu0 %3355
  %3357 = vrot.lane.b32.xlu0 %v1733, 113
  %v3358 = vpop.permute.xlu0 %3357
  %v3359 = vsel %vm1207, %v3352, %v3354
  %v3360 = vsel %vm1207, %v3354, %v3356
  %v3361 = vsel %vm1207, %v3356, %v3358
  %v3367 = vsel %vm1207, %v3358, %v3352
  %v3368 = vmul.f32 %v3359, %v1220
  %v3369 = vmul.f32 %v3360, %v1224
  %v3370 = vmul.f32 %v3361, %v1228
  %v3371 = vmul.f32 %v3367, %v1232
  %v3372 = vlaneseq
  %v3373 = vshrl.u32 %v3372, 7
  %v3374 = vsub.s32 0, %v3373
  %v3375 = vrot.slane %v1740, %v3374
  %3377 = vbcast.lane.b32.xlu0 %v3375, 256
  %v3378 = vpop.permute.xlu0 %3377
  %v3379 = vlaneseq
  %v3380 = vshrl.u32 %v3379, 7
  %v3381 = vsub.s32 0, %v3380
  %v3382 = vrot.slane %v3368, %v3381
  %v3383 = vlaneseq
  %v3384 = vshrl.u32 %v3383, 7
  %v3385 = vsub.s32 0, %v3384
  %v3386 = vrot.slane %v3369, %v3385
  %v3387 = vlaneseq
  %v3388 = vshrl.u32 %v3387, 7
  %v3389 = vsub.s32 0, %v3388
  %v3390 = vrot.slane %v3370, %v3389
  %v3391 = vlaneseq
  %v3392 = vshrl.u32 %v3391, 7
  %v3393 = vsub.s32 0, %v3392
  %v3394 = vrot.slane %v3371, %v3393
  %v3395 = vmul.f32 %v3378, %v3382
  %v3396 = vmul.f32 %v3378, %v3386
  %v3397 = vmul.f32 %v3378, %v3390
  %v3398 = vmul.f32 %v3378, %v3394
  %v3399 = vadd.f32 %v3347, %v3395
  %v3400 = vadd.f32 %v3348, %v3396
  %v3401 = vadd.f32 %v3349, %v3397
  %v3402 = vadd.f32 %v3350, %v3398
  %v3403 = vlaneseq
  %v3404 = vshrl.u32 %v3403, 7
  %v3405 = vsub.s32 1, %v3404
  %v3406 = vrot.slane %v1740, %v3405
  %3408 = vbcast.lane.b32.xlu0 %v3406, 256
  %v3409 = vpop.permute.xlu0 %3408
  %v3410 = vlaneseq
  %v3411 = vshrl.u32 %v3410, 7
  %v3412 = vsub.s32 1, %v3411
  %v3413 = vrot.slane %v3368, %v3412
  %v3414 = vlaneseq
  %v3415 = vshrl.u32 %v3414, 7
  %v3416 = vsub.s32 1, %v3415
  %v3417 = vrot.slane %v3369, %v3416
  %v3418 = vlaneseq
  %v3419 = vshrl.u32 %v3418, 7
  %v3420 = vsub.s32 1, %v3419
  %v3421 = vrot.slane %v3370, %v3420
  %v3422 = vlaneseq
  %v3423 = vshrl.u32 %v3422, 7
  %v3424 = vsub.s32 1, %v3423
  %v3425 = vrot.slane %v3371, %v3424
  %v3426 = vmul.f32 %v3409, %v3413
  %v3427 = vmul.f32 %v3409, %v3417
  %v3428 = vmul.f32 %v3409, %v3421
  %v3429 = vmul.f32 %v3409, %v3425
  %v3430 = vadd.f32 %v3399, %v3426
  %v3431 = vadd.f32 %v3400, %v3427
  %v3432 = vadd.f32 %v3401, %v3428
  %v3433 = vadd.f32 %v3402, %v3429
  %v3434 = vlaneseq
  %v3435 = vshrl.u32 %v3434, 7
  %v3436 = vsub.s32 2, %v3435
  %v3437 = vrot.slane %v1740, %v3436
  %3439 = vbcast.lane.b32.xlu0 %v3437, 256
  %v3440 = vpop.permute.xlu0 %3439
  %v3441 = vlaneseq
  %v3442 = vshrl.u32 %v3441, 7
  %v3443 = vsub.s32 2, %v3442
  %v3444 = vrot.slane %v3368, %v3443
  %v3445 = vlaneseq
  %v3446 = vshrl.u32 %v3445, 7
  %v3447 = vsub.s32 2, %v3446
  %v3448 = vrot.slane %v3369, %v3447
  %v3449 = vlaneseq
  %v3450 = vshrl.u32 %v3449, 7
  %v3451 = vsub.s32 2, %v3450
  %v3452 = vrot.slane %v3370, %v3451
  %v3453 = vlaneseq
  %v3454 = vshrl.u32 %v3453, 7
  %v3455 = vsub.s32 2, %v3454
  %v3456 = vrot.slane %v3371, %v3455
  %v3457 = vmul.f32 %v3440, %v3444
  %v3458 = vmul.f32 %v3440, %v3448
  %v3459 = vmul.f32 %v3440, %v3452
  %v3460 = vmul.f32 %v3440, %v3456
  %v3461 = vadd.f32 %v3430, %v3457
  %v3462 = vadd.f32 %v3431, %v3458
  %v3463 = vadd.f32 %v3432, %v3459
  %v3464 = vadd.f32 %v3433, %v3460
  %v3465 = vlaneseq
  %v3466 = vshrl.u32 %v3465, 7
  %v3467 = vsub.s32 3, %v3466
  %v3468 = vrot.slane %v1740, %v3467
  %3470 = vbcast.lane.b32.xlu0 %v3468, 256
  %v3471 = vpop.permute.xlu0 %3470
  %v3472 = vlaneseq
  %v3473 = vshrl.u32 %v3472, 7
  %v3474 = vsub.s32 3, %v3473
  %v3475 = vrot.slane %v3368, %v3474
  %v3476 = vlaneseq
  %v3477 = vshrl.u32 %v3476, 7
  %v3478 = vsub.s32 3, %v3477
  %v3479 = vrot.slane %v3369, %v3478
  %v3480 = vlaneseq
  %v3481 = vshrl.u32 %v3480, 7
  %v3482 = vsub.s32 3, %v3481
  %v3483 = vrot.slane %v3370, %v3482
  %v3484 = vlaneseq
  %v3485 = vshrl.u32 %v3484, 7
  %v3486 = vsub.s32 3, %v3485
  %v3487 = vrot.slane %v3371, %v3486
  %v3488 = vmul.f32 %v3471, %v3475
  %v3489 = vmul.f32 %v3471, %v3479
  %v3490 = vmul.f32 %v3471, %v3483
  %v3491 = vmul.f32 %v3471, %v3487
  %v3492 = vadd.f32 %v3461, %v3488
  %v3493 = vadd.f32 %v3462, %v3489
  %v3494 = vadd.f32 %v3463, %v3490
  %v3495 = vadd.f32 %v3464, %v3491
  %v3496 = vlaneseq
  %v3497 = vshrl.u32 %v3496, 7
  %v3498 = vsub.s32 4, %v3497
  %v3499 = vrot.slane %v1740, %v3498
  %3501 = vbcast.lane.b32.xlu0 %v3499, 256
  %v3502 = vpop.permute.xlu0 %3501
  %v3503 = vlaneseq
  %v3504 = vshrl.u32 %v3503, 7
  %v3505 = vsub.s32 4, %v3504
  %v3506 = vrot.slane %v3368, %v3505
  %v3507 = vlaneseq
  %v3508 = vshrl.u32 %v3507, 7
  %v3509 = vsub.s32 4, %v3508
  %v3510 = vrot.slane %v3369, %v3509
  %v3511 = vlaneseq
  %v3512 = vshrl.u32 %v3511, 7
  %v3513 = vsub.s32 4, %v3512
  %v3514 = vrot.slane %v3370, %v3513
  %v3515 = vlaneseq
  %v3516 = vshrl.u32 %v3515, 7
  %v3517 = vsub.s32 4, %v3516
  %v3518 = vrot.slane %v3371, %v3517
  %v3519 = vmul.f32 %v3502, %v3506
  %v3520 = vmul.f32 %v3502, %v3510
  %v3521 = vmul.f32 %v3502, %v3514
  %v3522 = vmul.f32 %v3502, %v3518
  %v3523 = vadd.f32 %v3492, %v3519
  %v3524 = vadd.f32 %v3493, %v3520
  %v3525 = vadd.f32 %v3494, %v3521
  %v3526 = vadd.f32 %v3495, %v3522
  %v3527 = vlaneseq
  %v3528 = vshrl.u32 %v3527, 7
  %v3529 = vsub.s32 5, %v3528
  %v3530 = vrot.slane %v1740, %v3529
  %3532 = vbcast.lane.b32.xlu0 %v3530, 256
  %v3533 = vpop.permute.xlu0 %3532
  %v3534 = vlaneseq
  %v3535 = vshrl.u32 %v3534, 7
  %v3536 = vsub.s32 5, %v3535
  %v3537 = vrot.slane %v3368, %v3536
  %v3538 = vlaneseq
  %v3539 = vshrl.u32 %v3538, 7
  %v3540 = vsub.s32 5, %v3539
  %v3541 = vrot.slane %v3369, %v3540
  %v3542 = vlaneseq
  %v3543 = vshrl.u32 %v3542, 7
  %v3544 = vsub.s32 5, %v3543
  %v3545 = vrot.slane %v3370, %v3544
  %v3546 = vlaneseq
  %v3547 = vshrl.u32 %v3546, 7
  %v3548 = vsub.s32 5, %v3547
  %v3549 = vrot.slane %v3371, %v3548
  %v3550 = vmul.f32 %v3533, %v3537
  %v3551 = vmul.f32 %v3533, %v3541
  %v3552 = vmul.f32 %v3533, %v3545
  %v3553 = vmul.f32 %v3533, %v3549
  %v3554 = vadd.f32 %v3523, %v3550
  %v3555 = vadd.f32 %v3524, %v3551
  %v3556 = vadd.f32 %v3525, %v3552
  %v3557 = vadd.f32 %v3526, %v3553
  %v3558 = vlaneseq
  %v3559 = vshrl.u32 %v3558, 7
  %v3560 = vsub.s32 6, %v3559
  %v3561 = vrot.slane %v1740, %v3560
  %3563 = vbcast.lane.b32.xlu0 %v3561, 256
  %v3564 = vpop.permute.xlu0 %3563
  %v3565 = vlaneseq
  %v3566 = vshrl.u32 %v3565, 7
  %v3567 = vsub.s32 6, %v3566
  %v3568 = vrot.slane %v3368, %v3567
  %v3569 = vlaneseq
  %v3570 = vshrl.u32 %v3569, 7
  %v3571 = vsub.s32 6, %v3570
  %v3572 = vrot.slane %v3369, %v3571
  %v3573 = vlaneseq
  %v3574 = vshrl.u32 %v3573, 7
  %v3575 = vsub.s32 6, %v3574
  %v3576 = vrot.slane %v3370, %v3575
  %v3577 = vlaneseq
  %v3578 = vshrl.u32 %v3577, 7
  %v3579 = vsub.s32 6, %v3578
  %v3580 = vrot.slane %v3371, %v3579
  %v3581 = vmul.f32 %v3564, %v3568
  %v3582 = vmul.f32 %v3564, %v3572
  %v3583 = vmul.f32 %v3564, %v3576
  %v3584 = vmul.f32 %v3564, %v3580
  %v3585 = vadd.f32 %v3554, %v3581
  %v3586 = vadd.f32 %v3555, %v3582
  %v3587 = vadd.f32 %v3556, %v3583
  %v3588 = vadd.f32 %v3557, %v3584
  %v3589 = vlaneseq
  %v3590 = vshrl.u32 %v3589, 7
  %v3591 = vsub.s32 7, %v3590
  %v3592 = vrot.slane %v1740, %v3591
  %3594 = vbcast.lane.b32.xlu0 %v3592, 256
  %v3595 = vpop.permute.xlu0 %3594
  %v3596 = vlaneseq
  %v3597 = vshrl.u32 %v3596, 7
  %v3598 = vsub.s32 7, %v3597
  %v3599 = vrot.slane %v3368, %v3598
  %v3600 = vlaneseq
  %v3601 = vshrl.u32 %v3600, 7
  %v3602 = vsub.s32 7, %v3601
  %v3603 = vrot.slane %v3369, %v3602
  %v3604 = vlaneseq
  %v3605 = vshrl.u32 %v3604, 7
  %v3606 = vsub.s32 7, %v3605
  %v3607 = vrot.slane %v3370, %v3606
  %v3608 = vlaneseq
  %v3609 = vshrl.u32 %v3608, 7
  %v3610 = vsub.s32 7, %v3609
  %v3611 = vrot.slane %v3371, %v3610
  %v3612 = vmul.f32 %v3595, %v3599
  %v3613 = vmul.f32 %v3595, %v3603
  %v3614 = vmul.f32 %v3595, %v3607
  %v3615 = vmul.f32 %v3595, %v3611
  %v3616 = vadd.f32 %v3585, %v3612
  %v3617 = vadd.f32 %v3586, %v3613
  %v3618 = vadd.f32 %v3587, %v3614
  %v3619 = vadd.f32 %v3588, %v3615
  %3620 = vrot.lane.b32.xlu0 %v1730, 112
  %v3621 = vpop.permute.xlu0 %3620
  %3622 = vrot.lane.b32.xlu0 %v1731, 112
  %v3623 = vpop.permute.xlu0 %3622
  %3624 = vrot.lane.b32.xlu0 %v1732, 112
  %v3625 = vpop.permute.xlu0 %3624
  %3626 = vrot.lane.b32.xlu0 %v1733, 112
  %v3627 = vpop.permute.xlu0 %3626
  %v3628 = vsel %vm1369, %v3621, %v3623
  %v3629 = vsel %vm1369, %v3623, %v3625
  %v3630 = vsel %vm1369, %v3625, %v3627
  %v3636 = vsel %vm1369, %v3627, %v3621
  %v3637 = vmul.f32 %v3628, %v1382
  %v3638 = vmul.f32 %v3629, %v1386
  %v3639 = vmul.f32 %v3630, %v1390
  %v3640 = vmul.f32 %v3636, %v1394
  %v3641 = vlaneseq
  %v3642 = vshrl.u32 %v3641, 7
  %v3643 = vsub.s32 0, %v3642
  %v3644 = vrot.slane %v1741, %v3643
  %3646 = vbcast.lane.b32.xlu0 %v3644, 256
  %v3647 = vpop.permute.xlu0 %3646
  %v3648 = vlaneseq
  %v3649 = vshrl.u32 %v3648, 7
  %v3650 = vsub.s32 0, %v3649
  %v3651 = vrot.slane %v3637, %v3650
  %v3652 = vlaneseq
  %v3653 = vshrl.u32 %v3652, 7
  %v3654 = vsub.s32 0, %v3653
  %v3655 = vrot.slane %v3638, %v3654
  %v3656 = vlaneseq
  %v3657 = vshrl.u32 %v3656, 7
  %v3658 = vsub.s32 0, %v3657
  %v3659 = vrot.slane %v3639, %v3658
  %v3660 = vlaneseq
  %v3661 = vshrl.u32 %v3660, 7
  %v3662 = vsub.s32 0, %v3661
  %v3663 = vrot.slane %v3640, %v3662
  %v3664 = vmul.f32 %v3647, %v3651
  %v3665 = vmul.f32 %v3647, %v3655
  %v3666 = vmul.f32 %v3647, %v3659
  %v3667 = vmul.f32 %v3647, %v3663
  %v3668 = vadd.f32 %v3616, %v3664
  %v3669 = vadd.f32 %v3617, %v3665
  %v3670 = vadd.f32 %v3618, %v3666
  %v3671 = vadd.f32 %v3619, %v3667
  %v3672 = vlaneseq
  %v3673 = vshrl.u32 %v3672, 7
  %v3674 = vsub.s32 1, %v3673
  %v3675 = vrot.slane %v1741, %v3674
  %3677 = vbcast.lane.b32.xlu0 %v3675, 256
  %v3678 = vpop.permute.xlu0 %3677
  %v3679 = vlaneseq
  %v3680 = vshrl.u32 %v3679, 7
  %v3681 = vsub.s32 1, %v3680
  %v3682 = vrot.slane %v3637, %v3681
  %v3683 = vlaneseq
  %v3684 = vshrl.u32 %v3683, 7
  %v3685 = vsub.s32 1, %v3684
  %v3686 = vrot.slane %v3638, %v3685
  %v3687 = vlaneseq
  %v3688 = vshrl.u32 %v3687, 7
  %v3689 = vsub.s32 1, %v3688
  %v3690 = vrot.slane %v3639, %v3689
  %v3691 = vlaneseq
  %v3692 = vshrl.u32 %v3691, 7
  %v3693 = vsub.s32 1, %v3692
  %v3694 = vrot.slane %v3640, %v3693
  %v3695 = vmul.f32 %v3678, %v3682
  %v3696 = vmul.f32 %v3678, %v3686
  %v3697 = vmul.f32 %v3678, %v3690
  %v3698 = vmul.f32 %v3678, %v3694
  %v3699 = vadd.f32 %v3668, %v3695
  %v3700 = vadd.f32 %v3669, %v3696
  %v3701 = vadd.f32 %v3670, %v3697
  %v3702 = vadd.f32 %v3671, %v3698
  %v3703 = vlaneseq
  %v3704 = vshrl.u32 %v3703, 7
  %v3705 = vsub.s32 2, %v3704
  %v3706 = vrot.slane %v1741, %v3705
  %3708 = vbcast.lane.b32.xlu0 %v3706, 256
  %v3709 = vpop.permute.xlu0 %3708
  %v3710 = vlaneseq
  %v3711 = vshrl.u32 %v3710, 7
  %v3712 = vsub.s32 2, %v3711
  %v3713 = vrot.slane %v3637, %v3712
  %v3714 = vlaneseq
  %v3715 = vshrl.u32 %v3714, 7
  %v3716 = vsub.s32 2, %v3715
  %v3717 = vrot.slane %v3638, %v3716
  %v3718 = vlaneseq
  %v3719 = vshrl.u32 %v3718, 7
  %v3720 = vsub.s32 2, %v3719
  %v3721 = vrot.slane %v3639, %v3720
  %v3722 = vlaneseq
  %v3723 = vshrl.u32 %v3722, 7
  %v3724 = vsub.s32 2, %v3723
  %v3725 = vrot.slane %v3640, %v3724
  %v3726 = vmul.f32 %v3709, %v3713
  %v3727 = vmul.f32 %v3709, %v3717
  %v3728 = vmul.f32 %v3709, %v3721
  %v3729 = vmul.f32 %v3709, %v3725
  %v3730 = vadd.f32 %v3699, %v3726
  %v3731 = vadd.f32 %v3700, %v3727
  %v3732 = vadd.f32 %v3701, %v3728
  %v3733 = vadd.f32 %v3702, %v3729
  %v3734 = vlaneseq
  %v3735 = vshrl.u32 %v3734, 7
  %v3736 = vsub.s32 3, %v3735
  %v3737 = vrot.slane %v1741, %v3736
  %3739 = vbcast.lane.b32.xlu0 %v3737, 256
  %v3740 = vpop.permute.xlu0 %3739
  %v3741 = vlaneseq
  %v3742 = vshrl.u32 %v3741, 7
  %v3743 = vsub.s32 3, %v3742
  %v3744 = vrot.slane %v3637, %v3743
  %v3745 = vlaneseq
  %v3746 = vshrl.u32 %v3745, 7
  %v3747 = vsub.s32 3, %v3746
  %v3748 = vrot.slane %v3638, %v3747
  %v3749 = vlaneseq
  %v3750 = vshrl.u32 %v3749, 7
  %v3751 = vsub.s32 3, %v3750
  %v3752 = vrot.slane %v3639, %v3751
  %v3753 = vlaneseq
  %v3754 = vshrl.u32 %v3753, 7
  %v3755 = vsub.s32 3, %v3754
  %v3756 = vrot.slane %v3640, %v3755
  %v3757 = vmul.f32 %v3740, %v3744
  %v3758 = vmul.f32 %v3740, %v3748
  %v3759 = vmul.f32 %v3740, %v3752
  %v3760 = vmul.f32 %v3740, %v3756
  %v3761 = vadd.f32 %v3730, %v3757
  %v3762 = vadd.f32 %v3731, %v3758
  %v3763 = vadd.f32 %v3732, %v3759
  %v3764 = vadd.f32 %v3733, %v3760
  %v3765 = vlaneseq
  %v3766 = vshrl.u32 %v3765, 7
  %v3767 = vsub.s32 4, %v3766
  %v3768 = vrot.slane %v1741, %v3767
  %3770 = vbcast.lane.b32.xlu0 %v3768, 256
  %v3771 = vpop.permute.xlu0 %3770
  %v3772 = vlaneseq
  %v3773 = vshrl.u32 %v3772, 7
  %v3774 = vsub.s32 4, %v3773
  %v3775 = vrot.slane %v3637, %v3774
  %v3776 = vlaneseq
  %v3777 = vshrl.u32 %v3776, 7
  %v3778 = vsub.s32 4, %v3777
  %v3779 = vrot.slane %v3638, %v3778
  %v3780 = vlaneseq
  %v3781 = vshrl.u32 %v3780, 7
  %v3782 = vsub.s32 4, %v3781
  %v3783 = vrot.slane %v3639, %v3782
  %v3784 = vlaneseq
  %v3785 = vshrl.u32 %v3784, 7
  %v3786 = vsub.s32 4, %v3785
  %v3787 = vrot.slane %v3640, %v3786
  %v3788 = vmul.f32 %v3771, %v3775
  %v3789 = vmul.f32 %v3771, %v3779
  %v3790 = vmul.f32 %v3771, %v3783
  %v3791 = vmul.f32 %v3771, %v3787
  %v3792 = vadd.f32 %v3761, %v3788
  %v3793 = vadd.f32 %v3762, %v3789
  %v3794 = vadd.f32 %v3763, %v3790
  %v3795 = vadd.f32 %v3764, %v3791
  %v3796 = vlaneseq
  %v3797 = vshrl.u32 %v3796, 7
  %v3798 = vsub.s32 5, %v3797
  %v3799 = vrot.slane %v1741, %v3798
  %3801 = vbcast.lane.b32.xlu0 %v3799, 256
  %v3802 = vpop.permute.xlu0 %3801
  %v3803 = vlaneseq
  %v3804 = vshrl.u32 %v3803, 7
  %v3805 = vsub.s32 5, %v3804
  %v3806 = vrot.slane %v3637, %v3805
  %v3807 = vlaneseq
  %v3808 = vshrl.u32 %v3807, 7
  %v3809 = vsub.s32 5, %v3808
  %v3810 = vrot.slane %v3638, %v3809
  %v3811 = vlaneseq
  %v3812 = vshrl.u32 %v3811, 7
  %v3813 = vsub.s32 5, %v3812
  %v3814 = vrot.slane %v3639, %v3813
  %v3815 = vlaneseq
  %v3816 = vshrl.u32 %v3815, 7
  %v3817 = vsub.s32 5, %v3816
  %v3818 = vrot.slane %v3640, %v3817
  %v3819 = vmul.f32 %v3802, %v3806
  %v3820 = vmul.f32 %v3802, %v3810
  %v3821 = vmul.f32 %v3802, %v3814
  %v3822 = vmul.f32 %v3802, %v3818
  %v3823 = vadd.f32 %v3792, %v3819
  %v3824 = vadd.f32 %v3793, %v3820
  %v3825 = vadd.f32 %v3794, %v3821
  %v3826 = vadd.f32 %v3795, %v3822
  %v3827 = vlaneseq
  %v3828 = vshrl.u32 %v3827, 7
  %v3829 = vsub.s32 6, %v3828
  %v3830 = vrot.slane %v1741, %v3829
  %3832 = vbcast.lane.b32.xlu0 %v3830, 256
  %v3833 = vpop.permute.xlu0 %3832
  %v3834 = vlaneseq
  %v3835 = vshrl.u32 %v3834, 7
  %v3836 = vsub.s32 6, %v3835
  %v3837 = vrot.slane %v3637, %v3836
  %v3838 = vlaneseq
  %v3839 = vshrl.u32 %v3838, 7
  %v3840 = vsub.s32 6, %v3839
  %v3841 = vrot.slane %v3638, %v3840
  %v3842 = vlaneseq
  %v3843 = vshrl.u32 %v3842, 7
  %v3844 = vsub.s32 6, %v3843
  %v3845 = vrot.slane %v3639, %v3844
  %v3846 = vlaneseq
  %v3847 = vshrl.u32 %v3846, 7
  %v3848 = vsub.s32 6, %v3847
  %v3849 = vrot.slane %v3640, %v3848
  %v3850 = vmul.f32 %v3833, %v3837
  %v3851 = vmul.f32 %v3833, %v3841
  %v3852 = vmul.f32 %v3833, %v3845
  %v3853 = vmul.f32 %v3833, %v3849
  %v3854 = vadd.f32 %v3823, %v3850
  %v3855 = vadd.f32 %v3824, %v3851
  %v3856 = vadd.f32 %v3825, %v3852
  %v3857 = vadd.f32 %v3826, %v3853
  %v3858 = vlaneseq
  %v3859 = vshrl.u32 %v3858, 7
  %v3860 = vsub.s32 7, %v3859
  %v3861 = vrot.slane %v1741, %v3860
  %3863 = vbcast.lane.b32.xlu0 %v3861, 256
  %v3864 = vpop.permute.xlu0 %3863
  %v3865 = vlaneseq
  %v3866 = vshrl.u32 %v3865, 7
  %v3867 = vsub.s32 7, %v3866
  %v3868 = vrot.slane %v3637, %v3867
  %v3869 = vlaneseq
  %v3870 = vshrl.u32 %v3869, 7
  %v3871 = vsub.s32 7, %v3870
  %v3872 = vrot.slane %v3638, %v3871
  %v3873 = vlaneseq
  %v3874 = vshrl.u32 %v3873, 7
  %v3875 = vsub.s32 7, %v3874
  %v3876 = vrot.slane %v3639, %v3875
  %v3877 = vlaneseq
  %v3878 = vshrl.u32 %v3877, 7
  %v3879 = vsub.s32 7, %v3878
  %v3880 = vrot.slane %v3640, %v3879
  %v3881 = vmul.f32 %v3864, %v3868
  %v3882 = vmul.f32 %v3864, %v3872
  %v3883 = vmul.f32 %v3864, %v3876
  %v3884 = vmul.f32 %v3864, %v3880
  %v3885 = vadd.f32 %v3854, %v3881
  %v3886 = vadd.f32 %v3855, %v3882
  %v3887 = vadd.f32 %v3856, %v3883
  %v3888 = vadd.f32 %v3857, %v3884
  %3889 = vrot.lane.b32.xlu0 %v1730, 111
  %v3890 = vpop.permute.xlu0 %3889
  %3891 = vrot.lane.b32.xlu0 %v1731, 111
  %v3892 = vpop.permute.xlu0 %3891
  %3893 = vrot.lane.b32.xlu0 %v1732, 111
  %v3894 = vpop.permute.xlu0 %3893
  %3895 = vrot.lane.b32.xlu0 %v1733, 111
  %v3896 = vpop.permute.xlu0 %3895
  %v3897 = vsel %vm1531, %v3890, %v3892
  %v3898 = vsel %vm1531, %v3892, %v3894
  %v3899 = vsel %vm1531, %v3894, %v3896
  %v3905 = vsel %vm1531, %v3896, %v3890
  %v3906 = vmul.f32 %v3897, %v1544
  %v3907 = vmul.f32 %v3898, %v1548
  %v3908 = vmul.f32 %v3899, %v1552
  %v3909 = vmul.f32 %v3905, %v1556
  %v3910 = vlaneseq
  %v3911 = vshrl.u32 %v3910, 7
  %v3912 = vsub.s32 0, %v3911
  %v3913 = vrot.slane %v1742, %v3912
  %3915 = vbcast.lane.b32.xlu0 %v3913, 256
  %v3916 = vpop.permute.xlu0 %3915
  %v3917 = vlaneseq
  %v3918 = vshrl.u32 %v3917, 7
  %v3919 = vsub.s32 0, %v3918
  %v3920 = vrot.slane %v3906, %v3919
  %v3921 = vlaneseq
  %v3922 = vshrl.u32 %v3921, 7
  %v3923 = vsub.s32 0, %v3922
  %v3924 = vrot.slane %v3907, %v3923
  %v3925 = vlaneseq
  %v3926 = vshrl.u32 %v3925, 7
  %v3927 = vsub.s32 0, %v3926
  %v3928 = vrot.slane %v3908, %v3927
  %v3929 = vlaneseq
  %v3930 = vshrl.u32 %v3929, 7
  %v3931 = vsub.s32 0, %v3930
  %v3932 = vrot.slane %v3909, %v3931
  %v3933 = vmul.f32 %v3916, %v3920
  %v3934 = vmul.f32 %v3916, %v3924
  %v3935 = vmul.f32 %v3916, %v3928
  %v3936 = vmul.f32 %v3916, %v3932
  %v3937 = vadd.f32 %v3885, %v3933
  %v3938 = vadd.f32 %v3886, %v3934
  %v3939 = vadd.f32 %v3887, %v3935
  %v3940 = vadd.f32 %v3888, %v3936
  %v3941 = vlaneseq
  %v3942 = vshrl.u32 %v3941, 7
  %v3943 = vsub.s32 1, %v3942
  %v3944 = vrot.slane %v1742, %v3943
  %3946 = vbcast.lane.b32.xlu0 %v3944, 256
  %v3947 = vpop.permute.xlu0 %3946
  %v3948 = vlaneseq
  %v3949 = vshrl.u32 %v3948, 7
  %v3950 = vsub.s32 1, %v3949
  %v3951 = vrot.slane %v3906, %v3950
  %v3952 = vlaneseq
  %v3953 = vshrl.u32 %v3952, 7
  %v3954 = vsub.s32 1, %v3953
  %v3955 = vrot.slane %v3907, %v3954
  %v3956 = vlaneseq
  %v3957 = vshrl.u32 %v3956, 7
  %v3958 = vsub.s32 1, %v3957
  %v3959 = vrot.slane %v3908, %v3958
  %v3960 = vlaneseq
  %v3961 = vshrl.u32 %v3960, 7
  %v3962 = vsub.s32 1, %v3961
  %v3963 = vrot.slane %v3909, %v3962
  %v3964 = vmul.f32 %v3947, %v3951
  %v3965 = vmul.f32 %v3947, %v3955
  %v3966 = vmul.f32 %v3947, %v3959
  %v3967 = vmul.f32 %v3947, %v3963
  %v3968 = vadd.f32 %v3937, %v3964
  %v3969 = vadd.f32 %v3938, %v3965
  %v3970 = vadd.f32 %v3939, %v3966
  %v3971 = vadd.f32 %v3940, %v3967
  %v3972 = vlaneseq
  %v3973 = vshrl.u32 %v3972, 7
  %v3974 = vsub.s32 2, %v3973
  %v3975 = vrot.slane %v1742, %v3974
  %3977 = vbcast.lane.b32.xlu0 %v3975, 256
  %v3978 = vpop.permute.xlu0 %3977
  %v3979 = vlaneseq
  %v3980 = vshrl.u32 %v3979, 7
  %v3981 = vsub.s32 2, %v3980
  %v3982 = vrot.slane %v3906, %v3981
  %v3983 = vlaneseq
  %v3984 = vshrl.u32 %v3983, 7
  %v3985 = vsub.s32 2, %v3984
  %v3986 = vrot.slane %v3907, %v3985
  %v3987 = vlaneseq
  %v3988 = vshrl.u32 %v3987, 7
  %v3989 = vsub.s32 2, %v3988
  %v3990 = vrot.slane %v3908, %v3989
  %v3991 = vlaneseq
  %v3992 = vshrl.u32 %v3991, 7
  %v3993 = vsub.s32 2, %v3992
  %v3994 = vrot.slane %v3909, %v3993
  %v3995 = vmul.f32 %v3978, %v3982
  %v3996 = vmul.f32 %v3978, %v3986
  %v3997 = vmul.f32 %v3978, %v3990
  %v3998 = vmul.f32 %v3978, %v3994
  %v3999 = vadd.f32 %v3968, %v3995
  %v4000 = vadd.f32 %v3969, %v3996
  %v4001 = vadd.f32 %v3970, %v3997
  %v4002 = vadd.f32 %v3971, %v3998
  %v4003 = vlaneseq
  %v4004 = vshrl.u32 %v4003, 7
  %v4005 = vsub.s32 3, %v4004
  %v4006 = vrot.slane %v1742, %v4005
  %4008 = vbcast.lane.b32.xlu0 %v4006, 256
  %v4009 = vpop.permute.xlu0 %4008
  %v4010 = vlaneseq
  %v4011 = vshrl.u32 %v4010, 7
  %v4012 = vsub.s32 3, %v4011
  %v4013 = vrot.slane %v3906, %v4012
  %v4014 = vlaneseq
  %v4015 = vshrl.u32 %v4014, 7
  %v4016 = vsub.s32 3, %v4015
  %v4017 = vrot.slane %v3907, %v4016
  %v4018 = vlaneseq
  %v4019 = vshrl.u32 %v4018, 7
  %v4020 = vsub.s32 3, %v4019
  %v4021 = vrot.slane %v3908, %v4020
  %v4022 = vlaneseq
  %v4023 = vshrl.u32 %v4022, 7
  %v4024 = vsub.s32 3, %v4023
  %v4025 = vrot.slane %v3909, %v4024
  %v4026 = vmul.f32 %v4009, %v4013
  %v4027 = vmul.f32 %v4009, %v4017
  %v4028 = vmul.f32 %v4009, %v4021
  %v4029 = vmul.f32 %v4009, %v4025
  %v4030 = vadd.f32 %v3999, %v4026
  %v4031 = vadd.f32 %v4000, %v4027
  %v4032 = vadd.f32 %v4001, %v4028
  %v4033 = vadd.f32 %v4002, %v4029
  %v4034 = vlaneseq
  %v4035 = vshrl.u32 %v4034, 7
  %v4036 = vsub.s32 4, %v4035
  %v4037 = vrot.slane %v1742, %v4036
  %4039 = vbcast.lane.b32.xlu0 %v4037, 256
  %v4040 = vpop.permute.xlu0 %4039
  %v4041 = vlaneseq
  %v4042 = vshrl.u32 %v4041, 7
  %v4043 = vsub.s32 4, %v4042
  %v4044 = vrot.slane %v3906, %v4043
  %v4045 = vlaneseq
  %v4046 = vshrl.u32 %v4045, 7
  %v4047 = vsub.s32 4, %v4046
  %v4048 = vrot.slane %v3907, %v4047
  %v4049 = vlaneseq
  %v4050 = vshrl.u32 %v4049, 7
  %v4051 = vsub.s32 4, %v4050
  %v4052 = vrot.slane %v3908, %v4051
  %v4053 = vlaneseq
  %v4054 = vshrl.u32 %v4053, 7
  %v4055 = vsub.s32 4, %v4054
  %v4056 = vrot.slane %v3909, %v4055
  %v4057 = vmul.f32 %v4040, %v4044
  %v4058 = vmul.f32 %v4040, %v4048
  %v4059 = vmul.f32 %v4040, %v4052
  %v4060 = vmul.f32 %v4040, %v4056
  %v4061 = vadd.f32 %v4030, %v4057
  %v4062 = vadd.f32 %v4031, %v4058
  %v4063 = vadd.f32 %v4032, %v4059
  %v4064 = vadd.f32 %v4033, %v4060
  %v4065 = vlaneseq
  %v4066 = vshrl.u32 %v4065, 7
  %v4067 = vsub.s32 5, %v4066
  %v4068 = vrot.slane %v1742, %v4067
  %4070 = vbcast.lane.b32.xlu0 %v4068, 256
  %v4071 = vpop.permute.xlu0 %4070
  %v4072 = vlaneseq
  %v4073 = vshrl.u32 %v4072, 7
  %v4074 = vsub.s32 5, %v4073
  %v4075 = vrot.slane %v3906, %v4074
  %v4076 = vlaneseq
  %v4077 = vshrl.u32 %v4076, 7
  %v4078 = vsub.s32 5, %v4077
  %v4079 = vrot.slane %v3907, %v4078
  %v4080 = vlaneseq
  %v4081 = vshrl.u32 %v4080, 7
  %v4082 = vsub.s32 5, %v4081
  %v4083 = vrot.slane %v3908, %v4082
  %v4084 = vlaneseq
  %v4085 = vshrl.u32 %v4084, 7
  %v4086 = vsub.s32 5, %v4085
  %v4087 = vrot.slane %v3909, %v4086
  %v4088 = vmul.f32 %v4071, %v4075
  %v4089 = vmul.f32 %v4071, %v4079
  %v4090 = vmul.f32 %v4071, %v4083
  %v4091 = vmul.f32 %v4071, %v4087
  %v4092 = vadd.f32 %v4061, %v4088
  %v4093 = vadd.f32 %v4062, %v4089
  %v4094 = vadd.f32 %v4063, %v4090
  %v4095 = vadd.f32 %v4064, %v4091
  %v4096 = vlaneseq
  %v4097 = vshrl.u32 %v4096, 7
  %v4098 = vsub.s32 6, %v4097
  %v4099 = vrot.slane %v1742, %v4098
  %4101 = vbcast.lane.b32.xlu0 %v4099, 256
  %v4102 = vpop.permute.xlu0 %4101
  %v4103 = vlaneseq
  %v4104 = vshrl.u32 %v4103, 7
  %v4105 = vsub.s32 6, %v4104
  %v4106 = vrot.slane %v3906, %v4105
  %v4107 = vlaneseq
  %v4108 = vshrl.u32 %v4107, 7
  %v4109 = vsub.s32 6, %v4108
  %v4110 = vrot.slane %v3907, %v4109
  %v4111 = vlaneseq
  %v4112 = vshrl.u32 %v4111, 7
  %v4113 = vsub.s32 6, %v4112
  %v4114 = vrot.slane %v3908, %v4113
  %v4115 = vlaneseq
  %v4116 = vshrl.u32 %v4115, 7
  %v4117 = vsub.s32 6, %v4116
  %v4118 = vrot.slane %v3909, %v4117
  %v4119 = vmul.f32 %v4102, %v4106
  %v4120 = vmul.f32 %v4102, %v4110
  %v4121 = vmul.f32 %v4102, %v4114
  %v4122 = vmul.f32 %v4102, %v4118
  %v4123 = vadd.f32 %v4092, %v4119
  %v4124 = vadd.f32 %v4093, %v4120
  %v4125 = vadd.f32 %v4094, %v4121
  %v4126 = vadd.f32 %v4095, %v4122
  %v4127 = vlaneseq
  %v4128 = vshrl.u32 %v4127, 7
  %v4129 = vsub.s32 7, %v4128
  %v4130 = vrot.slane %v1742, %v4129
  %4132 = vbcast.lane.b32.xlu0 %v4130, 256
  %v4133 = vpop.permute.xlu0 %4132
  %v4134 = vlaneseq
  %v4135 = vshrl.u32 %v4134, 7
  %v4136 = vsub.s32 7, %v4135
  %v4137 = vrot.slane %v3906, %v4136
  %v4138 = vlaneseq
  %v4139 = vshrl.u32 %v4138, 7
  %v4140 = vsub.s32 7, %v4139
  %v4141 = vrot.slane %v3907, %v4140
  %v4142 = vlaneseq
  %v4143 = vshrl.u32 %v4142, 7
  %v4144 = vsub.s32 7, %v4143
  %v4145 = vrot.slane %v3908, %v4144
  %v4146 = vlaneseq
  %v4147 = vshrl.u32 %v4146, 7
  %v4148 = vsub.s32 7, %v4147
  %v4149 = vrot.slane %v3909, %v4148
  %v4150 = vmul.f32 %v4133, %v4137
  %v4151 = vmul.f32 %v4133, %v4141
  %v4152 = vmul.f32 %v4133, %v4145
  %v4153 = vmul.f32 %v4133, %v4149
  %v4154 = vadd.f32 %v4123, %v4150
  %v4155 = vadd.f32 %v4124, %v4151
  %v4156 = vadd.f32 %v4125, %v4152
  %v4157 = vadd.f32 %v4126, %v4153
  %v4158 = vld [vmem:[%s10] sm:$0xff]
  %v4159 = vld [vmem:[%s10 + $0x8] sm:$0xff]
  %v4160 = vld [vmem:[%s10 + $0x10] sm:$0xff]
  %v4161 = vld [vmem:[%s10 + $0x18] sm:$0xff]
  %v4162 = vld [vmem:[%s10 + $0x20] sm:$0xf]
  %v4163 = vld [vmem:[%s11] sm:$0xff]
  %4165 = vset.pattern.permute.xlu0 0
  %4166 = vperm.xlu0 %4165, %v4163
  %v4167 = vpop.permute.xlu0 %4166
  %v4169 = vadd.f32 %v4167, 0.0
  %4170 = vrot.lane.b32.xlu0 %v62, 17
  %v4171 = vpop.permute.xlu0 %4170
  %4173 = vrot.lane.b32.xlu0 %v47, 17
  %v4174 = vpop.permute.xlu0 %4173
  %4175 = vrot.lane.b32.xlu0 %v61, 17
  %v4176 = vpop.permute.xlu0 %4175
  %4177 = vrot.lane.b32.xlu0 %v48, 17
  %v4178 = vpop.permute.xlu0 %4177
  %v4179 = vsel %vm166, %v4174, %v4176
  %v4180 = vsel %vm166, %v4176, %v4178
  %v4181 = vsel %vm166, %v4178, %v4171
  %v4186 = vsel %vm166, %v4171, %v4174
  %v4187 = vmul.f32 %v4186, %v178
  %v4188 = vmul.f32 %v4179, %v182
  %v4189 = vmul.f32 %v4180, %v186
  %v4190 = vmul.f32 %v4181, %v190
  %v4191 = vlaneseq
  %v4192 = vshrl.u32 %v4191, 7
  %v4193 = vsub.s32 0, %v4192
  %v4194 = vrot.slane %v4158, %v4193
  %4196 = vbcast.lane.b32.xlu0 %v4194, 256
  %v4197 = vpop.permute.xlu0 %4196
  %v4198 = vlaneseq
  %v4199 = vshrl.u32 %v4198, 7
  %v4200 = vsub.s32 0, %v4199
  %v4201 = vrot.slane %v4187, %v4200
  %v4202 = vlaneseq
  %v4203 = vshrl.u32 %v4202, 7
  %v4204 = vsub.s32 0, %v4203
  %v4205 = vrot.slane %v4188, %v4204
  %v4206 = vlaneseq
  %v4207 = vshrl.u32 %v4206, 7
  %v4208 = vsub.s32 0, %v4207
  %v4209 = vrot.slane %v4189, %v4208
  %v4210 = vlaneseq
  %v4211 = vshrl.u32 %v4210, 7
  %v4212 = vsub.s32 0, %v4211
  %v4213 = vrot.slane %v4190, %v4212
  %v4214 = vmul.f32 %v4197, %v4201
  %v4215 = vmul.f32 %v4197, %v4205
  %v4216 = vmul.f32 %v4197, %v4209
  %v4217 = vmul.f32 %v4197, %v4213
  %v4218 = vadd.f32 %v4169, %v4214
  %v4219 = vadd.f32 %v4169, %v4215
  %v4220 = vadd.f32 %v4169, %v4216
  %v4221 = vadd.f32 %v4169, %v4217
  %v4222 = vlaneseq
  %v4223 = vshrl.u32 %v4222, 7
  %v4224 = vsub.s32 1, %v4223
  %v4225 = vrot.slane %v4158, %v4224
  %4227 = vbcast.lane.b32.xlu0 %v4225, 256
  %v4228 = vpop.permute.xlu0 %4227
  %v4229 = vlaneseq
  %v4230 = vshrl.u32 %v4229, 7
  %v4231 = vsub.s32 1, %v4230
  %v4232 = vrot.slane %v4187, %v4231
  %v4233 = vlaneseq
  %v4234 = vshrl.u32 %v4233, 7
  %v4235 = vsub.s32 1, %v4234
  %v4236 = vrot.slane %v4188, %v4235
  %v4237 = vlaneseq
  %v4238 = vshrl.u32 %v4237, 7
  %v4239 = vsub.s32 1, %v4238
  %v4240 = vrot.slane %v4189, %v4239
  %v4241 = vlaneseq
  %v4242 = vshrl.u32 %v4241, 7
  %v4243 = vsub.s32 1, %v4242
  %v4244 = vrot.slane %v4190, %v4243
  %v4245 = vmul.f32 %v4228, %v4232
  %v4246 = vmul.f32 %v4228, %v4236
  %v4247 = vmul.f32 %v4228, %v4240
  %v4248 = vmul.f32 %v4228, %v4244
  %v4249 = vadd.f32 %v4218, %v4245
  %v4250 = vadd.f32 %v4219, %v4246
  %v4251 = vadd.f32 %v4220, %v4247
  %v4252 = vadd.f32 %v4221, %v4248
  %v4253 = vlaneseq
  %v4254 = vshrl.u32 %v4253, 7
  %v4255 = vsub.s32 2, %v4254
  %v4256 = vrot.slane %v4158, %v4255
  %4258 = vbcast.lane.b32.xlu0 %v4256, 256
  %v4259 = vpop.permute.xlu0 %4258
  %v4260 = vlaneseq
  %v4261 = vshrl.u32 %v4260, 7
  %v4262 = vsub.s32 2, %v4261
  %v4263 = vrot.slane %v4187, %v4262
  %v4264 = vlaneseq
  %v4265 = vshrl.u32 %v4264, 7
  %v4266 = vsub.s32 2, %v4265
  %v4267 = vrot.slane %v4188, %v4266
  %v4268 = vlaneseq
  %v4269 = vshrl.u32 %v4268, 7
  %v4270 = vsub.s32 2, %v4269
  %v4271 = vrot.slane %v4189, %v4270
  %v4272 = vlaneseq
  %v4273 = vshrl.u32 %v4272, 7
  %v4274 = vsub.s32 2, %v4273
  %v4275 = vrot.slane %v4190, %v4274
  %v4276 = vmul.f32 %v4259, %v4263
  %v4277 = vmul.f32 %v4259, %v4267
  %v4278 = vmul.f32 %v4259, %v4271
  %v4279 = vmul.f32 %v4259, %v4275
  %v4280 = vadd.f32 %v4249, %v4276
  %v4281 = vadd.f32 %v4250, %v4277
  %v4282 = vadd.f32 %v4251, %v4278
  %v4283 = vadd.f32 %v4252, %v4279
  %v4284 = vlaneseq
  %v4285 = vshrl.u32 %v4284, 7
  %v4286 = vsub.s32 3, %v4285
  %v4287 = vrot.slane %v4158, %v4286
  %4289 = vbcast.lane.b32.xlu0 %v4287, 256
  %v4290 = vpop.permute.xlu0 %4289
  %v4291 = vlaneseq
  %v4292 = vshrl.u32 %v4291, 7
  %v4293 = vsub.s32 3, %v4292
  %v4294 = vrot.slane %v4187, %v4293
  %v4295 = vlaneseq
  %v4296 = vshrl.u32 %v4295, 7
  %v4297 = vsub.s32 3, %v4296
  %v4298 = vrot.slane %v4188, %v4297
  %v4299 = vlaneseq
  %v4300 = vshrl.u32 %v4299, 7
  %v4301 = vsub.s32 3, %v4300
  %v4302 = vrot.slane %v4189, %v4301
  %v4303 = vlaneseq
  %v4304 = vshrl.u32 %v4303, 7
  %v4305 = vsub.s32 3, %v4304
  %v4306 = vrot.slane %v4190, %v4305
  %v4307 = vmul.f32 %v4290, %v4294
  %v4308 = vmul.f32 %v4290, %v4298
  %v4309 = vmul.f32 %v4290, %v4302
  %v4310 = vmul.f32 %v4290, %v4306
  %v4311 = vadd.f32 %v4280, %v4307
  %v4312 = vadd.f32 %v4281, %v4308
  %v4313 = vadd.f32 %v4282, %v4309
  %v4314 = vadd.f32 %v4283, %v4310
  %4315 = vrot.lane.b32.xlu0 %v62, 16
  %v4316 = vpop.permute.xlu0 %4315
  %4318 = vrot.lane.b32.xlu0 %v47, 16
  %v4319 = vpop.permute.xlu0 %4318
  %4320 = vrot.lane.b32.xlu0 %v61, 16
  %v4321 = vpop.permute.xlu0 %4320
  %4322 = vrot.lane.b32.xlu0 %v48, 16
  %v4323 = vpop.permute.xlu0 %4322
  %v4324 = vsel %vm328, %v4319, %v4321
  %v4325 = vsel %vm328, %v4321, %v4323
  %v4326 = vsel %vm328, %v4323, %v4316
  %v4331 = vsel %vm328, %v4316, %v4319
  %v4332 = vmul.f32 %v4331, %v340
  %v4333 = vmul.f32 %v4324, %v344
  %v4334 = vmul.f32 %v4325, %v348
  %v4335 = vmul.f32 %v4326, %v352
  %v4336 = vlaneseq
  %v4337 = vshrl.u32 %v4336, 7
  %v4338 = vsub.s32 4, %v4337
  %v4339 = vrot.slane %v4158, %v4338
  %4341 = vbcast.lane.b32.xlu0 %v4339, 256
  %v4342 = vpop.permute.xlu0 %4341
  %v4343 = vlaneseq
  %v4344 = vshrl.u32 %v4343, 7
  %v4345 = vsub.s32 0, %v4344
  %v4346 = vrot.slane %v4332, %v4345
  %v4347 = vlaneseq
  %v4348 = vshrl.u32 %v4347, 7
  %v4349 = vsub.s32 0, %v4348
  %v4350 = vrot.slane %v4333, %v4349
  %v4351 = vlaneseq
  %v4352 = vshrl.u32 %v4351, 7
  %v4353 = vsub.s32 0, %v4352
  %v4354 = vrot.slane %v4334, %v4353
  %v4355 = vlaneseq
  %v4356 = vshrl.u32 %v4355, 7
  %v4357 = vsub.s32 0, %v4356
  %v4358 = vrot.slane %v4335, %v4357
  %v4359 = vmul.f32 %v4342, %v4346
  %v4360 = vmul.f32 %v4342, %v4350
  %v4361 = vmul.f32 %v4342, %v4354
  %v4362 = vmul.f32 %v4342, %v4358
  %v4363 = vadd.f32 %v4311, %v4359
  %v4364 = vadd.f32 %v4312, %v4360
  %v4365 = vadd.f32 %v4313, %v4361
  %v4366 = vadd.f32 %v4314, %v4362
  %v4367 = vlaneseq
  %v4368 = vshrl.u32 %v4367, 7
  %v4369 = vsub.s32 5, %v4368
  %v4370 = vrot.slane %v4158, %v4369
  %4372 = vbcast.lane.b32.xlu0 %v4370, 256
  %v4373 = vpop.permute.xlu0 %4372
  %v4374 = vlaneseq
  %v4375 = vshrl.u32 %v4374, 7
  %v4376 = vsub.s32 1, %v4375
  %v4377 = vrot.slane %v4332, %v4376
  %v4378 = vlaneseq
  %v4379 = vshrl.u32 %v4378, 7
  %v4380 = vsub.s32 1, %v4379
  %v4381 = vrot.slane %v4333, %v4380
  %v4382 = vlaneseq
  %v4383 = vshrl.u32 %v4382, 7
  %v4384 = vsub.s32 1, %v4383
  %v4385 = vrot.slane %v4334, %v4384
  %v4386 = vlaneseq
  %v4387 = vshrl.u32 %v4386, 7
  %v4388 = vsub.s32 1, %v4387
  %v4389 = vrot.slane %v4335, %v4388
  %v4390 = vmul.f32 %v4373, %v4377
  %v4391 = vmul.f32 %v4373, %v4381
  %v4392 = vmul.f32 %v4373, %v4385
  %v4393 = vmul.f32 %v4373, %v4389
  %v4394 = vadd.f32 %v4363, %v4390
  %v4395 = vadd.f32 %v4364, %v4391
  %v4396 = vadd.f32 %v4365, %v4392
  %v4397 = vadd.f32 %v4366, %v4393
  %v4398 = vlaneseq
  %v4399 = vshrl.u32 %v4398, 7
  %v4400 = vsub.s32 6, %v4399
  %v4401 = vrot.slane %v4158, %v4400
  %4403 = vbcast.lane.b32.xlu0 %v4401, 256
  %v4404 = vpop.permute.xlu0 %4403
  %v4405 = vlaneseq
  %v4406 = vshrl.u32 %v4405, 7
  %v4407 = vsub.s32 2, %v4406
  %v4408 = vrot.slane %v4332, %v4407
  %v4409 = vlaneseq
  %v4410 = vshrl.u32 %v4409, 7
  %v4411 = vsub.s32 2, %v4410
  %v4412 = vrot.slane %v4333, %v4411
  %v4413 = vlaneseq
  %v4414 = vshrl.u32 %v4413, 7
  %v4415 = vsub.s32 2, %v4414
  %v4416 = vrot.slane %v4334, %v4415
  %v4417 = vlaneseq
  %v4418 = vshrl.u32 %v4417, 7
  %v4419 = vsub.s32 2, %v4418
  %v4420 = vrot.slane %v4335, %v4419
  %v4421 = vmul.f32 %v4404, %v4408
  %v4422 = vmul.f32 %v4404, %v4412
  %v4423 = vmul.f32 %v4404, %v4416
  %v4424 = vmul.f32 %v4404, %v4420
  %v4425 = vadd.f32 %v4394, %v4421
  %v4426 = vadd.f32 %v4395, %v4422
  %v4427 = vadd.f32 %v4396, %v4423
  %v4428 = vadd.f32 %v4397, %v4424
  %v4429 = vlaneseq
  %v4430 = vshrl.u32 %v4429, 7
  %v4431 = vsub.s32 7, %v4430
  %v4432 = vrot.slane %v4158, %v4431
  %4434 = vbcast.lane.b32.xlu0 %v4432, 256
  %v4435 = vpop.permute.xlu0 %4434
  %v4436 = vlaneseq
  %v4437 = vshrl.u32 %v4436, 7
  %v4438 = vsub.s32 3, %v4437
  %v4439 = vrot.slane %v4332, %v4438
  %v4440 = vlaneseq
  %v4441 = vshrl.u32 %v4440, 7
  %v4442 = vsub.s32 3, %v4441
  %v4443 = vrot.slane %v4333, %v4442
  %v4444 = vlaneseq
  %v4445 = vshrl.u32 %v4444, 7
  %v4446 = vsub.s32 3, %v4445
  %v4447 = vrot.slane %v4334, %v4446
  %v4448 = vlaneseq
  %v4449 = vshrl.u32 %v4448, 7
  %v4450 = vsub.s32 3, %v4449
  %v4451 = vrot.slane %v4335, %v4450
  %v4452 = vmul.f32 %v4435, %v4439
  %v4453 = vmul.f32 %v4435, %v4443
  %v4454 = vmul.f32 %v4435, %v4447
  %v4455 = vmul.f32 %v4435, %v4451
  %v4456 = vadd.f32 %v4425, %v4452
  %v4457 = vadd.f32 %v4426, %v4453
  %v4458 = vadd.f32 %v4427, %v4454
  %v4459 = vadd.f32 %v4428, %v4455
  %4460 = vrot.lane.b32.xlu0 %v62, 15
  %v4461 = vpop.permute.xlu0 %4460
  %4463 = vrot.lane.b32.xlu0 %v47, 15
  %v4464 = vpop.permute.xlu0 %4463
  %4465 = vrot.lane.b32.xlu0 %v61, 15
  %v4466 = vpop.permute.xlu0 %4465
  %4467 = vrot.lane.b32.xlu0 %v48, 15
  %v4468 = vpop.permute.xlu0 %4467
  %v4469 = vsel %vm490, %v4464, %v4466
  %v4470 = vsel %vm490, %v4466, %v4468
  %v4471 = vsel %vm490, %v4468, %v4461
  %v4476 = vsel %vm490, %v4461, %v4464
  %v4477 = vmul.f32 %v4476, %v502
  %v4478 = vmul.f32 %v4469, %v506
  %v4479 = vmul.f32 %v4470, %v510
  %v4480 = vmul.f32 %v4471, %v514
  %v4481 = vlaneseq
  %v4482 = vshrl.u32 %v4481, 7
  %v4483 = vsub.s32 0, %v4482
  %v4484 = vrot.slane %v4159, %v4483
  %4486 = vbcast.lane.b32.xlu0 %v4484, 256
  %v4487 = vpop.permute.xlu0 %4486
  %v4488 = vlaneseq
  %v4489 = vshrl.u32 %v4488, 7
  %v4490 = vsub.s32 0, %v4489
  %v4491 = vrot.slane %v4477, %v4490
  %v4492 = vlaneseq
  %v4493 = vshrl.u32 %v4492, 7
  %v4494 = vsub.s32 0, %v4493
  %v4495 = vrot.slane %v4478, %v4494
  %v4496 = vlaneseq
  %v4497 = vshrl.u32 %v4496, 7
  %v4498 = vsub.s32 0, %v4497
  %v4499 = vrot.slane %v4479, %v4498
  %v4500 = vlaneseq
  %v4501 = vshrl.u32 %v4500, 7
  %v4502 = vsub.s32 0, %v4501
  %v4503 = vrot.slane %v4480, %v4502
  %v4504 = vmul.f32 %v4487, %v4491
  %v4505 = vmul.f32 %v4487, %v4495
  %v4506 = vmul.f32 %v4487, %v4499
  %v4507 = vmul.f32 %v4487, %v4503
  %v4508 = vadd.f32 %v4456, %v4504
  %v4509 = vadd.f32 %v4457, %v4505
  %v4510 = vadd.f32 %v4458, %v4506
  %v4511 = vadd.f32 %v4459, %v4507
  %v4512 = vlaneseq
  %v4513 = vshrl.u32 %v4512, 7
  %v4514 = vsub.s32 1, %v4513
  %v4515 = vrot.slane %v4159, %v4514
  %4517 = vbcast.lane.b32.xlu0 %v4515, 256
  %v4518 = vpop.permute.xlu0 %4517
  %v4519 = vlaneseq
  %v4520 = vshrl.u32 %v4519, 7
  %v4521 = vsub.s32 1, %v4520
  %v4522 = vrot.slane %v4477, %v4521
  %v4523 = vlaneseq
  %v4524 = vshrl.u32 %v4523, 7
  %v4525 = vsub.s32 1, %v4524
  %v4526 = vrot.slane %v4478, %v4525
  %v4527 = vlaneseq
  %v4528 = vshrl.u32 %v4527, 7
  %v4529 = vsub.s32 1, %v4528
  %v4530 = vrot.slane %v4479, %v4529
  %v4531 = vlaneseq
  %v4532 = vshrl.u32 %v4531, 7
  %v4533 = vsub.s32 1, %v4532
  %v4534 = vrot.slane %v4480, %v4533
  %v4535 = vmul.f32 %v4518, %v4522
  %v4536 = vmul.f32 %v4518, %v4526
  %v4537 = vmul.f32 %v4518, %v4530
  %v4538 = vmul.f32 %v4518, %v4534
  %v4539 = vadd.f32 %v4508, %v4535
  %v4540 = vadd.f32 %v4509, %v4536
  %v4541 = vadd.f32 %v4510, %v4537
  %v4542 = vadd.f32 %v4511, %v4538
  %v4543 = vlaneseq
  %v4544 = vshrl.u32 %v4543, 7
  %v4545 = vsub.s32 2, %v4544
  %v4546 = vrot.slane %v4159, %v4545
  %4548 = vbcast.lane.b32.xlu0 %v4546, 256
  %v4549 = vpop.permute.xlu0 %4548
  %v4550 = vlaneseq
  %v4551 = vshrl.u32 %v4550, 7
  %v4552 = vsub.s32 2, %v4551
  %v4553 = vrot.slane %v4477, %v4552
  %v4554 = vlaneseq
  %v4555 = vshrl.u32 %v4554, 7
  %v4556 = vsub.s32 2, %v4555
  %v4557 = vrot.slane %v4478, %v4556
  %v4558 = vlaneseq
  %v4559 = vshrl.u32 %v4558, 7
  %v4560 = vsub.s32 2, %v4559
  %v4561 = vrot.slane %v4479, %v4560
  %v4562 = vlaneseq
  %v4563 = vshrl.u32 %v4562, 7
  %v4564 = vsub.s32 2, %v4563
  %v4565 = vrot.slane %v4480, %v4564
  %v4566 = vmul.f32 %v4549, %v4553
  %v4567 = vmul.f32 %v4549, %v4557
  %v4568 = vmul.f32 %v4549, %v4561
  %v4569 = vmul.f32 %v4549, %v4565
  %v4570 = vadd.f32 %v4539, %v4566
  %v4571 = vadd.f32 %v4540, %v4567
  %v4572 = vadd.f32 %v4541, %v4568
  %v4573 = vadd.f32 %v4542, %v4569
  %v4574 = vlaneseq
  %v4575 = vshrl.u32 %v4574, 7
  %v4576 = vsub.s32 3, %v4575
  %v4577 = vrot.slane %v4159, %v4576
  %4579 = vbcast.lane.b32.xlu0 %v4577, 256
  %v4580 = vpop.permute.xlu0 %4579
  %v4581 = vlaneseq
  %v4582 = vshrl.u32 %v4581, 7
  %v4583 = vsub.s32 3, %v4582
  %v4584 = vrot.slane %v4477, %v4583
  %v4585 = vlaneseq
  %v4586 = vshrl.u32 %v4585, 7
  %v4587 = vsub.s32 3, %v4586
  %v4588 = vrot.slane %v4478, %v4587
  %v4589 = vlaneseq
  %v4590 = vshrl.u32 %v4589, 7
  %v4591 = vsub.s32 3, %v4590
  %v4592 = vrot.slane %v4479, %v4591
  %v4593 = vlaneseq
  %v4594 = vshrl.u32 %v4593, 7
  %v4595 = vsub.s32 3, %v4594
  %v4596 = vrot.slane %v4480, %v4595
  %v4597 = vmul.f32 %v4580, %v4584
  %v4598 = vmul.f32 %v4580, %v4588
  %v4599 = vmul.f32 %v4580, %v4592
  %v4600 = vmul.f32 %v4580, %v4596
  %v4601 = vadd.f32 %v4570, %v4597
  %v4602 = vadd.f32 %v4571, %v4598
  %v4603 = vadd.f32 %v4572, %v4599
  %v4604 = vadd.f32 %v4573, %v4600
  %4605 = vrot.lane.b32.xlu0 %v62, 1
  %v4606 = vpop.permute.xlu0 %4605
  %4608 = vrot.lane.b32.xlu0 %v47, 1
  %v4609 = vpop.permute.xlu0 %4608
  %4610 = vrot.lane.b32.xlu0 %v61, 1
  %v4611 = vpop.permute.xlu0 %4610
  %4612 = vrot.lane.b32.xlu0 %v48, 1
  %v4613 = vpop.permute.xlu0 %4612
  %v4614 = vsel %vm652, %v4609, %v4611
  %v4615 = vsel %vm652, %v4611, %v4613
  %v4616 = vsel %vm652, %v4613, %v4606
  %v4621 = vsel %vm652, %v4606, %v4609
  %v4622 = vmul.f32 %v4621, %v664
  %v4623 = vmul.f32 %v4614, %v668
  %v4624 = vmul.f32 %v4615, %v672
  %v4625 = vmul.f32 %v4616, %v676
  %v4626 = vlaneseq
  %v4627 = vshrl.u32 %v4626, 7
  %v4628 = vsub.s32 4, %v4627
  %v4629 = vrot.slane %v4159, %v4628
  %4631 = vbcast.lane.b32.xlu0 %v4629, 256
  %v4632 = vpop.permute.xlu0 %4631
  %v4633 = vlaneseq
  %v4634 = vshrl.u32 %v4633, 7
  %v4635 = vsub.s32 0, %v4634
  %v4636 = vrot.slane %v4622, %v4635
  %v4637 = vlaneseq
  %v4638 = vshrl.u32 %v4637, 7
  %v4639 = vsub.s32 0, %v4638
  %v4640 = vrot.slane %v4623, %v4639
  %v4641 = vlaneseq
  %v4642 = vshrl.u32 %v4641, 7
  %v4643 = vsub.s32 0, %v4642
  %v4644 = vrot.slane %v4624, %v4643
  %v4645 = vlaneseq
  %v4646 = vshrl.u32 %v4645, 7
  %v4647 = vsub.s32 0, %v4646
  %v4648 = vrot.slane %v4625, %v4647
  %v4649 = vmul.f32 %v4632, %v4636
  %v4650 = vmul.f32 %v4632, %v4640
  %v4651 = vmul.f32 %v4632, %v4644
  %v4652 = vmul.f32 %v4632, %v4648
  %v4653 = vadd.f32 %v4601, %v4649
  %v4654 = vadd.f32 %v4602, %v4650
  %v4655 = vadd.f32 %v4603, %v4651
  %v4656 = vadd.f32 %v4604, %v4652
  %v4657 = vlaneseq
  %v4658 = vshrl.u32 %v4657, 7
  %v4659 = vsub.s32 5, %v4658
  %v4660 = vrot.slane %v4159, %v4659
  %4662 = vbcast.lane.b32.xlu0 %v4660, 256
  %v4663 = vpop.permute.xlu0 %4662
  %v4664 = vlaneseq
  %v4665 = vshrl.u32 %v4664, 7
  %v4666 = vsub.s32 1, %v4665
  %v4667 = vrot.slane %v4622, %v4666
  %v4668 = vlaneseq
  %v4669 = vshrl.u32 %v4668, 7
  %v4670 = vsub.s32 1, %v4669
  %v4671 = vrot.slane %v4623, %v4670
  %v4672 = vlaneseq
  %v4673 = vshrl.u32 %v4672, 7
  %v4674 = vsub.s32 1, %v4673
  %v4675 = vrot.slane %v4624, %v4674
  %v4676 = vlaneseq
  %v4677 = vshrl.u32 %v4676, 7
  %v4678 = vsub.s32 1, %v4677
  %v4679 = vrot.slane %v4625, %v4678
  %v4680 = vmul.f32 %v4663, %v4667
  %v4681 = vmul.f32 %v4663, %v4671
  %v4682 = vmul.f32 %v4663, %v4675
  %v4683 = vmul.f32 %v4663, %v4679
  %v4684 = vadd.f32 %v4653, %v4680
  %v4685 = vadd.f32 %v4654, %v4681
  %v4686 = vadd.f32 %v4655, %v4682
  %v4687 = vadd.f32 %v4656, %v4683
  %v4688 = vlaneseq
  %v4689 = vshrl.u32 %v4688, 7
  %v4690 = vsub.s32 6, %v4689
  %v4691 = vrot.slane %v4159, %v4690
  %4693 = vbcast.lane.b32.xlu0 %v4691, 256
  %v4694 = vpop.permute.xlu0 %4693
  %v4695 = vlaneseq
  %v4696 = vshrl.u32 %v4695, 7
  %v4697 = vsub.s32 2, %v4696
  %v4698 = vrot.slane %v4622, %v4697
  %v4699 = vlaneseq
  %v4700 = vshrl.u32 %v4699, 7
  %v4701 = vsub.s32 2, %v4700
  %v4702 = vrot.slane %v4623, %v4701
  %v4703 = vlaneseq
  %v4704 = vshrl.u32 %v4703, 7
  %v4705 = vsub.s32 2, %v4704
  %v4706 = vrot.slane %v4624, %v4705
  %v4707 = vlaneseq
  %v4708 = vshrl.u32 %v4707, 7
  %v4709 = vsub.s32 2, %v4708
  %v4710 = vrot.slane %v4625, %v4709
  %v4711 = vmul.f32 %v4694, %v4698
  %v4712 = vmul.f32 %v4694, %v4702
  %v4713 = vmul.f32 %v4694, %v4706
  %v4714 = vmul.f32 %v4694, %v4710
  %v4715 = vadd.f32 %v4684, %v4711
  %v4716 = vadd.f32 %v4685, %v4712
  %v4717 = vadd.f32 %v4686, %v4713
  %v4718 = vadd.f32 %v4687, %v4714
  %v4719 = vlaneseq
  %v4720 = vshrl.u32 %v4719, 7
  %v4721 = vsub.s32 7, %v4720
  %v4722 = vrot.slane %v4159, %v4721
  %4724 = vbcast.lane.b32.xlu0 %v4722, 256
  %v4725 = vpop.permute.xlu0 %4724
  %v4726 = vlaneseq
  %v4727 = vshrl.u32 %v4726, 7
  %v4728 = vsub.s32 3, %v4727
  %v4729 = vrot.slane %v4622, %v4728
  %v4730 = vlaneseq
  %v4731 = vshrl.u32 %v4730, 7
  %v4732 = vsub.s32 3, %v4731
  %v4733 = vrot.slane %v4623, %v4732
  %v4734 = vlaneseq
  %v4735 = vshrl.u32 %v4734, 7
  %v4736 = vsub.s32 3, %v4735
  %v4737 = vrot.slane %v4624, %v4736
  %v4738 = vlaneseq
  %v4739 = vshrl.u32 %v4738, 7
  %v4740 = vsub.s32 3, %v4739
  %v4741 = vrot.slane %v4625, %v4740
  %v4742 = vmul.f32 %v4725, %v4729
  %v4743 = vmul.f32 %v4725, %v4733
  %v4744 = vmul.f32 %v4725, %v4737
  %v4745 = vmul.f32 %v4725, %v4741
  %v4746 = vadd.f32 %v4715, %v4742
  %v4747 = vadd.f32 %v4716, %v4743
  %v4748 = vadd.f32 %v4717, %v4744
  %v4749 = vadd.f32 %v4718, %v4745
  %v4750 = vmul.f32 %v47, %v825
  %v4751 = vmul.f32 %v48, %v826
  %v4752 = vlaneseq
  %v4753 = vshrl.u32 %v4752, 7
  %v4754 = vsub.s32 0, %v4753
  %v4755 = vrot.slane %v4160, %v4754
  %4757 = vbcast.lane.b32.xlu0 %v4755, 256
  %v4758 = vpop.permute.xlu0 %4757
  %v4761 = vlaneseq
  %v4762 = vshrl.u32 %v4761, 7
  %v4763 = vsub.s32 0, %v4762
  %v4764 = vrot.slane %v4750, %v4763
  %v4765 = vlaneseq
  %v4766 = vshrl.u32 %v4765, 7
  %v4767 = vsub.s32 4, %v4766
  %v4768 = vrot.slane %v4750, %v4767
  %v4769 = vlaneseq
  %v4770 = vshrl.u32 %v4769, 7
  %v4771 = vsub.s32 0, %v4770
  %v4772 = vrot.slane %v4751, %v4771
  %v4773 = vlaneseq
  %v4774 = vshrl.u32 %v4773, 7
  %v4775 = vsub.s32 4, %v4774
  %v4776 = vrot.slane %v4751, %v4775
  %v4781 = vlaneseq
  %v4782 = vshrl.u32 %v4781, 7
  %v4783 = vsub.s32 0, %v4782
  %v4784 = vrot.slane %v4764, %v4783
  %v4785 = vlaneseq
  %v4786 = vshrl.u32 %v4785, 7
  %v4787 = vsub.s32 0, %v4786
  %v4788 = vrot.slane %v4768, %v4787
  %v4789 = vlaneseq
  %v4790 = vshrl.u32 %v4789, 7
  %v4791 = vsub.s32 0, %v4790
  %v4792 = vrot.slane %v4772, %v4791
  %v4793 = vlaneseq
  %v4794 = vshrl.u32 %v4793, 7
  %v4795 = vsub.s32 0, %v4794
  %v4796 = vrot.slane %v4776, %v4795
  %v4797 = vmul.f32 %v4758, %v4784
  %v4798 = vmul.f32 %v4758, %v4788
  %v4799 = vmul.f32 %v4758, %v4792
  %v4800 = vmul.f32 %v4758, %v4796
  %v4801 = vadd.f32 %v4746, %v4797
  %v4802 = vadd.f32 %v4747, %v4798
  %v4803 = vadd.f32 %v4748, %v4799
  %v4804 = vadd.f32 %v4749, %v4800
  %v4805 = vlaneseq
  %v4806 = vshrl.u32 %v4805, 7
  %v4807 = vsub.s32 1, %v4806
  %v4808 = vrot.slane %v4160, %v4807
  %4810 = vbcast.lane.b32.xlu0 %v4808, 256
  %v4811 = vpop.permute.xlu0 %4810
  %v4812 = vlaneseq
  %v4813 = vshrl.u32 %v4812, 7
  %v4814 = vsub.s32 1, %v4813
  %v4815 = vrot.slane %v4750, %v4814
  %v4816 = vlaneseq
  %v4817 = vshrl.u32 %v4816, 7
  %v4818 = vsub.s32 5, %v4817
  %v4819 = vrot.slane %v4750, %v4818
  %v4820 = vlaneseq
  %v4821 = vshrl.u32 %v4820, 7
  %v4822 = vsub.s32 1, %v4821
  %v4823 = vrot.slane %v4751, %v4822
  %v4824 = vlaneseq
  %v4825 = vshrl.u32 %v4824, 7
  %v4826 = vsub.s32 5, %v4825
  %v4827 = vrot.slane %v4751, %v4826
  %v4832 = vlaneseq
  %v4833 = vshrl.u32 %v4832, 7
  %v4834 = vsub.s32 1, %v4833
  %v4835 = vrot.slane %v4815, %v4834
  %v4836 = vlaneseq
  %v4837 = vshrl.u32 %v4836, 7
  %v4838 = vsub.s32 1, %v4837
  %v4839 = vrot.slane %v4819, %v4838
  %v4840 = vlaneseq
  %v4841 = vshrl.u32 %v4840, 7
  %v4842 = vsub.s32 1, %v4841
  %v4843 = vrot.slane %v4823, %v4842
  %v4844 = vlaneseq
  %v4845 = vshrl.u32 %v4844, 7
  %v4846 = vsub.s32 1, %v4845
  %v4847 = vrot.slane %v4827, %v4846
  %v4848 = vmul.f32 %v4811, %v4835
  %v4849 = vmul.f32 %v4811, %v4839
  %v4850 = vmul.f32 %v4811, %v4843
  %v4851 = vmul.f32 %v4811, %v4847
  %v4852 = vadd.f32 %v4801, %v4848
  %v4853 = vadd.f32 %v4802, %v4849
  %v4854 = vadd.f32 %v4803, %v4850
  %v4855 = vadd.f32 %v4804, %v4851
  %v4856 = vlaneseq
  %v4857 = vshrl.u32 %v4856, 7
  %v4858 = vsub.s32 2, %v4857
  %v4859 = vrot.slane %v4160, %v4858
  %4861 = vbcast.lane.b32.xlu0 %v4859, 256
  %v4862 = vpop.permute.xlu0 %4861
  %v4863 = vlaneseq
  %v4864 = vshrl.u32 %v4863, 7
  %v4865 = vsub.s32 2, %v4864
  %v4866 = vrot.slane %v4750, %v4865
  %v4867 = vlaneseq
  %v4868 = vshrl.u32 %v4867, 7
  %v4869 = vsub.s32 6, %v4868
  %v4870 = vrot.slane %v4750, %v4869
  %v4871 = vlaneseq
  %v4872 = vshrl.u32 %v4871, 7
  %v4873 = vsub.s32 2, %v4872
  %v4874 = vrot.slane %v4751, %v4873
  %v4875 = vlaneseq
  %v4876 = vshrl.u32 %v4875, 7
  %v4877 = vsub.s32 6, %v4876
  %v4878 = vrot.slane %v4751, %v4877
  %v4883 = vlaneseq
  %v4884 = vshrl.u32 %v4883, 7
  %v4885 = vsub.s32 2, %v4884
  %v4886 = vrot.slane %v4866, %v4885
  %v4887 = vlaneseq
  %v4888 = vshrl.u32 %v4887, 7
  %v4889 = vsub.s32 2, %v4888
  %v4890 = vrot.slane %v4870, %v4889
  %v4891 = vlaneseq
  %v4892 = vshrl.u32 %v4891, 7
  %v4893 = vsub.s32 2, %v4892
  %v4894 = vrot.slane %v4874, %v4893
  %v4895 = vlaneseq
  %v4896 = vshrl.u32 %v4895, 7
  %v4897 = vsub.s32 2, %v4896
  %v4898 = vrot.slane %v4878, %v4897
  %v4899 = vmul.f32 %v4862, %v4886
  %v4900 = vmul.f32 %v4862, %v4890
  %v4901 = vmul.f32 %v4862, %v4894
  %v4902 = vmul.f32 %v4862, %v4898
  %v4903 = vadd.f32 %v4852, %v4899
  %v4904 = vadd.f32 %v4853, %v4900
  %v4905 = vadd.f32 %v4854, %v4901
  %v4906 = vadd.f32 %v4855, %v4902
  %v4907 = vlaneseq
  %v4908 = vshrl.u32 %v4907, 7
  %v4909 = vsub.s32 3, %v4908
  %v4910 = vrot.slane %v4160, %v4909
  %4912 = vbcast.lane.b32.xlu0 %v4910, 256
  %v4913 = vpop.permute.xlu0 %4912
  %v4914 = vlaneseq
  %v4915 = vshrl.u32 %v4914, 7
  %v4916 = vsub.s32 3, %v4915
  %v4917 = vrot.slane %v4750, %v4916
  %v4918 = vlaneseq
  %v4919 = vshrl.u32 %v4918, 7
  %v4920 = vsub.s32 7, %v4919
  %v4921 = vrot.slane %v4750, %v4920
  %v4922 = vlaneseq
  %v4923 = vshrl.u32 %v4922, 7
  %v4924 = vsub.s32 3, %v4923
  %v4925 = vrot.slane %v4751, %v4924
  %v4926 = vlaneseq
  %v4927 = vshrl.u32 %v4926, 7
  %v4928 = vsub.s32 7, %v4927
  %v4929 = vrot.slane %v4751, %v4928
  %v4934 = vlaneseq
  %v4935 = vshrl.u32 %v4934, 7
  %v4936 = vsub.s32 3, %v4935
  %v4937 = vrot.slane %v4917, %v4936
  %v4938 = vlaneseq
  %v4939 = vshrl.u32 %v4938, 7
  %v4940 = vsub.s32 3, %v4939
  %v4941 = vrot.slane %v4921, %v4940
  %v4942 = vlaneseq
  %v4943 = vshrl.u32 %v4942, 7
  %v4944 = vsub.s32 3, %v4943
  %v4945 = vrot.slane %v4925, %v4944
  %v4946 = vlaneseq
  %v4947 = vshrl.u32 %v4946, 7
  %v4948 = vsub.s32 3, %v4947
  %v4949 = vrot.slane %v4929, %v4948
  %v4950 = vmul.f32 %v4913, %v4937
  %v4951 = vmul.f32 %v4913, %v4941
  %v4952 = vmul.f32 %v4913, %v4945
  %v4953 = vmul.f32 %v4913, %v4949
  %v4954 = vadd.f32 %v4903, %v4950
  %v4955 = vadd.f32 %v4904, %v4951
  %v4956 = vadd.f32 %v4905, %v4952
  %v4957 = vadd.f32 %v4906, %v4953
  %4958 = vrot.lane.b32.xlu0 %v47, 127
  %v4959 = vpop.permute.xlu0 %4958
  %4960 = vrot.lane.b32.xlu0 %v61, 127
  %v4961 = vpop.permute.xlu0 %4960
  %4962 = vrot.lane.b32.xlu0 %v48, 127
  %v4963 = vpop.permute.xlu0 %4962
  %4964 = vrot.lane.b32.xlu0 %v62, 127
  %v4965 = vpop.permute.xlu0 %4964
  %v4966 = vsel %vm1045, %v4959, %v4961
  %v4967 = vsel %vm1045, %v4961, %v4963
  %v4968 = vsel %vm1045, %v4963, %v4965
  %v4974 = vsel %vm1045, %v4965, %v4959
  %v4975 = vmul.f32 %v4966, %v1058
  %v4976 = vmul.f32 %v4967, %v1062
  %v4977 = vmul.f32 %v4968, %v1066
  %v4978 = vmul.f32 %v4974, %v1070
  %v4979 = vlaneseq
  %v4980 = vshrl.u32 %v4979, 7
  %v4981 = vsub.s32 4, %v4980
  %v4982 = vrot.slane %v4160, %v4981
  %4984 = vbcast.lane.b32.xlu0 %v4982, 256
  %v4985 = vpop.permute.xlu0 %4984
  %v4986 = vlaneseq
  %v4987 = vshrl.u32 %v4986, 7
  %v4988 = vsub.s32 0, %v4987
  %v4989 = vrot.slane %v4975, %v4988
  %v4990 = vlaneseq
  %v4991 = vshrl.u32 %v4990, 7
  %v4992 = vsub.s32 0, %v4991
  %v4993 = vrot.slane %v4976, %v4992
  %v4994 = vlaneseq
  %v4995 = vshrl.u32 %v4994, 7
  %v4996 = vsub.s32 0, %v4995
  %v4997 = vrot.slane %v4977, %v4996
  %v4998 = vlaneseq
  %v4999 = vshrl.u32 %v4998, 7
  %v5000 = vsub.s32 0, %v4999
  %v5001 = vrot.slane %v4978, %v5000
  %v5002 = vmul.f32 %v4985, %v4989
  %v5003 = vmul.f32 %v4985, %v4993
  %v5004 = vmul.f32 %v4985, %v4997
  %v5005 = vmul.f32 %v4985, %v5001
  %v5006 = vadd.f32 %v4954, %v5002
  %v5007 = vadd.f32 %v4955, %v5003
  %v5008 = vadd.f32 %v4956, %v5004
  %v5009 = vadd.f32 %v4957, %v5005
  %v5010 = vlaneseq
  %v5011 = vshrl.u32 %v5010, 7
  %v5012 = vsub.s32 5, %v5011
  %v5013 = vrot.slane %v4160, %v5012
  %5015 = vbcast.lane.b32.xlu0 %v5013, 256
  %v5016 = vpop.permute.xlu0 %5015
  %v5017 = vlaneseq
  %v5018 = vshrl.u32 %v5017, 7
  %v5019 = vsub.s32 1, %v5018
  %v5020 = vrot.slane %v4975, %v5019
  %v5021 = vlaneseq
  %v5022 = vshrl.u32 %v5021, 7
  %v5023 = vsub.s32 1, %v5022
  %v5024 = vrot.slane %v4976, %v5023
  %v5025 = vlaneseq
  %v5026 = vshrl.u32 %v5025, 7
  %v5027 = vsub.s32 1, %v5026
  %v5028 = vrot.slane %v4977, %v5027
  %v5029 = vlaneseq
  %v5030 = vshrl.u32 %v5029, 7
  %v5031 = vsub.s32 1, %v5030
  %v5032 = vrot.slane %v4978, %v5031
  %v5033 = vmul.f32 %v5016, %v5020
  %v5034 = vmul.f32 %v5016, %v5024
  %v5035 = vmul.f32 %v5016, %v5028
  %v5036 = vmul.f32 %v5016, %v5032
  %v5037 = vadd.f32 %v5006, %v5033
  %v5038 = vadd.f32 %v5007, %v5034
  %v5039 = vadd.f32 %v5008, %v5035
  %v5040 = vadd.f32 %v5009, %v5036
  %v5041 = vlaneseq
  %v5042 = vshrl.u32 %v5041, 7
  %v5043 = vsub.s32 6, %v5042
  %v5044 = vrot.slane %v4160, %v5043
  %5046 = vbcast.lane.b32.xlu0 %v5044, 256
  %v5047 = vpop.permute.xlu0 %5046
  %v5048 = vlaneseq
  %v5049 = vshrl.u32 %v5048, 7
  %v5050 = vsub.s32 2, %v5049
  %v5051 = vrot.slane %v4975, %v5050
  %v5052 = vlaneseq
  %v5053 = vshrl.u32 %v5052, 7
  %v5054 = vsub.s32 2, %v5053
  %v5055 = vrot.slane %v4976, %v5054
  %v5056 = vlaneseq
  %v5057 = vshrl.u32 %v5056, 7
  %v5058 = vsub.s32 2, %v5057
  %v5059 = vrot.slane %v4977, %v5058
  %v5060 = vlaneseq
  %v5061 = vshrl.u32 %v5060, 7
  %v5062 = vsub.s32 2, %v5061
  %v5063 = vrot.slane %v4978, %v5062
  %v5064 = vmul.f32 %v5047, %v5051
  %v5065 = vmul.f32 %v5047, %v5055
  %v5066 = vmul.f32 %v5047, %v5059
  %v5067 = vmul.f32 %v5047, %v5063
  %v5068 = vadd.f32 %v5037, %v5064
  %v5069 = vadd.f32 %v5038, %v5065
  %v5070 = vadd.f32 %v5039, %v5066
  %v5071 = vadd.f32 %v5040, %v5067
  %v5072 = vlaneseq
  %v5073 = vshrl.u32 %v5072, 7
  %v5074 = vsub.s32 7, %v5073
  %v5075 = vrot.slane %v4160, %v5074
  %5077 = vbcast.lane.b32.xlu0 %v5075, 256
  %v5078 = vpop.permute.xlu0 %5077
  %v5079 = vlaneseq
  %v5080 = vshrl.u32 %v5079, 7
  %v5081 = vsub.s32 3, %v5080
  %v5082 = vrot.slane %v4975, %v5081
  %v5083 = vlaneseq
  %v5084 = vshrl.u32 %v5083, 7
  %v5085 = vsub.s32 3, %v5084
  %v5086 = vrot.slane %v4976, %v5085
  %v5087 = vlaneseq
  %v5088 = vshrl.u32 %v5087, 7
  %v5089 = vsub.s32 3, %v5088
  %v5090 = vrot.slane %v4977, %v5089
  %v5091 = vlaneseq
  %v5092 = vshrl.u32 %v5091, 7
  %v5093 = vsub.s32 3, %v5092
  %v5094 = vrot.slane %v4978, %v5093
  %v5095 = vmul.f32 %v5078, %v5082
  %v5096 = vmul.f32 %v5078, %v5086
  %v5097 = vmul.f32 %v5078, %v5090
  %v5098 = vmul.f32 %v5078, %v5094
  %v5099 = vadd.f32 %v5068, %v5095
  %v5100 = vadd.f32 %v5069, %v5096
  %v5101 = vadd.f32 %v5070, %v5097
  %v5102 = vadd.f32 %v5071, %v5098
  %5103 = vrot.lane.b32.xlu0 %v47, 113
  %v5104 = vpop.permute.xlu0 %5103
  %5105 = vrot.lane.b32.xlu0 %v61, 113
  %v5106 = vpop.permute.xlu0 %5105
  %5107 = vrot.lane.b32.xlu0 %v48, 113
  %v5108 = vpop.permute.xlu0 %5107
  %5109 = vrot.lane.b32.xlu0 %v62, 113
  %v5110 = vpop.permute.xlu0 %5109
  %v5111 = vsel %vm1207, %v5104, %v5106
  %v5112 = vsel %vm1207, %v5106, %v5108
  %v5113 = vsel %vm1207, %v5108, %v5110
  %v5119 = vsel %vm1207, %v5110, %v5104
  %v5120 = vmul.f32 %v5111, %v1220
  %v5121 = vmul.f32 %v5112, %v1224
  %v5122 = vmul.f32 %v5113, %v1228
  %v5123 = vmul.f32 %v5119, %v1232
  %v5124 = vlaneseq
  %v5125 = vshrl.u32 %v5124, 7
  %v5126 = vsub.s32 0, %v5125
  %v5127 = vrot.slane %v4161, %v5126
  %5129 = vbcast.lane.b32.xlu0 %v5127, 256
  %v5130 = vpop.permute.xlu0 %5129
  %v5131 = vlaneseq
  %v5132 = vshrl.u32 %v5131, 7
  %v5133 = vsub.s32 0, %v5132
  %v5134 = vrot.slane %v5120, %v5133
  %v5135 = vlaneseq
  %v5136 = vshrl.u32 %v5135, 7
  %v5137 = vsub.s32 0, %v5136
  %v5138 = vrot.slane %v5121, %v5137
  %v5139 = vlaneseq
  %v5140 = vshrl.u32 %v5139, 7
  %v5141 = vsub.s32 0, %v5140
  %v5142 = vrot.slane %v5122, %v5141
  %v5143 = vlaneseq
  %v5144 = vshrl.u32 %v5143, 7
  %v5145 = vsub.s32 0, %v5144
  %v5146 = vrot.slane %v5123, %v5145
  %v5147 = vmul.f32 %v5130, %v5134
  %v5148 = vmul.f32 %v5130, %v5138
  %v5149 = vmul.f32 %v5130, %v5142
  %v5150 = vmul.f32 %v5130, %v5146
  %v5151 = vadd.f32 %v5099, %v5147
  %v5152 = vadd.f32 %v5100, %v5148
  %v5153 = vadd.f32 %v5101, %v5149
  %v5154 = vadd.f32 %v5102, %v5150
  %v5155 = vlaneseq
  %v5156 = vshrl.u32 %v5155, 7
  %v5157 = vsub.s32 1, %v5156
  %v5158 = vrot.slane %v4161, %v5157
  %5160 = vbcast.lane.b32.xlu0 %v5158, 256
  %v5161 = vpop.permute.xlu0 %5160
  %v5162 = vlaneseq
  %v5163 = vshrl.u32 %v5162, 7
  %v5164 = vsub.s32 1, %v5163
  %v5165 = vrot.slane %v5120, %v5164
  %v5166 = vlaneseq
  %v5167 = vshrl.u32 %v5166, 7
  %v5168 = vsub.s32 1, %v5167
  %v5169 = vrot.slane %v5121, %v5168
  %v5170 = vlaneseq
  %v5171 = vshrl.u32 %v5170, 7
  %v5172 = vsub.s32 1, %v5171
  %v5173 = vrot.slane %v5122, %v5172
  %v5174 = vlaneseq
  %v5175 = vshrl.u32 %v5174, 7
  %v5176 = vsub.s32 1, %v5175
  %v5177 = vrot.slane %v5123, %v5176
  %v5178 = vmul.f32 %v5161, %v5165
  %v5179 = vmul.f32 %v5161, %v5169
  %v5180 = vmul.f32 %v5161, %v5173
  %v5181 = vmul.f32 %v5161, %v5177
  %v5182 = vadd.f32 %v5151, %v5178
  %v5183 = vadd.f32 %v5152, %v5179
  %v5184 = vadd.f32 %v5153, %v5180
  %v5185 = vadd.f32 %v5154, %v5181
  %v5186 = vlaneseq
  %v5187 = vshrl.u32 %v5186, 7
  %v5188 = vsub.s32 2, %v5187
  %v5189 = vrot.slane %v4161, %v5188
  %5191 = vbcast.lane.b32.xlu0 %v5189, 256
  %v5192 = vpop.permute.xlu0 %5191
  %v5193 = vlaneseq
  %v5194 = vshrl.u32 %v5193, 7
  %v5195 = vsub.s32 2, %v5194
  %v5196 = vrot.slane %v5120, %v5195
  %v5197 = vlaneseq
  %v5198 = vshrl.u32 %v5197, 7
  %v5199 = vsub.s32 2, %v5198
  %v5200 = vrot.slane %v5121, %v5199
  %v5201 = vlaneseq
  %v5202 = vshrl.u32 %v5201, 7
  %v5203 = vsub.s32 2, %v5202
  %v5204 = vrot.slane %v5122, %v5203
  %v5205 = vlaneseq
  %v5206 = vshrl.u32 %v5205, 7
  %v5207 = vsub.s32 2, %v5206
  %v5208 = vrot.slane %v5123, %v5207
  %v5209 = vmul.f32 %v5192, %v5196
  %v5210 = vmul.f32 %v5192, %v5200
  %v5211 = vmul.f32 %v5192, %v5204
  %v5212 = vmul.f32 %v5192, %v5208
  %v5213 = vadd.f32 %v5182, %v5209
  %v5214 = vadd.f32 %v5183, %v5210
  %v5215 = vadd.f32 %v5184, %v5211
  %v5216 = vadd.f32 %v5185, %v5212
  %v5217 = vlaneseq
  %v5218 = vshrl.u32 %v5217, 7
  %v5219 = vsub.s32 3, %v5218
  %v5220 = vrot.slane %v4161, %v5219
  %5222 = vbcast.lane.b32.xlu0 %v5220, 256
  %v5223 = vpop.permute.xlu0 %5222
  %v5224 = vlaneseq
  %v5225 = vshrl.u32 %v5224, 7
  %v5226 = vsub.s32 3, %v5225
  %v5227 = vrot.slane %v5120, %v5226
  %v5228 = vlaneseq
  %v5229 = vshrl.u32 %v5228, 7
  %v5230 = vsub.s32 3, %v5229
  %v5231 = vrot.slane %v5121, %v5230
  %v5232 = vlaneseq
  %v5233 = vshrl.u32 %v5232, 7
  %v5234 = vsub.s32 3, %v5233
  %v5235 = vrot.slane %v5122, %v5234
  %v5236 = vlaneseq
  %v5237 = vshrl.u32 %v5236, 7
  %v5238 = vsub.s32 3, %v5237
  %v5239 = vrot.slane %v5123, %v5238
  %v5240 = vmul.f32 %v5223, %v5227
  %v5241 = vmul.f32 %v5223, %v5231
  %v5242 = vmul.f32 %v5223, %v5235
  %v5243 = vmul.f32 %v5223, %v5239
  %v5244 = vadd.f32 %v5213, %v5240
  %v5245 = vadd.f32 %v5214, %v5241
  %v5246 = vadd.f32 %v5215, %v5242
  %v5247 = vadd.f32 %v5216, %v5243
  %5248 = vrot.lane.b32.xlu0 %v47, 112
  %v5249 = vpop.permute.xlu0 %5248
  %5250 = vrot.lane.b32.xlu0 %v61, 112
  %v5251 = vpop.permute.xlu0 %5250
  %5252 = vrot.lane.b32.xlu0 %v48, 112
  %v5253 = vpop.permute.xlu0 %5252
  %5254 = vrot.lane.b32.xlu0 %v62, 112
  %v5255 = vpop.permute.xlu0 %5254
  %v5256 = vsel %vm1369, %v5249, %v5251
  %v5257 = vsel %vm1369, %v5251, %v5253
  %v5258 = vsel %vm1369, %v5253, %v5255
  %v5264 = vsel %vm1369, %v5255, %v5249
  %v5265 = vmul.f32 %v5256, %v1382
  %v5266 = vmul.f32 %v5257, %v1386
  %v5267 = vmul.f32 %v5258, %v1390
  %v5268 = vmul.f32 %v5264, %v1394
  %v5269 = vlaneseq
  %v5270 = vshrl.u32 %v5269, 7
  %v5271 = vsub.s32 4, %v5270
  %v5272 = vrot.slane %v4161, %v5271
  %5274 = vbcast.lane.b32.xlu0 %v5272, 256
  %v5275 = vpop.permute.xlu0 %5274
  %v5276 = vlaneseq
  %v5277 = vshrl.u32 %v5276, 7
  %v5278 = vsub.s32 0, %v5277
  %v5279 = vrot.slane %v5265, %v5278
  %v5280 = vlaneseq
  %v5281 = vshrl.u32 %v5280, 7
  %v5282 = vsub.s32 0, %v5281
  %v5283 = vrot.slane %v5266, %v5282
  %v5284 = vlaneseq
  %v5285 = vshrl.u32 %v5284, 7
  %v5286 = vsub.s32 0, %v5285
  %v5287 = vrot.slane %v5267, %v5286
  %v5288 = vlaneseq
  %v5289 = vshrl.u32 %v5288, 7
  %v5290 = vsub.s32 0, %v5289
  %v5291 = vrot.slane %v5268, %v5290
  %v5292 = vmul.f32 %v5275, %v5279
  %v5293 = vmul.f32 %v5275, %v5283
  %v5294 = vmul.f32 %v5275, %v5287
  %v5295 = vmul.f32 %v5275, %v5291
  %v5296 = vadd.f32 %v5244, %v5292
  %v5297 = vadd.f32 %v5245, %v5293
  %v5298 = vadd.f32 %v5246, %v5294
  %v5299 = vadd.f32 %v5247, %v5295
  %v5300 = vlaneseq
  %v5301 = vshrl.u32 %v5300, 7
  %v5302 = vsub.s32 5, %v5301
  %v5303 = vrot.slane %v4161, %v5302
  %5305 = vbcast.lane.b32.xlu0 %v5303, 256
  %v5306 = vpop.permute.xlu0 %5305
  %v5307 = vlaneseq
  %v5308 = vshrl.u32 %v5307, 7
  %v5309 = vsub.s32 1, %v5308
  %v5310 = vrot.slane %v5265, %v5309
  %v5311 = vlaneseq
  %v5312 = vshrl.u32 %v5311, 7
  %v5313 = vsub.s32 1, %v5312
  %v5314 = vrot.slane %v5266, %v5313
  %v5315 = vlaneseq
  %v5316 = vshrl.u32 %v5315, 7
  %v5317 = vsub.s32 1, %v5316
  %v5318 = vrot.slane %v5267, %v5317
  %v5319 = vlaneseq
  %v5320 = vshrl.u32 %v5319, 7
  %v5321 = vsub.s32 1, %v5320
  %v5322 = vrot.slane %v5268, %v5321
  %v5323 = vmul.f32 %v5306, %v5310
  %v5324 = vmul.f32 %v5306, %v5314
  %v5325 = vmul.f32 %v5306, %v5318
  %v5326 = vmul.f32 %v5306, %v5322
  %v5327 = vadd.f32 %v5296, %v5323
  %v5328 = vadd.f32 %v5297, %v5324
  %v5329 = vadd.f32 %v5298, %v5325
  %v5330 = vadd.f32 %v5299, %v5326
  %v5331 = vlaneseq
  %v5332 = vshrl.u32 %v5331, 7
  %v5333 = vsub.s32 6, %v5332
  %v5334 = vrot.slane %v4161, %v5333
  %5336 = vbcast.lane.b32.xlu0 %v5334, 256
  %v5337 = vpop.permute.xlu0 %5336
  %v5338 = vlaneseq
  %v5339 = vshrl.u32 %v5338, 7
  %v5340 = vsub.s32 2, %v5339
  %v5341 = vrot.slane %v5265, %v5340
  %v5342 = vlaneseq
  %v5343 = vshrl.u32 %v5342, 7
  %v5344 = vsub.s32 2, %v5343
  %v5345 = vrot.slane %v5266, %v5344
  %v5346 = vlaneseq
  %v5347 = vshrl.u32 %v5346, 7
  %v5348 = vsub.s32 2, %v5347
  %v5349 = vrot.slane %v5267, %v5348
  %v5350 = vlaneseq
  %v5351 = vshrl.u32 %v5350, 7
  %v5352 = vsub.s32 2, %v5351
  %v5353 = vrot.slane %v5268, %v5352
  %v5354 = vmul.f32 %v5337, %v5341
  %v5355 = vmul.f32 %v5337, %v5345
  %v5356 = vmul.f32 %v5337, %v5349
  %v5357 = vmul.f32 %v5337, %v5353
  %v5358 = vadd.f32 %v5327, %v5354
  %v5359 = vadd.f32 %v5328, %v5355
  %v5360 = vadd.f32 %v5329, %v5356
  %v5361 = vadd.f32 %v5330, %v5357
  %v5362 = vlaneseq
  %v5363 = vshrl.u32 %v5362, 7
  %v5364 = vsub.s32 7, %v5363
  %v5365 = vrot.slane %v4161, %v5364
  %5367 = vbcast.lane.b32.xlu0 %v5365, 256
  %v5368 = vpop.permute.xlu0 %5367
  %v5369 = vlaneseq
  %v5370 = vshrl.u32 %v5369, 7
  %v5371 = vsub.s32 3, %v5370
  %v5372 = vrot.slane %v5265, %v5371
  %v5373 = vlaneseq
  %v5374 = vshrl.u32 %v5373, 7
  %v5375 = vsub.s32 3, %v5374
  %v5376 = vrot.slane %v5266, %v5375
  %v5377 = vlaneseq
  %v5378 = vshrl.u32 %v5377, 7
  %v5379 = vsub.s32 3, %v5378
  %v5380 = vrot.slane %v5267, %v5379
  %v5381 = vlaneseq
  %v5382 = vshrl.u32 %v5381, 7
  %v5383 = vsub.s32 3, %v5382
  %v5384 = vrot.slane %v5268, %v5383
  %v5385 = vmul.f32 %v5368, %v5372
  %v5386 = vmul.f32 %v5368, %v5376
  %v5387 = vmul.f32 %v5368, %v5380
  %v5388 = vmul.f32 %v5368, %v5384
  %v5389 = vadd.f32 %v5358, %v5385
  %v5390 = vadd.f32 %v5359, %v5386
  %v5391 = vadd.f32 %v5360, %v5387
  %v5392 = vadd.f32 %v5361, %v5388
  %5393 = vrot.lane.b32.xlu0 %v47, 111
  %v5394 = vpop.permute.xlu0 %5393
  %5395 = vrot.lane.b32.xlu0 %v61, 111
  %v5396 = vpop.permute.xlu0 %5395
  %5397 = vrot.lane.b32.xlu0 %v48, 111
  %v5398 = vpop.permute.xlu0 %5397
  %5399 = vrot.lane.b32.xlu0 %v62, 111
  %v5400 = vpop.permute.xlu0 %5399
  %v5401 = vsel %vm1531, %v5394, %v5396
  %v5402 = vsel %vm1531, %v5396, %v5398
  %v5403 = vsel %vm1531, %v5398, %v5400
  %v5409 = vsel %vm1531, %v5400, %v5394
  %v5410 = vmul.f32 %v5401, %v1544
  %v5411 = vmul.f32 %v5402, %v1548
  %v5412 = vmul.f32 %v5403, %v1552
  %v5413 = vmul.f32 %v5409, %v1556
  %v5414 = vlaneseq
  %v5415 = vshrl.u32 %v5414, 7
  %v5416 = vsub.s32 0, %v5415
  %v5417 = vrot.slane %v4162, %v5416
  %5419 = vbcast.lane.b32.xlu0 %v5417, 256
  %v5420 = vpop.permute.xlu0 %5419
  %v5421 = vlaneseq
  %v5422 = vshrl.u32 %v5421, 7
  %v5423 = vsub.s32 0, %v5422
  %v5424 = vrot.slane %v5410, %v5423
  %v5425 = vlaneseq
  %v5426 = vshrl.u32 %v5425, 7
  %v5427 = vsub.s32 0, %v5426
  %v5428 = vrot.slane %v5411, %v5427
  %v5429 = vlaneseq
  %v5430 = vshrl.u32 %v5429, 7
  %v5431 = vsub.s32 0, %v5430
  %v5432 = vrot.slane %v5412, %v5431
  %v5433 = vlaneseq
  %v5434 = vshrl.u32 %v5433, 7
  %v5435 = vsub.s32 0, %v5434
  %v5436 = vrot.slane %v5413, %v5435
  %v5437 = vmul.f32 %v5420, %v5424
  %v5438 = vmul.f32 %v5420, %v5428
  %v5439 = vmul.f32 %v5420, %v5432
  %v5440 = vmul.f32 %v5420, %v5436
  %v5441 = vadd.f32 %v5389, %v5437
  %v5442 = vadd.f32 %v5390, %v5438
  %v5443 = vadd.f32 %v5391, %v5439
  %v5444 = vadd.f32 %v5392, %v5440
  %v5445 = vlaneseq
  %v5446 = vshrl.u32 %v5445, 7
  %v5447 = vsub.s32 1, %v5446
  %v5448 = vrot.slane %v4162, %v5447
  %5450 = vbcast.lane.b32.xlu0 %v5448, 256
  %v5451 = vpop.permute.xlu0 %5450
  %v5452 = vlaneseq
  %v5453 = vshrl.u32 %v5452, 7
  %v5454 = vsub.s32 1, %v5453
  %v5455 = vrot.slane %v5410, %v5454
  %v5456 = vlaneseq
  %v5457 = vshrl.u32 %v5456, 7
  %v5458 = vsub.s32 1, %v5457
  %v5459 = vrot.slane %v5411, %v5458
  %v5460 = vlaneseq
  %v5461 = vshrl.u32 %v5460, 7
  %v5462 = vsub.s32 1, %v5461
  %v5463 = vrot.slane %v5412, %v5462
  %v5464 = vlaneseq
  %v5465 = vshrl.u32 %v5464, 7
  %v5466 = vsub.s32 1, %v5465
  %v5467 = vrot.slane %v5413, %v5466
  %v5468 = vmul.f32 %v5451, %v5455
  %v5469 = vmul.f32 %v5451, %v5459
  %v5470 = vmul.f32 %v5451, %v5463
  %v5471 = vmul.f32 %v5451, %v5467
  %v5472 = vadd.f32 %v5441, %v5468
  %v5473 = vadd.f32 %v5442, %v5469
  %v5474 = vadd.f32 %v5443, %v5470
  %v5475 = vadd.f32 %v5444, %v5471
  %v5476 = vlaneseq
  %v5477 = vshrl.u32 %v5476, 7
  %v5478 = vsub.s32 2, %v5477
  %v5479 = vrot.slane %v4162, %v5478
  %5481 = vbcast.lane.b32.xlu0 %v5479, 256
  %v5482 = vpop.permute.xlu0 %5481
  %v5483 = vlaneseq
  %v5484 = vshrl.u32 %v5483, 7
  %v5485 = vsub.s32 2, %v5484
  %v5486 = vrot.slane %v5410, %v5485
  %v5487 = vlaneseq
  %v5488 = vshrl.u32 %v5487, 7
  %v5489 = vsub.s32 2, %v5488
  %v5490 = vrot.slane %v5411, %v5489
  %v5491 = vlaneseq
  %v5492 = vshrl.u32 %v5491, 7
  %v5493 = vsub.s32 2, %v5492
  %v5494 = vrot.slane %v5412, %v5493
  %v5495 = vlaneseq
  %v5496 = vshrl.u32 %v5495, 7
  %v5497 = vsub.s32 2, %v5496
  %v5498 = vrot.slane %v5413, %v5497
  %v5499 = vmul.f32 %v5482, %v5486
  %v5500 = vmul.f32 %v5482, %v5490
  %v5501 = vmul.f32 %v5482, %v5494
  %v5502 = vmul.f32 %v5482, %v5498
  %v5503 = vadd.f32 %v5472, %v5499
  %v5504 = vadd.f32 %v5473, %v5500
  %v5505 = vadd.f32 %v5474, %v5501
  %v5506 = vadd.f32 %v5475, %v5502
  %v5507 = vlaneseq
  %v5508 = vshrl.u32 %v5507, 7
  %v5509 = vsub.s32 3, %v5508
  %v5510 = vrot.slane %v4162, %v5509
  %5512 = vbcast.lane.b32.xlu0 %v5510, 256
  %v5513 = vpop.permute.xlu0 %5512
  %v5514 = vlaneseq
  %v5515 = vshrl.u32 %v5514, 7
  %v5516 = vsub.s32 3, %v5515
  %v5517 = vrot.slane %v5410, %v5516
  %v5518 = vlaneseq
  %v5519 = vshrl.u32 %v5518, 7
  %v5520 = vsub.s32 3, %v5519
  %v5521 = vrot.slane %v5411, %v5520
  %v5522 = vlaneseq
  %v5523 = vshrl.u32 %v5522, 7
  %v5524 = vsub.s32 3, %v5523
  %v5525 = vrot.slane %v5412, %v5524
  %v5526 = vlaneseq
  %v5527 = vshrl.u32 %v5526, 7
  %v5528 = vsub.s32 3, %v5527
  %v5529 = vrot.slane %v5413, %v5528
  %v5530 = vmul.f32 %v5513, %v5517
  %v5531 = vmul.f32 %v5513, %v5521
  %v5532 = vmul.f32 %v5513, %v5525
  %v5533 = vmul.f32 %v5513, %v5529
  %v5534 = vadd.f32 %v5503, %v5530
  %v5535 = vadd.f32 %v5504, %v5531
  %v5536 = vadd.f32 %v5505, %v5532
  %v5537 = vadd.f32 %v5506, %v5533
  %v5538 = vld [vmem:[%s12] sm:$0xff]
  %v5539 = vld [vmem:[%s13] sm:$0xff]
  %v5540 = vadd.f32 %v5534, %v5535
  %v5541 = vadd.f32 %v5540, %v5536
  %v5542 = vadd.f32 %v5541, %v5537
  %5543 = vadd.xlane.f32.xlu0 %v5542
  %v5544 = vpop.xlane.xlu0 %5543
  %v5545 = vmul.f32 %v5544, %v75
  %v5546 = vsub.f32 %v5534, %v5545
  %v5547 = vsub.f32 %v5535, %v5545
  %v5548 = vsub.f32 %v5536, %v5545
  %v5549 = vsub.f32 %v5537, %v5545
  %v5550 = vmul.f32 %v5546, %v5546
  %v5551 = vmul.f32 %v5547, %v5547
  %v5552 = vmul.f32 %v5548, %v5548
  %v5553 = vmul.f32 %v5549, %v5549
  %v5554 = vadd.f32 %v5550, %v5551
  %v5555 = vadd.f32 %v5554, %v5552
  %v5556 = vadd.f32 %v5555, %v5553
  %5557 = vadd.xlane.f32.xlu0 %v5556
  %v5558 = vpop.xlane.xlu0 %5557
  %v5559 = vmul.f32 %v5558, %v75
  %v5560 = vadd.f32 %v5559, 1e-05
  %v5561 = vrsqrt.pop %v5560
  %v5562 = vmul.f32 %v5538, %v5561
  %v5563 = vmul.f32 %v5545, %v5562
  %v5564 = vsub.f32 %v5539, %v5563
  %5566 = vset.pattern.permute.xlu0 0
  %5567 = vperm.xlu0 %5566, %v5562
  %v5568 = vpop.permute.xlu0 %5567
  %v5570 = vmul.f32 %v5534, %v5568
  %v5571 = vmul.f32 %v5535, %v5568
  %v5572 = vmul.f32 %v5536, %v5568
  %v5573 = vmul.f32 %v5537, %v5568
  %v5574 = vadd.f32 %v4154, %v5570
  %v5575 = vadd.f32 %v4155, %v5571
  %v5576 = vadd.f32 %v4156, %v5572
  %v5577 = vadd.f32 %v4157, %v5573
  %5579 = vset.pattern.permute.xlu0 0
  %5580 = vperm.xlu0 %5579, %v5564
  %v5581 = vpop.permute.xlu0 %5580
  %v5583 = vadd.f32 %v5574, %v5581
  %v5584 = vadd.f32 %v5575, %v5581
  %v5585 = vadd.f32 %v5576, %v5581
  %v5586 = vadd.f32 %v5577, %v5581
  %5587 = vst [vmem:[%s14] sm:$0xff] %v5583
  %5588 = vst [vmem:[%s14 + $0x8] sm:$0xff] %v5584
  %5589 = vst [vmem:[%s14 + $0x10] sm:$0xff] %v5585
  %5590 = vst [vmem:[%s14 + $0x18] sm:$0xff] %v5586
  // Predicated region
  $region58: #{residual_conv_forward.1} parent=0 // pred_check
    _
  $region59: #{residual_conv_forward.1} parent=0 // pred_check_branch
    %5592 = sbr.rel (0) target = $region61
  $region60: #{residual_conv_forward.1} parent=0 // pred_region
    _
  $region61: #{residual_conv_forward.1} parent=0 // pred_fallthru
    _
  // Predicated region
  $region62: #{residual_conv_forward.1} parent=0 // pred_check
    _
  $region63: #{residual_conv_forward.1} parent=0 // pred_check_branch
    %5594 = sbr.rel (0) target = $region65
  $region64: #{residual_conv_forward.1} parent=0 // pred_region
    _
  $region65: #{residual_conv_forward.1} parent=0 // pred_fallthru
    _

</llo_original>
